<compile_context>
chip_gen: v6e
topology: v6e:2x2x1
jax: 0.10.0
libtpu: 0.0.40
codegen_flags: <defaults>
</compile_context>

<pallas_src>
import functools
import math

import jax
import jax.numpy as jnp
from jax.experimental import pallas as pl
from jax.experimental.pallas import tpu as pltpu

_VMEM_LIMIT = 32 * 1024 * 1024
_VMEM_FULL = pl.BlockSpec(memory_space=pltpu.MemorySpace.VMEM)


# ----------------------------- helpers -----------------------------

def _gelu(x):
    # tanh-approximate GELU.
    # TODO(synk): HF HuBERT uses exact erf GELU; tanh approx deviates by <1e-3.
    c = math.sqrt(2.0 / math.pi)
    return 0.5 * x * (1.0 + jnp.tanh(c * (x + 0.044715 * x * x * x)))


def _tile_m(m, cap=512):
    # Full dim if it fits (always legal), else a multiple-of-8 cap with masked boundary.
    return m if m <= cap else cap


def _tile_n(n, cap=512):
    return n if n <= cap else 256


def _tile_k(k):
    if k <= 2048:
        return k
    return 512 if k % 512 == 0 else k


# ----------------------------- Pallas kernels -----------------------------

def _wave_norm_kernel(x_ref, o_ref):
    # Wav2Vec2FeatureExtractor zero_mean_unit_var_norm per utterance.
    x = x_ref[...].astype(jnp.float32)
    mean = jnp.mean(x, axis=-1, keepdims=True)
    var = jnp.mean((x - mean) ** 2, axis=-1, keepdims=True)
    o_ref[...] = ((x - mean) * jax.lax.rsqrt(var + 1e-7)).astype(o_ref.dtype)


def _linear_kernel(x_ref, w_ref, b_ref, o_ref, acc_ref, *, activation):
    # Tiled matmul with K-axis accumulator; bf16 MXU operands, f32 accumulation.
    k = pl.program_id(2)

    @pl.when(k == 0)
    def _():
        acc_ref[...] = jnp.zeros_like(acc_ref)

    acc_ref[...] += jnp.dot(x_ref[...].astype(jnp.bfloat16),
                            w_ref[...].astype(jnp.bfloat16),
                            preferred_element_type=jnp.float32)

    @pl.when(k == pl.num_programs(2) - 1)
    def _():
        y = acc_ref[...] + b_ref[...].astype(jnp.float32)
        if activation == "gelu":
            y = _gelu(y)
        o_ref[...] = y.astype(o_ref.dtype)


def _linear_res_ln_kernel(x_ref, w_ref, b_ref, r_ref, g_ref, beta_ref,
                          o_ref, acc_ref, *, eps):
    # Matmul + bias + residual add + LayerNorm fused in the epilogue.
    k = pl.program_id(1)

    @pl.when(k == 0)
    def _():
        acc_ref[...] = jnp.zeros_like(acc_ref)

    acc_ref[...] += jnp.dot(x_ref[...].astype(jnp.bfloat16),
                            w_ref[...].astype(jnp.bfloat16),
                            preferred_element_type=jnp.float32)

    @pl.when(k == pl.num_programs(1) - 1)
    def _():
        y = acc_ref[...] + b_ref[...].astype(jnp.float32) + r_ref[...].astype(jnp.float32)
        mean = jnp.mean(y, axis=-1, keepdims=True)
        var = jnp.mean((y - mean) ** 2, axis=-1, keepdims=True)
        y = (y - mean) * jax.lax.rsqrt(var + eps)
        o_ref[...] = (y * g_ref[...] + beta_ref[...]).astype(o_ref.dtype)


def _ln_linear_kernel(x_ref, g_ref, beta_ref, w_ref, b_ref, o_ref, *, eps):
    # LayerNorm fused into the prologue of the feature-projection matmul.
    x = x_ref[...].astype(jnp.float32)
    mean = jnp.mean(x, axis=-1, keepdims=True)
    var = jnp.mean((x - mean) ** 2, axis=-1, keepdims=True)
    xn = (x - mean) * jax.lax.rsqrt(var + eps)
    xn = xn * g_ref[...] + beta_ref[...]
    y = jnp.dot(xn.astype(jnp.bfloat16), w_ref[...].astype(jnp.bfloat16),
                preferred_element_type=jnp.float32) + b_ref[...].astype(jnp.float32)
    o_ref[...] = y.astype(o_ref.dtype)


def _conv_kernel(x_ref, w_ref, b_ref, *rest, taps, t_out, activation, gn_eps):
    # One batch per grid step.  x_ref: (T_r, stride*C_in) stride-grouped input,
    # w_ref: (taps, stride*C_in, C_out).  Overlap handled by shifted VMEM slices
    # (no im2col materialization in HBM).  Optionally fuses GroupNorm(+GELU).
    if gn_eps is not None:
        gn_g_ref, gn_b_ref, o_ref = rest
    else:
        (o_ref,) = rest
    acc = jnp.zeros(o_ref.shape, jnp.float32)
    for r in range(taps):
        xs = x_ref[pl.ds(r, t_out), :].astype(jnp.bfloat16)
        acc = acc + jnp.dot(xs, w_ref[r].astype(jnp.bfloat16),
                            preferred_element_type=jnp.float32)
    y = acc + b_ref[...].astype(jnp.float32)
    if gn_eps is not None:
        # GroupNorm with num_groups == num_channels: per-channel stats over time.
        mean = jnp.mean(y, axis=0, keepdims=True)
        var = jnp.mean((y - mean) ** 2, axis=0, keepdims=True)
        y = (y - mean) * jax.lax.rsqrt(var + gn_eps)
        y = y * gn_g_ref[...].astype(jnp.float32) + gn_b_ref[...].astype(jnp.float32)
    if activation == "gelu":
        y = _gelu(y)
    o_ref[...] = y.astype(o_ref.dtype)


def _pos_conv_res_ln_kernel(xp_ref, w_ref, b_ref, g_ref, beta_ref, o_ref,
                            *, ksize, pad, eps):
    # Positional grouped conv (as block-diagonal dense weight) + SamePad trim + GELU
    # + residual + encoder LayerNorm, all fused, one batch per grid step.
    t_len, hdim = o_ref.shape
    acc = jnp.zeros((t_len, hdim), jnp.float32)
    for k in range(ksize):
        xs = xp_ref[pl.ds(k, t_len), :].astype(jnp.bfloat16)
        acc = acc + jnp.dot(xs, w_ref[k].astype(jnp.bfloat16),
                            preferred_element_type=jnp.float32)
    pos = _gelu(acc + b_ref[...].astype(jnp.float32))
    h = xp_ref[pl.ds(pad, t_len), :].astype(jnp.float32) + pos
    mean = jnp.mean(h, axis=-1, keepdims=True)
    var = jnp.mean((h - mean) ** 2, axis=-1, keepdims=True)
    h = (h - mean) * jax.lax.rsqrt(var + eps)
    o_ref[...] = (h * g_ref[...] + beta_ref[...]).astype(o_ref.dtype)


def _attention_kernel(qkv_ref, o_ref, *, num_heads, scale):
    # One batch per grid step; all heads stay inside the kernel (lane-dense (T, H) output).
    t_len, hdim = o_ref.shape
    dh = hdim // num_heads
    qkv = qkv_ref[...].astype(jnp.float32)
    q = qkv[:, :hdim] * scale
    k = qkv[:, hdim:2 * hdim]
    v = qkv[:, 2 * hdim:]
    outs = []
    for h in range(num_heads):
        sl = slice(h * dh, (h + 1) * dh)
        s = jax.lax.dot_general(q[:, sl].astype(jnp.bfloat16),
                                k[:, sl].astype(jnp.bfloat16),
                                (((1,), (1,)), ((), ())),
                                preferred_element_type=jnp.float32)       # (T, T)
        s = s - jnp.max(s, axis=-1, keepdims=True)
        p = jnp.exp(s)
        p = p * pl.reciprocal(jnp.sum(p, axis=-1, keepdims=True), approx=True)
        outs.append(jnp.dot(p.astype(jnp.bfloat16), v[:, sl].astype(jnp.bfloat16),
                            preferred_element_type=jnp.float32))
    o_ref[...] = jnp.concatenate(outs, axis=-1).astype(o_ref.dtype)


# ----------------------------- kernel wrappers -----------------------------

def wave_normalize(x):
    # (B, L) per-utterance normalization; whole array easily fits VMEM.
    return pl.pallas_call(
        _wave_norm_kernel,
        out_shape=jax.ShapeDtypeStruct(x.shape, x.dtype),
        in_specs=[_VMEM_FULL],
        out_specs=_VMEM_FULL,
        compiler_params=pltpu.CompilerParams(vmem_limit_bytes=_VMEM_LIMIT),
    )(x)


def linear(x, w, b, activation=None):
    # x: (M, K), w: (K, N), b: (N,)
    M, K = x.shape
    N = w.shape[1]
    tm, tn, tk = _tile_m(M), _tile_n(N), _tile_k(K)
    grid = (pl.cdiv(M, tm), pl.cdiv(N, tn), pl.cdiv(K, tk))
    return pl.pallas_call(
        functools.partial(_linear_kernel, activation=activation),
        out_shape=jax.ShapeDtypeStruct((M, N), x.dtype),
        grid=grid,
        in_specs=[
            pl.BlockSpec((tm, tk), lambda i, j, k: (i, k)),
            pl.BlockSpec((tk, tn), lambda i, j, k: (k, j)),
            pl.BlockSpec((1, tn), lambda i, j, k: (0, j)),
        ],
        out_specs=pl.BlockSpec((tm, tn), lambda i, j, k: (i, j)),
        scratch_shapes=[pltpu.VMEM((tm, tn), jnp.float32)],
        compiler_params=pltpu.CompilerParams(
            dimension_semantics=("parallel", "parallel", "arbitrary"),
            vmem_limit_bytes=_VMEM_LIMIT),
    )(x, w, b.reshape(1, N))


def linear_residual_layernorm(x, w, b, res, g, beta, eps=1e-5):
    # (x @ w + b + res) -> LayerNorm(g, beta).  N kept whole (needed for LN).
    M, K = x.shape
    N = w.shape[1]
    tm, tk = _tile_m(M), _tile_k(K)
    grid = (pl.cdiv(M, tm), pl.cdiv(K, tk))
    return pl.pallas_call(
        functools.partial(_linear_res_ln_kernel, eps=eps),
        out_shape=jax.ShapeDtypeStruct((M, N), x.dtype),
        grid=grid,
        in_specs=[
            pl.BlockSpec((tm, tk), lambda i, k: (i, k)),
            pl.BlockSpec((tk, N), lambda i, k: (k, 0)),
            pl.BlockSpec((1, N), lambda i, k: (0, 0)),
            pl.BlockSpec((tm, N), lambda i, k: (i, 0)),
            pl.BlockSpec((1, N), lambda i, k: (0, 0)),
            pl.BlockSpec((1, N), lambda i, k: (0, 0)),
        ],
        out_specs=pl.BlockSpec((tm, N), lambda i, k: (i, 0)),
        scratch_shapes=[pltpu.VMEM((tm, N), jnp.float32)],
        compiler_params=pltpu.CompilerParams(
            dimension_semantics=("parallel", "arbitrary"),
            vmem_limit_bytes=_VMEM_LIMIT),
    )(x, w, b.reshape(1, N), res, g.reshape(1, N), beta.reshape(1, N))


def layernorm_linear(x, g, beta, w, b, eps=1e-5):
    # LayerNorm(x) @ w + b, LN fused into the matmul prologue.  K kept whole.
    M, K = x.shape
    N = w.shape[1]
    tm = _tile_m(M)
    grid = (pl.cdiv(M, tm),)
    return pl.pallas_call(
        functools.partial(_ln_linear_kernel, eps=eps),
        out_shape=jax.ShapeDtypeStruct((M, N), x.dtype),
        grid=grid,
        in_specs=[
            pl.BlockSpec((tm, K), lambda i: (i, 0)),
            pl.BlockSpec((1, K), lambda i: (0, 0)),
            pl.BlockSpec((1, K), lambda i: (0, 0)),
            pl.BlockSpec((K, N), lambda i: (0, 0)),
            pl.BlockSpec((1, N), lambda i: (0, 0)),
        ],
        out_specs=pl.BlockSpec((tm, N), lambda i: (i, 0)),
        compiler_params=pltpu.CompilerParams(
            dimension_semantics=("parallel",),
            vmem_limit_bytes=_VMEM_LIMIT),
    )(x, g.reshape(1, K), beta.reshape(1, K), w, b.reshape(1, N))


def conv1d_fused(x, w, b, kernel_size, stride, activation=None, gn_params=None, eps=1e-5):
    # x: (B, T, C_in) channels-last; w: (kernel_size*C_in, C_out) flattened (k, c) major.
    # Strided valid conv implemented by regrouping x into (T_r, stride*C_in) rows (1x HBM
    # traffic) and accumulating `taps` shifted matmuls inside a per-batch kernel.
    B, T, C = x.shape
    C_out = w.shape[1]
    t_out = (T - kernel_size) // stride + 1
    taps = (kernel_size - 1) // stride + 1
    t_r = t_out + taps - 1
    l_need = t_r * stride
    if T >= l_need:
        xr = x[:, :l_need, :]
    else:
        # Zero padding is safe: padded positions only ever hit zero-padded weight taps.
        xr = jnp.pad(x, ((0, 0), (0, l_need - T), (0, 0)))
    xr = xr.reshape(B, t_r, stride * C)
    pad_rows = taps * stride * C - w.shape[0]
    wr = jnp.pad(w, ((0, pad_rows), (0, 0))).reshape(taps, stride * C, C_out)

    in_specs = [
        pl.BlockSpec((None, t_r, stride * C), lambda bi: (bi, 0, 0)),
        pl.BlockSpec((taps, stride * C, C_out), lambda bi: (0, 0, 0)),
        pl.BlockSpec((1, C_out), lambda bi: (0, 0)),
    ]
    args = [xr, wr, b.reshape(1, C_out)]
    gn_eps = None
    if gn_params is not None:
        gn_g, gn_b = gn_params
        in_specs += [pl.BlockSpec((1, C_out), lambda bi: (0, 0)),
                     pl.BlockSpec((1, C_out), lambda bi: (0, 0))]
        args += [gn_g.reshape(1, C_out), gn_b.reshape(1, C_out)]
        gn_eps = eps

    return pl.pallas_call(
        functools.partial(_conv_kernel, taps=taps, t_out=t_out,
                          activation=activation, gn_eps=gn_eps),
        out_shape=jax.ShapeDtypeStruct((B, t_out, C_out), x.dtype),
        grid=(B,),
        in_specs=in_specs,
        out_specs=pl.BlockSpec((None, t_out, C_out), lambda bi: (bi, 0, 0)),
        compiler_params=pltpu.CompilerParams(
            dimension_semantics=("parallel",),
            vmem_limit_bytes=_VMEM_LIMIT),
    )(*args)


def pos_conv_residual_layernorm(h, w_groups, b_groups, kernel_size, groups,
                                ln_g, ln_b, eps=1e-5):
    # Grouped positional conv (padding=K//2, even-K trim), GELU, residual, LayerNorm
    # fused into one per-batch kernel with a lane-dense (T, H) output.
    B, T, H = h.shape
    cg = H // groups
    pad = kernel_size // 2
    hp = jnp.pad(h, ((0, 0), (pad, pad), (0, 0)))
    # Block-diagonal dense weight (K, H, H).
    # TODO(synk): at full 768-dim/16-group scale keep the conv grouped instead of dense.
    wd = jnp.zeros((kernel_size, H, H), h.dtype)
    for g in range(groups):
        wg = w_groups[g].reshape(kernel_size, cg, cg)
        wd = wd.at[:, g * cg:(g + 1) * cg, g * cg:(g + 1) * cg].set(wg)
    bd = jnp.concatenate(b_groups, axis=0)
    t_pad = T + 2 * pad
    return pl.pallas_call(
        functools.partial(_pos_conv_res_ln_kernel, ksize=kernel_size, pad=pad, eps=eps),
        out_shape=jax.ShapeDtypeStruct((B, T, H), h.dtype),
        grid=(B,),
        in_specs=[
            pl.BlockSpec((None, t_pad, H), lambda bi: (bi, 0, 0)),
            pl.BlockSpec((kernel_size, H, H), lambda bi: (0, 0, 0)),
            pl.BlockSpec((1, H), lambda bi: (0, 0)),
            pl.BlockSpec((1, H), lambda bi: (0, 0)),
            pl.BlockSpec((1, H), lambda bi: (0, 0)),
        ],
        out_specs=pl.BlockSpec((None, T, H), lambda bi: (bi, 0, 0)),
        compiler_params=pltpu.CompilerParams(
            dimension_semantics=("parallel",),
            vmem_limit_bytes=_VMEM_LIMIT),
    )(hp, wd, bd.reshape(1, H), ln_g.reshape(1, H), ln_b.reshape(1, H))


def multi_head_attention(qkv, num_heads):
    # qkv: (B, T, 3H) from a single fused QKV projection.
    B, T, H3 = qkv.shape
    H = H3 // 3
    scale = 1.0 / math.sqrt(H // num_heads)
    return pl.pallas_call(
        functools.partial(_attention_kernel, num_heads=num_heads, scale=scale),
        out_shape=jax.ShapeDtypeStruct((B, T, H), qkv.dtype),
        grid=(B,),
        in_specs=[pl.BlockSpec((None, T, H3), lambda b: (b, 0, 0))],
        out_specs=pl.BlockSpec((None, T, H), lambda b: (b, 0, 0)),
        compiler_params=pltpu.CompilerParams(
            dimension_semantics=("parallel",),
            vmem_limit_bytes=_VMEM_LIMIT),
    )(qkv)


# ----------------------------- model -----------------------------

class HubertConfig:
    conv_dim = (32, 32, 32)
    conv_kernel = (10, 3, 3)
    conv_stride = (5, 2, 2)
    hidden_size = 32
    num_heads = 4
    intermediate_size = 64
    num_layers = 2
    pos_conv_kernel = 4
    pos_conv_groups = 4
    layer_norm_eps = 1e-5


def init_params(key, cfg):
    kit = iter(jax.random.split(key, 128))

    def nrm(shape, scale=0.02):
        return scale * jax.random.normal(next(kit), shape, dtype=jnp.float32)

    params = {}
    in_c = 1
    for i, (c, kk) in enumerate(zip(cfg.conv_dim, cfg.conv_kernel)):
        params[f"conv{i}_w"] = nrm((kk * in_c, c))
        params[f"conv{i}_b"] = jnp.zeros((c,), jnp.float32)   # conv_bias=False in HuBERT base
        in_c = c
    params["gn_g"] = jnp.ones((cfg.conv_dim[0],), jnp.float32)
    params["gn_b"] = jnp.zeros((cfg.conv_dim[0],), jnp.float32)

    c_last = cfg.conv_dim[-1]
    params["fp_ln_g"] = jnp.ones((c_last,), jnp.float32)
    params["fp_ln_b"] = jnp.zeros((c_last,), jnp.float32)
    params["fp_w"] = nrm((c_last, cfg.hidden_size))
    params["fp_b"] = jnp.zeros((cfg.hidden_size,), jnp.float32)

    cg = cfg.hidden_size // cfg.pos_conv_groups
    # TODO(synk): HF applies weight_norm to the pos-conv weight; with synthetic weights the
    #             reparameterization is folded implicitly (would need folding for real ckpts).
    params["pos_w"] = [nrm((cfg.pos_conv_kernel * cg, cg)) for _ in range(cfg.pos_conv_groups)]
    params["pos_b"] = [jnp.zeros((cg,), jnp.float32) for _ in range(cfg.pos_conv_groups)]
    params["enc_ln_g"] = jnp.ones((cfg.hidden_size,), jnp.float32)
    params["enc_ln_b"] = jnp.zeros((cfg.hidden_size,), jnp.float32)

    H, I = cfg.hidden_size, cfg.intermediate_size
    layers = []
    for _ in range(cfg.num_layers):
        layers.append(dict(
            q_w=nrm((H, H)), q_b=jnp.zeros((H,), jnp.float32),
            k_w=nrm((H, H)), k_b=jnp.zeros((H,), jnp.float32),
            v_w=nrm((H, H)), v_b=jnp.zeros((H,), jnp.float32),
            o_w=nrm((H, H)), o_b=jnp.zeros((H,), jnp.float32),
            ln1_g=jnp.ones((H,), jnp.float32), ln1_b=jnp.zeros((H,), jnp.float32),
            ff1_w=nrm((H, I)), ff1_b=jnp.zeros((I,), jnp.float32),
            ff2_w=nrm((I, H)), ff2_b=jnp.zeros((H,), jnp.float32),
            ln2_g=jnp.ones((H,), jnp.float32), ln2_b=jnp.zeros((H,), jnp.float32),
        ))
    params["layers"] = layers
    return params


def encoder_layer(p, cfg, h):
    B, T, H = h.shape
    x2 = h.reshape(B * T, H)

    # Fused QKV projection (single lane-dense matmul instead of 3).
    w_qkv = jnp.concatenate([p["q_w"], p["k_w"], p["v_w"]], axis=1)
    b_qkv = jnp.concatenate([p["q_b"], p["k_b"], p["v_b"]], axis=0)
    qkv = linear(x2, w_qkv, b_qkv).reshape(B, T, 3 * H)

    attn = multi_head_attention(qkv, cfg.num_heads).reshape(B * T, H)

    # o_proj + residual + LayerNorm fused (dropout is identity at inference).
    h1 = linear_residual_layernorm(attn, p["o_w"], p["o_b"], x2,
                                   p["ln1_g"], p["ln1_b"], eps=cfg.layer_norm_eps)

    # FFN: ff1 with fused GELU; ff2 with fused residual + LayerNorm.
    ff = linear(h1, p["ff1_w"], p["ff1_b"], activation="gelu")
    h2 = linear_residual_layernorm(ff, p["ff2_w"], p["ff2_b"], h1,
                                   p["ln2_g"], p["ln2_b"], eps=cfg.layer_norm_eps)
    return h2.reshape(B, T, H)


def cnhubert_forward(params, cfg, x):
    # ---- Wav2Vec2FeatureExtractor ----
    h = wave_normalize(x)                              # (B, L)
    h = h[:, :, None]                                  # (B, L, 1) channels-last

    # ---- HubertFeatureEncoder (conv stack) ----
    for i, (kk, st) in enumerate(zip(cfg.conv_kernel, cfg.conv_stride)):
        if i == 0:
            h = conv1d_fused(h, params["conv0_w"], params["conv0_b"], kk, st,
                             activation="gelu",
                             gn_params=(params["gn_g"], params["gn_b"]),
                             eps=cfg.layer_norm_eps)
        else:
            h = conv1d_fused(h, params[f"conv{i}_w"], params[f"conv{i}_b"], kk, st,
                             activation="gelu")

    # ---- HubertFeatureProjection (LayerNorm fused into projection matmul) ----
    B, T, C = h.shape
    h = layernorm_linear(h.reshape(B * T, C), params["fp_ln_g"], params["fp_ln_b"],
                         params["fp_w"], params["fp_b"], eps=cfg.layer_norm_eps)
    h = h.reshape(B, T, cfg.hidden_size)

    # ---- HubertEncoder: pos-conv + residual + LayerNorm (fused), transformer layers ----
    h = pos_conv_residual_layernorm(h, params["pos_w"], params["pos_b"],
                                    cfg.pos_conv_kernel, cfg.pos_conv_groups,
                                    params["enc_ln_g"], params["enc_ln_b"],
                                    eps=cfg.layer_norm_eps)
    for p in params["layers"]:
        h = encoder_layer(p, cfg, h)
    return h                                           # last_hidden_state: (B, T, hidden)


# TODO(synk): HF `from_pretrained` checkpoint loading / local path check has no Pallas
#             equivalent; weights are synthetic deterministic initializations instead.
# TODO(synk): no attention_mask handling — matches the reference for unpadded utterances.

if __name__ == "__main__":
    cfg = HubertConfig()
    key = jax.random.PRNGKey(0)
    k_param, k_x = jax.random.split(key)
    params = init_params(k_param, cfg)

    B, L = 2, 1600
    x = jax.random.normal(k_x, (B, L), dtype=jnp.float32)

    fwd = jax.jit(lambda p, xx: cnhubert_forward(p, cfg, xx))
    out = fwd(params, x)
    out = jax.block_until_ready(out)

    # expected frames: 1600 -> 319 -> 159 -> 79
    assert out.shape == (B, 79, cfg.hidden_size), out.shape
    assert out.dtype == jnp.float32
    assert bool(jnp.all(jnp.isfinite(out)))
    print("KERNEL_OK")
</pallas_src>

<mosaic_0001>
module attributes {stable_mosaic.version = 11 : i64} {
  func.func @_conv_kernel(%arg0: i32, %arg1: memref<1x320x5xf32, #tpu.memory_space<vmem>>, %arg2: memref<2x5x32xf32, #tpu.memory_space<vmem>>, %arg3: memref<1x32xf32, #tpu.memory_space<vmem>>, %arg4: memref<1x32xf32, #tpu.memory_space<vmem>>, %arg5: memref<1x32xf32, #tpu.memory_space<vmem>>, %arg6: memref<1x319x32xf32, #tpu.memory_space<vmem>>) attributes {dimension_semantics = [#tpu.dimension_semantics<parallel>], iteration_bounds = array<i64: 2>, scalar_prefetch = 0 : i64, scratch_operands = 0 : i64, tpu.core_type = #tpu.core_type<tc>, window_params = [{transform_indices = @transform_0, window_bounds = array<i64: 1, 320, 5>}, {pipeline_mode = #tpu.pipeline_mode<synchronous>, transform_indices = @transform_1, window_bounds = array<i64: 2, 5, 32>}, {pipeline_mode = #tpu.pipeline_mode<synchronous>, transform_indices = @transform_2, window_bounds = array<i64: 1, 32>}, {pipeline_mode = #tpu.pipeline_mode<synchronous>, transform_indices = @transform_3, window_bounds = array<i64: 1, 32>}, {pipeline_mode = #tpu.pipeline_mode<synchronous>, transform_indices = @transform_4, window_bounds = array<i64: 1, 32>}, {transform_indices = @transform_5, window_bounds = array<i64: 1, 319, 32>}]} {
    %cst = arith.constant 0.000000e+00 : f32
    %0 = vector.broadcast %cst : f32 to vector<319x32xf32>
    %c0 = arith.constant 0 : index
    %c0_0 = arith.constant 0 : index
    %c0_1 = arith.constant 0 : index
    %1 = vector.load %arg1[%c0, %c0_0, %c0_1] : memref<1x320x5xf32, #tpu.memory_space<vmem>>, vector<1x319x5xf32>
    %2 = vector.shape_cast %1 : vector<1x319x5xf32> to vector<319x5xf32>
    %3 = arith.truncf %2 : vector<319x5xf32> to vector<319x5xbf16>
    %c0_2 = arith.constant 0 : index
    %c0_3 = arith.constant 0 : index
    %c0_4 = arith.constant 0 : index
    %4 = vector.load %arg2[%c0_2, %c0_3, %c0_4] : memref<2x5x32xf32, #tpu.memory_space<vmem>>, vector<1x5x32xf32>
    %5 = vector.shape_cast %4 : vector<1x5x32xf32> to vector<5x32xf32>
    %6 = arith.truncf %5 : vector<5x32xf32> to vector<5x32xbf16>
    %cst_5 = arith.constant dense<0.000000e+00> : vector<319x32xf32>
    %7 = tpu.matmul %3, %6, %cst_5 {dimension_numbers = #tpu.dot_dimension_numbers<[1], [0], [0], [1], [0, 0, 1, 1], [], []>} : vector<319x5xbf16>, vector<5x32xbf16>, vector<319x32xf32> -> vector<319x32xf32>
    %8 = arith.addf %0, %7 : vector<319x32xf32>
    %c0_6 = arith.constant 0 : index
    %c1 = arith.constant 1 : index
    %c0_7 = arith.constant 0 : index
    %9 = vector.load %arg1[%c0_6, %c1, %c0_7] : memref<1x320x5xf32, #tpu.memory_space<vmem>>, vector<1x319x5xf32>
    %10 = vector.shape_cast %9 : vector<1x319x5xf32> to vector<319x5xf32>
    %11 = arith.truncf %10 : vector<319x5xf32> to vector<319x5xbf16>
    %c1_8 = arith.constant 1 : index
    %c0_9 = arith.constant 0 : index
    %c0_10 = arith.constant 0 : index
    %12 = vector.load %arg2[%c1_8, %c0_9, %c0_10] : memref<2x5x32xf32, #tpu.memory_space<vmem>>, vector<1x5x32xf32>
    %13 = vector.shape_cast %12 : vector<1x5x32xf32> to vector<5x32xf32>
    %14 = arith.truncf %13 : vector<5x32xf32> to vector<5x32xbf16>
    %cst_11 = arith.constant dense<0.000000e+00> : vector<319x32xf32>
    %15 = tpu.matmul %11, %14, %cst_11 {dimension_numbers = #tpu.dot_dimension_numbers<[1], [0], [0], [1], [0, 0, 1, 1], [], []>} : vector<319x5xbf16>, vector<5x32xbf16>, vector<319x32xf32> -> vector<319x32xf32>
    %16 = arith.addf %8, %15 : vector<319x32xf32>
    %c0_12 = arith.constant 0 : index
    %c0_13 = arith.constant 0 : index
    %17 = vector.load %arg3[%c0_12, %c0_13] : memref<1x32xf32, #tpu.memory_space<vmem>>, vector<1x32xf32>
    %18 = vector.broadcast %17 : vector<1x32xf32> to vector<319x32xf32>
    %19 = arith.addf %16, %18 : vector<319x32xf32>
    %cst_14 = arith.constant dense<0.000000e+00> : vector<32xf32>
    %20 = vector.multi_reduction <add>, %19, %cst_14 [0] : vector<319x32xf32> to vector<32xf32>
    %21 = vector.shape_cast %20 : vector<32xf32> to vector<1x32xf32>
    %cst_15 = arith.constant 3.190000e+02 : f32
    %22 = vector.broadcast %cst_15 : f32 to vector<1x32xf32>
    %23 = arith.divf %21, %22 : vector<1x32xf32>
    %24 = vector.broadcast %23 : vector<1x32xf32> to vector<319x32xf32>
    %25 = arith.subf %19, %24 : vector<319x32xf32>
    %26 = arith.mulf %25, %25 : vector<319x32xf32>
    %cst_16 = arith.constant dense<0.000000e+00> : vector<32xf32>
    %27 = vector.multi_reduction <add>, %26, %cst_16 [0] : vector<319x32xf32> to vector<32xf32>
    %28 = vector.shape_cast %27 : vector<32xf32> to vector<1x32xf32>
    %cst_17 = arith.constant 3.190000e+02 : f32
    %29 = vector.broadcast %cst_17 : f32 to vector<1x32xf32>
    %30 = arith.divf %28, %29 : vector<1x32xf32>
    %31 = vector.broadcast %23 : vector<1x32xf32> to vector<319x32xf32>
    %32 = arith.subf %19, %31 : vector<319x32xf32>
    %cst_18 = arith.constant 9.99999974E-6 : f32
    %33 = vector.broadcast %cst_18 : f32 to vector<1x32xf32>
    %34 = arith.addf %30, %33 : vector<1x32xf32>
    %35 = math.rsqrt %34 : vector<1x32xf32>
    %36 = vector.broadcast %35 : vector<1x32xf32> to vector<319x32xf32>
    %37 = arith.mulf %32, %36 : vector<319x32xf32>
    %c0_19 = arith.constant 0 : index
    %c0_20 = arith.constant 0 : index
    %38 = vector.load %arg4[%c0_19, %c0_20] : memref<1x32xf32, #tpu.memory_space<vmem>>, vector<1x32xf32>
    %39 = vector.broadcast %38 : vector<1x32xf32> to vector<319x32xf32>
    %40 = arith.mulf %37, %39 : vector<319x32xf32>
    %c0_21 = arith.constant 0 : index
    %c0_22 = arith.constant 0 : index
    %41 = vector.load %arg5[%c0_21, %c0_22] : memref<1x32xf32, #tpu.memory_space<vmem>>, vector<1x32xf32>
    %42 = vector.broadcast %41 : vector<1x32xf32> to vector<319x32xf32>
    %43 = arith.addf %40, %42 : vector<319x32xf32>
    %cst_23 = arith.constant 5.000000e-01 : f32
    %44 = vector.broadcast %cst_23 : f32 to vector<319x32xf32>
    %45 = arith.mulf %44, %43 : vector<319x32xf32>
    %cst_24 = arith.constant 4.471500e-02 : f32
    %46 = vector.broadcast %cst_24 : f32 to vector<319x32xf32>
    %47 = arith.mulf %46, %43 : vector<319x32xf32>
    %48 = arith.mulf %47, %43 : vector<319x32xf32>
    %49 = arith.mulf %48, %43 : vector<319x32xf32>
    %50 = arith.addf %43, %49 : vector<319x32xf32>
    %cst_25 = arith.constant 0.797884583 : f32
    %51 = vector.broadcast %cst_25 : f32 to vector<319x32xf32>
    %52 = arith.mulf %51, %50 : vector<319x32xf32>
    %53 = math.tanh %52 : vector<319x32xf32>
    %cst_26 = arith.constant 1.000000e+00 : f32
    %54 = vector.broadcast %cst_26 : f32 to vector<319x32xf32>
    %55 = arith.addf %54, %53 : vector<319x32xf32>
    %56 = arith.mulf %45, %55 : vector<319x32xf32>
    %c0_27 = arith.constant 0 : index
    %c0_28 = arith.constant 0 : index
    %c0_29 = arith.constant 0 : index
    %57 = vector.load %arg6[%c0_27, %c0_28, %c0_29] : memref<1x319x32xf32, #tpu.memory_space<vmem>>, vector<1x319x32xf32>
    %58 = vector.shape_cast %57 : vector<1x319x32xf32> to vector<319x32xf32>
    %59 = vector.shape_cast %56 : vector<319x32xf32> to vector<1x319x32xf32>
    tpu.vector_store %arg6[%c0_27, %c0_28, %c0_29], %59 {strides = array<i32>} : memref<1x319x32xf32, #tpu.memory_space<vmem>>, vector<1x319x32xf32>,
    return
  }
  func.func @transform_0(%arg0: i32) -> (i32, i32, i32) {
    %c0_i32 = arith.constant 0 : i32
    %c0_i32_0 = arith.constant 0 : i32
    %c0_i32_1 = arith.constant 0 : i32
    return %arg0, %c0_i32, %c0_i32_0 : i32, i32, i32
  }
  func.func @transform_1(%arg0: i32) -> (i32, i32, i32) {
    %c0_i32 = arith.constant 0 : i32
    %c0_i32_0 = arith.constant 0 : i32
    %c0_i32_1 = arith.constant 0 : i32
    %c0_i32_2 = arith.constant 0 : i32
    return %c0_i32, %c0_i32_0, %c0_i32_1 : i32, i32, i32
  }
  func.func @transform_2(%arg0: i32) -> (i32, i32) {
    %c0_i32 = arith.constant 0 : i32
    %c0_i32_0 = arith.constant 0 : i32
    %c0_i32_1 = arith.constant 0 : i32
    return %c0_i32, %c0_i32_0 : i32, i32
  }
  func.func @transform_3(%arg0: i32) -> (i32, i32) {
    %c0_i32 = arith.constant 0 : i32
    %c0_i32_0 = arith.constant 0 : i32
    %c0_i32_1 = arith.constant 0 : i32
    return %c0_i32, %c0_i32_0 : i32, i32
  }
  func.func @transform_4(%arg0: i32) -> (i32, i32) {
    %c0_i32 = arith.constant 0 : i32
    %c0_i32_0 = arith.constant 0 : i32
    %c0_i32_1 = arith.constant 0 : i32
    return %c0_i32, %c0_i32_0 : i32, i32
  }
  func.func @transform_5(%arg0: i32) -> (i32, i32, i32) {
    %c0_i32 = arith.constant 0 : i32
    %c0_i32_0 = arith.constant 0 : i32
    %c0_i32_1 = arith.constant 0 : i32
    return %arg0, %c0_i32, %c0_i32_0 : i32, i32, i32
  }
}

module attributes {stable_mosaic.version = 11 : i64} {
  func.func @_wave_norm_kernel(%arg0: memref<2x1600xf32, #tpu.memory_space<vmem>>, %arg1: memref<2x1600xf32, #tpu.memory_space<vmem>>) attributes {dimension_semantics = [], scalar_prefetch = 0 : i64, scratch_operands = 0 : i64, tpu.core_type = #tpu.core_type<tc>} {
    %c0 = arith.constant 0 : index
    %c0_0 = arith.constant 0 : index
    %0 = vector.load %arg0[%c0, %c0_0] : memref<2x1600xf32, #tpu.memory_space<vmem>>, vector<2x1600xf32>
    %cst = arith.constant dense<0.000000e+00> : vector<2xf32>
    %1 = vector.multi_reduction <add>, %0, %cst [1] : vector<2x1600xf32> to vector<2xf32>
    %2 = vector.shape_cast %1 : vector<2xf32> to vector<2x1xf32>
    %cst_1 = arith.constant 1.600000e+03 : f32
    %3 = vector.broadcast %cst_1 : f32 to vector<2x1xf32>
    %4 = arith.divf %2, %3 : vector<2x1xf32>
    %5 = vector.broadcast %4 : vector<2x1xf32> to vector<2x1600xf32>
    %6 = arith.subf %0, %5 : vector<2x1600xf32>
    %7 = arith.mulf %6, %6 : vector<2x1600xf32>
    %cst_2 = arith.constant dense<0.000000e+00> : vector<2xf32>
    %8 = vector.multi_reduction <add>, %7, %cst_2 [1] : vector<2x1600xf32> to vector<2xf32>
    %9 = vector.shape_cast %8 : vector<2xf32> to vector<2x1xf32>
    %cst_3 = arith.constant 1.600000e+03 : f32
    %10 = vector.broadcast %cst_3 : f32 to vector<2x1xf32>
    %11 = arith.divf %9, %10 : vector<2x1xf32>
    %12 = vector.broadcast %4 : vector<2x1xf32> to vector<2x1600xf32>
    %13 = arith.subf %0, %12 : vector<2x1600xf32>
    %cst_4 = arith.constant 1.000000e-07 : f32
    %14 = vector.broadcast %cst_4 : f32 to vector<2x1xf32>
    %15 = arith.addf %11, %14 : vector<2x1xf32>
    %16 = math.rsqrt %15 : vector<2x1xf32>
    %17 = vector.broadcast %16 : vector<2x1xf32> to vector<2x1600xf32>
    %18 = arith.mulf %13, %17 : vector<2x1600xf32>
    %c0_5 = arith.constant 0 : index
    %c0_6 = arith.constant 0 : index
    %19 = vector.load %arg1[%c0_5, %c0_6] : memref<2x1600xf32, #tpu.memory_space<vmem>>, vector<2x1600xf32>
    tpu.vector_store %arg1[%c0_5, %c0_6], %18 {strides = array<i32>} : memref<2x1600xf32, #tpu.memory_space<vmem>>, vector<2x1600xf32>,
    return
  }
}

module attributes {stable_mosaic.version = 11 : i64} {
  func.func @_conv_kernel(%arg0: i32, %arg1: memref<1x160x64xf32, #tpu.memory_space<vmem>>, %arg2: memref<2x64x32xf32, #tpu.memory_space<vmem>>, %arg3: memref<1x32xf32, #tpu.memory_space<vmem>>, %arg4: memref<1x159x32xf32, #tpu.memory_space<vmem>>) attributes {dimension_semantics = [#tpu.dimension_semantics<parallel>], iteration_bounds = array<i64: 2>, scalar_prefetch = 0 : i64, scratch_operands = 0 : i64, tpu.core_type = #tpu.core_type<tc>, window_params = [{transform_indices = @transform_0, window_bounds = array<i64: 1, 160, 64>}, {pipeline_mode = #tpu.pipeline_mode<synchronous>, transform_indices = @transform_1, window_bounds = array<i64: 2, 64, 32>}, {pipeline_mode = #tpu.pipeline_mode<synchronous>, transform_indices = @transform_2, window_bounds = array<i64: 1, 32>}, {transform_indices = @transform_3, window_bounds = array<i64: 1, 159, 32>}]} {
    %cst = arith.constant 0.000000e+00 : f32
    %0 = vector.broadcast %cst : f32 to vector<159x32xf32>
    %c0 = arith.constant 0 : index
    %c0_0 = arith.constant 0 : index
    %c0_1 = arith.constant 0 : index
    %1 = vector.load %arg1[%c0, %c0_0, %c0_1] : memref<1x160x64xf32, #tpu.memory_space<vmem>>, vector<1x159x64xf32>
    %2 = vector.shape_cast %1 : vector<1x159x64xf32> to vector<159x64xf32>
    %3 = arith.truncf %2 : vector<159x64xf32> to vector<159x64xbf16>
    %c0_2 = arith.constant 0 : index
    %c0_3 = arith.constant 0 : index
    %c0_4 = arith.constant 0 : index
    %4 = vector.load %arg2[%c0_2, %c0_3, %c0_4] : memref<2x64x32xf32, #tpu.memory_space<vmem>>, vector<1x64x32xf32>
    %5 = vector.shape_cast %4 : vector<1x64x32xf32> to vector<64x32xf32>
    %6 = arith.truncf %5 : vector<64x32xf32> to vector<64x32xbf16>
    %cst_5 = arith.constant dense<0.000000e+00> : vector<159x32xf32>
    %7 = tpu.matmul %3, %6, %cst_5 {dimension_numbers = #tpu.dot_dimension_numbers<[1], [0], [0], [1], [0, 0, 1, 1], [], []>} : vector<159x64xbf16>, vector<64x32xbf16>, vector<159x32xf32> -> vector<159x32xf32>
    %8 = arith.addf %0, %7 : vector<159x32xf32>
    %c0_6 = arith.constant 0 : index
    %c1 = arith.constant 1 : index
    %c0_7 = arith.constant 0 : index
    %9 = vector.load %arg1[%c0_6, %c1, %c0_7] : memref<1x160x64xf32, #tpu.memory_space<vmem>>, vector<1x159x64xf32>
    %10 = vector.shape_cast %9 : vector<1x159x64xf32> to vector<159x64xf32>
    %11 = arith.truncf %10 : vector<159x64xf32> to vector<159x64xbf16>
    %c1_8 = arith.constant 1 : index
    %c0_9 = arith.constant 0 : index
    %c0_10 = arith.constant 0 : index
    %12 = vector.load %arg2[%c1_8, %c0_9, %c0_10] : memref<2x64x32xf32, #tpu.memory_space<vmem>>, vector<1x64x32xf32>
    %13 = vector.shape_cast %12 : vector<1x64x32xf32> to vector<64x32xf32>
    %14 = arith.truncf %13 : vector<64x32xf32> to vector<64x32xbf16>
    %cst_11 = arith.constant dense<0.000000e+00> : vector<159x32xf32>
    %15 = tpu.matmul %11, %14, %cst_11 {dimension_numbers = #tpu.dot_dimension_numbers<[1], [0], [0], [1], [0, 0, 1, 1], [], []>} : vector<159x64xbf16>, vector<64x32xbf16>, vector<159x32xf32> -> vector<159x32xf32>
    %16 = arith.addf %8, %15 : vector<159x32xf32>
    %c0_12 = arith.constant 0 : index
    %c0_13 = arith.constant 0 : index
    %17 = vector.load %arg3[%c0_12, %c0_13] : memref<1x32xf32, #tpu.memory_space<vmem>>, vector<1x32xf32>
    %18 = vector.broadcast %17 : vector<1x32xf32> to vector<159x32xf32>
    %19 = arith.addf %16, %18 : vector<159x32xf32>
    %cst_14 = arith.constant 5.000000e-01 : f32
    %20 = vector.broadcast %cst_14 : f32 to vector<159x32xf32>
    %21 = arith.mulf %20, %19 : vector<159x32xf32>
    %cst_15 = arith.constant 4.471500e-02 : f32
    %22 = vector.broadcast %cst_15 : f32 to vector<159x32xf32>
    %23 = arith.mulf %22, %19 : vector<159x32xf32>
    %24 = arith.mulf %23, %19 : vector<159x32xf32>
    %25 = arith.mulf %24, %19 : vector<159x32xf32>
    %26 = arith.addf %19, %25 : vector<159x32xf32>
    %cst_16 = arith.constant 0.797884583 : f32
    %27 = vector.broadcast %cst_16 : f32 to vector<159x32xf32>
    %28 = arith.mulf %27, %26 : vector<159x32xf32>
    %29 = math.tanh %28 : vector<159x32xf32>
    %cst_17 = arith.constant 1.000000e+00 : f32
    %30 = vector.broadcast %cst_17 : f32 to vector<159x32xf32>
    %31 = arith.addf %30, %29 : vector<159x32xf32>
    %32 = arith.mulf %21, %31 : vector<159x32xf32>
    %c0_18 = arith.constant 0 : index
    %c0_19 = arith.constant 0 : index
    %c0_20 = arith.constant 0 : index
    %33 = vector.load %arg4[%c0_18, %c0_19, %c0_20] : memref<1x159x32xf32, #tpu.memory_space<vmem>>, vector<1x159x32xf32>
    %34 = vector.shape_cast %33 : vector<1x159x32xf32> to vector<159x32xf32>
    %35 = vector.shape_cast %32 : vector<159x32xf32> to vector<1x159x32xf32>
    tpu.vector_store %arg4[%c0_18, %c0_19, %c0_20], %35 {strides = array<i32>} : memref<1x159x32xf32, #tpu.memory_space<vmem>>, vector<1x159x32xf32>,
    return
  }
  func.func @transform_0(%arg0: i32) -> (i32, i32, i32) {
    %c0_i32 = arith.constant 0 : i32
    %c0_i32_0 = arith.constant 0 : i32
    %c0_i32_1 = arith.constant 0 : i32
    return %arg0, %c0_i32, %c0_i32_0 : i32, i32, i32
  }
  func.func @transform_1(%arg0: i32) -> (i32, i32, i32) {
    %c0_i32 = arith.constant 0 : i32
    %c0_i32_0 = arith.constant 0 : i32
    %c0_i32_1 = arith.constant 0 : i32
    %c0_i32_2 = arith.constant 0 : i32
    return %c0_i32, %c0_i32_0, %c0_i32_1 : i32, i32, i32
  }
  func.func @transform_2(%arg0: i32) -> (i32, i32) {
    %c0_i32 = arith.constant 0 : i32
    %c0_i32_0 = arith.constant 0 : i32
    %c0_i32_1 = arith.constant 0 : i32
    return %c0_i32, %c0_i32_0 : i32, i32
  }
  func.func @transform_3(%arg0: i32) -> (i32, i32, i32) {
    %c0_i32 = arith.constant 0 : i32
    %c0_i32_0 = arith.constant 0 : i32
    %c0_i32_1 = arith.constant 0 : i32
    return %arg0, %c0_i32, %c0_i32_0 : i32, i32, i32
  }
}

module attributes {stable_mosaic.version = 11 : i64} {
  func.func @_conv_kernel(%arg0: i32, %arg1: memref<1x80x64xf32, #tpu.memory_space<vmem>>, %arg2: memref<2x64x32xf32, #tpu.memory_space<vmem>>, %arg3: memref<1x32xf32, #tpu.memory_space<vmem>>, %arg4: memref<1x79x32xf32, #tpu.memory_space<vmem>>) attributes {dimension_semantics = [#tpu.dimension_semantics<parallel>], iteration_bounds = array<i64: 2>, scalar_prefetch = 0 : i64, scratch_operands = 0 : i64, tpu.core_type = #tpu.core_type<tc>, window_params = [{transform_indices = @transform_0, window_bounds = array<i64: 1, 80, 64>}, {pipeline_mode = #tpu.pipeline_mode<synchronous>, transform_indices = @transform_1, window_bounds = array<i64: 2, 64, 32>}, {pipeline_mode = #tpu.pipeline_mode<synchronous>, transform_indices = @transform_2, window_bounds = array<i64: 1, 32>}, {transform_indices = @transform_3, window_bounds = array<i64: 1, 79, 32>}]} {
    %cst = arith.constant 0.000000e+00 : f32
    %0 = vector.broadcast %cst : f32 to vector<79x32xf32>
    %c0 = arith.constant 0 : index
    %c0_0 = arith.constant 0 : index
    %c0_1 = arith.constant 0 : index
    %1 = vector.load %arg1[%c0, %c0_0, %c0_1] : memref<1x80x64xf32, #tpu.memory_space<vmem>>, vector<1x79x64xf32>
    %2 = vector.shape_cast %1 : vector<1x79x64xf32> to vector<79x64xf32>
    %3 = arith.truncf %2 : vector<79x64xf32> to vector<79x64xbf16>
    %c0_2 = arith.constant 0 : index
    %c0_3 = arith.constant 0 : index
    %c0_4 = arith.constant 0 : index
    %4 = vector.load %arg2[%c0_2, %c0_3, %c0_4] : memref<2x64x32xf32, #tpu.memory_space<vmem>>, vector<1x64x32xf32>
    %5 = vector.shape_cast %4 : vector<1x64x32xf32> to vector<64x32xf32>
    %6 = arith.truncf %5 : vector<64x32xf32> to vector<64x32xbf16>
    %cst_5 = arith.constant dense<0.000000e+00> : vector<79x32xf32>
    %7 = tpu.matmul %3, %6, %cst_5 {dimension_numbers = #tpu.dot_dimension_numbers<[1], [0], [0], [1], [0, 0, 1, 1], [], []>} : vector<79x64xbf16>, vector<64x32xbf16>, vector<79x32xf32> -> vector<79x32xf32>
    %8 = arith.addf %0, %7 : vector<79x32xf32>
    %c0_6 = arith.constant 0 : index
    %c1 = arith.constant 1 : index
    %c0_7 = arith.constant 0 : index
    %9 = vector.load %arg1[%c0_6, %c1, %c0_7] : memref<1x80x64xf32, #tpu.memory_space<vmem>>, vector<1x79x64xf32>
    %10 = vector.shape_cast %9 : vector<1x79x64xf32> to vector<79x64xf32>
    %11 = arith.truncf %10 : vector<79x64xf32> to vector<79x64xbf16>
    %c1_8 = arith.constant 1 : index
    %c0_9 = arith.constant 0 : index
    %c0_10 = arith.constant 0 : index
    %12 = vector.load %arg2[%c1_8, %c0_9, %c0_10] : memref<2x64x32xf32, #tpu.memory_space<vmem>>, vector<1x64x32xf32>
    %13 = vector.shape_cast %12 : vector<1x64x32xf32> to vector<64x32xf32>
    %14 = arith.truncf %13 : vector<64x32xf32> to vector<64x32xbf16>
    %cst_11 = arith.constant dense<0.000000e+00> : vector<79x32xf32>
    %15 = tpu.matmul %11, %14, %cst_11 {dimension_numbers = #tpu.dot_dimension_numbers<[1], [0], [0], [1], [0, 0, 1, 1], [], []>} : vector<79x64xbf16>, vector<64x32xbf16>, vector<79x32xf32> -> vector<79x32xf32>
    %16 = arith.addf %8, %15 : vector<79x32xf32>
    %c0_12 = arith.constant 0 : index
    %c0_13 = arith.constant 0 : index
    %17 = vector.load %arg3[%c0_12, %c0_13] : memref<1x32xf32, #tpu.memory_space<vmem>>, vector<1x32xf32>
    %18 = vector.broadcast %17 : vector<1x32xf32> to vector<79x32xf32>
    %19 = arith.addf %16, %18 : vector<79x32xf32>
    %cst_14 = arith.constant 5.000000e-01 : f32
    %20 = vector.broadcast %cst_14 : f32 to vector<79x32xf32>
    %21 = arith.mulf %20, %19 : vector<79x32xf32>
    %cst_15 = arith.constant 4.471500e-02 : f32
    %22 = vector.broadcast %cst_15 : f32 to vector<79x32xf32>
    %23 = arith.mulf %22, %19 : vector<79x32xf32>
    %24 = arith.mulf %23, %19 : vector<79x32xf32>
    %25 = arith.mulf %24, %19 : vector<79x32xf32>
    %26 = arith.addf %19, %25 : vector<79x32xf32>
    %cst_16 = arith.constant 0.797884583 : f32
    %27 = vector.broadcast %cst_16 : f32 to vector<79x32xf32>
    %28 = arith.mulf %27, %26 : vector<79x32xf32>
    %29 = math.tanh %28 : vector<79x32xf32>
    %cst_17 = arith.constant 1.000000e+00 : f32
    %30 = vector.broadcast %cst_17 : f32 to vector<79x32xf32>
    %31 = arith.addf %30, %29 : vector<79x32xf32>
    %32 = arith.mulf %21, %31 : vector<79x32xf32>
    %c0_18 = arith.constant 0 : index
    %c0_19 = arith.constant 0 : index
    %c0_20 = arith.constant 0 : index
    %33 = vector.load %arg4[%c0_18, %c0_19, %c0_20] : memref<1x79x32xf32, #tpu.memory_space<vmem>>, vector<1x79x32xf32>
    %34 = vector.shape_cast %33 : vector<1x79x32xf32> to vector<79x32xf32>
    %35 = vector.shape_cast %32 : vector<79x32xf32> to vector<1x79x32xf32>
    tpu.vector_store %arg4[%c0_18, %c0_19, %c0_20], %35 {strides = array<i32>} : memref<1x79x32xf32, #tpu.memory_space<vmem>>, vector<1x79x32xf32>,
    return
  }
  func.func @transform_0(%arg0: i32) -> (i32, i32, i32) {
    %c0_i32 = arith.constant 0 : i32
    %c0_i32_0 = arith.constant 0 : i32
    %c0_i32_1 = arith.constant 0 : i32
    return %arg0, %c0_i32, %c0_i32_0 : i32, i32, i32
  }
  func.func @transform_1(%arg0: i32) -> (i32, i32, i32) {
    %c0_i32 = arith.constant 0 : i32
    %c0_i32_0 = arith.constant 0 : i32
    %c0_i32_1 = arith.constant 0 : i32
    %c0_i32_2 = arith.constant 0 : i32
    return %c0_i32, %c0_i32_0, %c0_i32_1 : i32, i32, i32
  }
  func.func @transform_2(%arg0: i32) -> (i32, i32) {
    %c0_i32 = arith.constant 0 : i32
    %c0_i32_0 = arith.constant 0 : i32
    %c0_i32_1 = arith.constant 0 : i32
    return %c0_i32, %c0_i32_0 : i32, i32
  }
  func.func @transform_3(%arg0: i32) -> (i32, i32, i32) {
    %c0_i32 = arith.constant 0 : i32
    %c0_i32_0 = arith.constant 0 : i32
    %c0_i32_1 = arith.constant 0 : i32
    return %arg0, %c0_i32, %c0_i32_0 : i32, i32, i32
  }
}

module attributes {stable_mosaic.version = 11 : i64} {
  func.func @_ln_linear_kernel(%arg0: i32, %arg1: memref<158x32xf32, #tpu.memory_space<vmem>>, %arg2: memref<1x32xf32, #tpu.memory_space<vmem>>, %arg3: memref<1x32xf32, #tpu.memory_space<vmem>>, %arg4: memref<32x32xf32, #tpu.memory_space<vmem>>, %arg5: memref<1x32xf32, #tpu.memory_space<vmem>>, %arg6: memref<158x32xf32, #tpu.memory_space<vmem>>) attributes {dimension_semantics = [#tpu.dimension_semantics<parallel>], iteration_bounds = array<i64: 1>, scalar_prefetch = 0 : i64, scratch_operands = 0 : i64, tpu.core_type = #tpu.core_type<tc>, window_params = [{transform_indices = @transform_0, window_bounds = array<i64: 158, 32>}, {pipeline_mode = #tpu.pipeline_mode<synchronous>, transform_indices = @transform_1, window_bounds = array<i64: 1, 32>}, {pipeline_mode = #tpu.pipeline_mode<synchronous>, transform_indices = @transform_2, window_bounds = array<i64: 1, 32>}, {pipeline_mode = #tpu.pipeline_mode<synchronous>, transform_indices = @transform_3, window_bounds = array<i64: 32, 32>}, {pipeline_mode = #tpu.pipeline_mode<synchronous>, transform_indices = @transform_4, window_bounds = array<i64: 1, 32>}, {transform_indices = @transform_5, window_bounds = array<i64: 158, 32>}]} {
    %c0 = arith.constant 0 : index
    %c0_0 = arith.constant 0 : index
    %0 = vector.load %arg1[%c0, %c0_0] : memref<158x32xf32, #tpu.memory_space<vmem>>, vector<158x32xf32>
    %cst = arith.constant dense<0.000000e+00> : vector<158xf32>
    %1 = vector.multi_reduction <add>, %0, %cst [1] : vector<158x32xf32> to vector<158xf32>
    %2 = vector.shape_cast %1 : vector<158xf32> to vector<158x1xf32>
    %cst_1 = arith.constant 3.200000e+01 : f32
    %3 = vector.broadcast %cst_1 : f32 to vector<158x1xf32>
    %4 = arith.divf %2, %3 : vector<158x1xf32>
    %5 = vector.broadcast %4 : vector<158x1xf32> to vector<158x32xf32>
    %6 = arith.subf %0, %5 : vector<158x32xf32>
    %7 = arith.mulf %6, %6 : vector<158x32xf32>
    %cst_2 = arith.constant dense<0.000000e+00> : vector<158xf32>
    %8 = vector.multi_reduction <add>, %7, %cst_2 [1] : vector<158x32xf32> to vector<158xf32>
    %9 = vector.shape_cast %8 : vector<158xf32> to vector<158x1xf32>
    %cst_3 = arith.constant 3.200000e+01 : f32
    %10 = vector.broadcast %cst_3 : f32 to vector<158x1xf32>
    %11 = arith.divf %9, %10 : vector<158x1xf32>
    %12 = vector.broadcast %4 : vector<158x1xf32> to vector<158x32xf32>
    %13 = arith.subf %0, %12 : vector<158x32xf32>
    %cst_4 = arith.constant 9.99999974E-6 : f32
    %14 = vector.broadcast %cst_4 : f32 to vector<158x1xf32>
    %15 = arith.addf %11, %14 : vector<158x1xf32>
    %16 = math.rsqrt %15 : vector<158x1xf32>
    %17 = vector.broadcast %16 : vector<158x1xf32> to vector<158x32xf32>
    %18 = arith.mulf %13, %17 : vector<158x32xf32>
    %c0_5 = arith.constant 0 : index
    %c0_6 = arith.constant 0 : index
    %19 = vector.load %arg2[%c0_5, %c0_6] : memref<1x32xf32, #tpu.memory_space<vmem>>, vector<1x32xf32>
    %20 = vector.broadcast %19 : vector<1x32xf32> to vector<158x32xf32>
    %21 = arith.mulf %18, %20 : vector<158x32xf32>
    %c0_7 = arith.constant 0 : index
    %c0_8 = arith.constant 0 : index
    %22 = vector.load %arg3[%c0_7, %c0_8] : memref<1x32xf32, #tpu.memory_space<vmem>>, vector<1x32xf32>
    %23 = vector.broadcast %22 : vector<1x32xf32> to vector<158x32xf32>
    %24 = arith.addf %21, %23 : vector<158x32xf32>
    %25 = arith.truncf %24 : vector<158x32xf32> to vector<158x32xbf16>
    %c0_9 = arith.constant 0 : index
    %c0_10 = arith.constant 0 : index
    %26 = vector.load %arg4[%c0_9, %c0_10] : memref<32x32xf32, #tpu.memory_space<vmem>>, vector<32x32xf32>
    %27 = arith.truncf %26 : vector<32x32xf32> to vector<32x32xbf16>
    %cst_11 = arith.constant dense<0.000000e+00> : vector<158x32xf32>
    %28 = tpu.matmul %25, %27, %cst_11 {dimension_numbers = #tpu.dot_dimension_numbers<[1], [0], [0], [1], [0, 0, 1, 1], [], []>} : vector<158x32xbf16>, vector<32x32xbf16>, vector<158x32xf32> -> vector<158x32xf32>
    %c0_12 = arith.constant 0 : index
    %c0_13 = arith.constant 0 : index
    %29 = vector.load %arg5[%c0_12, %c0_13] : memref<1x32xf32, #tpu.memory_space<vmem>>, vector<1x32xf32>
    %30 = vector.broadcast %29 : vector<1x32xf32> to vector<158x32xf32>
    %31 = arith.addf %28, %30 : vector<158x32xf32>
    %c0_14 = arith.constant 0 : index
    %c0_15 = arith.constant 0 : index
    %32 = vector.load %arg6[%c0_14, %c0_15] : memref<158x32xf32, #tpu.memory_space<vmem>>, vector<158x32xf32>
    tpu.vector_store %arg6[%c0_14, %c0_15], %31 {strides = array<i32>} : memref<158x32xf32, #tpu.memory_space<vmem>>, vector<158x32xf32>,
    return
  }
  func.func @transform_0(%arg0: i32) -> (i32, i32) {
    %c0_i32 = arith.constant 0 : i32
    %c0_i32_0 = arith.constant 0 : i32
    return %arg0, %c0_i32 : i32, i32
  }
  func.func @transform_1(%arg0: i32) -> (i32, i32) {
    %c0_i32 = arith.constant 0 : i32
    %c0_i32_0 = arith.constant 0 : i32
    %c0_i32_1 = arith.constant 0 : i32
    return %c0_i32, %c0_i32_0 : i32, i32
  }
  func.func @transform_2(%arg0: i32) -> (i32, i32) {
    %c0_i32 = arith.constant 0 : i32
    %c0_i32_0 = arith.constant 0 : i32
    %c0_i32_1 = arith.constant 0 : i32
    return %c0_i32, %c0_i32_0 : i32, i32
  }
  func.func @transform_3(%arg0: i32) -> (i32, i32) {
    %c0_i32 = arith.constant 0 : i32
    %c0_i32_0 = arith.constant 0 : i32
    %c0_i32_1 = arith.constant 0 : i32
    return %c0_i32, %c0_i32_0 : i32, i32
  }
  func.func @transform_4(%arg0: i32) -> (i32, i32) {
    %c0_i32 = arith.constant 0 : i32
    %c0_i32_0 = arith.constant 0 : i32
    %c0_i32_1 = arith.constant 0 : i32
    return %c0_i32, %c0_i32_0 : i32, i32
  }
  func.func @transform_5(%arg0: i32) -> (i32, i32) {
    %c0_i32 = arith.constant 0 : i32
    %c0_i32_0 = arith.constant 0 : i32
    return %arg0, %c0_i32 : i32, i32
  }
}

module attributes {stable_mosaic.version = 11 : i64} {
  func.func @_pos_conv_res_ln_kernel(%arg0: i32, %arg1: memref<1x83x32xf32, #tpu.memory_space<vmem>>, %arg2: memref<4x32x32xf32, #tpu.memory_space<vmem>>, %arg3: memref<1x32xf32, #tpu.memory_space<vmem>>, %arg4: memref<1x32xf32, #tpu.memory_space<vmem>>, %arg5: memref<1x32xf32, #tpu.memory_space<vmem>>, %arg6: memref<1x79x32xf32, #tpu.memory_space<vmem>>) attributes {dimension_semantics = [#tpu.dimension_semantics<parallel>], iteration_bounds = array<i64: 2>, scalar_prefetch = 0 : i64, scratch_operands = 0 : i64, tpu.core_type = #tpu.core_type<tc>, window_params = [{transform_indices = @transform_0, window_bounds = array<i64: 1, 83, 32>}, {pipeline_mode = #tpu.pipeline_mode<synchronous>, transform_indices = @transform_1, window_bounds = array<i64: 4, 32, 32>}, {pipeline_mode = #tpu.pipeline_mode<synchronous>, transform_indices = @transform_2, window_bounds = array<i64: 1, 32>}, {pipeline_mode = #tpu.pipeline_mode<synchronous>, transform_indices = @transform_3, window_bounds = array<i64: 1, 32>}, {pipeline_mode = #tpu.pipeline_mode<synchronous>, transform_indices = @transform_4, window_bounds = array<i64: 1, 32>}, {transform_indices = @transform_5, window_bounds = array<i64: 1, 79, 32>}]} {
    %cst = arith.constant 0.000000e+00 : f32
    %0 = vector.broadcast %cst : f32 to vector<79x32xf32>
    %c0 = arith.constant 0 : index
    %c0_0 = arith.constant 0 : index
    %c0_1 = arith.constant 0 : index
    %1 = vector.load %arg1[%c0, %c0_0, %c0_1] : memref<1x83x32xf32, #tpu.memory_space<vmem>>, vector<1x79x32xf32>
    %2 = vector.shape_cast %1 : vector<1x79x32xf32> to vector<79x32xf32>
    %3 = arith.truncf %2 : vector<79x32xf32> to vector<79x32xbf16>
    %c0_2 = arith.constant 0 : index
    %c0_3 = arith.constant 0 : index
    %c0_4 = arith.constant 0 : index
    %4 = vector.load %arg2[%c0_2, %c0_3, %c0_4] : memref<4x32x32xf32, #tpu.memory_space<vmem>>, vector<1x32x32xf32>
    %5 = vector.shape_cast %4 : vector<1x32x32xf32> to vector<32x32xf32>
    %6 = arith.truncf %5 : vector<32x32xf32> to vector<32x32xbf16>
    %cst_5 = arith.constant dense<0.000000e+00> : vector<79x32xf32>
    %7 = tpu.matmul %3, %6, %cst_5 {dimension_numbers = #tpu.dot_dimension_numbers<[1], [0], [0], [1], [0, 0, 1, 1], [], []>} : vector<79x32xbf16>, vector<32x32xbf16>, vector<79x32xf32> -> vector<79x32xf32>
    %8 = arith.addf %0, %7 : vector<79x32xf32>
    %c0_6 = arith.constant 0 : index
    %c1 = arith.constant 1 : index
    %c0_7 = arith.constant 0 : index
    %9 = vector.load %arg1[%c0_6, %c1, %c0_7] : memref<1x83x32xf32, #tpu.memory_space<vmem>>, vector<1x79x32xf32>
    %10 = vector.shape_cast %9 : vector<1x79x32xf32> to vector<79x32xf32>
    %11 = arith.truncf %10 : vector<79x32xf32> to vector<79x32xbf16>
    %c1_8 = arith.constant 1 : index
    %c0_9 = arith.constant 0 : index
    %c0_10 = arith.constant 0 : index
    %12 = vector.load %arg2[%c1_8, %c0_9, %c0_10] : memref<4x32x32xf32, #tpu.memory_space<vmem>>, vector<1x32x32xf32>
    %13 = vector.shape_cast %12 : vector<1x32x32xf32> to vector<32x32xf32>
    %14 = arith.truncf %13 : vector<32x32xf32> to vector<32x32xbf16>
    %cst_11 = arith.constant dense<0.000000e+00> : vector<79x32xf32>
    %15 = tpu.matmul %11, %14, %cst_11 {dimension_numbers = #tpu.dot_dimension_numbers<[1], [0], [0], [1], [0, 0, 1, 1], [], []>} : vector<79x32xbf16>, vector<32x32xbf16>, vector<79x32xf32> -> vector<79x32xf32>
    %16 = arith.addf %8, %15 : vector<79x32xf32>
    %c0_12 = arith.constant 0 : index
    %c2 = arith.constant 2 : index
    %c0_13 = arith.constant 0 : index
    %17 = vector.load %arg1[%c0_12, %c2, %c0_13] : memref<1x83x32xf32, #tpu.memory_space<vmem>>, vector<1x79x32xf32>
    %18 = vector.shape_cast %17 : vector<1x79x32xf32> to vector<79x32xf32>
    %19 = arith.truncf %18 : vector<79x32xf32> to vector<79x32xbf16>
    %c2_14 = arith.constant 2 : index
    %c0_15 = arith.constant 0 : index
    %c0_16 = arith.constant 0 : index
    %20 = vector.load %arg2[%c2_14, %c0_15, %c0_16] : memref<4x32x32xf32, #tpu.memory_space<vmem>>, vector<1x32x32xf32>
    %21 = vector.shape_cast %20 : vector<1x32x32xf32> to vector<32x32xf32>
    %22 = arith.truncf %21 : vector<32x32xf32> to vector<32x32xbf16>
    %cst_17 = arith.constant dense<0.000000e+00> : vector<79x32xf32>
    %23 = tpu.matmul %19, %22, %cst_17 {dimension_numbers = #tpu.dot_dimension_numbers<[1], [0], [0], [1], [0, 0, 1, 1], [], []>} : vector<79x32xbf16>, vector<32x32xbf16>, vector<79x32xf32> -> vector<79x32xf32>
    %24 = arith.addf %16, %23 : vector<79x32xf32>
    %c0_18 = arith.constant 0 : index
    %c3 = arith.constant 3 : index
    %c0_19 = arith.constant 0 : index
    %25 = vector.load %arg1[%c0_18, %c3, %c0_19] : memref<1x83x32xf32, #tpu.memory_space<vmem>>, vector<1x79x32xf32>
    %26 = vector.shape_cast %25 : vector<1x79x32xf32> to vector<79x32xf32>
    %27 = arith.truncf %26 : vector<79x32xf32> to vector<79x32xbf16>
    %c3_20 = arith.constant 3 : index
    %c0_21 = arith.constant 0 : index
    %c0_22 = arith.constant 0 : index
    %28 = vector.load %arg2[%c3_20, %c0_21, %c0_22] : memref<4x32x32xf32, #tpu.memory_space<vmem>>, vector<1x32x32xf32>
    %29 = vector.shape_cast %28 : vector<1x32x32xf32> to vector<32x32xf32>
    %30 = arith.truncf %29 : vector<32x32xf32> to vector<32x32xbf16>
    %cst_23 = arith.constant dense<0.000000e+00> : vector<79x32xf32>
    %31 = tpu.matmul %27, %30, %cst_23 {dimension_numbers = #tpu.dot_dimension_numbers<[1], [0], [0], [1], [0, 0, 1, 1], [], []>} : vector<79x32xbf16>, vector<32x32xbf16>, vector<79x32xf32> -> vector<79x32xf32>
    %32 = arith.addf %24, %31 : vector<79x32xf32>
    %c0_24 = arith.constant 0 : index
    %c0_25 = arith.constant 0 : index
    %33 = vector.load %arg3[%c0_24, %c0_25] : memref<1x32xf32, #tpu.memory_space<vmem>>, vector<1x32xf32>
    %34 = vector.broadcast %33 : vector<1x32xf32> to vector<79x32xf32>
    %35 = arith.addf %32, %34 : vector<79x32xf32>
    %cst_26 = arith.constant 5.000000e-01 : f32
    %36 = vector.broadcast %cst_26 : f32 to vector<79x32xf32>
    %37 = arith.mulf %36, %35 : vector<79x32xf32>
    %cst_27 = arith.constant 4.471500e-02 : f32
    %38 = vector.broadcast %cst_27 : f32 to vector<79x32xf32>
    %39 = arith.mulf %38, %35 : vector<79x32xf32>
    %40 = arith.mulf %39, %35 : vector<79x32xf32>
    %41 = arith.mulf %40, %35 : vector<79x32xf32>
    %42 = arith.addf %35, %41 : vector<79x32xf32>
    %cst_28 = arith.constant 0.797884583 : f32
    %43 = vector.broadcast %cst_28 : f32 to vector<79x32xf32>
    %44 = arith.mulf %43, %42 : vector<79x32xf32>
    %45 = math.tanh %44 : vector<79x32xf32>
    %cst_29 = arith.constant 1.000000e+00 : f32
    %46 = vector.broadcast %cst_29 : f32 to vector<79x32xf32>
    %47 = arith.addf %46, %45 : vector<79x32xf32>
    %48 = arith.mulf %37, %47 : vector<79x32xf32>
    %c0_30 = arith.constant 0 : index
    %c2_31 = arith.constant 2 : index
    %c0_32 = arith.constant 0 : index
    %49 = vector.load %arg1[%c0_30, %c2_31, %c0_32] : memref<1x83x32xf32, #tpu.memory_space<vmem>>, vector<1x79x32xf32>
    %50 = vector.shape_cast %49 : vector<1x79x32xf32> to vector<79x32xf32>
    %51 = arith.addf %50, %48 : vector<79x32xf32>
    %cst_33 = arith.constant dense<0.000000e+00> : vector<79xf32>
    %52 = vector.multi_reduction <add>, %51, %cst_33 [1] : vector<79x32xf32> to vector<79xf32>
    %53 = vector.shape_cast %52 : vector<79xf32> to vector<79x1xf32>
    %cst_34 = arith.constant 3.200000e+01 : f32
    %54 = vector.broadcast %cst_34 : f32 to vector<79x1xf32>
    %55 = arith.divf %53, %54 : vector<79x1xf32>
    %56 = vector.broadcast %55 : vector<79x1xf32> to vector<79x32xf32>
    %57 = arith.subf %51, %56 : vector<79x32xf32>
    %58 = arith.mulf %57, %57 : vector<79x32xf32>
    %cst_35 = arith.constant dense<0.000000e+00> : vector<79xf32>
    %59 = vector.multi_reduction <add>, %58, %cst_35 [1] : vector<79x32xf32> to vector<79xf32>
    %60 = vector.shape_cast %59 : vector<79xf32> to vector<79x1xf32>
    %cst_36 = arith.constant 3.200000e+01 : f32
    %61 = vector.broadcast %cst_36 : f32 to vector<79x1xf32>
    %62 = arith.divf %60, %61 : vector<79x1xf32>
    %63 = vector.broadcast %55 : vector<79x1xf32> to vector<79x32xf32>
    %64 = arith.subf %51, %63 : vector<79x32xf32>
    %cst_37 = arith.constant 9.99999974E-6 : f32
    %65 = vector.broadcast %cst_37 : f32 to vector<79x1xf32>
    %66 = arith.addf %62, %65 : vector<79x1xf32>
    %67 = math.rsqrt %66 : vector<79x1xf32>
    %68 = vector.broadcast %67 : vector<79x1xf32> to vector<79x32xf32>
    %69 = arith.mulf %64, %68 : vector<79x32xf32>
    %c0_38 = arith.constant 0 : index
    %c0_39 = arith.constant 0 : index
    %70 = vector.load %arg4[%c0_38, %c0_39] : memref<1x32xf32, #tpu.memory_space<vmem>>, vector<1x32xf32>
    %71 = vector.broadcast %70 : vector<1x32xf32> to vector<79x32xf32>
    %72 = arith.mulf %69, %71 : vector<79x32xf32>
    %c0_40 = arith.constant 0 : index
    %c0_41 = arith.constant 0 : index
    %73 = vector.load %arg5[%c0_40, %c0_41] : memref<1x32xf32, #tpu.memory_space<vmem>>, vector<1x32xf32>
    %74 = vector.broadcast %73 : vector<1x32xf32> to vector<79x32xf32>
    %75 = arith.addf %72, %74 : vector<79x32xf32>
    %c0_42 = arith.constant 0 : index
    %c0_43 = arith.constant 0 : index
    %c0_44 = arith.constant 0 : index
    %76 = vector.load %arg6[%c0_42, %c0_43, %c0_44] : memref<1x79x32xf32, #tpu.memory_space<vmem>>, vector<1x79x32xf32>
    %77 = vector.shape_cast %76 : vector<1x79x32xf32> to vector<79x32xf32>
    %78 = vector.shape_cast %75 : vector<79x32xf32> to vector<1x79x32xf32>
    tpu.vector_store %arg6[%c0_42, %c0_43, %c0_44], %78 {strides = array<i32>} : memref<1x79x32xf32, #tpu.memory_space<vmem>>, vector<1x79x32xf32>,
    return
  }
  func.func @transform_0(%arg0: i32) -> (i32, i32, i32) {
    %c0_i32 = arith.constant 0 : i32
    %c0_i32_0 = arith.constant 0 : i32
    %c0_i32_1 = arith.constant 0 : i32
    return %arg0, %c0_i32, %c0_i32_0 : i32, i32, i32
  }
  func.func @transform_1(%arg0: i32) -> (i32, i32, i32) {
    %c0_i32 = arith.constant 0 : i32
    %c0_i32_0 = arith.constant 0 : i32
    %c0_i32_1 = arith.constant 0 : i32
    %c0_i32_2 = arith.constant 0 : i32
    return %c0_i32, %c0_i32_0, %c0_i32_1 : i32, i32, i32
  }
  func.func @transform_2(%arg0: i32) -> (i32, i32) {
    %c0_i32 = arith.constant 0 : i32
    %c0_i32_0 = arith.constant 0 : i32
    %c0_i32_1 = arith.constant 0 : i32
    return %c0_i32, %c0_i32_0 : i32, i32
  }
  func.func @transform_3(%arg0: i32) -> (i32, i32) {
    %c0_i32 = arith.constant 0 : i32
    %c0_i32_0 = arith.constant 0 : i32
    %c0_i32_1 = arith.constant 0 : i32
    return %c0_i32, %c0_i32_0 : i32, i32
  }
  func.func @transform_4(%arg0: i32) -> (i32, i32) {
    %c0_i32 = arith.constant 0 : i32
    %c0_i32_0 = arith.constant 0 : i32
    %c0_i32_1 = arith.constant 0 : i32
    return %c0_i32, %c0_i32_0 : i32, i32
  }
  func.func @transform_5(%arg0: i32) -> (i32, i32, i32) {
    %c0_i32 = arith.constant 0 : i32
    %c0_i32_0 = arith.constant 0 : i32
    %c0_i32_1 = arith.constant 0 : i32
    return %arg0, %c0_i32, %c0_i32_0 : i32, i32, i32
  }
}

module attributes {stable_mosaic.version = 11 : i64} {
  func.func @_linear_kernel(%arg0: i32, %arg1: i32, %arg2: i32, %arg3: memref<158x32xf32, #tpu.memory_space<vmem>>, %arg4: memref<32x96xf32, #tpu.memory_space<vmem>>, %arg5: memref<1x96xf32, #tpu.memory_space<vmem>>, %arg6: memref<158x96xf32, #tpu.memory_space<vmem>>, %arg7: memref<158x96xf32, #tpu.memory_space<vmem>>) attributes {dimension_semantics = [#tpu.dimension_semantics<parallel>, #tpu.dimension_semantics<parallel>, #tpu.dimension_semantics<arbitrary>], iteration_bounds = array<i64: 1, 1, 1>, scalar_prefetch = 0 : i64, scratch_operands = 1 : i64, tpu.core_type = #tpu.core_type<tc>, window_params = [{transform_indices = @transform_0, window_bounds = array<i64: 158, 32>}, {transform_indices = @transform_1, window_bounds = array<i64: 32, 96>}, {transform_indices = @transform_2, window_bounds = array<i64: 1, 96>}, {transform_indices = @transform_3, window_bounds = array<i64: 158, 96>}]} {
    %c0_i32 = arith.constant 0 : i32
    %0 = arith.cmpi eq, %arg2, %c0_i32 : i32
    %1 = arith.extui %0 : i1 to i32
    %c0_i32_0 = arith.constant 0 : i32
    %2 = arith.cmpi ne, %1, %c0_i32_0 : i32
    scf.if %2 {
      %cst_10 = arith.constant 0.000000e+00 : f32
      %14 = vector.broadcast %cst_10 : f32 to vector<158x96xf32>
      %c0_11 = arith.constant 0 : index
      %c0_12 = arith.constant 0 : index
      %15 = vector.load %arg7[%c0_11, %c0_12] : memref<158x96xf32, #tpu.memory_space<vmem>>, vector<158x96xf32>
      tpu.vector_store %arg7[%c0_11, %c0_12], %14 {strides = array<i32>} : memref<158x96xf32, #tpu.memory_space<vmem>>, vector<158x96xf32>,
    } else {
    }
    %c0 = arith.constant 0 : index
    %c0_1 = arith.constant 0 : index
    %3 = vector.load %arg7[%c0, %c0_1] : memref<158x96xf32, #tpu.memory_space<vmem>>, vector<158x96xf32>
    %c0_2 = arith.constant 0 : index
    %c0_3 = arith.constant 0 : index
    %4 = vector.load %arg3[%c0_2, %c0_3] : memref<158x32xf32, #tpu.memory_space<vmem>>, vector<158x32xf32>
    %5 = arith.truncf %4 : vector<158x32xf32> to vector<158x32xbf16>
    %c0_4 = arith.constant 0 : index
    %c0_5 = arith.constant 0 : index
    %6 = vector.load %arg4[%c0_4, %c0_5] : memref<32x96xf32, #tpu.memory_space<vmem>>, vector<32x96xf32>
    %7 = arith.truncf %6 : vector<32x96xf32> to vector<32x96xbf16>
    %cst = arith.constant dense<0.000000e+00> : vector<158x96xf32>
    %8 = tpu.matmul %5, %7, %cst {dimension_numbers = #tpu.dot_dimension_numbers<[1], [0], [0], [1], [0, 0, 1, 1], [], []>} : vector<158x32xbf16>, vector<32x96xbf16>, vector<158x96xf32> -> vector<158x96xf32>
    %9 = arith.addf %3, %8 : vector<158x96xf32>
    %c0_6 = arith.constant 0 : index
    %c0_7 = arith.constant 0 : index
    %10 = vector.load %arg7[%c0_6, %c0_7] : memref<158x96xf32, #tpu.memory_space<vmem>>, vector<158x96xf32>
    tpu.vector_store %arg7[%c0_6, %c0_7], %9 {strides = array<i32>} : memref<158x96xf32, #tpu.memory_space<vmem>>, vector<158x96xf32>,
    %c0_i32_8 = arith.constant 0 : i32
    %11 = arith.cmpi eq, %arg2, %c0_i32_8 : i32
    %12 = arith.extui %11 : i1 to i32
    %c0_i32_9 = arith.constant 0 : i32
    %13 = arith.cmpi ne, %12, %c0_i32_9 : i32
    scf.if %13 {
      %c0_10 = arith.constant 0 : index
      %c0_11 = arith.constant 0 : index
      %14 = vector.load %arg7[%c0_10, %c0_11] : memref<158x96xf32, #tpu.memory_space<vmem>>, vector<158x96xf32>
      %c0_12 = arith.constant 0 : index
      %c0_13 = arith.constant 0 : index
      %15 = vector.load %arg5[%c0_12, %c0_13] : memref<1x96xf32, #tpu.memory_space<vmem>>, vector<1x96xf32>
      %16 = vector.broadcast %15 : vector<1x96xf32> to vector<158x96xf32>
      %17 = arith.addf %14, %16 : vector<158x96xf32>
      %c0_14 = arith.constant 0 : index
      %c0_15 = arith.constant 0 : index
      %18 = vector.load %arg6[%c0_14, %c0_15] : memref<158x96xf32, #tpu.memory_space<vmem>>, vector<158x96xf32>
      tpu.vector_store %arg6[%c0_14, %c0_15], %17 {strides = array<i32>} : memref<158x96xf32, #tpu.memory_space<vmem>>, vector<158x96xf32>,
    } else {
    }
    return
  }
  func.func @transform_0(%arg0: i32, %arg1: i32, %arg2: i32) -> (i32, i32) {
    %c0_i32 = arith.constant 0 : i32
    return %arg0, %arg2 : i32, i32
  }
  func.func @transform_1(%arg0: i32, %arg1: i32, %arg2: i32) -> (i32, i32) {
    %c0_i32 = arith.constant 0 : i32
    return %arg2, %arg1 : i32, i32
  }
  func.func @transform_2(%arg0: i32, %arg1: i32, %arg2: i32) -> (i32, i32) {
    %c0_i32 = arith.constant 0 : i32
    %c0_i32_0 = arith.constant 0 : i32
    return %c0_i32, %arg1 : i32, i32
  }
  func.func @transform_3(%arg0: i32, %arg1: i32, %arg2: i32) -> (i32, i32) {
    %c0_i32 = arith.constant 0 : i32
    return %arg0, %arg1 : i32, i32
  }
}

module attributes {stable_mosaic.version = 11 : i64} {
  func.func @_attention_kernel(%arg0: i32, %arg1: memref<1x79x96xf32, #tpu.memory_space<vmem>>, %arg2: memref<1x79x32xf32, #tpu.memory_space<vmem>>) attributes {dimension_semantics = [#tpu.dimension_semantics<parallel>], iteration_bounds = array<i64: 2>, scalar_prefetch = 0 : i64, scratch_operands = 0 : i64, tpu.core_type = #tpu.core_type<tc>, window_params = [{transform_indices = @transform_0, window_bounds = array<i64: 1, 79, 96>}, {transform_indices = @transform_1, window_bounds = array<i64: 1, 79, 32>}]} {
    %c0 = arith.constant 0 : index
    %c0_0 = arith.constant 0 : index
    %c0_1 = arith.constant 0 : index
    %0 = vector.load %arg1[%c0, %c0_0, %c0_1] : memref<1x79x96xf32, #tpu.memory_space<vmem>>, vector<1x79x96xf32>
    %1 = vector.shape_cast %0 : vector<1x79x96xf32> to vector<79x96xf32>
    %2 = vector.extract_strided_slice %1 {offsets = [0, 0], sizes = [79, 32], strides = [1, 1]} : vector<79x96xf32> to vector<79x32xf32>
    %cst = arith.constant 0.353553385 : f32
    %3 = vector.broadcast %cst : f32 to vector<79x32xf32>
    %4 = arith.mulf %2, %3 : vector<79x32xf32>
    %5 = vector.extract_strided_slice %1 {offsets = [0, 32], sizes = [79, 32], strides = [1, 1]} : vector<79x96xf32> to vector<79x32xf32>
    %6 = vector.extract_strided_slice %1 {offsets = [0, 64], sizes = [79, 32], strides = [1, 1]} : vector<79x96xf32> to vector<79x32xf32>
    %7 = vector.extract_strided_slice %4 {offsets = [0, 0], sizes = [79, 8], strides = [1, 1]} : vector<79x32xf32> to vector<79x8xf32>
    %8 = arith.truncf %7 : vector<79x8xf32> to vector<79x8xbf16>
    %9 = vector.extract_strided_slice %5 {offsets = [0, 0], sizes = [79, 8], strides = [1, 1]} : vector<79x32xf32> to vector<79x8xf32>
    %10 = arith.truncf %9 : vector<79x8xf32> to vector<79x8xbf16>
    %cst_2 = arith.constant dense<0.000000e+00> : vector<79x79xf32>
    %11 = tpu.matmul %8, %10, %cst_2 {dimension_numbers = #tpu.dot_dimension_numbers<[1], [1], [0], [0], [0, 0, 1, 0], [], []>} : vector<79x8xbf16>, vector<79x8xbf16>, vector<79x79xf32> -> vector<79x79xf32>
    %cst_3 = arith.constant dense<0xFF800000> : vector<79xf32>
    %12 = vector.multi_reduction <maximumf>, %11, %cst_3 [1] : vector<79x79xf32> to vector<79xf32>
    %13 = vector.shape_cast %12 : vector<79xf32> to vector<79x1xf32>
    %14 = vector.broadcast %13 : vector<79x1xf32> to vector<79x79xf32>
    %15 = arith.subf %11, %14 : vector<79x79xf32>
    %16 = math.exp %15 : vector<79x79xf32>
    %cst_4 = arith.constant dense<0.000000e+00> : vector<79xf32>
    %17 = vector.multi_reduction <add>, %16, %cst_4 [1] : vector<79x79xf32> to vector<79xf32>
    %18 = vector.shape_cast %17 : vector<79xf32> to vector<79x1xf32>
    %19 = tpu.reciprocal %18 {approx = true} : vector<79x1xf32> -> vector<79x1xf32>
    %20 = vector.broadcast %19 : vector<79x1xf32> to vector<79x79xf32>
    %21 = arith.mulf %16, %20 : vector<79x79xf32>
    %22 = arith.truncf %21 : vector<79x79xf32> to vector<79x79xbf16>
    %23 = vector.extract_strided_slice %6 {offsets = [0, 0], sizes = [79, 8], strides = [1, 1]} : vector<79x32xf32> to vector<79x8xf32>
    %24 = arith.truncf %23 : vector<79x8xf32> to vector<79x8xbf16>
    %cst_5 = arith.constant dense<0.000000e+00> : vector<79x8xf32>
    %25 = tpu.matmul %22, %24, %cst_5 {dimension_numbers = #tpu.dot_dimension_numbers<[1], [0], [0], [1], [0, 0, 1, 1], [], []>} : vector<79x79xbf16>, vector<79x8xbf16>, vector<79x8xf32> -> vector<79x8xf32>
    %26 = vector.extract_strided_slice %4 {offsets = [0, 8], sizes = [79, 8], strides = [1, 1]} : vector<79x32xf32> to vector<79x8xf32>
    %27 = arith.truncf %26 : vector<79x8xf32> to vector<79x8xbf16>
    %28 = vector.extract_strided_slice %5 {offsets = [0, 8], sizes = [79, 8], strides = [1, 1]} : vector<79x32xf32> to vector<79x8xf32>
    %29 = arith.truncf %28 : vector<79x8xf32> to vector<79x8xbf16>
    %cst_6 = arith.constant dense<0.000000e+00> : vector<79x79xf32>
    %30 = tpu.matmul %27, %29, %cst_6 {dimension_numbers = #tpu.dot_dimension_numbers<[1], [1], [0], [0], [0, 0, 1, 0], [], []>} : vector<79x8xbf16>, vector<79x8xbf16>, vector<79x79xf32> -> vector<79x79xf32>
    %cst_7 = arith.constant dense<0xFF800000> : vector<79xf32>
    %31 = vector.multi_reduction <maximumf>, %30, %cst_7 [1] : vector<79x79xf32> to vector<79xf32>
    %32 = vector.shape_cast %31 : vector<79xf32> to vector<79x1xf32>
    %33 = vector.broadcast %32 : vector<79x1xf32> to vector<79x79xf32>
    %34 = arith.subf %30, %33 : vector<79x79xf32>
    %35 = math.exp %34 : vector<79x79xf32>
    %cst_8 = arith.constant dense<0.000000e+00> : vector<79xf32>
    %36 = vector.multi_reduction <add>, %35, %cst_8 [1] : vector<79x79xf32> to vector<79xf32>
    %37 = vector.shape_cast %36 : vector<79xf32> to vector<79x1xf32>
    %38 = tpu.reciprocal %37 {approx = true} : vector<79x1xf32> -> vector<79x1xf32>
    %39 = vector.broadcast %38 : vector<79x1xf32> to vector<79x79xf32>
    %40 = arith.mulf %35, %39 : vector<79x79xf32>
    %41 = arith.truncf %40 : vector<79x79xf32> to vector<79x79xbf16>
    %42 = vector.extract_strided_slice %6 {offsets = [0, 8], sizes = [79, 8], strides = [1, 1]} : vector<79x32xf32> to vector<79x8xf32>
    %43 = arith.truncf %42 : vector<79x8xf32> to vector<79x8xbf16>
    %cst_9 = arith.constant dense<0.000000e+00> : vector<79x8xf32>
    %44 = tpu.matmul %41, %43, %cst_9 {dimension_numbers = #tpu.dot_dimension_numbers<[1], [0], [0], [1], [0, 0, 1, 1], [], []>} : vector<79x79xbf16>, vector<79x8xbf16>, vector<79x8xf32> -> vector<79x8xf32>
    %45 = vector.extract_strided_slice %4 {offsets = [0, 16], sizes = [79, 8], strides = [1, 1]} : vector<79x32xf32> to vector<79x8xf32>
    %46 = arith.truncf %45 : vector<79x8xf32> to vector<79x8xbf16>
    %47 = vector.extract_strided_slice %5 {offsets = [0, 16], sizes = [79, 8], strides = [1, 1]} : vector<79x32xf32> to vector<79x8xf32>
    %48 = arith.truncf %47 : vector<79x8xf32> to vector<79x8xbf16>
    %cst_10 = arith.constant dense<0.000000e+00> : vector<79x79xf32>
    %49 = tpu.matmul %46, %48, %cst_10 {dimension_numbers = #tpu.dot_dimension_numbers<[1], [1], [0], [0], [0, 0, 1, 0], [], []>} : vector<79x8xbf16>, vector<79x8xbf16>, vector<79x79xf32> -> vector<79x79xf32>
    %cst_11 = arith.constant dense<0xFF800000> : vector<79xf32>
    %50 = vector.multi_reduction <maximumf>, %49, %cst_11 [1] : vector<79x79xf32> to vector<79xf32>
    %51 = vector.shape_cast %50 : vector<79xf32> to vector<79x1xf32>
    %52 = vector.broadcast %51 : vector<79x1xf32> to vector<79x79xf32>
    %53 = arith.subf %49, %52 : vector<79x79xf32>
    %54 = math.exp %53 : vector<79x79xf32>
    %cst_12 = arith.constant dense<0.000000e+00> : vector<79xf32>
    %55 = vector.multi_reduction <add>, %54, %cst_12 [1] : vector<79x79xf32> to vector<79xf32>
    %56 = vector.shape_cast %55 : vector<79xf32> to vector<79x1xf32>
    %57 = tpu.reciprocal %56 {approx = true} : vector<79x1xf32> -> vector<79x1xf32>
    %58 = vector.broadcast %57 : vector<79x1xf32> to vector<79x79xf32>
    %59 = arith.mulf %54, %58 : vector<79x79xf32>
    %60 = arith.truncf %59 : vector<79x79xf32> to vector<79x79xbf16>
    %61 = vector.extract_strided_slice %6 {offsets = [0, 16], sizes = [79, 8], strides = [1, 1]} : vector<79x32xf32> to vector<79x8xf32>
    %62 = arith.truncf %61 : vector<79x8xf32> to vector<79x8xbf16>
    %cst_13 = arith.constant dense<0.000000e+00> : vector<79x8xf32>
    %63 = tpu.matmul %60, %62, %cst_13 {dimension_numbers = #tpu.dot_dimension_numbers<[1], [0], [0], [1], [0, 0, 1, 1], [], []>} : vector<79x79xbf16>, vector<79x8xbf16>, vector<79x8xf32> -> vector<79x8xf32>
    %64 = vector.extract_strided_slice %4 {offsets = [0, 24], sizes = [79, 8], strides = [1, 1]} : vector<79x32xf32> to vector<79x8xf32>
    %65 = arith.truncf %64 : vector<79x8xf32> to vector<79x8xbf16>
    %66 = vector.extract_strided_slice %5 {offsets = [0, 24], sizes = [79, 8], strides = [1, 1]} : vector<79x32xf32> to vector<79x8xf32>
    %67 = arith.truncf %66 : vector<79x8xf32> to vector<79x8xbf16>
    %cst_14 = arith.constant dense<0.000000e+00> : vector<79x79xf32>
    %68 = tpu.matmul %65, %67, %cst_14 {dimension_numbers = #tpu.dot_dimension_numbers<[1], [1], [0], [0], [0, 0, 1, 0], [], []>} : vector<79x8xbf16>, vector<79x8xbf16>, vector<79x79xf32> -> vector<79x79xf32>
    %cst_15 = arith.constant dense<0xFF800000> : vector<79xf32>
    %69 = vector.multi_reduction <maximumf>, %68, %cst_15 [1] : vector<79x79xf32> to vector<79xf32>
    %70 = vector.shape_cast %69 : vector<79xf32> to vector<79x1xf32>
    %71 = vector.broadcast %70 : vector<79x1xf32> to vector<79x79xf32>
    %72 = arith.subf %68, %71 : vector<79x79xf32>
    %73 = math.exp %72 : vector<79x79xf32>
    %cst_16 = arith.constant dense<0.000000e+00> : vector<79xf32>
    %74 = vector.multi_reduction <add>, %73, %cst_16 [1] : vector<79x79xf32> to vector<79xf32>
    %75 = vector.shape_cast %74 : vector<79xf32> to vector<79x1xf32>
    %76 = tpu.reciprocal %75 {approx = true} : vector<79x1xf32> -> vector<79x1xf32>
    %77 = vector.broadcast %76 : vector<79x1xf32> to vector<79x79xf32>
    %78 = arith.mulf %73, %77 : vector<79x79xf32>
    %79 = arith.truncf %78 : vector<79x79xf32> to vector<79x79xbf16>
    %80 = vector.extract_strided_slice %6 {offsets = [0, 24], sizes = [79, 8], strides = [1, 1]} : vector<79x32xf32> to vector<79x8xf32>
    %81 = arith.truncf %80 : vector<79x8xf32> to vector<79x8xbf16>
    %cst_17 = arith.constant dense<0.000000e+00> : vector<79x8xf32>
    %82 = tpu.matmul %79, %81, %cst_17 {dimension_numbers = #tpu.dot_dimension_numbers<[1], [0], [0], [1], [0, 0, 1, 1], [], []>} : vector<79x79xbf16>, vector<79x8xbf16>, vector<79x8xf32> -> vector<79x8xf32>
    %83 = tpu.concatenate %25, %44, %63, %82 in 1 : vector<79x8xf32>, vector<79x8xf32>, vector<79x8xf32>, vector<79x8xf32> -> vector<79x32xf32>
    %c0_18 = arith.constant 0 : index
    %c0_19 = arith.constant 0 : index
    %c0_20 = arith.constant 0 : index
    %84 = vector.load %arg2[%c0_18, %c0_19, %c0_20] : memref<1x79x32xf32, #tpu.memory_space<vmem>>, vector<1x79x32xf32>
    %85 = vector.shape_cast %84 : vector<1x79x32xf32> to vector<79x32xf32>
    %86 = vector.shape_cast %83 : vector<79x32xf32> to vector<1x79x32xf32>
    tpu.vector_store %arg2[%c0_18, %c0_19, %c0_20], %86 {strides = array<i32>} : memref<1x79x32xf32, #tpu.memory_space<vmem>>, vector<1x79x32xf32>,
    return
  }
  func.func @transform_0(%arg0: i32) -> (i32, i32, i32) {
    %c0_i32 = arith.constant 0 : i32
    %c0_i32_0 = arith.constant 0 : i32
    %c0_i32_1 = arith.constant 0 : i32
    return %arg0, %c0_i32, %c0_i32_0 : i32, i32, i32
  }
  func.func @transform_1(%arg0: i32) -> (i32, i32, i32) {
    %c0_i32 = arith.constant 0 : i32
    %c0_i32_0 = arith.constant 0 : i32
    %c0_i32_1 = arith.constant 0 : i32
    return %arg0, %c0_i32, %c0_i32_0 : i32, i32, i32
  }
}

module attributes {stable_mosaic.version = 11 : i64} {
  func.func @_linear_res_ln_kernel(%arg0: i32, %arg1: i32, %arg2: memref<158x32xf32, #tpu.memory_space<vmem>>, %arg3: memref<32x32xf32, #tpu.memory_space<vmem>>, %arg4: memref<1x32xf32, #tpu.memory_space<vmem>>, %arg5: memref<158x32xf32, #tpu.memory_space<vmem>>, %arg6: memref<1x32xf32, #tpu.memory_space<vmem>>, %arg7: memref<1x32xf32, #tpu.memory_space<vmem>>, %arg8: memref<158x32xf32, #tpu.memory_space<vmem>>, %arg9: memref<158x32xf32, #tpu.memory_space<vmem>>) attributes {dimension_semantics = [#tpu.dimension_semantics<parallel>, #tpu.dimension_semantics<arbitrary>], iteration_bounds = array<i64: 1, 1>, scalar_prefetch = 0 : i64, scratch_operands = 1 : i64, tpu.core_type = #tpu.core_type<tc>, window_params = [{transform_indices = @transform_0, window_bounds = array<i64: 158, 32>}, {transform_indices = @transform_1, window_bounds = array<i64: 32, 32>}, {pipeline_mode = #tpu.pipeline_mode<synchronous>, transform_indices = @transform_2, window_bounds = array<i64: 1, 32>}, {transform_indices = @transform_3, window_bounds = array<i64: 158, 32>}, {pipeline_mode = #tpu.pipeline_mode<synchronous>, transform_indices = @transform_4, window_bounds = array<i64: 1, 32>}, {pipeline_mode = #tpu.pipeline_mode<synchronous>, transform_indices = @transform_5, window_bounds = array<i64: 1, 32>}, {transform_indices = @transform_6, window_bounds = array<i64: 158, 32>}]} {
    %c0_i32 = arith.constant 0 : i32
    %0 = arith.cmpi eq, %arg1, %c0_i32 : i32
    %1 = arith.extui %0 : i1 to i32
    %c0_i32_0 = arith.constant 0 : i32
    %2 = arith.cmpi ne, %1, %c0_i32_0 : i32
    scf.if %2 {
      %cst_10 = arith.constant 0.000000e+00 : f32
      %14 = vector.broadcast %cst_10 : f32 to vector<158x32xf32>
      %c0_11 = arith.constant 0 : index
      %c0_12 = arith.constant 0 : index
      %15 = vector.load %arg9[%c0_11, %c0_12] : memref<158x32xf32, #tpu.memory_space<vmem>>, vector<158x32xf32>
      tpu.vector_store %arg9[%c0_11, %c0_12], %14 {strides = array<i32>} : memref<158x32xf32, #tpu.memory_space<vmem>>, vector<158x32xf32>,
    } else {
    }
    %c0 = arith.constant 0 : index
    %c0_1 = arith.constant 0 : index
    %3 = vector.load %arg9[%c0, %c0_1] : memref<158x32xf32, #tpu.memory_space<vmem>>, vector<158x32xf32>
    %c0_2 = arith.constant 0 : index
    %c0_3 = arith.constant 0 : index
    %4 = vector.load %arg2[%c0_2, %c0_3] : memref<158x32xf32, #tpu.memory_space<vmem>>, vector<158x32xf32>
    %5 = arith.truncf %4 : vector<158x32xf32> to vector<158x32xbf16>
    %c0_4 = arith.constant 0 : index
    %c0_5 = arith.constant 0 : index
    %6 = vector.load %arg3[%c0_4, %c0_5] : memref<32x32xf32, #tpu.memory_space<vmem>>, vector<32x32xf32>
    %7 = arith.truncf %6 : vector<32x32xf32> to vector<32x32xbf16>
    %cst = arith.constant dense<0.000000e+00> : vector<158x32xf32>
    %8 = tpu.matmul %5, %7, %cst {dimension_numbers = #tpu.dot_dimension_numbers<[1], [0], [0], [1], [0, 0, 1, 1], [], []>} : vector<158x32xbf16>, vector<32x32xbf16>, vector<158x32xf32> -> vector<158x32xf32>
    %9 = arith.addf %3, %8 : vector<158x32xf32>
    %c0_6 = arith.constant 0 : index
    %c0_7 = arith.constant 0 : index
    %10 = vector.load %arg9[%c0_6, %c0_7] : memref<158x32xf32, #tpu.memory_space<vmem>>, vector<158x32xf32>
    tpu.vector_store %arg9[%c0_6, %c0_7], %9 {strides = array<i32>} : memref<158x32xf32, #tpu.memory_space<vmem>>, vector<158x32xf32>,
    %c0_i32_8 = arith.constant 0 : i32
    %11 = arith.cmpi eq, %arg1, %c0_i32_8 : i32
    %12 = arith.extui %11 : i1 to i32
    %c0_i32_9 = arith.constant 0 : i32
    %13 = arith.cmpi ne, %12, %c0_i32_9 : i32
    scf.if %13 {
      %c0_10 = arith.constant 0 : index
      %c0_11 = arith.constant 0 : index
      %14 = vector.load %arg9[%c0_10, %c0_11] : memref<158x32xf32, #tpu.memory_space<vmem>>, vector<158x32xf32>
      %c0_12 = arith.constant 0 : index
      %c0_13 = arith.constant 0 : index
      %15 = vector.load %arg4[%c0_12, %c0_13] : memref<1x32xf32, #tpu.memory_space<vmem>>, vector<1x32xf32>
      %16 = vector.broadcast %15 : vector<1x32xf32> to vector<158x32xf32>
      %17 = arith.addf %14, %16 : vector<158x32xf32>
      %c0_14 = arith.constant 0 : index
      %c0_15 = arith.constant 0 : index
      %18 = vector.load %arg5[%c0_14, %c0_15] : memref<158x32xf32, #tpu.memory_space<vmem>>, vector<158x32xf32>
      %19 = arith.addf %17, %18 : vector<158x32xf32>
      %cst_16 = arith.constant dense<0.000000e+00> : vector<158xf32>
      %20 = vector.multi_reduction <add>, %19, %cst_16 [1] : vector<158x32xf32> to vector<158xf32>
      %21 = vector.shape_cast %20 : vector<158xf32> to vector<158x1xf32>
      %cst_17 = arith.constant 3.200000e+01 : f32
      %22 = vector.broadcast %cst_17 : f32 to vector<158x1xf32>
      %23 = arith.divf %21, %22 : vector<158x1xf32>
      %24 = vector.broadcast %23 : vector<158x1xf32> to vector<158x32xf32>
      %25 = arith.subf %19, %24 : vector<158x32xf32>
      %26 = arith.mulf %25, %25 : vector<158x32xf32>
      %cst_18 = arith.constant dense<0.000000e+00> : vector<158xf32>
      %27 = vector.multi_reduction <add>, %26, %cst_18 [1] : vector<158x32xf32> to vector<158xf32>
      %28 = vector.shape_cast %27 : vector<158xf32> to vector<158x1xf32>
      %cst_19 = arith.constant 3.200000e+01 : f32
      %29 = vector.broadcast %cst_19 : f32 to vector<158x1xf32>
      %30 = arith.divf %28, %29 : vector<158x1xf32>
      %31 = vector.broadcast %23 : vector<158x1xf32> to vector<158x32xf32>
      %32 = arith.subf %19, %31 : vector<158x32xf32>
      %cst_20 = arith.constant 9.99999974E-6 : f32
      %33 = vector.broadcast %cst_20 : f32 to vector<158x1xf32>
      %34 = arith.addf %30, %33 : vector<158x1xf32>
      %35 = math.rsqrt %34 : vector<158x1xf32>
      %36 = vector.broadcast %35 : vector<158x1xf32> to vector<158x32xf32>
      %37 = arith.mulf %32, %36 : vector<158x32xf32>
      %c0_21 = arith.constant 0 : index
      %c0_22 = arith.constant 0 : index
      %38 = vector.load %arg6[%c0_21, %c0_22] : memref<1x32xf32, #tpu.memory_space<vmem>>, vector<1x32xf32>
      %39 = vector.broadcast %38 : vector<1x32xf32> to vector<158x32xf32>
      %40 = arith.mulf %37, %39 : vector<158x32xf32>
      %c0_23 = arith.constant 0 : index
      %c0_24 = arith.constant 0 : index
      %41 = vector.load %arg7[%c0_23, %c0_24] : memref<1x32xf32, #tpu.memory_space<vmem>>, vector<1x32xf32>
      %42 = vector.broadcast %41 : vector<1x32xf32> to vector<158x32xf32>
      %43 = arith.addf %40, %42 : vector<158x32xf32>
      %c0_25 = arith.constant 0 : index
      %c0_26 = arith.constant 0 : index
      %44 = vector.load %arg8[%c0_25, %c0_26] : memref<158x32xf32, #tpu.memory_space<vmem>>, vector<158x32xf32>
      tpu.vector_store %arg8[%c0_25, %c0_26], %43 {strides = array<i32>} : memref<158x32xf32, #tpu.memory_space<vmem>>, vector<158x32xf32>,
    } else {
    }
    return
  }
  func.func @transform_0(%arg0: i32, %arg1: i32) -> (i32, i32) {
    %c0_i32 = arith.constant 0 : i32
    return %arg0, %arg1 : i32, i32
  }
  func.func @transform_1(%arg0: i32, %arg1: i32) -> (i32, i32) {
    %c0_i32 = arith.constant 0 : i32
    %c0_i32_0 = arith.constant 0 : i32
    return %arg1, %c0_i32 : i32, i32
  }
  func.func @transform_2(%arg0: i32, %arg1: i32) -> (i32, i32) {
    %c0_i32 = arith.constant 0 : i32
    %c0_i32_0 = arith.constant 0 : i32
    %c0_i32_1 = arith.constant 0 : i32
    return %c0_i32, %c0_i32_0 : i32, i32
  }
  func.func @transform_3(%arg0: i32, %arg1: i32) -> (i32, i32) {
    %c0_i32 = arith.constant 0 : i32
    %c0_i32_0 = arith.constant 0 : i32
    return %arg0, %c0_i32 : i32, i32
  }
  func.func @transform_4(%arg0: i32, %arg1: i32) -> (i32, i32) {
    %c0_i32 = arith.constant 0 : i32
    %c0_i32_0 = arith.constant 0 : i32
    %c0_i32_1 = arith.constant 0 : i32
    return %c0_i32, %c0_i32_0 : i32, i32
  }
  func.func @transform_5(%arg0: i32, %arg1: i32) -> (i32, i32) {
    %c0_i32 = arith.constant 0 : i32
    %c0_i32_0 = arith.constant 0 : i32
    %c0_i32_1 = arith.constant 0 : i32
    return %c0_i32, %c0_i32_0 : i32, i32
  }
  func.func @transform_6(%arg0: i32, %arg1: i32) -> (i32, i32) {
    %c0_i32 = arith.constant 0 : i32
    %c0_i32_0 = arith.constant 0 : i32
    return %arg0, %c0_i32 : i32, i32
  }
}

module attributes {stable_mosaic.version = 11 : i64} {
  func.func @_linear_kernel(%arg0: i32, %arg1: i32, %arg2: i32, %arg3: memref<158x32xf32, #tpu.memory_space<vmem>>, %arg4: memref<32x64xf32, #tpu.memory_space<vmem>>, %arg5: memref<1x64xf32, #tpu.memory_space<vmem>>, %arg6: memref<158x64xf32, #tpu.memory_space<vmem>>, %arg7: memref<158x64xf32, #tpu.memory_space<vmem>>) attributes {dimension_semantics = [#tpu.dimension_semantics<parallel>, #tpu.dimension_semantics<parallel>, #tpu.dimension_semantics<arbitrary>], iteration_bounds = array<i64: 1, 1, 1>, scalar_prefetch = 0 : i64, scratch_operands = 1 : i64, tpu.core_type = #tpu.core_type<tc>, window_params = [{transform_indices = @transform_0, window_bounds = array<i64: 158, 32>}, {transform_indices = @transform_1, window_bounds = array<i64: 32, 64>}, {transform_indices = @transform_2, window_bounds = array<i64: 1, 64>}, {transform_indices = @transform_3, window_bounds = array<i64: 158, 64>}]} {
    %c0_i32 = arith.constant 0 : i32
    %0 = arith.cmpi eq, %arg2, %c0_i32 : i32
    %1 = arith.extui %0 : i1 to i32
    %c0_i32_0 = arith.constant 0 : i32
    %2 = arith.cmpi ne, %1, %c0_i32_0 : i32
    scf.if %2 {
      %cst_10 = arith.constant 0.000000e+00 : f32
      %14 = vector.broadcast %cst_10 : f32 to vector<158x64xf32>
      %c0_11 = arith.constant 0 : index
      %c0_12 = arith.constant 0 : index
      %15 = vector.load %arg7[%c0_11, %c0_12] : memref<158x64xf32, #tpu.memory_space<vmem>>, vector<158x64xf32>
      tpu.vector_store %arg7[%c0_11, %c0_12], %14 {strides = array<i32>} : memref<158x64xf32, #tpu.memory_space<vmem>>, vector<158x64xf32>,
    } else {
    }
    %c0 = arith.constant 0 : index
    %c0_1 = arith.constant 0 : index
    %3 = vector.load %arg7[%c0, %c0_1] : memref<158x64xf32, #tpu.memory_space<vmem>>, vector<158x64xf32>
    %c0_2 = arith.constant 0 : index
    %c0_3 = arith.constant 0 : index
    %4 = vector.load %arg3[%c0_2, %c0_3] : memref<158x32xf32, #tpu.memory_space<vmem>>, vector<158x32xf32>
    %5 = arith.truncf %4 : vector<158x32xf32> to vector<158x32xbf16>
    %c0_4 = arith.constant 0 : index
    %c0_5 = arith.constant 0 : index
    %6 = vector.load %arg4[%c0_4, %c0_5] : memref<32x64xf32, #tpu.memory_space<vmem>>, vector<32x64xf32>
    %7 = arith.truncf %6 : vector<32x64xf32> to vector<32x64xbf16>
    %cst = arith.constant dense<0.000000e+00> : vector<158x64xf32>
    %8 = tpu.matmul %5, %7, %cst {dimension_numbers = #tpu.dot_dimension_numbers<[1], [0], [0], [1], [0, 0, 1, 1], [], []>} : vector<158x32xbf16>, vector<32x64xbf16>, vector<158x64xf32> -> vector<158x64xf32>
    %9 = arith.addf %3, %8 : vector<158x64xf32>
    %c0_6 = arith.constant 0 : index
    %c0_7 = arith.constant 0 : index
    %10 = vector.load %arg7[%c0_6, %c0_7] : memref<158x64xf32, #tpu.memory_space<vmem>>, vector<158x64xf32>
    tpu.vector_store %arg7[%c0_6, %c0_7], %9 {strides = array<i32>} : memref<158x64xf32, #tpu.memory_space<vmem>>, vector<158x64xf32>,
    %c0_i32_8 = arith.constant 0 : i32
    %11 = arith.cmpi eq, %arg2, %c0_i32_8 : i32
    %12 = arith.extui %11 : i1 to i32
    %c0_i32_9 = arith.constant 0 : i32
    %13 = arith.cmpi ne, %12, %c0_i32_9 : i32
    scf.if %13 {
      %c0_10 = arith.constant 0 : index
      %c0_11 = arith.constant 0 : index
      %14 = vector.load %arg7[%c0_10, %c0_11] : memref<158x64xf32, #tpu.memory_space<vmem>>, vector<158x64xf32>
      %c0_12 = arith.constant 0 : index
      %c0_13 = arith.constant 0 : index
      %15 = vector.load %arg5[%c0_12, %c0_13] : memref<1x64xf32, #tpu.memory_space<vmem>>, vector<1x64xf32>
      %16 = vector.broadcast %15 : vector<1x64xf32> to vector<158x64xf32>
      %17 = arith.addf %14, %16 : vector<158x64xf32>
      %cst_14 = arith.constant 5.000000e-01 : f32
      %18 = vector.broadcast %cst_14 : f32 to vector<158x64xf32>
      %19 = arith.mulf %18, %17 : vector<158x64xf32>
      %cst_15 = arith.constant 4.471500e-02 : f32
      %20 = vector.broadcast %cst_15 : f32 to vector<158x64xf32>
      %21 = arith.mulf %20, %17 : vector<158x64xf32>
      %22 = arith.mulf %21, %17 : vector<158x64xf32>
      %23 = arith.mulf %22, %17 : vector<158x64xf32>
      %24 = arith.addf %17, %23 : vector<158x64xf32>
      %cst_16 = arith.constant 0.797884583 : f32
      %25 = vector.broadcast %cst_16 : f32 to vector<158x64xf32>
      %26 = arith.mulf %25, %24 : vector<158x64xf32>
      %27 = math.tanh %26 : vector<158x64xf32>
      %cst_17 = arith.constant 1.000000e+00 : f32
      %28 = vector.broadcast %cst_17 : f32 to vector<158x64xf32>
      %29 = arith.addf %28, %27 : vector<158x64xf32>
      %30 = arith.mulf %19, %29 : vector<158x64xf32>
      %c0_18 = arith.constant 0 : index
      %c0_19 = arith.constant 0 : index
      %31 = vector.load %arg6[%c0_18, %c0_19] : memref<158x64xf32, #tpu.memory_space<vmem>>, vector<158x64xf32>
      tpu.vector_store %arg6[%c0_18, %c0_19], %30 {strides = array<i32>} : memref<158x64xf32, #tpu.memory_space<vmem>>, vector<158x64xf32>,
    } else {
    }
    return
  }
  func.func @transform_0(%arg0: i32, %arg1: i32, %arg2: i32) -> (i32, i32) {
    %c0_i32 = arith.constant 0 : i32
    return %arg0, %arg2 : i32, i32
  }
  func.func @transform_1(%arg0: i32, %arg1: i32, %arg2: i32) -> (i32, i32) {
    %c0_i32 = arith.constant 0 : i32
    return %arg2, %arg1 : i32, i32
  }
  func.func @transform_2(%arg0: i32, %arg1: i32, %arg2: i32) -> (i32, i32) {
    %c0_i32 = arith.constant 0 : i32
    %c0_i32_0 = arith.constant 0 : i32
    return %c0_i32, %arg1 : i32, i32
  }
  func.func @transform_3(%arg0: i32, %arg1: i32, %arg2: i32) -> (i32, i32) {
    %c0_i32 = arith.constant 0 : i32
    return %arg0, %arg1 : i32, i32
  }
}

module attributes {stable_mosaic.version = 11 : i64} {
  func.func @_linear_res_ln_kernel(%arg0: i32, %arg1: i32, %arg2: memref<158x64xf32, #tpu.memory_space<vmem>>, %arg3: memref<64x32xf32, #tpu.memory_space<vmem>>, %arg4: memref<1x32xf32, #tpu.memory_space<vmem>>, %arg5: memref<158x32xf32, #tpu.memory_space<vmem>>, %arg6: memref<1x32xf32, #tpu.memory_space<vmem>>, %arg7: memref<1x32xf32, #tpu.memory_space<vmem>>, %arg8: memref<158x32xf32, #tpu.memory_space<vmem>>, %arg9: memref<158x32xf32, #tpu.memory_space<vmem>>) attributes {dimension_semantics = [#tpu.dimension_semantics<parallel>, #tpu.dimension_semantics<arbitrary>], iteration_bounds = array<i64: 1, 1>, scalar_prefetch = 0 : i64, scratch_operands = 1 : i64, tpu.core_type = #tpu.core_type<tc>, window_params = [{transform_indices = @transform_0, window_bounds = array<i64: 158, 64>}, {transform_indices = @transform_1, window_bounds = array<i64: 64, 32>}, {pipeline_mode = #tpu.pipeline_mode<synchronous>, transform_indices = @transform_2, window_bounds = array<i64: 1, 32>}, {transform_indices = @transform_3, window_bounds = array<i64: 158, 32>}, {pipeline_mode = #tpu.pipeline_mode<synchronous>, transform_indices = @transform_4, window_bounds = array<i64: 1, 32>}, {pipeline_mode = #tpu.pipeline_mode<synchronous>, transform_indices = @transform_5, window_bounds = array<i64: 1, 32>}, {transform_indices = @transform_6, window_bounds = array<i64: 158, 32>}]} {
    %c0_i32 = arith.constant 0 : i32
    %0 = arith.cmpi eq, %arg1, %c0_i32 : i32
    %1 = arith.extui %0 : i1 to i32
    %c0_i32_0 = arith.constant 0 : i32
    %2 = arith.cmpi ne, %1, %c0_i32_0 : i32
    scf.if %2 {
      %cst_10 = arith.constant 0.000000e+00 : f32
      %14 = vector.broadcast %cst_10 : f32 to vector<158x32xf32>
      %c0_11 = arith.constant 0 : index
      %c0_12 = arith.constant 0 : index
      %15 = vector.load %arg9[%c0_11, %c0_12] : memref<158x32xf32, #tpu.memory_space<vmem>>, vector<158x32xf32>
      tpu.vector_store %arg9[%c0_11, %c0_12], %14 {strides = array<i32>} : memref<158x32xf32, #tpu.memory_space<vmem>>, vector<158x32xf32>,
    } else {
    }
    %c0 = arith.constant 0 : index
    %c0_1 = arith.constant 0 : index
    %3 = vector.load %arg9[%c0, %c0_1] : memref<158x32xf32, #tpu.memory_space<vmem>>, vector<158x32xf32>
    %c0_2 = arith.constant 0 : index
    %c0_3 = arith.constant 0 : index
    %4 = vector.load %arg2[%c0_2, %c0_3] : memref<158x64xf32, #tpu.memory_space<vmem>>, vector<158x64xf32>
    %5 = arith.truncf %4 : vector<158x64xf32> to vector<158x64xbf16>
    %c0_4 = arith.constant 0 : index
    %c0_5 = arith.constant 0 : index
    %6 = vector.load %arg3[%c0_4, %c0_5] : memref<64x32xf32, #tpu.memory_space<vmem>>, vector<64x32xf32>
    %7 = arith.truncf %6 : vector<64x32xf32> to vector<64x32xbf16>
    %cst = arith.constant dense<0.000000e+00> : vector<158x32xf32>
    %8 = tpu.matmul %5, %7, %cst {dimension_numbers = #tpu.dot_dimension_numbers<[1], [0], [0], [1], [0, 0, 1, 1], [], []>} : vector<158x64xbf16>, vector<64x32xbf16>, vector<158x32xf32> -> vector<158x32xf32>
    %9 = arith.addf %3, %8 : vector<158x32xf32>
    %c0_6 = arith.constant 0 : index
    %c0_7 = arith.constant 0 : index
    %10 = vector.load %arg9[%c0_6, %c0_7] : memref<158x32xf32, #tpu.memory_space<vmem>>, vector<158x32xf32>
    tpu.vector_store %arg9[%c0_6, %c0_7], %9 {strides = array<i32>} : memref<158x32xf32, #tpu.memory_space<vmem>>, vector<158x32xf32>,
    %c0_i32_8 = arith.constant 0 : i32
    %11 = arith.cmpi eq, %arg1, %c0_i32_8 : i32
    %12 = arith.extui %11 : i1 to i32
    %c0_i32_9 = arith.constant 0 : i32
    %13 = arith.cmpi ne, %12, %c0_i32_9 : i32
    scf.if %13 {
      %c0_10 = arith.constant 0 : index
      %c0_11 = arith.constant 0 : index
      %14 = vector.load %arg9[%c0_10, %c0_11] : memref<158x32xf32, #tpu.memory_space<vmem>>, vector<158x32xf32>
      %c0_12 = arith.constant 0 : index
      %c0_13 = arith.constant 0 : index
      %15 = vector.load %arg4[%c0_12, %c0_13] : memref<1x32xf32, #tpu.memory_space<vmem>>, vector<1x32xf32>
      %16 = vector.broadcast %15 : vector<1x32xf32> to vector<158x32xf32>
      %17 = arith.addf %14, %16 : vector<158x32xf32>
      %c0_14 = arith.constant 0 : index
      %c0_15 = arith.constant 0 : index
      %18 = vector.load %arg5[%c0_14, %c0_15] : memref<158x32xf32, #tpu.memory_space<vmem>>, vector<158x32xf32>
      %19 = arith.addf %17, %18 : vector<158x32xf32>
      %cst_16 = arith.constant dense<0.000000e+00> : vector<158xf32>
      %20 = vector.multi_reduction <add>, %19, %cst_16 [1] : vector<158x32xf32> to vector<158xf32>
      %21 = vector.shape_cast %20 : vector<158xf32> to vector<158x1xf32>
      %cst_17 = arith.constant 3.200000e+01 : f32
      %22 = vector.broadcast %cst_17 : f32 to vector<158x1xf32>
      %23 = arith.divf %21, %22 : vector<158x1xf32>
      %24 = vector.broadcast %23 : vector<158x1xf32> to vector<158x32xf32>
      %25 = arith.subf %19, %24 : vector<158x32xf32>
      %26 = arith.mulf %25, %25 : vector<158x32xf32>
      %cst_18 = arith.constant dense<0.000000e+00> : vector<158xf32>
      %27 = vector.multi_reduction <add>, %26, %cst_18 [1] : vector<158x32xf32> to vector<158xf32>
      %28 = vector.shape_cast %27 : vector<158xf32> to vector<158x1xf32>
      %cst_19 = arith.constant 3.200000e+01 : f32
      %29 = vector.broadcast %cst_19 : f32 to vector<158x1xf32>
      %30 = arith.divf %28, %29 : vector<158x1xf32>
      %31 = vector.broadcast %23 : vector<158x1xf32> to vector<158x32xf32>
      %32 = arith.subf %19, %31 : vector<158x32xf32>
      %cst_20 = arith.constant 9.99999974E-6 : f32
      %33 = vector.broadcast %cst_20 : f32 to vector<158x1xf32>
      %34 = arith.addf %30, %33 : vector<158x1xf32>
      %35 = math.rsqrt %34 : vector<158x1xf32>
      %36 = vector.broadcast %35 : vector<158x1xf32> to vector<158x32xf32>
      %37 = arith.mulf %32, %36 : vector<158x32xf32>
      %c0_21 = arith.constant 0 : index
      %c0_22 = arith.constant 0 : index
      %38 = vector.load %arg6[%c0_21, %c0_22] : memref<1x32xf32, #tpu.memory_space<vmem>>, vector<1x32xf32>
      %39 = vector.broadcast %38 : vector<1x32xf32> to vector<158x32xf32>
      %40 = arith.mulf %37, %39 : vector<158x32xf32>
      %c0_23 = arith.constant 0 : index
      %c0_24 = arith.constant 0 : index
      %41 = vector.load %arg7[%c0_23, %c0_24] : memref<1x32xf32, #tpu.memory_space<vmem>>, vector<1x32xf32>
      %42 = vector.broadcast %41 : vector<1x32xf32> to vector<158x32xf32>
      %43 = arith.addf %40, %42 : vector<158x32xf32>
      %c0_25 = arith.constant 0 : index
      %c0_26 = arith.constant 0 : index
      %44 = vector.load %arg8[%c0_25, %c0_26] : memref<158x32xf32, #tpu.memory_space<vmem>>, vector<158x32xf32>
      tpu.vector_store %arg8[%c0_25, %c0_26], %43 {strides = array<i32>} : memref<158x32xf32, #tpu.memory_space<vmem>>, vector<158x32xf32>,
    } else {
    }
    return
  }
  func.func @transform_0(%arg0: i32, %arg1: i32) -> (i32, i32) {
    %c0_i32 = arith.constant 0 : i32
    return %arg0, %arg1 : i32, i32
  }
  func.func @transform_1(%arg0: i32, %arg1: i32) -> (i32, i32) {
    %c0_i32 = arith.constant 0 : i32
    %c0_i32_0 = arith.constant 0 : i32
    return %arg1, %c0_i32 : i32, i32
  }
  func.func @transform_2(%arg0: i32, %arg1: i32) -> (i32, i32) {
    %c0_i32 = arith.constant 0 : i32
    %c0_i32_0 = arith.constant 0 : i32
    %c0_i32_1 = arith.constant 0 : i32
    return %c0_i32, %c0_i32_0 : i32, i32
  }
  func.func @transform_3(%arg0: i32, %arg1: i32) -> (i32, i32) {
    %c0_i32 = arith.constant 0 : i32
    %c0_i32_0 = arith.constant 0 : i32
    return %arg0, %c0_i32 : i32, i32
  }
  func.func @transform_4(%arg0: i32, %arg1: i32) -> (i32, i32) {
    %c0_i32 = arith.constant 0 : i32
    %c0_i32_0 = arith.constant 0 : i32
    %c0_i32_1 = arith.constant 0 : i32
    return %c0_i32, %c0_i32_0 : i32, i32
  }
  func.func @transform_5(%arg0: i32, %arg1: i32) -> (i32, i32) {
    %c0_i32 = arith.constant 0 : i32
    %c0_i32_0 = arith.constant 0 : i32
    %c0_i32_1 = arith.constant 0 : i32
    return %c0_i32, %c0_i32_0 : i32, i32
  }
  func.func @transform_6(%arg0: i32, %arg1: i32) -> (i32, i32) {
    %c0_i32 = arith.constant 0 : i32
    %c0_i32_0 = arith.constant 0 : i32
    return %arg0, %c0_i32 : i32, i32
  }
}

</mosaic_0001>

<llo_original>
// kernel: _lambda_.16
$region0: #{_lambda_.16}
  #allocation0 [shape = 'u32[]', space=smem, size = 0x4, offset = 0x4, fixed_abs, tag = 'smem constant byte address 0x4 - core index']
  #allocation1 [shape = 'u32[144,128]{1,0:T(1,128)}', space=vmem, size = 0x12000, scoped, tag = 'internal scratch']
  %s0 = inlined_call_operand.vmem [shape: f32[2,1600], index: 0, kind: input, shape index: {}]
  %s1 = inlined_call_operand.vmem [shape: f32[2,1600], index: 1, kind: output, shape index: {}]
  %s2 = sld [smem:[#allocation0]]
  $region14: #{_lambda_.16} parent=0
    _
  %s4 = ssub.s32 1, %s2
  %s5 = scalar_select 0, %s4, %s2
  // Predicated region
  $region2: #{_lambda_.16} parent=0 // pred_check
    _
  $region3: #{_lambda_.16} parent=0 // pred_check_branch
    %7 = sbr.rel (0) target = $region5
  $region4: #{_lambda_.16} parent=0 // pred_region
    _
  $region5: #{_lambda_.16} parent=0 // pred_fallthru
    _
  %v8 = vld [vmem:[%s0] sm:$0xff]
  %v9 = vld [vmem:[%s0 + $0x8] sm:$0xff]
  %v10 = vld [vmem:[%s0 + $0x10] sm:$0xff]
  %v11 = vld [vmem:[%s0 + $0x18] sm:$0x3]
  %v16 = vcombine.high %v8, %v8
  %v18 = vunpack.c.l.s4 1983009808
  %v19 = vunpack.c.0.s8 %v18
  %v20 = vlaneseq
  %v21 = vshrl.u32 %v20, 7
  %v22 = vsub.s32 %v19, %v21
  %v23 = vrot.slane %v8, %v22
  %v25 = vunpack.c.l.s4 1983009808
  %v26 = vunpack.c.0.s8 %v25
  %v27 = vlaneseq
  %v28 = vshrl.u32 %v27, 7
  %v29 = vsub.s32 %v26, %v28
  %v30 = vrot.slane %v16, %v29
  %v31 = vcombine.high %v23, %v23
  %v32 = vcombine.high %v30, %v30
  %v33 = vcombine.high %v9, %v9
  %v35 = vunpack.c.l.s4 1983009808
  %v36 = vunpack.c.0.s8 %v35
  %v37 = vlaneseq
  %v38 = vshrl.u32 %v37, 7
  %v39 = vsub.s32 %v36, %v38
  %v40 = vrot.slane %v9, %v39
  %v42 = vunpack.c.l.s4 1983009808
  %v43 = vunpack.c.0.s8 %v42
  %v44 = vlaneseq
  %v45 = vshrl.u32 %v44, 7
  %v46 = vsub.s32 %v43, %v45
  %v47 = vrot.slane %v33, %v46
  %v48 = vcombine.high %v40, %v40
  %v49 = vcombine.high %v47, %v47
  %v50 = vcombine.high %v10, %v10
  %v52 = vunpack.c.l.s4 1983009808
  %v53 = vunpack.c.0.s8 %v52
  %v54 = vlaneseq
  %v55 = vshrl.u32 %v54, 7
  %v56 = vsub.s32 %v53, %v55
  %v57 = vrot.slane %v10, %v56
  %v59 = vunpack.c.l.s4 1983009808
  %v60 = vunpack.c.0.s8 %v59
  %v61 = vlaneseq
  %v62 = vshrl.u32 %v61, 7
  %v63 = vsub.s32 %v60, %v62
  %v64 = vrot.slane %v50, %v63
  %v65 = vcombine.high %v57, %v57
  %v66 = vcombine.high %v64, %v64
  %v68 = vunpack.c.l.s4 1983009808
  %v69 = vunpack.c.0.s8 %v68
  %v70 = vlaneseq
  %v71 = vshrl.u32 %v70, 7
  %v72 = vsub.s32 %v69, %v71
  %v73 = vrot.slane %v11, %v72
  %vm87 = vcmask 1041408
  %v88 = vsel %vm87, %v23, 0.0
  %v89 = vsel %vm87, %v31, 0.0
  %v90 = vadd.f32 %v88, %v89
  %v91 = vsel %vm87, %v30, 0.0
  %v92 = vadd.f32 %v90, %v91
  %v93 = vsel %vm87, %v32, 0.0
  %v94 = vadd.f32 %v92, %v93
  %v95 = vsel %vm87, %v40, 0.0
  %v96 = vadd.f32 %v94, %v95
  %v97 = vsel %vm87, %v48, 0.0
  %v98 = vadd.f32 %v96, %v97
  %v99 = vsel %vm87, %v47, 0.0
  %v100 = vadd.f32 %v98, %v99
  %v101 = vsel %vm87, %v49, 0.0
  %v102 = vadd.f32 %v100, %v101
  %v103 = vsel %vm87, %v57, 0.0
  %v104 = vadd.f32 %v102, %v103
  %v105 = vsel %vm87, %v65, 0.0
  %v106 = vadd.f32 %v104, %v105
  %v107 = vsel %vm87, %v64, 0.0
  %v108 = vadd.f32 %v106, %v107
  %v109 = vsel %vm87, %v66, 0.0
  %v110 = vadd.f32 %v108, %v109
  %vm111 = vcmask 517120
  %v112 = vsel %vm111, %v73, 0.0
  %v113 = vadd.f32 %v110, %v112
  %114 = vadd.xlane.f32.xlu0 %v113
  %v115 = vpop.xlane.xlu0 %114
  %v116 = vrcp.pop 1600.0
  %v117 = vmul.f32 %v115, %v116
  %v120 = vunpack.c.l.s4 269488144
  %v121 = vunpack.c.0.s8 %v120
  %v122 = vlaneseq
  %v123 = vshrl.u32 %v122, 7
  %v124 = vsub.s32 %v121, %v123
  %v125 = vrot.slane %v117, %v124
  %v127 = vsub.f32 %v8, %v125
  %v128 = vsub.f32 %v9, %v125
  %v129 = vsub.f32 %v10, %v125
  %v130 = vsub.f32 %v11, %v125
  %v131 = vmul.f32 %v127, %v127
  %v132 = vmul.f32 %v128, %v128
  %v133 = vmul.f32 %v129, %v129
  %v134 = vmul.f32 %v130, %v130
  %v139 = vcombine.high %v131, %v131
  %v141 = vunpack.c.l.s4 1983009808
  %v142 = vunpack.c.0.s8 %v141
  %v143 = vlaneseq
  %v144 = vshrl.u32 %v143, 7
  %v145 = vsub.s32 %v142, %v144
  %v146 = vrot.slane %v131, %v145
  %v148 = vunpack.c.l.s4 1983009808
  %v149 = vunpack.c.0.s8 %v148
  %v150 = vlaneseq
  %v151 = vshrl.u32 %v150, 7
  %v152 = vsub.s32 %v149, %v151
  %v153 = vrot.slane %v139, %v152
  %v154 = vcombine.high %v146, %v146
  %v155 = vcombine.high %v153, %v153
  %v156 = vcombine.high %v132, %v132
  %v158 = vunpack.c.l.s4 1983009808
  %v159 = vunpack.c.0.s8 %v158
  %v160 = vlaneseq
  %v161 = vshrl.u32 %v160, 7
  %v162 = vsub.s32 %v159, %v161
  %v163 = vrot.slane %v132, %v162
  %v165 = vunpack.c.l.s4 1983009808
  %v166 = vunpack.c.0.s8 %v165
  %v167 = vlaneseq
  %v168 = vshrl.u32 %v167, 7
  %v169 = vsub.s32 %v166, %v168
  %v170 = vrot.slane %v156, %v169
  %v171 = vcombine.high %v163, %v163
  %v172 = vcombine.high %v170, %v170
  %v173 = vcombine.high %v133, %v133
  %v175 = vunpack.c.l.s4 1983009808
  %v176 = vunpack.c.0.s8 %v175
  %v177 = vlaneseq
  %v178 = vshrl.u32 %v177, 7
  %v179 = vsub.s32 %v176, %v178
  %v180 = vrot.slane %v133, %v179
  %v182 = vunpack.c.l.s4 1983009808
  %v183 = vunpack.c.0.s8 %v182
  %v184 = vlaneseq
  %v185 = vshrl.u32 %v184, 7
  %v186 = vsub.s32 %v183, %v185
  %v187 = vrot.slane %v173, %v186
  %v188 = vcombine.high %v180, %v180
  %v189 = vcombine.high %v187, %v187
  %v191 = vunpack.c.l.s4 1983009808
  %v192 = vunpack.c.0.s8 %v191
  %v193 = vlaneseq
  %v194 = vshrl.u32 %v193, 7
  %v195 = vsub.s32 %v192, %v194
  %v196 = vrot.slane %v134, %v195
  %v210 = vsel %vm87, %v146, 0.0
  %v211 = vsel %vm87, %v154, 0.0
  %v212 = vadd.f32 %v210, %v211
  %v213 = vsel %vm87, %v153, 0.0
  %v214 = vadd.f32 %v212, %v213
  %v215 = vsel %vm87, %v155, 0.0
  %v216 = vadd.f32 %v214, %v215
  %v217 = vsel %vm87, %v163, 0.0
  %v218 = vadd.f32 %v216, %v217
  %v219 = vsel %vm87, %v171, 0.0
  %v220 = vadd.f32 %v218, %v219
  %v221 = vsel %vm87, %v170, 0.0
  %v222 = vadd.f32 %v220, %v221
  %v223 = vsel %vm87, %v172, 0.0
  %v224 = vadd.f32 %v222, %v223
  %v225 = vsel %vm87, %v180, 0.0
  %v226 = vadd.f32 %v224, %v225
  %v227 = vsel %vm87, %v188, 0.0
  %v228 = vadd.f32 %v226, %v227
  %v229 = vsel %vm87, %v187, 0.0
  %v230 = vadd.f32 %v228, %v229
  %v231 = vsel %vm87, %v189, 0.0
  %v232 = vadd.f32 %v230, %v231
  %v233 = vsel %vm111, %v196, 0.0
  %v234 = vadd.f32 %v232, %v233
  %235 = vadd.xlane.f32.xlu0 %v234
  %v236 = vpop.xlane.xlu0 %235
  %v237 = vmul.f32 %v236, %v116
  %v238 = vadd.f32 %v237, 1e-07
  %v239 = vrsqrt.pop %v238
  %v242 = vunpack.c.l.s4 269488144
  %v243 = vunpack.c.0.s8 %v242
  %v244 = vlaneseq
  %v245 = vshrl.u32 %v244, 7
  %v246 = vsub.s32 %v243, %v245
  %v247 = vrot.slane %v239, %v246
  %v249 = vmul.f32 %v127, %v247
  %v250 = vmul.f32 %v128, %v247
  %v251 = vmul.f32 %v129, %v247
  %v252 = vmul.f32 %v130, %v247
  %253 = vst [vmem:[%s1] sm:$0xff] %v249
  %254 = vst [vmem:[%s1 + $0x8] sm:$0xff] %v250
  %255 = vst [vmem:[%s1 + $0x10] sm:$0xff] %v251
  %256 = vst.msk [vmem:[%s1 + $0x18] sm:$0x3] %vm111, %v252
  // Predicated region
  $region6: #{_lambda_.16} parent=0 // pred_check
    _
  $region7: #{_lambda_.16} parent=0 // pred_check_branch
    %258 = sbr.rel (0) target = $region9
  $region8: #{_lambda_.16} parent=0 // pred_region
    _
  $region9: #{_lambda_.16} parent=0 // pred_fallthru
    _
  // Predicated region
  $region10: #{_lambda_.16} parent=0 // pred_check
    _
  $region11: #{_lambda_.16} parent=0 // pred_check_branch
    %260 = sbr.rel (0) target = $region13
  $region12: #{_lambda_.16} parent=0 // pred_region
    _
  $region13: #{_lambda_.16} parent=0 // pred_fallthru
    _

// kernel: _lambda_.17
$region0: #{_lambda_.17}
  #allocation0 [shape = 'u32[]', space=smem, size = 0x4, offset = 0x4, fixed_abs, tag = 'smem constant byte address 0x4 - core index']
  #allocation1 [shape = 'u32[144,128]{1,0:T(1,128)}', space=vmem, size = 0x12000, scoped, tag = 'internal scratch']
  %s0 = inlined_call_operand.vmem [shape: f32[2,320,5], index: 0, kind: input, shape index: {}]
  %s1 = inlined_call_operand.vmem [shape: f32[2,5,32], index: 1, kind: input, shape index: {}]
  %s2 = inlined_call_operand.vmem [shape: f32[1,32], index: 2, kind: input, shape index: {}]
  %s3 = inlined_call_operand.vmem [shape: f32[1,32], index: 3, kind: input, shape index: {}]
  %s4 = inlined_call_operand.vmem [shape: f32[1,32], index: 4, kind: input, shape index: {}]
  %s5 = inlined_call_operand.vmem [shape: f32[2,319,32], index: 5, kind: output, shape index: {}]
  %s6 = sld [smem:[#allocation0]]
  $region53: #{_lambda_.17} parent=0
    _
  %s8 = ssub.s32 1, %s6
  %s9 = scalar_select 0, %s8, %s6
  loop: start=0, step=1, limit=4
  $region2: #{_lambda_.17} parent=0 // loop_pre_header
    _
  $region3: #{_lambda_.17} parent=0 // loop_header
    %s11 = sphi 0, %s15
    %p12 = scmp.ge.s32.totalorder %s11, 4
    %s21 = sphi 0, %s23
    %s24 = sphi 0, %s21
    %s25 = sphi 0, %s24
    %s41 = sphi 0, %s25
    %s45 = sphi 0, %s45
    %s47 = sphi 0, %s45
    %s48 = sphi 0, %s47
    %s62 = sphi 0, %s48
    %s66 = sphi 0, %s66
    %s68 = sphi 0, %s66
    %s69 = sphi 0, %s68
    %s83 = sphi 0, %s69
    %s87 = sphi 0, %s87
    %s89 = sphi 0, %s87
    %s90 = sphi 0, %s89
    %s104 = sphi 0, %s90
    %s108 = sphi 0, %s108
    %s110 = sphi 0, %s108
    %s111 = sphi 0, %s110
    %s125 = sphi 0, %s111
    %s131 = sphi 0, %s133
    %s134 = sphi 0, %s131
    %s135 = sphi 0, %s134
    %s151 = sphi 0, %s135
  $region4: #{_lambda_.17} parent=0 // loop_header_branch
    %14 = sbr.rel (%p12) target = $region8
  $region5: #{_lambda_.17} parent=0 // loop_body
    %s16 = ssub.s32 %s11, 1
    %s17 = ssub.s32 %s11, 2
    %s18 = sadd.s32 %s11, 1
    %s19 = ssub.s32 %s11, %s18
    %p20 = scmp.eq.s32.totalorder %s19, 0
    %s22 = sadd.s32 %s21, 1
    %s23 = scalar_select %p20, %s21, %s22
    %p26 = pneg %p20
    %p27 = scmp.eq.s32.totalorder %s11, 1
    %p28 = por %p26, %p27
    %p29 = scmp.ne.s32.totalorder %s21, %s24
    %p30 = scmp.eq.s32.totalorder %s11, 0
    %p31 = por %p29, %p30
    %p32 = scmp.ne.s32.totalorder %s21, %s24
    %p33 = scmp.eq.s32.totalorder %s16, 1
    %p34 = por %p32, %p33
    %p35 = scmp.ne.s32.totalorder %s24, %s25
    %p36 = scmp.eq.s32.totalorder %s16, 0
    %p37 = por %p35, %p36
    %p38 = scmp.ne.s32.totalorder %s24, %s25
    %p39 = scmp.eq.s32.totalorder %s17, 1
    %p40 = por %p38, %p39
    %p42 = scmp.ne.s32.totalorder %s25, %s41
    %p43 = scmp.eq.s32.totalorder %s17, 0
    %p44 = por %p42, %p43
    %s46 = sadd.s32 %s45, 1
    %p49 = scmp.eq.s32.totalorder %s11, 1
    %p50 = scmp.ne.s32.totalorder %s45, %s47
    %p51 = scmp.eq.s32.totalorder %s11, 0
    %p52 = por %p50, %p51
    %p53 = scmp.ne.s32.totalorder %s45, %s47
    %p54 = scmp.eq.s32.totalorder %s16, 1
    %p55 = por %p53, %p54
    %p56 = scmp.ne.s32.totalorder %s47, %s48
    %p57 = scmp.eq.s32.totalorder %s16, 0
    %p58 = por %p56, %p57
    %p59 = scmp.ne.s32.totalorder %s47, %s48
    %p60 = scmp.eq.s32.totalorder %s17, 1
    %p61 = por %p59, %p60
    %p63 = scmp.ne.s32.totalorder %s48, %s62
    %p64 = scmp.eq.s32.totalorder %s17, 0
    %p65 = por %p63, %p64
    %s67 = sadd.s32 %s66, 1
    %p70 = scmp.eq.s32.totalorder %s11, 1
    %p71 = scmp.ne.s32.totalorder %s66, %s68
    %p72 = scmp.eq.s32.totalorder %s11, 0
    %p73 = por %p71, %p72
    %p74 = scmp.ne.s32.totalorder %s66, %s68
    %p75 = scmp.eq.s32.totalorder %s16, 1
    %p76 = por %p74, %p75
    %p77 = scmp.ne.s32.totalorder %s68, %s69
    %p78 = scmp.eq.s32.totalorder %s16, 0
    %p79 = por %p77, %p78
    %p80 = scmp.ne.s32.totalorder %s68, %s69
    %p81 = scmp.eq.s32.totalorder %s17, 1
    %p82 = por %p80, %p81
    %p84 = scmp.ne.s32.totalorder %s69, %s83
    %p85 = scmp.eq.s32.totalorder %s17, 0
    %p86 = por %p84, %p85
    %s88 = sadd.s32 %s87, 1
    %p91 = scmp.eq.s32.totalorder %s11, 1
    %p92 = scmp.ne.s32.totalorder %s87, %s89
    %p93 = scmp.eq.s32.totalorder %s11, 0
    %p94 = por %p92, %p93
    %p95 = scmp.ne.s32.totalorder %s87, %s89
    %p96 = scmp.eq.s32.totalorder %s16, 1
    %p97 = por %p95, %p96
    %p98 = scmp.ne.s32.totalorder %s89, %s90
    %p99 = scmp.eq.s32.totalorder %s16, 0
    %p100 = por %p98, %p99
    %p101 = scmp.ne.s32.totalorder %s89, %s90
    %p102 = scmp.eq.s32.totalorder %s17, 1
    %p103 = por %p101, %p102
    %p105 = scmp.ne.s32.totalorder %s90, %s104
    %p106 = scmp.eq.s32.totalorder %s17, 0
    %p107 = por %p105, %p106
    %s109 = sadd.s32 %s108, 1
    %p112 = scmp.eq.s32.totalorder %s11, 1
    %p113 = scmp.ne.s32.totalorder %s108, %s110
    %p114 = scmp.eq.s32.totalorder %s11, 0
    %p115 = por %p113, %p114
    %p116 = scmp.ne.s32.totalorder %s108, %s110
    %p117 = scmp.eq.s32.totalorder %s16, 1
    %p118 = por %p116, %p117
    %p119 = scmp.ne.s32.totalorder %s110, %s111
    %p120 = scmp.eq.s32.totalorder %s16, 0
    %p121 = por %p119, %p120
    %p122 = scmp.ne.s32.totalorder %s110, %s111
    %p123 = scmp.eq.s32.totalorder %s17, 1
    %p124 = por %p122, %p123
    %p126 = scmp.ne.s32.totalorder %s111, %s125
    %p127 = scmp.eq.s32.totalorder %s17, 0
    %p128 = por %p126, %p127
    %s129 = ssub.s32 %s11, %s18
    %p130 = scmp.eq.s32.totalorder %s129, 0
    %s132 = sadd.s32 %s131, 1
    %s133 = scalar_select %p130, %s131, %s132
    %p136 = pneg %p130
    %p137 = scmp.eq.s32.totalorder %s11, 1
    %p138 = por %p136, %p137
    %p139 = scmp.ne.s32.totalorder %s131, %s134
    %p140 = scmp.eq.s32.totalorder %s11, 0
    %p141 = por %p139, %p140
    %p142 = scmp.ne.s32.totalorder %s131, %s134
    %p143 = scmp.eq.s32.totalorder %s16, 1
    %p144 = por %p142, %p143
    %p145 = scmp.ne.s32.totalorder %s134, %s135
    %p146 = scmp.eq.s32.totalorder %s16, 0
    %p147 = por %p145, %p146
    %p148 = scmp.ne.s32.totalorder %s134, %s135
    %p149 = scmp.eq.s32.totalorder %s17, 1
    %p150 = por %p148, %p149
    %p152 = scmp.ne.s32.totalorder %s135, %s151
    %p153 = scmp.eq.s32.totalorder %s17, 0
    %p154 = por %p152, %p153
    %p155 = scmp.le.s32.totalorder 1, %s11
    %p156 = scmp.lt.s32.totalorder %s11, 3
    %p157 = pnand %p155, %p156
    %p158 = pneg %p157
    // Predicated region
    $region9: #{_lambda_.17} parent=5 // pred_check
      _
    $region10: #{_lambda_.17} parent=5 // pred_check_branch
      %160 = sbr.rel (%p157) target = $region12
    $region11: #{_lambda_.17} parent=5 // pred_region
      %s161 = ssub.s32 %s11, 1
      // Predicated region
      $region13: #{_lambda_.17} parent=11 // pred_check
        %p162 = pneg %p58
      $region14: #{_lambda_.17} parent=11 // pred_check_branch
        %164 = sbr.rel (%p162) target = $region16
      $region15: #{_lambda_.17} parent=11 // pred_region
        _
      $region16: #{_lambda_.17} parent=11 // pred_fallthru
        _
      // Predicated region
      $region17: #{_lambda_.17} parent=11 // pred_check
        %p165 = pneg %p79
      $region18: #{_lambda_.17} parent=11 // pred_check_branch
        %167 = sbr.rel (%p165) target = $region20
      $region19: #{_lambda_.17} parent=11 // pred_region
        _
      $region20: #{_lambda_.17} parent=11 // pred_fallthru
        _
      // Predicated region
      $region21: #{_lambda_.17} parent=11 // pred_check
        %p168 = pneg %p100
      $region22: #{_lambda_.17} parent=11 // pred_check_branch
        %170 = sbr.rel (%p168) target = $region24
      $region23: #{_lambda_.17} parent=11 // pred_region
        _
      $region24: #{_lambda_.17} parent=11 // pred_fallthru
        _
      // Predicated region
      $region25: #{_lambda_.17} parent=11 // pred_check
        %p171 = pneg %p121
      $region26: #{_lambda_.17} parent=11 // pred_check_branch
        %173 = sbr.rel (%p171) target = $region28
      $region27: #{_lambda_.17} parent=11 // pred_region
        _
      $region28: #{_lambda_.17} parent=11 // pred_fallthru
        _
    $region12: #{_lambda_.17} parent=5 // pred_fallthru
      _
    %p174 = scmp.lt.s32.totalorder %s11, 2
    // Predicated region
    $region29: #{_lambda_.17} parent=5 // pred_check
      %p175 = pneg %p174
    $region30: #{_lambda_.17} parent=5 // pred_check_branch
      %177 = sbr.rel (%p175) target = $region32
    $region31: #{_lambda_.17} parent=5 // pred_region
      // Predicated region
      $region33: #{_lambda_.17} parent=31 // pred_check
        %p178 = pneg %p31
      $region34: #{_lambda_.17} parent=31 // pred_check_branch
        %180 = sbr.rel (%p178) target = $region36
      $region35: #{_lambda_.17} parent=31 // pred_region
        %p181 = scmp.lt.s32.totalorder %s11, 1
        %s182 = scalar_select %p181, %s11, 1
        %s183 = smul.addr %s182, 40
        %s184 = smul.addr %s183, 8
        %s185 = scalar_lea.vmem %s0, %s184
      $region36: #{_lambda_.17} parent=31 // pred_fallthru
        _
    $region32: #{_lambda_.17} parent=5 // pred_fallthru
      _
    %p186 = scmp.le.s32.totalorder 1, %s11
    %p187 = scmp.lt.s32.totalorder %s11, 3
    %p188 = pnand %p186, %p187
    %p189 = pneg %p188
    // Predicated region
    $region37: #{_lambda_.17} parent=5 // pred_check
      _
    $region38: #{_lambda_.17} parent=5 // pred_check_branch
      %191 = sbr.rel (%p188) target = $region40
    $region39: #{_lambda_.17} parent=5 // pred_region
      %s192 = ssub.s32 %s11, 1
      %p193 = scmp.lt.s32.totalorder %s16, 1
      %s194 = scalar_select %p193, %s16, 1
      %s195 = smul.addr %s194, 40
      %s196 = smul.addr %s195, 8
      %s197 = scalar_lea.vmem %s0, %s196
      %p198 = pneg %p37
      %p199 = pneg %p34
      %p200 = pneg %p58
      %p201 = pneg %p55
      %p202 = pneg %p79
      %p203 = pneg %p76
      %p204 = pneg %p100
      %p205 = pneg %p97
      %p206 = pneg %p121
      %p207 = pneg %p118
      %p208 = pneg %p147
      %p209 = pneg %p144
      %p210 = scmp.lt.s32.totalorder %s16, 1
      %s211 = scalar_select %p210, %s16, 1
      %s212 = smul.addr %s211, 40
      %s213 = smul.addr %s212, 8
      %s214 = scalar_lea.vmem %s5, %s213
      %p215 = scmp.lt.s32.totalorder %s16, 1
      %s216 = scalar_select %p215, %s16, 1
      %s217 = smul.addr %s216, 40
      %s218 = smul.addr %s217, 8
      %s219 = scalar_lea.vmem %s0, %s218
      %p220 = scmp.lt.s32.totalorder %s16, 1
      %s221 = scalar_select %p220, %s16, 1
      %s222 = smul.addr %s221, 40
      %s223 = smul.addr %s222, 8
      %s224 = scalar_lea.vmem %s5, %s223
      %v226 = vld [vmem:[%s219] sm:$0xff]
      %v227 = vld [vmem:[%s219 + $0x8] sm:$0xff]
      %v228 = vld [vmem:[%s219 + $0x10] sm:$0xff]
      %v229 = vld [vmem:[%s219 + $0x18] sm:$0xff]
      %v230 = vld [vmem:[%s219 + $0x20] sm:$0xff]
      %v231 = vld [vmem:[%s219 + $0x28] sm:$0xff]
      %v232 = vld [vmem:[%s219 + $0x30] sm:$0xff]
      %v233 = vld [vmem:[%s219 + $0x38] sm:$0xff]
      %v234 = vld [vmem:[%s219 + $0x40] sm:$0xff]
      %v235 = vld [vmem:[%s219 + $0x48] sm:$0xff]
      %v236 = vld [vmem:[%s219 + $0x50] sm:$0xff]
      %v237 = vld [vmem:[%s219 + $0x58] sm:$0xff]
      %v238 = vld [vmem:[%s219 + $0x60] sm:$0xff]
      %v239 = vld [vmem:[%s219 + $0x68] sm:$0xff]
      %v240 = vld [vmem:[%s219 + $0x70] sm:$0xff]
      %v241 = vld [vmem:[%s219 + $0x78] sm:$0xff]
      %v242 = vld [vmem:[%s219 + $0x80] sm:$0xff]
      %v243 = vld [vmem:[%s219 + $0x88] sm:$0xff]
      %v244 = vld [vmem:[%s219 + $0x90] sm:$0xff]
      %v245 = vld [vmem:[%s219 + $0x98] sm:$0xff]
      %v246 = vld [vmem:[%s219 + $0xa0] sm:$0xff]
      %v247 = vld [vmem:[%s219 + $0xa8] sm:$0xff]
      %v248 = vld [vmem:[%s219 + $0xb0] sm:$0xff]
      %v249 = vld [vmem:[%s219 + $0xb8] sm:$0xff]
      %v250 = vld [vmem:[%s219 + $0xc0] sm:$0xff]
      %v251 = vld [vmem:[%s219 + $0xc8] sm:$0xff]
      %v252 = vld [vmem:[%s219 + $0xd0] sm:$0xff]
      %v253 = vld [vmem:[%s219 + $0xd8] sm:$0xff]
      %v254 = vld [vmem:[%s219 + $0xe0] sm:$0xff]
      %v255 = vld [vmem:[%s219 + $0xe8] sm:$0xff]
      %v256 = vld [vmem:[%s219 + $0xf0] sm:$0xff]
      %v257 = vld [vmem:[%s219 + $0xf8] sm:$0xff]
      %v258 = vld [vmem:[%s219 + $0x100] sm:$0xff]
      %v259 = vld [vmem:[%s219 + $0x108] sm:$0xff]
      %v260 = vld [vmem:[%s219 + $0x110] sm:$0xff]
      %v261 = vld [vmem:[%s219 + $0x118] sm:$0xff]
      %v262 = vld [vmem:[%s219 + $0x120] sm:$0xff]
      %v263 = vld [vmem:[%s219 + $0x128] sm:$0xff]
      %v264 = vld [vmem:[%s219 + $0x130] sm:$0xff]
      %v265 = vld [vmem:[%s219 + $0x138] sm:$0x7f]
      %v266 = vpack.c.bf16 %v227, %v226
      %v267 = vpack.c.bf16 %v229, %v228
      %v268 = vpack.c.bf16 %v231, %v230
      %v269 = vpack.c.bf16 %v233, %v232
      %v270 = vpack.c.bf16 %v235, %v234
      %v271 = vpack.c.bf16 %v237, %v236
      %v272 = vpack.c.bf16 %v239, %v238
      %v273 = vpack.c.bf16 %v241, %v240
      %v274 = vpack.c.bf16 %v243, %v242
      %v275 = vpack.c.bf16 %v245, %v244
      %v276 = vpack.c.bf16 %v247, %v246
      %v277 = vpack.c.bf16 %v249, %v248
      %v278 = vpack.c.bf16 %v251, %v250
      %v279 = vpack.c.bf16 %v253, %v252
      %v280 = vpack.c.bf16 %v255, %v254
      %v281 = vpack.c.bf16 %v257, %v256
      %v282 = vpack.c.bf16 %v259, %v258
      %v283 = vpack.c.bf16 %v261, %v260
      %v284 = vpack.c.bf16 %v263, %v262
      %v285 = vpack.c.bf16 %v265, %v264
      %v286 = vld [vmem:[%s1] sm:$0x1f]
      %v287 = vpack.c.bf16 %v286, %v286
      %v288 = vld [vmem:[%s219 + $0x1] sm:$0xff]
      %v289 = vld [vmem:[%s219 + $0x9] sm:$0xff]
      %v290 = vld [vmem:[%s219 + $0x11] sm:$0xff]
      %v291 = vld [vmem:[%s219 + $0x19] sm:$0xff]
      %v292 = vld [vmem:[%s219 + $0x21] sm:$0xff]
      %v293 = vld [vmem:[%s219 + $0x29] sm:$0xff]
      %v294 = vld [vmem:[%s219 + $0x31] sm:$0xff]
      %v295 = vld [vmem:[%s219 + $0x39] sm:$0xff]
      %v296 = vld [vmem:[%s219 + $0x41] sm:$0xff]
      %v297 = vld [vmem:[%s219 + $0x49] sm:$0xff]
      %v298 = vld [vmem:[%s219 + $0x51] sm:$0xff]
      %v299 = vld [vmem:[%s219 + $0x59] sm:$0xff]
      %v300 = vld [vmem:[%s219 + $0x61] sm:$0xff]
      %v301 = vld [vmem:[%s219 + $0x69] sm:$0xff]
      %v302 = vld [vmem:[%s219 + $0x71] sm:$0xff]
      %v303 = vld [vmem:[%s219 + $0x79] sm:$0xff]
      %v304 = vld [vmem:[%s219 + $0x81] sm:$0xff]
      %v305 = vld [vmem:[%s219 + $0x89] sm:$0xff]
      %v306 = vld [vmem:[%s219 + $0x91] sm:$0xff]
      %v307 = vld [vmem:[%s219 + $0x99] sm:$0xff]
      %v308 = vld [vmem:[%s219 + $0xa1] sm:$0xff]
      %v309 = vld [vmem:[%s219 + $0xa9] sm:$0xff]
      %v310 = vld [vmem:[%s219 + $0xb1] sm:$0xff]
      %v311 = vld [vmem:[%s219 + $0xb9] sm:$0xff]
      %v312 = vld [vmem:[%s219 + $0xc1] sm:$0xff]
      %v313 = vld [vmem:[%s219 + $0xc9] sm:$0xff]
      %v314 = vld [vmem:[%s219 + $0xd1] sm:$0xff]
      %v315 = vld [vmem:[%s219 + $0xd9] sm:$0xff]
      %v316 = vld [vmem:[%s219 + $0xe1] sm:$0xff]
      %v317 = vld [vmem:[%s219 + $0xe9] sm:$0xff]
      %v318 = vld [vmem:[%s219 + $0xf1] sm:$0xff]
      %v319 = vld [vmem:[%s219 + $0xf9] sm:$0xff]
      %v320 = vld [vmem:[%s219 + $0x101] sm:$0xff]
      %v321 = vld [vmem:[%s219 + $0x109] sm:$0xff]
      %v322 = vld [vmem:[%s219 + $0x111] sm:$0xff]
      %v323 = vld [vmem:[%s219 + $0x119] sm:$0xff]
      %v324 = vld [vmem:[%s219 + $0x121] sm:$0xff]
      %v325 = vld [vmem:[%s219 + $0x129] sm:$0xff]
      %v326 = vld [vmem:[%s219 + $0x131] sm:$0xff]
      %v327 = vld [vmem:[%s219 + $0x139] sm:$0x7f]
      %v328 = vpack.c.bf16 %v289, %v288
      %v329 = vpack.c.bf16 %v291, %v290
      %v330 = vpack.c.bf16 %v293, %v292
      %v331 = vpack.c.bf16 %v295, %v294
      %v332 = vpack.c.bf16 %v297, %v296
      %v333 = vpack.c.bf16 %v299, %v298
      %v334 = vpack.c.bf16 %v301, %v300
      %v335 = vpack.c.bf16 %v303, %v302
      %v336 = vpack.c.bf16 %v305, %v304
      %v337 = vpack.c.bf16 %v307, %v306
      %v338 = vpack.c.bf16 %v309, %v308
      %v339 = vpack.c.bf16 %v311, %v310
      %v340 = vpack.c.bf16 %v313, %v312
      %v341 = vpack.c.bf16 %v315, %v314
      %v342 = vpack.c.bf16 %v317, %v316
      %v343 = vpack.c.bf16 %v319, %v318
      %v344 = vpack.c.bf16 %v321, %v320
      %v345 = vpack.c.bf16 %v323, %v322
      %v346 = vpack.c.bf16 %v325, %v324
      %v347 = vpack.c.bf16 %v327, %v326
      %s348 = scalar_lea.vmem %s1, 8
      %v349 = vld [vmem:[%s348] sm:$0x1f]
      %v350 = vpack.c.bf16 %v349, %v349
      %vm351 = vcmask 39936
      %v353 = vsel %vm351, %v328, 0
      %v356 = vsel %vm351, %v329, 0
      %v359 = vsel %vm351, %v330, 0
      %v362 = vsel %vm351, %v331, 0
      %v365 = vsel %vm351, %v332, 0
      %v368 = vsel %vm351, %v333, 0
      %v371 = vsel %vm351, %v334, 0
      %v374 = vsel %vm351, %v335, 0
      %v377 = vsel %vm351, %v336, 0
      %v380 = vsel %vm351, %v337, 0
      %v383 = vsel %vm351, %v338, 0
      %v386 = vsel %vm351, %v339, 0
      %v389 = vsel %vm351, %v340, 0
      %v392 = vsel %vm351, %v341, 0
      %v395 = vsel %vm351, %v342, 0
      %v398 = vsel %vm351, %v343, 0
      %v401 = vsel %vm351, %v344, 0
      %v404 = vsel %vm351, %v345, 0
      %v407 = vsel %vm351, %v346, 0
      %v410 = vsel %vm351, %v347, 0
      %vm412 = vcmask 1041408
      %vm413 = vcmask 1042432
      %v414 = vsel %vm412, 4294967295, 65535
      %v415 = vsel %vm413, %v414, 0
      %v417 = vand.u32 %v350, %v415
      %419 = vmatprep.subr.bf16.mxu0 0
      %420 = vmatpush1.bf16.msra.mxu0 0
      %421 = vmatprep.subr.bf16.mxu0 0
      %422 = vmatpush1.bf16.msra.mxu0 0
      %423 = vmatprep.subr.bf16.mxu0 0
      %424 = vmatpush1.bf16.msra.mxu0 0
      %425 = vmatprep.subr.bf16.mxu0 0
      %426 = vmatpush1.bf16.msra.mxu0 0
      %427 = vmatprep.subr.bf16.mxu0 0
      %428 = vmatpush1.bf16.msra.mxu0 0
      %429 = vmatprep.subr.bf16.mxu0 0
      %430 = vmatpush1.bf16.msra.mxu0 0
      %431 = vmatprep.subr.bf16.mxu0 0
      %432 = vmatpush1.bf16.msra.mxu0 0
      %433 = vmatprep.subr.bf16.mxu0 0
      %434 = vmatpush1.bf16.msra.mxu0 %v417
      %435 = vmatprep.subr.bf16.mxu0 0
      %436 = vmatpush2.bf16.msra.mxu0 0
      %437 = vmatprep.subr.bf16.mxu0 0
      %438 = vmatpush2.bf16.msra.mxu0 0
      %439 = vmatprep.subr.bf16.mxu0 0
      %440 = vmatpush2.bf16.msra.mxu0 0
      %441 = vmatprep.subr.bf16.mxu0 0
      %442 = vmatpush2.bf16.msra.mxu0 0
      %443 = vmatprep.subr.bf16.mxu0 0
      %444 = vmatpush2.bf16.msra.mxu0 0
      %445 = vmatprep.subr.bf16.mxu0 0
      %446 = vmatpush2.bf16.msra.mxu0 0
      %447 = vmatprep.subr.bf16.mxu0 0
      %448 = vmatpush2.bf16.msra.mxu0 0
      %449 = vmatprep.subr.bf16.mxu0 0
      %450 = vmatpush2.bf16.msra.mxu0 0
      %451 = vmatprep.mubr.bf16.mxu0 0
      %452 = vmatmul.mubr.bf16.gmra.mxu0 %v353
      %v453 = vpop.f32.mrf.mxu0
      %v454 = vadd.f32 0.0, %v453
      %v455 = vpop.f32.mrf.mxu0
      %v456 = vpop.f32.mrf.mxu0
      %v457 = vadd.f32 0.0, %v456
      %v458 = vpop.f32.mrf.mxu0
      %459 = vmatprep.mubr.bf16.mxu0 0
      %460 = vmatmul.mubr.bf16.gmra.mxu0 %v356
      %v461 = vpop.f32.mrf.mxu0
      %v462 = vadd.f32 0.0, %v461
      %v463 = vpop.f32.mrf.mxu0
      %v464 = vpop.f32.mrf.mxu0
      %v465 = vadd.f32 0.0, %v464
      %v466 = vpop.f32.mrf.mxu0
      %467 = vmatprep.mubr.bf16.mxu0 0
      %468 = vmatmul.mubr.bf16.gmra.mxu0 %v359
      %v469 = vpop.f32.mrf.mxu0
      %v470 = vadd.f32 0.0, %v469
      %v471 = vpop.f32.mrf.mxu0
      %v472 = vpop.f32.mrf.mxu0
      %v473 = vadd.f32 0.0, %v472
      %v474 = vpop.f32.mrf.mxu0
      %475 = vmatprep.mubr.bf16.mxu0 0
      %476 = vmatmul.mubr.bf16.gmra.mxu0 %v362
      %v477 = vpop.f32.mrf.mxu0
      %v478 = vadd.f32 0.0, %v477
      %v479 = vpop.f32.mrf.mxu0
      %v480 = vpop.f32.mrf.mxu0
      %v481 = vadd.f32 0.0, %v480
      %v482 = vpop.f32.mrf.mxu0
      %483 = vmatprep.mubr.bf16.mxu0 0
      %484 = vmatmul.mubr.bf16.gmra.mxu0 %v365
      %v485 = vpop.f32.mrf.mxu0
      %v486 = vadd.f32 0.0, %v485
      %v487 = vpop.f32.mrf.mxu0
      %v488 = vpop.f32.mrf.mxu0
      %v489 = vadd.f32 0.0, %v488
      %v490 = vpop.f32.mrf.mxu0
      %491 = vmatprep.mubr.bf16.mxu0 0
      %492 = vmatmul.mubr.bf16.gmra.mxu0 %v368
      %v493 = vpop.f32.mrf.mxu0
      %v494 = vadd.f32 0.0, %v493
      %v495 = vpop.f32.mrf.mxu0
      %v496 = vpop.f32.mrf.mxu0
      %v497 = vadd.f32 0.0, %v496
      %v498 = vpop.f32.mrf.mxu0
      %499 = vmatprep.mubr.bf16.mxu0 0
      %500 = vmatmul.mubr.bf16.gmra.mxu0 %v371
      %v501 = vpop.f32.mrf.mxu0
      %v502 = vadd.f32 0.0, %v501
      %v503 = vpop.f32.mrf.mxu0
      %v504 = vpop.f32.mrf.mxu0
      %v505 = vadd.f32 0.0, %v504
      %v506 = vpop.f32.mrf.mxu0
      %507 = vmatprep.mubr.bf16.mxu0 0
      %508 = vmatmul.mubr.bf16.gmra.mxu0 %v374
      %v509 = vpop.f32.mrf.mxu0
      %v510 = vadd.f32 0.0, %v509
      %v511 = vpop.f32.mrf.mxu0
      %v512 = vpop.f32.mrf.mxu0
      %v513 = vadd.f32 0.0, %v512
      %v514 = vpop.f32.mrf.mxu0
      %515 = vmatprep.mubr.bf16.mxu0 0
      %516 = vmatmul.mubr.bf16.gmra.mxu0 %v377
      %v517 = vpop.f32.mrf.mxu0
      %v518 = vadd.f32 0.0, %v517
      %v519 = vpop.f32.mrf.mxu0
      %v520 = vpop.f32.mrf.mxu0
      %v521 = vadd.f32 0.0, %v520
      %v522 = vpop.f32.mrf.mxu0
      %523 = vmatprep.mubr.bf16.mxu0 0
      %524 = vmatmul.mubr.bf16.gmra.mxu0 %v380
      %v525 = vpop.f32.mrf.mxu0
      %v526 = vadd.f32 0.0, %v525
      %v527 = vpop.f32.mrf.mxu0
      %v528 = vpop.f32.mrf.mxu0
      %v529 = vadd.f32 0.0, %v528
      %v530 = vpop.f32.mrf.mxu0
      %531 = vmatprep.mubr.bf16.mxu0 0
      %532 = vmatmul.mubr.bf16.gmra.mxu0 %v383
      %v533 = vpop.f32.mrf.mxu0
      %v534 = vadd.f32 0.0, %v533
      %v535 = vpop.f32.mrf.mxu0
      %v536 = vpop.f32.mrf.mxu0
      %v537 = vadd.f32 0.0, %v536
      %v538 = vpop.f32.mrf.mxu0
      %539 = vmatprep.mubr.bf16.mxu0 0
      %540 = vmatmul.mubr.bf16.gmra.mxu0 %v386
      %v541 = vpop.f32.mrf.mxu0
      %v542 = vadd.f32 0.0, %v541
      %v543 = vpop.f32.mrf.mxu0
      %v544 = vpop.f32.mrf.mxu0
      %v545 = vadd.f32 0.0, %v544
      %v546 = vpop.f32.mrf.mxu0
      %547 = vmatprep.mubr.bf16.mxu0 0
      %548 = vmatmul.mubr.bf16.gmra.mxu0 %v389
      %v549 = vpop.f32.mrf.mxu0
      %v550 = vadd.f32 0.0, %v549
      %v551 = vpop.f32.mrf.mxu0
      %v552 = vpop.f32.mrf.mxu0
      %v553 = vadd.f32 0.0, %v552
      %v554 = vpop.f32.mrf.mxu0
      %555 = vmatprep.mubr.bf16.mxu0 0
      %556 = vmatmul.mubr.bf16.gmra.mxu0 %v392
      %v557 = vpop.f32.mrf.mxu0
      %v558 = vadd.f32 0.0, %v557
      %v559 = vpop.f32.mrf.mxu0
      %v560 = vpop.f32.mrf.mxu0
      %v561 = vadd.f32 0.0, %v560
      %v562 = vpop.f32.mrf.mxu0
      %563 = vmatprep.mubr.bf16.mxu0 0
      %564 = vmatmul.mubr.bf16.gmra.mxu0 %v395
      %v565 = vpop.f32.mrf.mxu0
      %v566 = vadd.f32 0.0, %v565
      %v567 = vpop.f32.mrf.mxu0
      %v568 = vpop.f32.mrf.mxu0
      %v569 = vadd.f32 0.0, %v568
      %v570 = vpop.f32.mrf.mxu0
      %571 = vmatprep.mubr.bf16.mxu0 0
      %572 = vmatmul.mubr.bf16.gmra.mxu0 %v398
      %v573 = vpop.f32.mrf.mxu0
      %v574 = vadd.f32 0.0, %v573
      %v575 = vpop.f32.mrf.mxu0
      %v576 = vpop.f32.mrf.mxu0
      %v577 = vadd.f32 0.0, %v576
      %v578 = vpop.f32.mrf.mxu0
      %579 = vmatprep.mubr.bf16.mxu0 0
      %580 = vmatmul.mubr.bf16.gmra.mxu0 %v401
      %v581 = vpop.f32.mrf.mxu0
      %v582 = vadd.f32 0.0, %v581
      %v583 = vpop.f32.mrf.mxu0
      %v584 = vpop.f32.mrf.mxu0
      %v585 = vadd.f32 0.0, %v584
      %v586 = vpop.f32.mrf.mxu0
      %587 = vmatprep.mubr.bf16.mxu0 0
      %588 = vmatmul.mubr.bf16.gmra.mxu0 %v404
      %v589 = vpop.f32.mrf.mxu0
      %v590 = vadd.f32 0.0, %v589
      %v591 = vpop.f32.mrf.mxu0
      %v592 = vpop.f32.mrf.mxu0
      %v593 = vadd.f32 0.0, %v592
      %v594 = vpop.f32.mrf.mxu0
      %595 = vmatprep.mubr.bf16.mxu0 0
      %596 = vmatmul.mubr.bf16.gmra.mxu0 %v407
      %v597 = vpop.f32.mrf.mxu0
      %v598 = vadd.f32 0.0, %v597
      %v599 = vpop.f32.mrf.mxu0
      %v600 = vpop.f32.mrf.mxu0
      %v601 = vadd.f32 0.0, %v600
      %v602 = vpop.f32.mrf.mxu0
      %603 = vmatprep.mubr.bf16.mxu0 0
      %604 = vmatmul.mubr.bf16.gmra.mxu0 %v410
      %v605 = vpop.f32.mrf.mxu0
      %v606 = vadd.f32 0.0, %v605
      %v607 = vpop.f32.mrf.mxu0
      %v608 = vpop.f32.mrf.mxu0
      %v609 = vadd.f32 0.0, %v608
      %v610 = vpop.f32.mrf.mxu0
      %611 = vdwg.mxu0
      %v613 = vsel %vm351, %v266, 0
      %v616 = vsel %vm351, %v267, 0
      %v619 = vsel %vm351, %v268, 0
      %v622 = vsel %vm351, %v269, 0
      %v625 = vsel %vm351, %v270, 0
      %v628 = vsel %vm351, %v271, 0
      %v631 = vsel %vm351, %v272, 0
      %v634 = vsel %vm351, %v273, 0
      %v637 = vsel %vm351, %v274, 0
      %v640 = vsel %vm351, %v275, 0
      %v643 = vsel %vm351, %v276, 0
      %v646 = vsel %vm351, %v277, 0
      %v649 = vsel %vm351, %v278, 0
      %v652 = vsel %vm351, %v279, 0
      %v655 = vsel %vm351, %v280, 0
      %v658 = vsel %vm351, %v281, 0
      %v661 = vsel %vm351, %v282, 0
      %v664 = vsel %vm351, %v283, 0
      %v667 = vsel %vm351, %v284, 0
      %v670 = vsel %vm351, %v285, 0
      %v673 = vand.u32 %v287, %v415
      %675 = vmatprep.subr.bf16.mxu0 0
      %676 = vmatpush1.bf16.msra.mxu0 0
      %677 = vmatprep.subr.bf16.mxu0 0
      %678 = vmatpush1.bf16.msra.mxu0 0
      %679 = vmatprep.subr.bf16.mxu0 0
      %680 = vmatpush1.bf16.msra.mxu0 0
      %681 = vmatprep.subr.bf16.mxu0 0
      %682 = vmatpush1.bf16.msra.mxu0 0
      %683 = vmatprep.subr.bf16.mxu0 0
      %684 = vmatpush1.bf16.msra.mxu0 0
      %685 = vmatprep.subr.bf16.mxu0 0
      %686 = vmatpush1.bf16.msra.mxu0 0
      %687 = vmatprep.subr.bf16.mxu0 0
      %688 = vmatpush1.bf16.msra.mxu0 0
      %689 = vmatprep.subr.bf16.mxu0 0
      %690 = vmatpush1.bf16.msra.mxu0 %v673
      %691 = vmatprep.subr.bf16.mxu0 0
      %692 = vmatpush2.bf16.msra.mxu0 0
      %693 = vmatprep.subr.bf16.mxu0 0
      %694 = vmatpush2.bf16.msra.mxu0 0
      %695 = vmatprep.subr.bf16.mxu0 0
      %696 = vmatpush2.bf16.msra.mxu0 0
      %697 = vmatprep.subr.bf16.mxu0 0
      %698 = vmatpush2.bf16.msra.mxu0 0
      %699 = vmatprep.subr.bf16.mxu0 0
      %700 = vmatpush2.bf16.msra.mxu0 0
      %701 = vmatprep.subr.bf16.mxu0 0
      %702 = vmatpush2.bf16.msra.mxu0 0
      %703 = vmatprep.subr.bf16.mxu0 0
      %704 = vmatpush2.bf16.msra.mxu0 0
      %705 = vmatprep.subr.bf16.mxu0 0
      %706 = vmatpush2.bf16.msra.mxu0 0
      %707 = vmatprep.mubr.bf16.mxu0 0
      %708 = vmatmul.mubr.bf16.gmra.mxu0 %v613
      %v709 = vpop.f32.mrf.mxu0
      %v710 = vadd.f32 %v454, %v709
      %v711 = vpop.f32.mrf.mxu0
      %v712 = vpop.f32.mrf.mxu0
      %v713 = vadd.f32 %v457, %v712
      %v714 = vpop.f32.mrf.mxu0
      %715 = vmatprep.mubr.bf16.mxu0 0
      %716 = vmatmul.mubr.bf16.gmra.mxu0 %v616
      %v717 = vpop.f32.mrf.mxu0
      %v718 = vadd.f32 %v462, %v717
      %v719 = vpop.f32.mrf.mxu0
      %v720 = vpop.f32.mrf.mxu0
      %v721 = vadd.f32 %v465, %v720
      %v722 = vpop.f32.mrf.mxu0
      %723 = vmatprep.mubr.bf16.mxu0 0
      %724 = vmatmul.mubr.bf16.gmra.mxu0 %v619
      %v725 = vpop.f32.mrf.mxu0
      %v726 = vadd.f32 %v470, %v725
      %v727 = vpop.f32.mrf.mxu0
      %v728 = vpop.f32.mrf.mxu0
      %v729 = vadd.f32 %v473, %v728
      %v730 = vpop.f32.mrf.mxu0
      %731 = vmatprep.mubr.bf16.mxu0 0
      %732 = vmatmul.mubr.bf16.gmra.mxu0 %v622
      %v733 = vpop.f32.mrf.mxu0
      %v734 = vadd.f32 %v478, %v733
      %v735 = vpop.f32.mrf.mxu0
      %v736 = vpop.f32.mrf.mxu0
      %v737 = vadd.f32 %v481, %v736
      %v738 = vpop.f32.mrf.mxu0
      %739 = vmatprep.mubr.bf16.mxu0 0
      %740 = vmatmul.mubr.bf16.gmra.mxu0 %v625
      %v741 = vpop.f32.mrf.mxu0
      %v742 = vadd.f32 %v486, %v741
      %v743 = vpop.f32.mrf.mxu0
      %v744 = vpop.f32.mrf.mxu0
      %v745 = vadd.f32 %v489, %v744
      %v746 = vpop.f32.mrf.mxu0
      %747 = vmatprep.mubr.bf16.mxu0 0
      %748 = vmatmul.mubr.bf16.gmra.mxu0 %v628
      %v749 = vpop.f32.mrf.mxu0
      %v750 = vadd.f32 %v494, %v749
      %v751 = vpop.f32.mrf.mxu0
      %v752 = vpop.f32.mrf.mxu0
      %v753 = vadd.f32 %v497, %v752
      %v754 = vpop.f32.mrf.mxu0
      %755 = vmatprep.mubr.bf16.mxu0 0
      %756 = vmatmul.mubr.bf16.gmra.mxu0 %v631
      %v757 = vpop.f32.mrf.mxu0
      %v758 = vadd.f32 %v502, %v757
      %v759 = vpop.f32.mrf.mxu0
      %v760 = vpop.f32.mrf.mxu0
      %v761 = vadd.f32 %v505, %v760
      %v762 = vpop.f32.mrf.mxu0
      %763 = vmatprep.mubr.bf16.mxu0 0
      %764 = vmatmul.mubr.bf16.gmra.mxu0 %v634
      %v765 = vpop.f32.mrf.mxu0
      %v766 = vadd.f32 %v510, %v765
      %v767 = vpop.f32.mrf.mxu0
      %v768 = vpop.f32.mrf.mxu0
      %v769 = vadd.f32 %v513, %v768
      %v770 = vpop.f32.mrf.mxu0
      %771 = vmatprep.mubr.bf16.mxu0 0
      %772 = vmatmul.mubr.bf16.gmra.mxu0 %v637
      %v773 = vpop.f32.mrf.mxu0
      %v774 = vadd.f32 %v518, %v773
      %v775 = vpop.f32.mrf.mxu0
      %v776 = vpop.f32.mrf.mxu0
      %v777 = vadd.f32 %v521, %v776
      %v778 = vpop.f32.mrf.mxu0
      %779 = vmatprep.mubr.bf16.mxu0 0
      %780 = vmatmul.mubr.bf16.gmra.mxu0 %v640
      %v781 = vpop.f32.mrf.mxu0
      %v782 = vadd.f32 %v526, %v781
      %v783 = vpop.f32.mrf.mxu0
      %v784 = vpop.f32.mrf.mxu0
      %v785 = vadd.f32 %v529, %v784
      %v786 = vpop.f32.mrf.mxu0
      %787 = vmatprep.mubr.bf16.mxu0 0
      %788 = vmatmul.mubr.bf16.gmra.mxu0 %v643
      %v789 = vpop.f32.mrf.mxu0
      %v790 = vadd.f32 %v534, %v789
      %v791 = vpop.f32.mrf.mxu0
      %v792 = vpop.f32.mrf.mxu0
      %v793 = vadd.f32 %v537, %v792
      %v794 = vpop.f32.mrf.mxu0
      %795 = vmatprep.mubr.bf16.mxu0 0
      %796 = vmatmul.mubr.bf16.gmra.mxu0 %v646
      %v797 = vpop.f32.mrf.mxu0
      %v798 = vadd.f32 %v542, %v797
      %v799 = vpop.f32.mrf.mxu0
      %v800 = vpop.f32.mrf.mxu0
      %v801 = vadd.f32 %v545, %v800
      %v802 = vpop.f32.mrf.mxu0
      %803 = vmatprep.mubr.bf16.mxu0 0
      %804 = vmatmul.mubr.bf16.gmra.mxu0 %v649
      %v805 = vpop.f32.mrf.mxu0
      %v806 = vadd.f32 %v550, %v805
      %v807 = vpop.f32.mrf.mxu0
      %v808 = vpop.f32.mrf.mxu0
      %v809 = vadd.f32 %v553, %v808
      %v810 = vpop.f32.mrf.mxu0
      %811 = vmatprep.mubr.bf16.mxu0 0
      %812 = vmatmul.mubr.bf16.gmra.mxu0 %v652
      %v813 = vpop.f32.mrf.mxu0
      %v814 = vadd.f32 %v558, %v813
      %v815 = vpop.f32.mrf.mxu0
      %v816 = vpop.f32.mrf.mxu0
      %v817 = vadd.f32 %v561, %v816
      %v818 = vpop.f32.mrf.mxu0
      %819 = vmatprep.mubr.bf16.mxu0 0
      %820 = vmatmul.mubr.bf16.gmra.mxu0 %v655
      %v821 = vpop.f32.mrf.mxu0
      %v822 = vadd.f32 %v566, %v821
      %v823 = vpop.f32.mrf.mxu0
      %v824 = vpop.f32.mrf.mxu0
      %v825 = vadd.f32 %v569, %v824
      %v826 = vpop.f32.mrf.mxu0
      %827 = vmatprep.mubr.bf16.mxu0 0
      %828 = vmatmul.mubr.bf16.gmra.mxu0 %v658
      %v829 = vpop.f32.mrf.mxu0
      %v830 = vadd.f32 %v574, %v829
      %v831 = vpop.f32.mrf.mxu0
      %v832 = vpop.f32.mrf.mxu0
      %v833 = vadd.f32 %v577, %v832
      %v834 = vpop.f32.mrf.mxu0
      %835 = vmatprep.mubr.bf16.mxu0 0
      %836 = vmatmul.mubr.bf16.gmra.mxu0 %v661
      %v837 = vpop.f32.mrf.mxu0
      %v838 = vadd.f32 %v582, %v837
      %v839 = vpop.f32.mrf.mxu0
      %v840 = vpop.f32.mrf.mxu0
      %v841 = vadd.f32 %v585, %v840
      %v842 = vpop.f32.mrf.mxu0
      %843 = vmatprep.mubr.bf16.mxu0 0
      %844 = vmatmul.mubr.bf16.gmra.mxu0 %v664
      %v845 = vpop.f32.mrf.mxu0
      %v846 = vadd.f32 %v590, %v845
      %v847 = vpop.f32.mrf.mxu0
      %v848 = vpop.f32.mrf.mxu0
      %v849 = vadd.f32 %v593, %v848
      %v850 = vpop.f32.mrf.mxu0
      %851 = vmatprep.mubr.bf16.mxu0 0
      %852 = vmatmul.mubr.bf16.gmra.mxu0 %v667
      %v853 = vpop.f32.mrf.mxu0
      %v854 = vadd.f32 %v598, %v853
      %v855 = vpop.f32.mrf.mxu0
      %v856 = vpop.f32.mrf.mxu0
      %v857 = vadd.f32 %v601, %v856
      %v858 = vpop.f32.mrf.mxu0
      %859 = vmatprep.mubr.bf16.mxu0 0
      %860 = vmatmul.mubr.bf16.gmra.mxu0 %v670
      %v861 = vpop.f32.mrf.mxu0
      %v862 = vadd.f32 %v606, %v861
      %v863 = vpop.f32.mrf.mxu0
      %v864 = vpop.f32.mrf.mxu0
      %v865 = vadd.f32 %v609, %v864
      %v866 = vpop.f32.mrf.mxu0
      %867 = vdwg.mxu0
      %v868 = vld [vmem:[%s2] sm:$0x1]
      %v870 = vlaneseq
      %v871 = vshrl.u32 %v870, 7
      %v872 = vsub.s32 0, %v871
      %v873 = vrot.slane %v868, %v872
      %v875 = vadd.f32 %v710, %v873
      %v876 = vadd.f32 %v713, %v873
      %v877 = vadd.f32 %v718, %v873
      %v878 = vadd.f32 %v721, %v873
      %v879 = vadd.f32 %v726, %v873
      %v880 = vadd.f32 %v729, %v873
      %v881 = vadd.f32 %v734, %v873
      %v882 = vadd.f32 %v737, %v873
      %v883 = vadd.f32 %v742, %v873
      %v884 = vadd.f32 %v745, %v873
      %v885 = vadd.f32 %v750, %v873
      %v886 = vadd.f32 %v753, %v873
      %v887 = vadd.f32 %v758, %v873
      %v888 = vadd.f32 %v761, %v873
      %v889 = vadd.f32 %v766, %v873
      %v890 = vadd.f32 %v769, %v873
      %v891 = vadd.f32 %v774, %v873
      %v892 = vadd.f32 %v777, %v873
      %v893 = vadd.f32 %v782, %v873
      %v894 = vadd.f32 %v785, %v873
      %v895 = vadd.f32 %v790, %v873
      %v896 = vadd.f32 %v793, %v873
      %v897 = vadd.f32 %v798, %v873
      %v898 = vadd.f32 %v801, %v873
      %v899 = vadd.f32 %v806, %v873
      %v900 = vadd.f32 %v809, %v873
      %v901 = vadd.f32 %v814, %v873
      %v902 = vadd.f32 %v817, %v873
      %v903 = vadd.f32 %v822, %v873
      %v904 = vadd.f32 %v825, %v873
      %v905 = vadd.f32 %v830, %v873
      %v906 = vadd.f32 %v833, %v873
      %v907 = vadd.f32 %v838, %v873
      %v908 = vadd.f32 %v841, %v873
      %v909 = vadd.f32 %v846, %v873
      %v910 = vadd.f32 %v849, %v873
      %v911 = vadd.f32 %v854, %v873
      %v912 = vadd.f32 %v857, %v873
      %v913 = vadd.f32 %v862, %v873
      %v914 = vadd.f32 %v865, %v873
      %vm915 = vcmask 261120
      %v916 = vsel %vm915, %v875, 0.0
      %v917 = vsel %vm915, %v876, 0.0
      %v918 = vadd.f32 %v916, %v917
      %v919 = vsel %vm915, %v877, 0.0
      %v920 = vadd.f32 %v918, %v919
      %v921 = vsel %vm915, %v878, 0.0
      %v922 = vadd.f32 %v920, %v921
      %v923 = vsel %vm915, %v879, 0.0
      %v924 = vadd.f32 %v922, %v923
      %v925 = vsel %vm915, %v880, 0.0
      %v926 = vadd.f32 %v924, %v925
      %v927 = vsel %vm915, %v881, 0.0
      %v928 = vadd.f32 %v926, %v927
      %v929 = vsel %vm915, %v882, 0.0
      %v930 = vadd.f32 %v928, %v929
      %v931 = vsel %vm915, %v883, 0.0
      %v932 = vadd.f32 %v930, %v931
      %v933 = vsel %vm915, %v884, 0.0
      %v934 = vadd.f32 %v932, %v933
      %v935 = vsel %vm915, %v885, 0.0
      %v936 = vadd.f32 %v934, %v935
      %v937 = vsel %vm915, %v886, 0.0
      %v938 = vadd.f32 %v936, %v937
      %v939 = vsel %vm915, %v887, 0.0
      %v940 = vadd.f32 %v938, %v939
      %v941 = vsel %vm915, %v888, 0.0
      %v942 = vadd.f32 %v940, %v941
      %v943 = vsel %vm915, %v889, 0.0
      %v944 = vadd.f32 %v942, %v943
      %v945 = vsel %vm915, %v890, 0.0
      %v946 = vadd.f32 %v944, %v945
      %v947 = vsel %vm915, %v891, 0.0
      %v948 = vadd.f32 %v946, %v947
      %v949 = vsel %vm915, %v892, 0.0
      %v950 = vadd.f32 %v948, %v949
      %v951 = vsel %vm915, %v893, 0.0
      %v952 = vadd.f32 %v950, %v951
      %v953 = vsel %vm915, %v894, 0.0
      %v954 = vadd.f32 %v952, %v953
      %v955 = vsel %vm915, %v895, 0.0
      %v956 = vadd.f32 %v954, %v955
      %v957 = vsel %vm915, %v896, 0.0
      %v958 = vadd.f32 %v956, %v957
      %v959 = vsel %vm915, %v897, 0.0
      %v960 = vadd.f32 %v958, %v959
      %v961 = vsel %vm915, %v898, 0.0
      %v962 = vadd.f32 %v960, %v961
      %v963 = vsel %vm915, %v899, 0.0
      %v964 = vadd.f32 %v962, %v963
      %v965 = vsel %vm915, %v900, 0.0
      %v966 = vadd.f32 %v964, %v965
      %v967 = vsel %vm915, %v901, 0.0
      %v968 = vadd.f32 %v966, %v967
      %v969 = vsel %vm915, %v902, 0.0
      %v970 = vadd.f32 %v968, %v969
      %v971 = vsel %vm915, %v903, 0.0
      %v972 = vadd.f32 %v970, %v971
      %v973 = vsel %vm915, %v904, 0.0
      %v974 = vadd.f32 %v972, %v973
      %v975 = vsel %vm915, %v905, 0.0
      %v976 = vadd.f32 %v974, %v975
      %v977 = vsel %vm915, %v906, 0.0
      %v978 = vadd.f32 %v976, %v977
      %v979 = vsel %vm915, %v907, 0.0
      %v980 = vadd.f32 %v978, %v979
      %v981 = vsel %vm915, %v908, 0.0
      %v982 = vadd.f32 %v980, %v981
      %v983 = vsel %vm915, %v909, 0.0
      %v984 = vadd.f32 %v982, %v983
      %v985 = vsel %vm915, %v910, 0.0
      %v986 = vadd.f32 %v984, %v985
      %v987 = vsel %vm915, %v911, 0.0
      %v988 = vadd.f32 %v986, %v987
      %v989 = vsel %vm915, %v912, 0.0
      %v990 = vadd.f32 %v988, %v989
      %v991 = vsel %vm915, %v913, 0.0
      %v992 = vadd.f32 %v990, %v991
      %vm993 = vcmask 260096
      %v994 = vsel %vm993, %v914, 0.0
      %v995 = vadd.f32 %v992, %v994
      %v996 = vrot.slane %v995, 4
      %v997 = vadd.f32 %v995, %v996
      %v998 = vrot.slane %v997, 2
      %v999 = vadd.f32 %v997, %v998
      %v1000 = vrot.slane %v999, 1
      %v1001 = vadd.f32 %v999, %v1000
      %v1002 = vrcp.pop 319.0
      %v1003 = vmul.f32 %v1001, %v1002
      %v1004 = vsub.f32 %v875, %v1003
      %v1005 = vsub.f32 %v876, %v1003
      %v1006 = vsub.f32 %v877, %v1003
      %v1007 = vsub.f32 %v878, %v1003
      %v1008 = vsub.f32 %v879, %v1003
      %v1009 = vsub.f32 %v880, %v1003
      %v1010 = vsub.f32 %v881, %v1003
      %v1011 = vsub.f32 %v882, %v1003
      %v1012 = vsub.f32 %v883, %v1003
      %v1013 = vsub.f32 %v884, %v1003
      %v1014 = vsub.f32 %v885, %v1003
      %v1015 = vsub.f32 %v886, %v1003
      %v1016 = vsub.f32 %v887, %v1003
      %v1017 = vsub.f32 %v888, %v1003
      %v1018 = vsub.f32 %v889, %v1003
      %v1019 = vsub.f32 %v890, %v1003
      %v1020 = vsub.f32 %v891, %v1003
      %v1021 = vsub.f32 %v892, %v1003
      %v1022 = vsub.f32 %v893, %v1003
      %v1023 = vsub.f32 %v894, %v1003
      %v1024 = vsub.f32 %v895, %v1003
      %v1025 = vsub.f32 %v896, %v1003
      %v1026 = vsub.f32 %v897, %v1003
      %v1027 = vsub.f32 %v898, %v1003
      %v1028 = vsub.f32 %v899, %v1003
      %v1029 = vsub.f32 %v900, %v1003
      %v1030 = vsub.f32 %v901, %v1003
      %v1031 = vsub.f32 %v902, %v1003
      %v1032 = vsub.f32 %v903, %v1003
      %v1033 = vsub.f32 %v904, %v1003
      %v1034 = vsub.f32 %v905, %v1003
      %v1035 = vsub.f32 %v906, %v1003
      %v1036 = vsub.f32 %v907, %v1003
      %v1037 = vsub.f32 %v908, %v1003
      %v1038 = vsub.f32 %v909, %v1003
      %v1039 = vsub.f32 %v910, %v1003
      %v1040 = vsub.f32 %v911, %v1003
      %v1041 = vsub.f32 %v912, %v1003
      %v1042 = vsub.f32 %v913, %v1003
      %v1043 = vsub.f32 %v914, %v1003
      %v1044 = vmul.f32 %v1004, %v1004
      %v1045 = vmul.f32 %v1005, %v1005
      %v1046 = vmul.f32 %v1006, %v1006
      %v1047 = vmul.f32 %v1007, %v1007
      %v1048 = vmul.f32 %v1008, %v1008
      %v1049 = vmul.f32 %v1009, %v1009
      %v1050 = vmul.f32 %v1010, %v1010
      %v1051 = vmul.f32 %v1011, %v1011
      %v1052 = vmul.f32 %v1012, %v1012
      %v1053 = vmul.f32 %v1013, %v1013
      %v1054 = vmul.f32 %v1014, %v1014
      %v1055 = vmul.f32 %v1015, %v1015
      %v1056 = vmul.f32 %v1016, %v1016
      %v1057 = vmul.f32 %v1017, %v1017
      %v1058 = vmul.f32 %v1018, %v1018
      %v1059 = vmul.f32 %v1019, %v1019
      %v1060 = vmul.f32 %v1020, %v1020
      %v1061 = vmul.f32 %v1021, %v1021
      %v1062 = vmul.f32 %v1022, %v1022
      %v1063 = vmul.f32 %v1023, %v1023
      %v1064 = vmul.f32 %v1024, %v1024
      %v1065 = vmul.f32 %v1025, %v1025
      %v1066 = vmul.f32 %v1026, %v1026
      %v1067 = vmul.f32 %v1027, %v1027
      %v1068 = vmul.f32 %v1028, %v1028
      %v1069 = vmul.f32 %v1029, %v1029
      %v1070 = vmul.f32 %v1030, %v1030
      %v1071 = vmul.f32 %v1031, %v1031
      %v1072 = vmul.f32 %v1032, %v1032
      %v1073 = vmul.f32 %v1033, %v1033
      %v1074 = vmul.f32 %v1034, %v1034
      %v1075 = vmul.f32 %v1035, %v1035
      %v1076 = vmul.f32 %v1036, %v1036
      %v1077 = vmul.f32 %v1037, %v1037
      %v1078 = vmul.f32 %v1038, %v1038
      %v1079 = vmul.f32 %v1039, %v1039
      %v1080 = vmul.f32 %v1040, %v1040
      %v1081 = vmul.f32 %v1041, %v1041
      %v1082 = vmul.f32 %v1042, %v1042
      %v1083 = vmul.f32 %v1043, %v1043
      %v1084 = vsel %vm915, %v1044, 0.0
      %v1085 = vsel %vm915, %v1045, 0.0
      %v1086 = vadd.f32 %v1084, %v1085
      %v1087 = vsel %vm915, %v1046, 0.0
      %v1088 = vadd.f32 %v1086, %v1087
      %v1089 = vsel %vm915, %v1047, 0.0
      %v1090 = vadd.f32 %v1088, %v1089
      %v1091 = vsel %vm915, %v1048, 0.0
      %v1092 = vadd.f32 %v1090, %v1091
      %v1093 = vsel %vm915, %v1049, 0.0
      %v1094 = vadd.f32 %v1092, %v1093
      %v1095 = vsel %vm915, %v1050, 0.0
      %v1096 = vadd.f32 %v1094, %v1095
      %v1097 = vsel %vm915, %v1051, 0.0
      %v1098 = vadd.f32 %v1096, %v1097
      %v1099 = vsel %vm915, %v1052, 0.0
      %v1100 = vadd.f32 %v1098, %v1099
      %v1101 = vsel %vm915, %v1053, 0.0
      %v1102 = vadd.f32 %v1100, %v1101
      %v1103 = vsel %vm915, %v1054, 0.0
      %v1104 = vadd.f32 %v1102, %v1103
      %v1105 = vsel %vm915, %v1055, 0.0
      %v1106 = vadd.f32 %v1104, %v1105
      %v1107 = vsel %vm915, %v1056, 0.0
      %v1108 = vadd.f32 %v1106, %v1107
      %v1109 = vsel %vm915, %v1057, 0.0
      %v1110 = vadd.f32 %v1108, %v1109
      %v1111 = vsel %vm915, %v1058, 0.0
      %v1112 = vadd.f32 %v1110, %v1111
      %v1113 = vsel %vm915, %v1059, 0.0
      %v1114 = vadd.f32 %v1112, %v1113
      %v1115 = vsel %vm915, %v1060, 0.0
      %v1116 = vadd.f32 %v1114, %v1115
      %v1117 = vsel %vm915, %v1061, 0.0
      %v1118 = vadd.f32 %v1116, %v1117
      %v1119 = vsel %vm915, %v1062, 0.0
      %v1120 = vadd.f32 %v1118, %v1119
      %v1121 = vsel %vm915, %v1063, 0.0
      %v1122 = vadd.f32 %v1120, %v1121
      %v1123 = vsel %vm915, %v1064, 0.0
      %v1124 = vadd.f32 %v1122, %v1123
      %v1125 = vsel %vm915, %v1065, 0.0
      %v1126 = vadd.f32 %v1124, %v1125
      %v1127 = vsel %vm915, %v1066, 0.0
      %v1128 = vadd.f32 %v1126, %v1127
      %v1129 = vsel %vm915, %v1067, 0.0
      %v1130 = vadd.f32 %v1128, %v1129
      %v1131 = vsel %vm915, %v1068, 0.0
      %v1132 = vadd.f32 %v1130, %v1131
      %v1133 = vsel %vm915, %v1069, 0.0
      %v1134 = vadd.f32 %v1132, %v1133
      %v1135 = vsel %vm915, %v1070, 0.0
      %v1136 = vadd.f32 %v1134, %v1135
      %v1137 = vsel %vm915, %v1071, 0.0
      %v1138 = vadd.f32 %v1136, %v1137
      %v1139 = vsel %vm915, %v1072, 0.0
      %v1140 = vadd.f32 %v1138, %v1139
      %v1141 = vsel %vm915, %v1073, 0.0
      %v1142 = vadd.f32 %v1140, %v1141
      %v1143 = vsel %vm915, %v1074, 0.0
      %v1144 = vadd.f32 %v1142, %v1143
      %v1145 = vsel %vm915, %v1075, 0.0
      %v1146 = vadd.f32 %v1144, %v1145
      %v1147 = vsel %vm915, %v1076, 0.0
      %v1148 = vadd.f32 %v1146, %v1147
      %v1149 = vsel %vm915, %v1077, 0.0
      %v1150 = vadd.f32 %v1148, %v1149
      %v1151 = vsel %vm915, %v1078, 0.0
      %v1152 = vadd.f32 %v1150, %v1151
      %v1153 = vsel %vm915, %v1079, 0.0
      %v1154 = vadd.f32 %v1152, %v1153
      %v1155 = vsel %vm915, %v1080, 0.0
      %v1156 = vadd.f32 %v1154, %v1155
      %v1157 = vsel %vm915, %v1081, 0.0
      %v1158 = vadd.f32 %v1156, %v1157
      %v1159 = vsel %vm915, %v1082, 0.0
      %v1160 = vadd.f32 %v1158, %v1159
      %v1161 = vsel %vm993, %v1083, 0.0
      %v1162 = vadd.f32 %v1160, %v1161
      %v1163 = vrot.slane %v1162, 4
      %v1164 = vadd.f32 %v1162, %v1163
      %v1165 = vrot.slane %v1164, 2
      %v1166 = vadd.f32 %v1164, %v1165
      %v1167 = vrot.slane %v1166, 1
      %v1168 = vadd.f32 %v1166, %v1167
      %v1169 = vmul.f32 %v1168, %v1002
      %v1170 = vadd.f32 %v1169, 1e-05
      %v1171 = vrsqrt.pop %v1170
      %v1172 = vmul.f32 %v1004, %v1171
      %v1173 = vmul.f32 %v1005, %v1171
      %v1174 = vmul.f32 %v1006, %v1171
      %v1175 = vmul.f32 %v1007, %v1171
      %v1176 = vmul.f32 %v1008, %v1171
      %v1177 = vmul.f32 %v1009, %v1171
      %v1178 = vmul.f32 %v1010, %v1171
      %v1179 = vmul.f32 %v1011, %v1171
      %v1180 = vmul.f32 %v1012, %v1171
      %v1181 = vmul.f32 %v1013, %v1171
      %v1182 = vmul.f32 %v1014, %v1171
      %v1183 = vmul.f32 %v1015, %v1171
      %v1184 = vmul.f32 %v1016, %v1171
      %v1185 = vmul.f32 %v1017, %v1171
      %v1186 = vmul.f32 %v1018, %v1171
      %v1187 = vmul.f32 %v1019, %v1171
      %v1188 = vmul.f32 %v1020, %v1171
      %v1189 = vmul.f32 %v1021, %v1171
      %v1190 = vmul.f32 %v1022, %v1171
      %v1191 = vmul.f32 %v1023, %v1171
      %v1192 = vmul.f32 %v1024, %v1171
      %v1193 = vmul.f32 %v1025, %v1171
      %v1194 = vmul.f32 %v1026, %v1171
      %v1195 = vmul.f32 %v1027, %v1171
      %v1196 = vmul.f32 %v1028, %v1171
      %v1197 = vmul.f32 %v1029, %v1171
      %v1198 = vmul.f32 %v1030, %v1171
      %v1199 = vmul.f32 %v1031, %v1171
      %v1200 = vmul.f32 %v1032, %v1171
      %v1201 = vmul.f32 %v1033, %v1171
      %v1202 = vmul.f32 %v1034, %v1171
      %v1203 = vmul.f32 %v1035, %v1171
      %v1204 = vmul.f32 %v1036, %v1171
      %v1205 = vmul.f32 %v1037, %v1171
      %v1206 = vmul.f32 %v1038, %v1171
      %v1207 = vmul.f32 %v1039, %v1171
      %v1208 = vmul.f32 %v1040, %v1171
      %v1209 = vmul.f32 %v1041, %v1171
      %v1210 = vmul.f32 %v1042, %v1171
      %v1211 = vmul.f32 %v1043, %v1171
      %v1212 = vld [vmem:[%s3] sm:$0x1]
      %v1214 = vlaneseq
      %v1215 = vshrl.u32 %v1214, 7
      %v1216 = vsub.s32 0, %v1215
      %v1217 = vrot.slane %v1212, %v1216
      %v1219 = vmul.f32 %v1172, %v1217
      %v1220 = vmul.f32 %v1173, %v1217
      %v1221 = vmul.f32 %v1174, %v1217
      %v1222 = vmul.f32 %v1175, %v1217
      %v1223 = vmul.f32 %v1176, %v1217
      %v1224 = vmul.f32 %v1177, %v1217
      %v1225 = vmul.f32 %v1178, %v1217
      %v1226 = vmul.f32 %v1179, %v1217
      %v1227 = vmul.f32 %v1180, %v1217
      %v1228 = vmul.f32 %v1181, %v1217
      %v1229 = vmul.f32 %v1182, %v1217
      %v1230 = vmul.f32 %v1183, %v1217
      %v1231 = vmul.f32 %v1184, %v1217
      %v1232 = vmul.f32 %v1185, %v1217
      %v1233 = vmul.f32 %v1186, %v1217
      %v1234 = vmul.f32 %v1187, %v1217
      %v1235 = vmul.f32 %v1188, %v1217
      %v1236 = vmul.f32 %v1189, %v1217
      %v1237 = vmul.f32 %v1190, %v1217
      %v1238 = vmul.f32 %v1191, %v1217
      %v1239 = vmul.f32 %v1192, %v1217
      %v1240 = vmul.f32 %v1193, %v1217
      %v1241 = vmul.f32 %v1194, %v1217
      %v1242 = vmul.f32 %v1195, %v1217
      %v1243 = vmul.f32 %v1196, %v1217
      %v1244 = vmul.f32 %v1197, %v1217
      %v1245 = vmul.f32 %v1198, %v1217
      %v1246 = vmul.f32 %v1199, %v1217
      %v1247 = vmul.f32 %v1200, %v1217
      %v1248 = vmul.f32 %v1201, %v1217
      %v1249 = vmul.f32 %v1202, %v1217
      %v1250 = vmul.f32 %v1203, %v1217
      %v1251 = vmul.f32 %v1204, %v1217
      %v1252 = vmul.f32 %v1205, %v1217
      %v1253 = vmul.f32 %v1206, %v1217
      %v1254 = vmul.f32 %v1207, %v1217
      %v1255 = vmul.f32 %v1208, %v1217
      %v1256 = vmul.f32 %v1209, %v1217
      %v1257 = vmul.f32 %v1210, %v1217
      %v1258 = vmul.f32 %v1211, %v1217
      %v1259 = vld [vmem:[%s4] sm:$0x1]
      %v1261 = vlaneseq
      %v1262 = vshrl.u32 %v1261, 7
      %v1263 = vsub.s32 0, %v1262
      %v1264 = vrot.slane %v1259, %v1263
      %v1266 = vadd.f32 %v1219, %v1264
      %v1267 = vadd.f32 %v1220, %v1264
      %v1268 = vadd.f32 %v1221, %v1264
      %v1269 = vadd.f32 %v1222, %v1264
      %v1270 = vadd.f32 %v1223, %v1264
      %v1271 = vadd.f32 %v1224, %v1264
      %v1272 = vadd.f32 %v1225, %v1264
      %v1273 = vadd.f32 %v1226, %v1264
      %v1274 = vadd.f32 %v1227, %v1264
      %v1275 = vadd.f32 %v1228, %v1264
      %v1276 = vadd.f32 %v1229, %v1264
      %v1277 = vadd.f32 %v1230, %v1264
      %v1278 = vadd.f32 %v1231, %v1264
      %v1279 = vadd.f32 %v1232, %v1264
      %v1280 = vadd.f32 %v1233, %v1264
      %v1281 = vadd.f32 %v1234, %v1264
      %v1282 = vadd.f32 %v1235, %v1264
      %v1283 = vadd.f32 %v1236, %v1264
      %v1284 = vadd.f32 %v1237, %v1264
      %v1285 = vadd.f32 %v1238, %v1264
      %v1286 = vadd.f32 %v1239, %v1264
      %v1287 = vadd.f32 %v1240, %v1264
      %v1288 = vadd.f32 %v1241, %v1264
      %v1289 = vadd.f32 %v1242, %v1264
      %v1290 = vadd.f32 %v1243, %v1264
      %v1291 = vadd.f32 %v1244, %v1264
      %v1292 = vadd.f32 %v1245, %v1264
      %v1293 = vadd.f32 %v1246, %v1264
      %v1294 = vadd.f32 %v1247, %v1264
      %v1295 = vadd.f32 %v1248, %v1264
      %v1296 = vadd.f32 %v1249, %v1264
      %v1297 = vadd.f32 %v1250, %v1264
      %v1298 = vadd.f32 %v1251, %v1264
      %v1299 = vadd.f32 %v1252, %v1264
      %v1300 = vadd.f32 %v1253, %v1264
      %v1301 = vadd.f32 %v1254, %v1264
      %v1302 = vadd.f32 %v1255, %v1264
      %v1303 = vadd.f32 %v1256, %v1264
      %v1304 = vadd.f32 %v1257, %v1264
      %v1305 = vadd.f32 %v1258, %v1264
      %v1306 = vmul.f32 %v1266, 0.5
      %v1307 = vmul.f32 %v1267, 0.5
      %v1308 = vmul.f32 %v1268, 0.5
      %v1309 = vmul.f32 %v1269, 0.5
      %v1310 = vmul.f32 %v1270, 0.5
      %v1311 = vmul.f32 %v1271, 0.5
      %v1312 = vmul.f32 %v1272, 0.5
      %v1313 = vmul.f32 %v1273, 0.5
      %v1314 = vmul.f32 %v1274, 0.5
      %v1315 = vmul.f32 %v1275, 0.5
      %v1316 = vmul.f32 %v1276, 0.5
      %v1317 = vmul.f32 %v1277, 0.5
      %v1318 = vmul.f32 %v1278, 0.5
      %v1319 = vmul.f32 %v1279, 0.5
      %v1320 = vmul.f32 %v1280, 0.5
      %v1321 = vmul.f32 %v1281, 0.5
      %v1322 = vmul.f32 %v1282, 0.5
      %v1323 = vmul.f32 %v1283, 0.5
      %v1324 = vmul.f32 %v1284, 0.5
      %v1325 = vmul.f32 %v1285, 0.5
      %v1326 = vmul.f32 %v1286, 0.5
      %v1327 = vmul.f32 %v1287, 0.5
      %v1328 = vmul.f32 %v1288, 0.5
      %v1329 = vmul.f32 %v1289, 0.5
      %v1330 = vmul.f32 %v1290, 0.5
      %v1331 = vmul.f32 %v1291, 0.5
      %v1332 = vmul.f32 %v1292, 0.5
      %v1333 = vmul.f32 %v1293, 0.5
      %v1334 = vmul.f32 %v1294, 0.5
      %v1335 = vmul.f32 %v1295, 0.5
      %v1336 = vmul.f32 %v1296, 0.5
      %v1337 = vmul.f32 %v1297, 0.5
      %v1338 = vmul.f32 %v1298, 0.5
      %v1339 = vmul.f32 %v1299, 0.5
      %v1340 = vmul.f32 %v1300, 0.5
      %v1341 = vmul.f32 %v1301, 0.5
      %v1342 = vmul.f32 %v1302, 0.5
      %v1343 = vmul.f32 %v1303, 0.5
      %v1344 = vmul.f32 %v1304, 0.5
      %v1345 = vmul.f32 %v1305, 0.5
      %v1346 = vmul.f32 %v1266, 0.044715
      %v1347 = vmul.f32 %v1267, 0.044715
      %v1348 = vmul.f32 %v1268, 0.044715
      %v1349 = vmul.f32 %v1269, 0.044715
      %v1350 = vmul.f32 %v1270, 0.044715
      %v1351 = vmul.f32 %v1271, 0.044715
      %v1352 = vmul.f32 %v1272, 0.044715
      %v1353 = vmul.f32 %v1273, 0.044715
      %v1354 = vmul.f32 %v1274, 0.044715
      %v1355 = vmul.f32 %v1275, 0.044715
      %v1356 = vmul.f32 %v1276, 0.044715
      %v1357 = vmul.f32 %v1277, 0.044715
      %v1358 = vmul.f32 %v1278, 0.044715
      %v1359 = vmul.f32 %v1279, 0.044715
      %v1360 = vmul.f32 %v1280, 0.044715
      %v1361 = vmul.f32 %v1281, 0.044715
      %v1362 = vmul.f32 %v1282, 0.044715
      %v1363 = vmul.f32 %v1283, 0.044715
      %v1364 = vmul.f32 %v1284, 0.044715
      %v1365 = vmul.f32 %v1285, 0.044715
      %v1366 = vmul.f32 %v1286, 0.044715
      %v1367 = vmul.f32 %v1287, 0.044715
      %v1368 = vmul.f32 %v1288, 0.044715
      %v1369 = vmul.f32 %v1289, 0.044715
      %v1370 = vmul.f32 %v1290, 0.044715
      %v1371 = vmul.f32 %v1291, 0.044715
      %v1372 = vmul.f32 %v1292, 0.044715
      %v1373 = vmul.f32 %v1293, 0.044715
      %v1374 = vmul.f32 %v1294, 0.044715
      %v1375 = vmul.f32 %v1295, 0.044715
      %v1376 = vmul.f32 %v1296, 0.044715
      %v1377 = vmul.f32 %v1297, 0.044715
      %v1378 = vmul.f32 %v1298, 0.044715
      %v1379 = vmul.f32 %v1299, 0.044715
      %v1380 = vmul.f32 %v1300, 0.044715
      %v1381 = vmul.f32 %v1301, 0.044715
      %v1382 = vmul.f32 %v1302, 0.044715
      %v1383 = vmul.f32 %v1303, 0.044715
      %v1384 = vmul.f32 %v1304, 0.044715
      %v1385 = vmul.f32 %v1305, 0.044715
      %v1386 = vmul.f32 %v1346, %v1266
      %v1387 = vmul.f32 %v1347, %v1267
      %v1388 = vmul.f32 %v1348, %v1268
      %v1389 = vmul.f32 %v1349, %v1269
      %v1390 = vmul.f32 %v1350, %v1270
      %v1391 = vmul.f32 %v1351, %v1271
      %v1392 = vmul.f32 %v1352, %v1272
      %v1393 = vmul.f32 %v1353, %v1273
      %v1394 = vmul.f32 %v1354, %v1274
      %v1395 = vmul.f32 %v1355, %v1275
      %v1396 = vmul.f32 %v1356, %v1276
      %v1397 = vmul.f32 %v1357, %v1277
      %v1398 = vmul.f32 %v1358, %v1278
      %v1399 = vmul.f32 %v1359, %v1279
      %v1400 = vmul.f32 %v1360, %v1280
      %v1401 = vmul.f32 %v1361, %v1281
      %v1402 = vmul.f32 %v1362, %v1282
      %v1403 = vmul.f32 %v1363, %v1283
      %v1404 = vmul.f32 %v1364, %v1284
      %v1405 = vmul.f32 %v1365, %v1285
      %v1406 = vmul.f32 %v1366, %v1286
      %v1407 = vmul.f32 %v1367, %v1287
      %v1408 = vmul.f32 %v1368, %v1288
      %v1409 = vmul.f32 %v1369, %v1289
      %v1410 = vmul.f32 %v1370, %v1290
      %v1411 = vmul.f32 %v1371, %v1291
      %v1412 = vmul.f32 %v1372, %v1292
      %v1413 = vmul.f32 %v1373, %v1293
      %v1414 = vmul.f32 %v1374, %v1294
      %v1415 = vmul.f32 %v1375, %v1295
      %v1416 = vmul.f32 %v1376, %v1296
      %v1417 = vmul.f32 %v1377, %v1297
      %v1418 = vmul.f32 %v1378, %v1298
      %v1419 = vmul.f32 %v1379, %v1299
      %v1420 = vmul.f32 %v1380, %v1300
      %v1421 = vmul.f32 %v1381, %v1301
      %v1422 = vmul.f32 %v1382, %v1302
      %v1423 = vmul.f32 %v1383, %v1303
      %v1424 = vmul.f32 %v1384, %v1304
      %v1425 = vmul.f32 %v1385, %v1305
      %v1426 = vmul.f32 %v1386, %v1266
      %v1427 = vmul.f32 %v1387, %v1267
      %v1428 = vmul.f32 %v1388, %v1268
      %v1429 = vmul.f32 %v1389, %v1269
      %v1430 = vmul.f32 %v1390, %v1270
      %v1431 = vmul.f32 %v1391, %v1271
      %v1432 = vmul.f32 %v1392, %v1272
      %v1433 = vmul.f32 %v1393, %v1273
      %v1434 = vmul.f32 %v1394, %v1274
      %v1435 = vmul.f32 %v1395, %v1275
      %v1436 = vmul.f32 %v1396, %v1276
      %v1437 = vmul.f32 %v1397, %v1277
      %v1438 = vmul.f32 %v1398, %v1278
      %v1439 = vmul.f32 %v1399, %v1279
      %v1440 = vmul.f32 %v1400, %v1280
      %v1441 = vmul.f32 %v1401, %v1281
      %v1442 = vmul.f32 %v1402, %v1282
      %v1443 = vmul.f32 %v1403, %v1283
      %v1444 = vmul.f32 %v1404, %v1284
      %v1445 = vmul.f32 %v1405, %v1285
      %v1446 = vmul.f32 %v1406, %v1286
      %v1447 = vmul.f32 %v1407, %v1287
      %v1448 = vmul.f32 %v1408, %v1288
      %v1449 = vmul.f32 %v1409, %v1289
      %v1450 = vmul.f32 %v1410, %v1290
      %v1451 = vmul.f32 %v1411, %v1291
      %v1452 = vmul.f32 %v1412, %v1292
      %v1453 = vmul.f32 %v1413, %v1293
      %v1454 = vmul.f32 %v1414, %v1294
      %v1455 = vmul.f32 %v1415, %v1295
      %v1456 = vmul.f32 %v1416, %v1296
      %v1457 = vmul.f32 %v1417, %v1297
      %v1458 = vmul.f32 %v1418, %v1298
      %v1459 = vmul.f32 %v1419, %v1299
      %v1460 = vmul.f32 %v1420, %v1300
      %v1461 = vmul.f32 %v1421, %v1301
      %v1462 = vmul.f32 %v1422, %v1302
      %v1463 = vmul.f32 %v1423, %v1303
      %v1464 = vmul.f32 %v1424, %v1304
      %v1465 = vmul.f32 %v1425, %v1305
      %v1466 = vadd.f32 %v1266, %v1426
      %v1467 = vadd.f32 %v1267, %v1427
      %v1468 = vadd.f32 %v1268, %v1428
      %v1469 = vadd.f32 %v1269, %v1429
      %v1470 = vadd.f32 %v1270, %v1430
      %v1471 = vadd.f32 %v1271, %v1431
      %v1472 = vadd.f32 %v1272, %v1432
      %v1473 = vadd.f32 %v1273, %v1433
      %v1474 = vadd.f32 %v1274, %v1434
      %v1475 = vadd.f32 %v1275, %v1435
      %v1476 = vadd.f32 %v1276, %v1436
      %v1477 = vadd.f32 %v1277, %v1437
      %v1478 = vadd.f32 %v1278, %v1438
      %v1479 = vadd.f32 %v1279, %v1439
      %v1480 = vadd.f32 %v1280, %v1440
      %v1481 = vadd.f32 %v1281, %v1441
      %v1482 = vadd.f32 %v1282, %v1442
      %v1483 = vadd.f32 %v1283, %v1443
      %v1484 = vadd.f32 %v1284, %v1444
      %v1485 = vadd.f32 %v1285, %v1445
      %v1486 = vadd.f32 %v1286, %v1446
      %v1487 = vadd.f32 %v1287, %v1447
      %v1488 = vadd.f32 %v1288, %v1448
      %v1489 = vadd.f32 %v1289, %v1449
      %v1490 = vadd.f32 %v1290, %v1450
      %v1491 = vadd.f32 %v1291, %v1451
      %v1492 = vadd.f32 %v1292, %v1452
      %v1493 = vadd.f32 %v1293, %v1453
      %v1494 = vadd.f32 %v1294, %v1454
      %v1495 = vadd.f32 %v1295, %v1455
      %v1496 = vadd.f32 %v1296, %v1456
      %v1497 = vadd.f32 %v1297, %v1457
      %v1498 = vadd.f32 %v1298, %v1458
      %v1499 = vadd.f32 %v1299, %v1459
      %v1500 = vadd.f32 %v1300, %v1460
      %v1501 = vadd.f32 %v1301, %v1461
      %v1502 = vadd.f32 %v1302, %v1462
      %v1503 = vadd.f32 %v1303, %v1463
      %v1504 = vadd.f32 %v1304, %v1464
      %v1505 = vadd.f32 %v1305, %v1465
      %v1506 = vmul.f32 %v1466, 0.7978846
      %v1507 = vmul.f32 %v1467, 0.7978846
      %v1508 = vmul.f32 %v1468, 0.7978846
      %v1509 = vmul.f32 %v1469, 0.7978846
      %v1510 = vmul.f32 %v1470, 0.7978846
      %v1511 = vmul.f32 %v1471, 0.7978846
      %v1512 = vmul.f32 %v1472, 0.7978846
      %v1513 = vmul.f32 %v1473, 0.7978846
      %v1514 = vmul.f32 %v1474, 0.7978846
      %v1515 = vmul.f32 %v1475, 0.7978846
      %v1516 = vmul.f32 %v1476, 0.7978846
      %v1517 = vmul.f32 %v1477, 0.7978846
      %v1518 = vmul.f32 %v1478, 0.7978846
      %v1519 = vmul.f32 %v1479, 0.7978846
      %v1520 = vmul.f32 %v1480, 0.7978846
      %v1521 = vmul.f32 %v1481, 0.7978846
      %v1522 = vmul.f32 %v1482, 0.7978846
      %v1523 = vmul.f32 %v1483, 0.7978846
      %v1524 = vmul.f32 %v1484, 0.7978846
      %v1525 = vmul.f32 %v1485, 0.7978846
      %v1526 = vmul.f32 %v1486, 0.7978846
      %v1527 = vmul.f32 %v1487, 0.7978846
      %v1528 = vmul.f32 %v1488, 0.7978846
      %v1529 = vmul.f32 %v1489, 0.7978846
      %v1530 = vmul.f32 %v1490, 0.7978846
      %v1531 = vmul.f32 %v1491, 0.7978846
      %v1532 = vmul.f32 %v1492, 0.7978846
      %v1533 = vmul.f32 %v1493, 0.7978846
      %v1534 = vmul.f32 %v1494, 0.7978846
      %v1535 = vmul.f32 %v1495, 0.7978846
      %v1536 = vmul.f32 %v1496, 0.7978846
      %v1537 = vmul.f32 %v1497, 0.7978846
      %v1538 = vmul.f32 %v1498, 0.7978846
      %v1539 = vmul.f32 %v1499, 0.7978846
      %v1540 = vmul.f32 %v1500, 0.7978846
      %v1541 = vmul.f32 %v1501, 0.7978846
      %v1542 = vmul.f32 %v1502, 0.7978846
      %v1543 = vmul.f32 %v1503, 0.7978846
      %v1544 = vmul.f32 %v1504, 0.7978846
      %v1545 = vmul.f32 %v1505, 0.7978846
      %v1546 = vtanh.pop %v1506
      %v1547 = vtanh.pop %v1507
      %v1548 = vtanh.pop %v1508
      %v1549 = vtanh.pop %v1509
      %v1550 = vtanh.pop %v1510
      %v1551 = vtanh.pop %v1511
      %v1552 = vtanh.pop %v1512
      %v1553 = vtanh.pop %v1513
      %v1554 = vtanh.pop %v1514
      %v1555 = vtanh.pop %v1515
      %v1556 = vtanh.pop %v1516
      %v1557 = vtanh.pop %v1517
      %v1558 = vtanh.pop %v1518
      %v1559 = vtanh.pop %v1519
      %v1560 = vtanh.pop %v1520
      %v1561 = vtanh.pop %v1521
      %v1562 = vtanh.pop %v1522
      %v1563 = vtanh.pop %v1523
      %v1564 = vtanh.pop %v1524
      %v1565 = vtanh.pop %v1525
      %v1566 = vtanh.pop %v1526
      %v1567 = vtanh.pop %v1527
      %v1568 = vtanh.pop %v1528
      %v1569 = vtanh.pop %v1529
      %v1570 = vtanh.pop %v1530
      %v1571 = vtanh.pop %v1531
      %v1572 = vtanh.pop %v1532
      %v1573 = vtanh.pop %v1533
      %v1574 = vtanh.pop %v1534
      %v1575 = vtanh.pop %v1535
      %v1576 = vtanh.pop %v1536
      %v1577 = vtanh.pop %v1537
      %v1578 = vtanh.pop %v1538
      %v1579 = vtanh.pop %v1539
      %v1580 = vtanh.pop %v1540
      %v1581 = vtanh.pop %v1541
      %v1582 = vtanh.pop %v1542
      %v1583 = vtanh.pop %v1543
      %v1584 = vtanh.pop %v1544
      %v1585 = vtanh.pop %v1545
      %v1586 = vadd.f32 %v1546, 1.0
      %v1587 = vadd.f32 %v1547, 1.0
      %v1588 = vadd.f32 %v1548, 1.0
      %v1589 = vadd.f32 %v1549, 1.0
      %v1590 = vadd.f32 %v1550, 1.0
      %v1591 = vadd.f32 %v1551, 1.0
      %v1592 = vadd.f32 %v1552, 1.0
      %v1593 = vadd.f32 %v1553, 1.0
      %v1594 = vadd.f32 %v1554, 1.0
      %v1595 = vadd.f32 %v1555, 1.0
      %v1596 = vadd.f32 %v1556, 1.0
      %v1597 = vadd.f32 %v1557, 1.0
      %v1598 = vadd.f32 %v1558, 1.0
      %v1599 = vadd.f32 %v1559, 1.0
      %v1600 = vadd.f32 %v1560, 1.0
      %v1601 = vadd.f32 %v1561, 1.0
      %v1602 = vadd.f32 %v1562, 1.0
      %v1603 = vadd.f32 %v1563, 1.0
      %v1604 = vadd.f32 %v1564, 1.0
      %v1605 = vadd.f32 %v1565, 1.0
      %v1606 = vadd.f32 %v1566, 1.0
      %v1607 = vadd.f32 %v1567, 1.0
      %v1608 = vadd.f32 %v1568, 1.0
      %v1609 = vadd.f32 %v1569, 1.0
      %v1610 = vadd.f32 %v1570, 1.0
      %v1611 = vadd.f32 %v1571, 1.0
      %v1612 = vadd.f32 %v1572, 1.0
      %v1613 = vadd.f32 %v1573, 1.0
      %v1614 = vadd.f32 %v1574, 1.0
      %v1615 = vadd.f32 %v1575, 1.0
      %v1616 = vadd.f32 %v1576, 1.0
      %v1617 = vadd.f32 %v1577, 1.0
      %v1618 = vadd.f32 %v1578, 1.0
      %v1619 = vadd.f32 %v1579, 1.0
      %v1620 = vadd.f32 %v1580, 1.0
      %v1621 = vadd.f32 %v1581, 1.0
      %v1622 = vadd.f32 %v1582, 1.0
      %v1623 = vadd.f32 %v1583, 1.0
      %v1624 = vadd.f32 %v1584, 1.0
      %v1625 = vadd.f32 %v1585, 1.0
      %v1626 = vmul.f32 %v1306, %v1586
      %v1627 = vmul.f32 %v1307, %v1587
      %v1628 = vmul.f32 %v1308, %v1588
      %v1629 = vmul.f32 %v1309, %v1589
      %v1630 = vmul.f32 %v1310, %v1590
      %v1631 = vmul.f32 %v1311, %v1591
      %v1632 = vmul.f32 %v1312, %v1592
      %v1633 = vmul.f32 %v1313, %v1593
      %v1634 = vmul.f32 %v1314, %v1594
      %v1635 = vmul.f32 %v1315, %v1595
      %v1636 = vmul.f32 %v1316, %v1596
      %v1637 = vmul.f32 %v1317, %v1597
      %v1638 = vmul.f32 %v1318, %v1598
      %v1639 = vmul.f32 %v1319, %v1599
      %v1640 = vmul.f32 %v1320, %v1600
      %v1641 = vmul.f32 %v1321, %v1601
      %v1642 = vmul.f32 %v1322, %v1602
      %v1643 = vmul.f32 %v1323, %v1603
      %v1644 = vmul.f32 %v1324, %v1604
      %v1645 = vmul.f32 %v1325, %v1605
      %v1646 = vmul.f32 %v1326, %v1606
      %v1647 = vmul.f32 %v1327, %v1607
      %v1648 = vmul.f32 %v1328, %v1608
      %v1649 = vmul.f32 %v1329, %v1609
      %v1650 = vmul.f32 %v1330, %v1610
      %v1651 = vmul.f32 %v1331, %v1611
      %v1652 = vmul.f32 %v1332, %v1612
      %v1653 = vmul.f32 %v1333, %v1613
      %v1654 = vmul.f32 %v1334, %v1614
      %v1655 = vmul.f32 %v1335, %v1615
      %v1656 = vmul.f32 %v1336, %v1616
      %v1657 = vmul.f32 %v1337, %v1617
      %v1658 = vmul.f32 %v1338, %v1618
      %v1659 = vmul.f32 %v1339, %v1619
      %v1660 = vmul.f32 %v1340, %v1620
      %v1661 = vmul.f32 %v1341, %v1621
      %v1662 = vmul.f32 %v1342, %v1622
      %v1663 = vmul.f32 %v1343, %v1623
      %v1664 = vmul.f32 %v1344, %v1624
      %v1665 = vmul.f32 %v1345, %v1625
      %1666 = vst.msk [vmem:[%s224] sm:$0xff] %vm915, %v1626
      %1667 = vst.msk [vmem:[%s224 + $0x8] sm:$0xff] %vm915, %v1627
      %1668 = vst.msk [vmem:[%s224 + $0x10] sm:$0xff] %vm915, %v1628
      %1669 = vst.msk [vmem:[%s224 + $0x18] sm:$0xff] %vm915, %v1629
      %1670 = vst.msk [vmem:[%s224 + $0x20] sm:$0xff] %vm915, %v1630
      %1671 = vst.msk [vmem:[%s224 + $0x28] sm:$0xff] %vm915, %v1631
      %1672 = vst.msk [vmem:[%s224 + $0x30] sm:$0xff] %vm915, %v1632
      %1673 = vst.msk [vmem:[%s224 + $0x38] sm:$0xff] %vm915, %v1633
      %1674 = vst.msk [vmem:[%s224 + $0x40] sm:$0xff] %vm915, %v1634
      %1675 = vst.msk [vmem:[%s224 + $0x48] sm:$0xff] %vm915, %v1635
      %1676 = vst.msk [vmem:[%s224 + $0x50] sm:$0xff] %vm915, %v1636
      %1677 = vst.msk [vmem:[%s224 + $0x58] sm:$0xff] %vm915, %v1637
      %1678 = vst.msk [vmem:[%s224 + $0x60] sm:$0xff] %vm915, %v1638
      %1679 = vst.msk [vmem:[%s224 + $0x68] sm:$0xff] %vm915, %v1639
      %1680 = vst.msk [vmem:[%s224 + $0x70] sm:$0xff] %vm915, %v1640
      %1681 = vst.msk [vmem:[%s224 + $0x78] sm:$0xff] %vm915, %v1641
      %1682 = vst.msk [vmem:[%s224 + $0x80] sm:$0xff] %vm915, %v1642
      %1683 = vst.msk [vmem:[%s224 + $0x88] sm:$0xff] %vm915, %v1643
      %1684 = vst.msk [vmem:[%s224 + $0x90] sm:$0xff] %vm915, %v1644
      %1685 = vst.msk [vmem:[%s224 + $0x98] sm:$0xff] %vm915, %v1645
      %1686 = vst.msk [vmem:[%s224 + $0xa0] sm:$0xff] %vm915, %v1646
      %1687 = vst.msk [vmem:[%s224 + $0xa8] sm:$0xff] %vm915, %v1647
      %1688 = vst.msk [vmem:[%s224 + $0xb0] sm:$0xff] %vm915, %v1648
      %1689 = vst.msk [vmem:[%s224 + $0xb8] sm:$0xff] %vm915, %v1649
      %1690 = vst.msk [vmem:[%s224 + $0xc0] sm:$0xff] %vm915, %v1650
      %1691 = vst.msk [vmem:[%s224 + $0xc8] sm:$0xff] %vm915, %v1651
      %1692 = vst.msk [vmem:[%s224 + $0xd0] sm:$0xff] %vm915, %v1652
      %1693 = vst.msk [vmem:[%s224 + $0xd8] sm:$0xff] %vm915, %v1653
      %1694 = vst.msk [vmem:[%s224 + $0xe0] sm:$0xff] %vm915, %v1654
      %1695 = vst.msk [vmem:[%s224 + $0xe8] sm:$0xff] %vm915, %v1655
      %1696 = vst.msk [vmem:[%s224 + $0xf0] sm:$0xff] %vm915, %v1656
      %1697 = vst.msk [vmem:[%s224 + $0xf8] sm:$0xff] %vm915, %v1657
      %1698 = vst.msk [vmem:[%s224 + $0x100] sm:$0xff] %vm915, %v1658
      %1699 = vst.msk [vmem:[%s224 + $0x108] sm:$0xff] %vm915, %v1659
      %1700 = vst.msk [vmem:[%s224 + $0x110] sm:$0xff] %vm915, %v1660
      %1701 = vst.msk [vmem:[%s224 + $0x118] sm:$0xff] %vm915, %v1661
      %1702 = vst.msk [vmem:[%s224 + $0x120] sm:$0xff] %vm915, %v1662
      %1703 = vst.msk [vmem:[%s224 + $0x128] sm:$0xff] %vm915, %v1663
      %1704 = vst.msk [vmem:[%s224 + $0x130] sm:$0xff] %vm915, %v1664
      %1705 = vst.msk [vmem:[%s224 + $0x138] sm:$0x7f] %vm993, %v1665
      %p1706 = scmp.lt.s32.totalorder %s16, 1
      %s1707 = scalar_select %p1706, %s16, 1
      %s1708 = smul.addr %s1707, 40
      %s1709 = smul.addr %s1708, 8
      %s1710 = scalar_lea.vmem %s5, %s1709
      // Predicated region
      $region41: #{_lambda_.17} parent=39 // pred_check
        %p1711 = pneg %p144
      $region42: #{_lambda_.17} parent=39 // pred_check_branch
        %1713 = sbr.rel (%p1711) target = $region44
      $region43: #{_lambda_.17} parent=39 // pred_region
        _
      $region44: #{_lambda_.17} parent=39 // pred_fallthru
        _
    $region40: #{_lambda_.17} parent=5 // pred_fallthru
      _
    %p1714 = scmp.le.s32.totalorder 2, %s11
    // Predicated region
    $region45: #{_lambda_.17} parent=5 // pred_check
      %p1715 = pneg %p1714
    $region46: #{_lambda_.17} parent=5 // pred_check_branch
      %1717 = sbr.rel (%p1715) target = $region48
    $region47: #{_lambda_.17} parent=5 // pred_region
      %s1718 = ssub.s32 %s11, 2
      // Predicated region
      $region49: #{_lambda_.17} parent=47 // pred_check
        %p1719 = pneg %p150
      $region50: #{_lambda_.17} parent=47 // pred_check_branch
        %1721 = sbr.rel (%p1719) target = $region52
      $region51: #{_lambda_.17} parent=47 // pred_region
        %p1722 = scmp.lt.s32.totalorder %s17, 1
        %s1723 = scalar_select %p1722, %s17, 1
        %s1724 = smul.addr %s1723, 40
        %s1725 = smul.addr %s1724, 8
        %s1726 = scalar_lea.vmem %s5, %s1725
      $region52: #{_lambda_.17} parent=47 // pred_fallthru
        _
    $region48: #{_lambda_.17} parent=5 // pred_fallthru
      _
  $region6: #{_lambda_.17} parent=0 // loop_footer
    %s15 = sadd.s32 1, %s11
  $region7: #{_lambda_.17} parent=0 // loop_footer_branch
    %10 = sbr.rel target = $region3
  $region8: #{_lambda_.17} parent=0 // loop_exit
    _

// kernel: _lambda_.18
$region0: #{_lambda_.18}
  #allocation0 [shape = 'u32[]', space=smem, size = 0x4, offset = 0x4, fixed_abs, tag = 'smem constant byte address 0x4 - core index']
  #allocation1 [shape = 'u32[144,128]{1,0:T(1,128)}', space=vmem, size = 0x12000, scoped, tag = 'internal scratch']
  %s0 = inlined_call_operand.vmem [shape: f32[2,160,64], index: 0, kind: input, shape index: {}]
  %s1 = inlined_call_operand.vmem [shape: f32[2,64,32], index: 1, kind: input, shape index: {}]
  %s2 = inlined_call_operand.vmem [shape: f32[1,32], index: 2, kind: input, shape index: {}]
  %s3 = inlined_call_operand.vmem [shape: f32[2,159,32], index: 3, kind: output, shape index: {}]
  %s4 = sld [smem:[#allocation0]]
  $region45: #{_lambda_.18} parent=0
    _
  %s6 = ssub.s32 1, %s4
  %s7 = scalar_select 0, %s6, %s4
  loop: start=0, step=1, limit=4
  $region2: #{_lambda_.18} parent=0 // loop_pre_header
    _
  $region3: #{_lambda_.18} parent=0 // loop_header
    %s9 = sphi 0, %s13
    %p10 = scmp.ge.s32.totalorder %s9, 4
    %s19 = sphi 0, %s21
    %s22 = sphi 0, %s19
    %s23 = sphi 0, %s22
    %s39 = sphi 0, %s23
    %s43 = sphi 0, %s43
    %s45 = sphi 0, %s43
    %s46 = sphi 0, %s45
    %s60 = sphi 0, %s46
    %s64 = sphi 0, %s64
    %s66 = sphi 0, %s64
    %s67 = sphi 0, %s66
    %s81 = sphi 0, %s67
    %s87 = sphi 0, %s89
    %s90 = sphi 0, %s87
    %s91 = sphi 0, %s90
    %s107 = sphi 0, %s91
  $region4: #{_lambda_.18} parent=0 // loop_header_branch
    %12 = sbr.rel (%p10) target = $region8
  $region5: #{_lambda_.18} parent=0 // loop_body
    %s14 = ssub.s32 %s9, 1
    %s15 = ssub.s32 %s9, 2
    %s16 = sadd.s32 %s9, 1
    %s17 = ssub.s32 %s9, %s16
    %p18 = scmp.eq.s32.totalorder %s17, 0
    %s20 = sadd.s32 %s19, 1
    %s21 = scalar_select %p18, %s19, %s20
    %p24 = pneg %p18
    %p25 = scmp.eq.s32.totalorder %s9, 1
    %p26 = por %p24, %p25
    %p27 = scmp.ne.s32.totalorder %s19, %s22
    %p28 = scmp.eq.s32.totalorder %s9, 0
    %p29 = por %p27, %p28
    %p30 = scmp.ne.s32.totalorder %s19, %s22
    %p31 = scmp.eq.s32.totalorder %s14, 1
    %p32 = por %p30, %p31
    %p33 = scmp.ne.s32.totalorder %s22, %s23
    %p34 = scmp.eq.s32.totalorder %s14, 0
    %p35 = por %p33, %p34
    %p36 = scmp.ne.s32.totalorder %s22, %s23
    %p37 = scmp.eq.s32.totalorder %s15, 1
    %p38 = por %p36, %p37
    %p40 = scmp.ne.s32.totalorder %s23, %s39
    %p41 = scmp.eq.s32.totalorder %s15, 0
    %p42 = por %p40, %p41
    %s44 = sadd.s32 %s43, 1
    %p47 = scmp.eq.s32.totalorder %s9, 1
    %p48 = scmp.ne.s32.totalorder %s43, %s45
    %p49 = scmp.eq.s32.totalorder %s9, 0
    %p50 = por %p48, %p49
    %p51 = scmp.ne.s32.totalorder %s43, %s45
    %p52 = scmp.eq.s32.totalorder %s14, 1
    %p53 = por %p51, %p52
    %p54 = scmp.ne.s32.totalorder %s45, %s46
    %p55 = scmp.eq.s32.totalorder %s14, 0
    %p56 = por %p54, %p55
    %p57 = scmp.ne.s32.totalorder %s45, %s46
    %p58 = scmp.eq.s32.totalorder %s15, 1
    %p59 = por %p57, %p58
    %p61 = scmp.ne.s32.totalorder %s46, %s60
    %p62 = scmp.eq.s32.totalorder %s15, 0
    %p63 = por %p61, %p62
    %s65 = sadd.s32 %s64, 1
    %p68 = scmp.eq.s32.totalorder %s9, 1
    %p69 = scmp.ne.s32.totalorder %s64, %s66
    %p70 = scmp.eq.s32.totalorder %s9, 0
    %p71 = por %p69, %p70
    %p72 = scmp.ne.s32.totalorder %s64, %s66
    %p73 = scmp.eq.s32.totalorder %s14, 1
    %p74 = por %p72, %p73
    %p75 = scmp.ne.s32.totalorder %s66, %s67
    %p76 = scmp.eq.s32.totalorder %s14, 0
    %p77 = por %p75, %p76
    %p78 = scmp.ne.s32.totalorder %s66, %s67
    %p79 = scmp.eq.s32.totalorder %s15, 1
    %p80 = por %p78, %p79
    %p82 = scmp.ne.s32.totalorder %s67, %s81
    %p83 = scmp.eq.s32.totalorder %s15, 0
    %p84 = por %p82, %p83
    %s85 = ssub.s32 %s9, %s16
    %p86 = scmp.eq.s32.totalorder %s85, 0
    %s88 = sadd.s32 %s87, 1
    %s89 = scalar_select %p86, %s87, %s88
    %p92 = pneg %p86
    %p93 = scmp.eq.s32.totalorder %s9, 1
    %p94 = por %p92, %p93
    %p95 = scmp.ne.s32.totalorder %s87, %s90
    %p96 = scmp.eq.s32.totalorder %s9, 0
    %p97 = por %p95, %p96
    %p98 = scmp.ne.s32.totalorder %s87, %s90
    %p99 = scmp.eq.s32.totalorder %s14, 1
    %p100 = por %p98, %p99
    %p101 = scmp.ne.s32.totalorder %s90, %s91
    %p102 = scmp.eq.s32.totalorder %s14, 0
    %p103 = por %p101, %p102
    %p104 = scmp.ne.s32.totalorder %s90, %s91
    %p105 = scmp.eq.s32.totalorder %s15, 1
    %p106 = por %p104, %p105
    %p108 = scmp.ne.s32.totalorder %s91, %s107
    %p109 = scmp.eq.s32.totalorder %s15, 0
    %p110 = por %p108, %p109
    %p111 = scmp.le.s32.totalorder 1, %s9
    %p112 = scmp.lt.s32.totalorder %s9, 3
    %p113 = pnand %p111, %p112
    %p114 = pneg %p113
    // Predicated region
    $region9: #{_lambda_.18} parent=5 // pred_check
      _
    $region10: #{_lambda_.18} parent=5 // pred_check_branch
      %116 = sbr.rel (%p113) target = $region12
    $region11: #{_lambda_.18} parent=5 // pred_region
      %s117 = ssub.s32 %s9, 1
      // Predicated region
      $region13: #{_lambda_.18} parent=11 // pred_check
        %p118 = pneg %p56
      $region14: #{_lambda_.18} parent=11 // pred_check_branch
        %120 = sbr.rel (%p118) target = $region16
      $region15: #{_lambda_.18} parent=11 // pred_region
        _
      $region16: #{_lambda_.18} parent=11 // pred_fallthru
        _
      // Predicated region
      $region17: #{_lambda_.18} parent=11 // pred_check
        %p121 = pneg %p77
      $region18: #{_lambda_.18} parent=11 // pred_check_branch
        %123 = sbr.rel (%p121) target = $region20
      $region19: #{_lambda_.18} parent=11 // pred_region
        _
      $region20: #{_lambda_.18} parent=11 // pred_fallthru
        _
    $region12: #{_lambda_.18} parent=5 // pred_fallthru
      _
    %p124 = scmp.lt.s32.totalorder %s9, 2
    // Predicated region
    $region21: #{_lambda_.18} parent=5 // pred_check
      %p125 = pneg %p124
    $region22: #{_lambda_.18} parent=5 // pred_check_branch
      %127 = sbr.rel (%p125) target = $region24
    $region23: #{_lambda_.18} parent=5 // pred_region
      // Predicated region
      $region25: #{_lambda_.18} parent=23 // pred_check
        %p128 = pneg %p29
      $region26: #{_lambda_.18} parent=23 // pred_check_branch
        %130 = sbr.rel (%p128) target = $region28
      $region27: #{_lambda_.18} parent=23 // pred_region
        %p131 = scmp.lt.s32.totalorder %s9, 1
        %s132 = scalar_select %p131, %s9, 1
        %s133 = smul.addr %s132, 20
        %s134 = smul.addr %s133, 8
        %s135 = scalar_lea.vmem %s0, %s134
      $region28: #{_lambda_.18} parent=23 // pred_fallthru
        _
    $region24: #{_lambda_.18} parent=5 // pred_fallthru
      _
    %p136 = scmp.le.s32.totalorder 1, %s9
    %p137 = scmp.lt.s32.totalorder %s9, 3
    %p138 = pnand %p136, %p137
    %p139 = pneg %p138
    // Predicated region
    $region29: #{_lambda_.18} parent=5 // pred_check
      _
    $region30: #{_lambda_.18} parent=5 // pred_check_branch
      %141 = sbr.rel (%p138) target = $region32
    $region31: #{_lambda_.18} parent=5 // pred_region
      %s142 = ssub.s32 %s9, 1
      %p143 = scmp.lt.s32.totalorder %s14, 1
      %s144 = scalar_select %p143, %s14, 1
      %s145 = smul.addr %s144, 20
      %s146 = smul.addr %s145, 8
      %s147 = scalar_lea.vmem %s0, %s146
      %p148 = pneg %p35
      %p149 = pneg %p32
      %p150 = pneg %p56
      %p151 = pneg %p53
      %p152 = pneg %p77
      %p153 = pneg %p74
      %p154 = pneg %p103
      %p155 = pneg %p100
      %p156 = scmp.lt.s32.totalorder %s14, 1
      %s157 = scalar_select %p156, %s14, 1
      %s158 = smul.addr %s157, 20
      %s159 = smul.addr %s158, 8
      %s160 = scalar_lea.vmem %s3, %s159
      %p161 = scmp.lt.s32.totalorder %s14, 1
      %s162 = scalar_select %p161, %s14, 1
      %s163 = smul.addr %s162, 20
      %s164 = smul.addr %s163, 8
      %s165 = scalar_lea.vmem %s0, %s164
      %p166 = scmp.lt.s32.totalorder %s14, 1
      %s167 = scalar_select %p166, %s14, 1
      %s168 = smul.addr %s167, 20
      %s169 = smul.addr %s168, 8
      %s170 = scalar_lea.vmem %s3, %s169
      %v172 = vld [vmem:[%s165] sm:$0xff]
      %v173 = vld [vmem:[%s165 + $0x8] sm:$0xff]
      %v174 = vld [vmem:[%s165 + $0x10] sm:$0xff]
      %v175 = vld [vmem:[%s165 + $0x18] sm:$0xff]
      %v176 = vld [vmem:[%s165 + $0x20] sm:$0xff]
      %v177 = vld [vmem:[%s165 + $0x28] sm:$0xff]
      %v178 = vld [vmem:[%s165 + $0x30] sm:$0xff]
      %v179 = vld [vmem:[%s165 + $0x38] sm:$0xff]
      %v180 = vld [vmem:[%s165 + $0x40] sm:$0xff]
      %v181 = vld [vmem:[%s165 + $0x48] sm:$0xff]
      %v182 = vld [vmem:[%s165 + $0x50] sm:$0xff]
      %v183 = vld [vmem:[%s165 + $0x58] sm:$0xff]
      %v184 = vld [vmem:[%s165 + $0x60] sm:$0xff]
      %v185 = vld [vmem:[%s165 + $0x68] sm:$0xff]
      %v186 = vld [vmem:[%s165 + $0x70] sm:$0xff]
      %v187 = vld [vmem:[%s165 + $0x78] sm:$0xff]
      %v188 = vld [vmem:[%s165 + $0x80] sm:$0xff]
      %v189 = vld [vmem:[%s165 + $0x88] sm:$0xff]
      %v190 = vld [vmem:[%s165 + $0x90] sm:$0xff]
      %v191 = vld [vmem:[%s165 + $0x98] sm:$0x7f]
      %v192 = vpack.c.bf16 %v173, %v172
      %v193 = vpack.c.bf16 %v175, %v174
      %v194 = vpack.c.bf16 %v177, %v176
      %v195 = vpack.c.bf16 %v179, %v178
      %v196 = vpack.c.bf16 %v181, %v180
      %v197 = vpack.c.bf16 %v183, %v182
      %v198 = vpack.c.bf16 %v185, %v184
      %v199 = vpack.c.bf16 %v187, %v186
      %v200 = vpack.c.bf16 %v189, %v188
      %v201 = vpack.c.bf16 %v191, %v190
      %v202 = vld [vmem:[%s1] sm:$0xff]
      %v203 = vld [vmem:[%s1 + $0x8] sm:$0xff]
      %v204 = vld [vmem:[%s1 + $0x10] sm:$0xff]
      %v205 = vld [vmem:[%s1 + $0x18] sm:$0xff]
      %v206 = vld [vmem:[%s1 + $0x20] sm:$0xff]
      %v207 = vld [vmem:[%s1 + $0x28] sm:$0xff]
      %v208 = vld [vmem:[%s1 + $0x30] sm:$0xff]
      %v209 = vld [vmem:[%s1 + $0x38] sm:$0xff]
      %v210 = vpack.c.bf16 %v203, %v202
      %v211 = vpack.c.bf16 %v205, %v204
      %v212 = vpack.c.bf16 %v207, %v206
      %v213 = vpack.c.bf16 %v209, %v208
      %v214 = vld [vmem:[%s165 + $0x1] sm:$0xff]
      %v215 = vld [vmem:[%s165 + $0x9] sm:$0xff]
      %v216 = vld [vmem:[%s165 + $0x11] sm:$0xff]
      %v217 = vld [vmem:[%s165 + $0x19] sm:$0xff]
      %v218 = vld [vmem:[%s165 + $0x21] sm:$0xff]
      %v219 = vld [vmem:[%s165 + $0x29] sm:$0xff]
      %v220 = vld [vmem:[%s165 + $0x31] sm:$0xff]
      %v221 = vld [vmem:[%s165 + $0x39] sm:$0xff]
      %v222 = vld [vmem:[%s165 + $0x41] sm:$0xff]
      %v223 = vld [vmem:[%s165 + $0x49] sm:$0xff]
      %v224 = vld [vmem:[%s165 + $0x51] sm:$0xff]
      %v225 = vld [vmem:[%s165 + $0x59] sm:$0xff]
      %v226 = vld [vmem:[%s165 + $0x61] sm:$0xff]
      %v227 = vld [vmem:[%s165 + $0x69] sm:$0xff]
      %v228 = vld [vmem:[%s165 + $0x71] sm:$0xff]
      %v229 = vld [vmem:[%s165 + $0x79] sm:$0xff]
      %v230 = vld [vmem:[%s165 + $0x81] sm:$0xff]
      %v231 = vld [vmem:[%s165 + $0x89] sm:$0xff]
      %v232 = vld [vmem:[%s165 + $0x91] sm:$0xff]
      %v233 = vld [vmem:[%s165 + $0x99] sm:$0x7f]
      %v234 = vpack.c.bf16 %v215, %v214
      %v235 = vpack.c.bf16 %v217, %v216
      %v236 = vpack.c.bf16 %v219, %v218
      %v237 = vpack.c.bf16 %v221, %v220
      %v238 = vpack.c.bf16 %v223, %v222
      %v239 = vpack.c.bf16 %v225, %v224
      %v240 = vpack.c.bf16 %v227, %v226
      %v241 = vpack.c.bf16 %v229, %v228
      %v242 = vpack.c.bf16 %v231, %v230
      %v243 = vpack.c.bf16 %v233, %v232
      %s244 = scalar_lea.vmem %s1, 64
      %v245 = vld [vmem:[%s244] sm:$0xff]
      %v246 = vld [vmem:[%s244 + $0x8] sm:$0xff]
      %v247 = vld [vmem:[%s244 + $0x10] sm:$0xff]
      %v248 = vld [vmem:[%s244 + $0x18] sm:$0xff]
      %v249 = vld [vmem:[%s244 + $0x20] sm:$0xff]
      %v250 = vld [vmem:[%s244 + $0x28] sm:$0xff]
      %v251 = vld [vmem:[%s244 + $0x30] sm:$0xff]
      %v252 = vld [vmem:[%s244 + $0x38] sm:$0xff]
      %v253 = vpack.c.bf16 %v246, %v245
      %v254 = vpack.c.bf16 %v248, %v247
      %v255 = vpack.c.bf16 %v250, %v249
      %v256 = vpack.c.bf16 %v252, %v251
      %vm257 = vcmask 523264
      %v259 = vsel %vm257, %v234, 0
      %v262 = vsel %vm257, %v235, 0
      %v265 = vsel %vm257, %v236, 0
      %v268 = vsel %vm257, %v237, 0
      %v271 = vsel %vm257, %v238, 0
      %v274 = vsel %vm257, %v239, 0
      %v277 = vsel %vm257, %v240, 0
      %v280 = vsel %vm257, %v241, 0
      %v283 = vsel %vm257, %v242, 0
      %v286 = vsel %vm257, %v243, 0
      %288 = vmatprep.subr.bf16.mxu0 0
      %289 = vmatpush1.bf16.msra.mxu0 0
      %290 = vmatprep.subr.bf16.mxu0 0
      %291 = vmatpush1.bf16.msra.mxu0 0
      %292 = vmatprep.subr.bf16.mxu0 0
      %293 = vmatpush1.bf16.msra.mxu0 0
      %294 = vmatprep.subr.bf16.mxu0 0
      %295 = vmatpush1.bf16.msra.mxu0 0
      %296 = vmatprep.subr.bf16.mxu0 0
      %297 = vmatpush1.bf16.msra.mxu0 %v256
      %298 = vmatprep.subr.bf16.mxu0 0
      %299 = vmatpush1.bf16.msra.mxu0 %v255
      %300 = vmatprep.subr.bf16.mxu0 0
      %301 = vmatpush1.bf16.msra.mxu0 %v254
      %302 = vmatprep.subr.bf16.mxu0 0
      %303 = vmatpush1.bf16.msra.mxu0 %v253
      %304 = vmatprep.subr.bf16.mxu0 0
      %305 = vmatpush2.bf16.msra.mxu0 0
      %306 = vmatprep.subr.bf16.mxu0 0
      %307 = vmatpush2.bf16.msra.mxu0 0
      %308 = vmatprep.subr.bf16.mxu0 0
      %309 = vmatpush2.bf16.msra.mxu0 0
      %310 = vmatprep.subr.bf16.mxu0 0
      %311 = vmatpush2.bf16.msra.mxu0 0
      %312 = vmatprep.subr.bf16.mxu0 0
      %313 = vmatpush2.bf16.msra.mxu0 0
      %314 = vmatprep.subr.bf16.mxu0 0
      %315 = vmatpush2.bf16.msra.mxu0 0
      %316 = vmatprep.subr.bf16.mxu0 0
      %317 = vmatpush2.bf16.msra.mxu0 0
      %318 = vmatprep.subr.bf16.mxu0 0
      %319 = vmatpush2.bf16.msra.mxu0 0
      %320 = vmatprep.mubr.bf16.mxu0 0
      %321 = vmatmul.mubr.bf16.gmra.mxu0 %v259
      %v322 = vpop.f32.mrf.mxu0
      %v323 = vadd.f32 0.0, %v322
      %v324 = vpop.f32.mrf.mxu0
      %v325 = vpop.f32.mrf.mxu0
      %v326 = vadd.f32 0.0, %v325
      %v327 = vpop.f32.mrf.mxu0
      %328 = vmatprep.mubr.bf16.mxu0 0
      %329 = vmatmul.mubr.bf16.gmra.mxu0 %v262
      %v330 = vpop.f32.mrf.mxu0
      %v331 = vadd.f32 0.0, %v330
      %v332 = vpop.f32.mrf.mxu0
      %v333 = vpop.f32.mrf.mxu0
      %v334 = vadd.f32 0.0, %v333
      %v335 = vpop.f32.mrf.mxu0
      %336 = vmatprep.mubr.bf16.mxu0 0
      %337 = vmatmul.mubr.bf16.gmra.mxu0 %v265
      %v338 = vpop.f32.mrf.mxu0
      %v339 = vadd.f32 0.0, %v338
      %v340 = vpop.f32.mrf.mxu0
      %v341 = vpop.f32.mrf.mxu0
      %v342 = vadd.f32 0.0, %v341
      %v343 = vpop.f32.mrf.mxu0
      %344 = vmatprep.mubr.bf16.mxu0 0
      %345 = vmatmul.mubr.bf16.gmra.mxu0 %v268
      %v346 = vpop.f32.mrf.mxu0
      %v347 = vadd.f32 0.0, %v346
      %v348 = vpop.f32.mrf.mxu0
      %v349 = vpop.f32.mrf.mxu0
      %v350 = vadd.f32 0.0, %v349
      %v351 = vpop.f32.mrf.mxu0
      %352 = vmatprep.mubr.bf16.mxu0 0
      %353 = vmatmul.mubr.bf16.gmra.mxu0 %v271
      %v354 = vpop.f32.mrf.mxu0
      %v355 = vadd.f32 0.0, %v354
      %v356 = vpop.f32.mrf.mxu0
      %v357 = vpop.f32.mrf.mxu0
      %v358 = vadd.f32 0.0, %v357
      %v359 = vpop.f32.mrf.mxu0
      %360 = vmatprep.mubr.bf16.mxu0 0
      %361 = vmatmul.mubr.bf16.gmra.mxu0 %v274
      %v362 = vpop.f32.mrf.mxu0
      %v363 = vadd.f32 0.0, %v362
      %v364 = vpop.f32.mrf.mxu0
      %v365 = vpop.f32.mrf.mxu0
      %v366 = vadd.f32 0.0, %v365
      %v367 = vpop.f32.mrf.mxu0
      %368 = vmatprep.mubr.bf16.mxu0 0
      %369 = vmatmul.mubr.bf16.gmra.mxu0 %v277
      %v370 = vpop.f32.mrf.mxu0
      %v371 = vadd.f32 0.0, %v370
      %v372 = vpop.f32.mrf.mxu0
      %v373 = vpop.f32.mrf.mxu0
      %v374 = vadd.f32 0.0, %v373
      %v375 = vpop.f32.mrf.mxu0
      %376 = vmatprep.mubr.bf16.mxu0 0
      %377 = vmatmul.mubr.bf16.gmra.mxu0 %v280
      %v378 = vpop.f32.mrf.mxu0
      %v379 = vadd.f32 0.0, %v378
      %v380 = vpop.f32.mrf.mxu0
      %v381 = vpop.f32.mrf.mxu0
      %v382 = vadd.f32 0.0, %v381
      %v383 = vpop.f32.mrf.mxu0
      %384 = vmatprep.mubr.bf16.mxu0 0
      %385 = vmatmul.mubr.bf16.gmra.mxu0 %v283
      %v386 = vpop.f32.mrf.mxu0
      %v387 = vadd.f32 0.0, %v386
      %v388 = vpop.f32.mrf.mxu0
      %v389 = vpop.f32.mrf.mxu0
      %v390 = vadd.f32 0.0, %v389
      %v391 = vpop.f32.mrf.mxu0
      %392 = vmatprep.mubr.bf16.mxu0 0
      %393 = vmatmul.mubr.bf16.gmra.mxu0 %v286
      %v394 = vpop.f32.mrf.mxu0
      %v395 = vadd.f32 0.0, %v394
      %v396 = vpop.f32.mrf.mxu0
      %v397 = vpop.f32.mrf.mxu0
      %v398 = vadd.f32 0.0, %v397
      %v399 = vpop.f32.mrf.mxu0
      %400 = vdwg.mxu0
      %v402 = vsel %vm257, %v192, 0
      %v405 = vsel %vm257, %v193, 0
      %v408 = vsel %vm257, %v194, 0
      %v411 = vsel %vm257, %v195, 0
      %v414 = vsel %vm257, %v196, 0
      %v417 = vsel %vm257, %v197, 0
      %v420 = vsel %vm257, %v198, 0
      %v423 = vsel %vm257, %v199, 0
      %v426 = vsel %vm257, %v200, 0
      %v429 = vsel %vm257, %v201, 0
      %431 = vmatprep.subr.bf16.mxu0 0
      %432 = vmatpush1.bf16.msra.mxu0 0
      %433 = vmatprep.subr.bf16.mxu0 0
      %434 = vmatpush1.bf16.msra.mxu0 0
      %435 = vmatprep.subr.bf16.mxu0 0
      %436 = vmatpush1.bf16.msra.mxu0 0
      %437 = vmatprep.subr.bf16.mxu0 0
      %438 = vmatpush1.bf16.msra.mxu0 0
      %439 = vmatprep.subr.bf16.mxu0 0
      %440 = vmatpush1.bf16.msra.mxu0 %v213
      %441 = vmatprep.subr.bf16.mxu0 0
      %442 = vmatpush1.bf16.msra.mxu0 %v212
      %443 = vmatprep.subr.bf16.mxu0 0
      %444 = vmatpush1.bf16.msra.mxu0 %v211
      %445 = vmatprep.subr.bf16.mxu0 0
      %446 = vmatpush1.bf16.msra.mxu0 %v210
      %447 = vmatprep.subr.bf16.mxu0 0
      %448 = vmatpush2.bf16.msra.mxu0 0
      %449 = vmatprep.subr.bf16.mxu0 0
      %450 = vmatpush2.bf16.msra.mxu0 0
      %451 = vmatprep.subr.bf16.mxu0 0
      %452 = vmatpush2.bf16.msra.mxu0 0
      %453 = vmatprep.subr.bf16.mxu0 0
      %454 = vmatpush2.bf16.msra.mxu0 0
      %455 = vmatprep.subr.bf16.mxu0 0
      %456 = vmatpush2.bf16.msra.mxu0 0
      %457 = vmatprep.subr.bf16.mxu0 0
      %458 = vmatpush2.bf16.msra.mxu0 0
      %459 = vmatprep.subr.bf16.mxu0 0
      %460 = vmatpush2.bf16.msra.mxu0 0
      %461 = vmatprep.subr.bf16.mxu0 0
      %462 = vmatpush2.bf16.msra.mxu0 0
      %463 = vmatprep.mubr.bf16.mxu0 0
      %464 = vmatmul.mubr.bf16.gmra.mxu0 %v402
      %v465 = vpop.f32.mrf.mxu0
      %v466 = vadd.f32 %v323, %v465
      %v467 = vpop.f32.mrf.mxu0
      %v468 = vpop.f32.mrf.mxu0
      %v469 = vadd.f32 %v326, %v468
      %v470 = vpop.f32.mrf.mxu0
      %471 = vmatprep.mubr.bf16.mxu0 0
      %472 = vmatmul.mubr.bf16.gmra.mxu0 %v405
      %v473 = vpop.f32.mrf.mxu0
      %v474 = vadd.f32 %v331, %v473
      %v475 = vpop.f32.mrf.mxu0
      %v476 = vpop.f32.mrf.mxu0
      %v477 = vadd.f32 %v334, %v476
      %v478 = vpop.f32.mrf.mxu0
      %479 = vmatprep.mubr.bf16.mxu0 0
      %480 = vmatmul.mubr.bf16.gmra.mxu0 %v408
      %v481 = vpop.f32.mrf.mxu0
      %v482 = vadd.f32 %v339, %v481
      %v483 = vpop.f32.mrf.mxu0
      %v484 = vpop.f32.mrf.mxu0
      %v485 = vadd.f32 %v342, %v484
      %v486 = vpop.f32.mrf.mxu0
      %487 = vmatprep.mubr.bf16.mxu0 0
      %488 = vmatmul.mubr.bf16.gmra.mxu0 %v411
      %v489 = vpop.f32.mrf.mxu0
      %v490 = vadd.f32 %v347, %v489
      %v491 = vpop.f32.mrf.mxu0
      %v492 = vpop.f32.mrf.mxu0
      %v493 = vadd.f32 %v350, %v492
      %v494 = vpop.f32.mrf.mxu0
      %495 = vmatprep.mubr.bf16.mxu0 0
      %496 = vmatmul.mubr.bf16.gmra.mxu0 %v414
      %v497 = vpop.f32.mrf.mxu0
      %v498 = vadd.f32 %v355, %v497
      %v499 = vpop.f32.mrf.mxu0
      %v500 = vpop.f32.mrf.mxu0
      %v501 = vadd.f32 %v358, %v500
      %v502 = vpop.f32.mrf.mxu0
      %503 = vmatprep.mubr.bf16.mxu0 0
      %504 = vmatmul.mubr.bf16.gmra.mxu0 %v417
      %v505 = vpop.f32.mrf.mxu0
      %v506 = vadd.f32 %v363, %v505
      %v507 = vpop.f32.mrf.mxu0
      %v508 = vpop.f32.mrf.mxu0
      %v509 = vadd.f32 %v366, %v508
      %v510 = vpop.f32.mrf.mxu0
      %511 = vmatprep.mubr.bf16.mxu0 0
      %512 = vmatmul.mubr.bf16.gmra.mxu0 %v420
      %v513 = vpop.f32.mrf.mxu0
      %v514 = vadd.f32 %v371, %v513
      %v515 = vpop.f32.mrf.mxu0
      %v516 = vpop.f32.mrf.mxu0
      %v517 = vadd.f32 %v374, %v516
      %v518 = vpop.f32.mrf.mxu0
      %519 = vmatprep.mubr.bf16.mxu0 0
      %520 = vmatmul.mubr.bf16.gmra.mxu0 %v423
      %v521 = vpop.f32.mrf.mxu0
      %v522 = vadd.f32 %v379, %v521
      %v523 = vpop.f32.mrf.mxu0
      %v524 = vpop.f32.mrf.mxu0
      %v525 = vadd.f32 %v382, %v524
      %v526 = vpop.f32.mrf.mxu0
      %527 = vmatprep.mubr.bf16.mxu0 0
      %528 = vmatmul.mubr.bf16.gmra.mxu0 %v426
      %v529 = vpop.f32.mrf.mxu0
      %v530 = vadd.f32 %v387, %v529
      %v531 = vpop.f32.mrf.mxu0
      %v532 = vpop.f32.mrf.mxu0
      %v533 = vadd.f32 %v390, %v532
      %v534 = vpop.f32.mrf.mxu0
      %535 = vmatprep.mubr.bf16.mxu0 0
      %536 = vmatmul.mubr.bf16.gmra.mxu0 %v429
      %v537 = vpop.f32.mrf.mxu0
      %v538 = vadd.f32 %v395, %v537
      %v539 = vpop.f32.mrf.mxu0
      %v540 = vpop.f32.mrf.mxu0
      %v541 = vadd.f32 %v398, %v540
      %v542 = vpop.f32.mrf.mxu0
      %543 = vdwg.mxu0
      %v544 = vld [vmem:[%s2] sm:$0x1]
      %v546 = vlaneseq
      %v547 = vshrl.u32 %v546, 7
      %v548 = vsub.s32 0, %v547
      %v549 = vrot.slane %v544, %v548
      %v551 = vadd.f32 %v466, %v549
      %v552 = vadd.f32 %v469, %v549
      %v553 = vadd.f32 %v474, %v549
      %v554 = vadd.f32 %v477, %v549
      %v555 = vadd.f32 %v482, %v549
      %v556 = vadd.f32 %v485, %v549
      %v557 = vadd.f32 %v490, %v549
      %v558 = vadd.f32 %v493, %v549
      %v559 = vadd.f32 %v498, %v549
      %v560 = vadd.f32 %v501, %v549
      %v561 = vadd.f32 %v506, %v549
      %v562 = vadd.f32 %v509, %v549
      %v563 = vadd.f32 %v514, %v549
      %v564 = vadd.f32 %v517, %v549
      %v565 = vadd.f32 %v522, %v549
      %v566 = vadd.f32 %v525, %v549
      %v567 = vadd.f32 %v530, %v549
      %v568 = vadd.f32 %v533, %v549
      %v569 = vadd.f32 %v538, %v549
      %v570 = vadd.f32 %v541, %v549
      %v571 = vmul.f32 %v551, 0.5
      %v572 = vmul.f32 %v552, 0.5
      %v573 = vmul.f32 %v553, 0.5
      %v574 = vmul.f32 %v554, 0.5
      %v575 = vmul.f32 %v555, 0.5
      %v576 = vmul.f32 %v556, 0.5
      %v577 = vmul.f32 %v557, 0.5
      %v578 = vmul.f32 %v558, 0.5
      %v579 = vmul.f32 %v559, 0.5
      %v580 = vmul.f32 %v560, 0.5
      %v581 = vmul.f32 %v561, 0.5
      %v582 = vmul.f32 %v562, 0.5
      %v583 = vmul.f32 %v563, 0.5
      %v584 = vmul.f32 %v564, 0.5
      %v585 = vmul.f32 %v565, 0.5
      %v586 = vmul.f32 %v566, 0.5
      %v587 = vmul.f32 %v567, 0.5
      %v588 = vmul.f32 %v568, 0.5
      %v589 = vmul.f32 %v569, 0.5
      %v590 = vmul.f32 %v570, 0.5
      %v591 = vmul.f32 %v551, 0.044715
      %v592 = vmul.f32 %v552, 0.044715
      %v593 = vmul.f32 %v553, 0.044715
      %v594 = vmul.f32 %v554, 0.044715
      %v595 = vmul.f32 %v555, 0.044715
      %v596 = vmul.f32 %v556, 0.044715
      %v597 = vmul.f32 %v557, 0.044715
      %v598 = vmul.f32 %v558, 0.044715
      %v599 = vmul.f32 %v559, 0.044715
      %v600 = vmul.f32 %v560, 0.044715
      %v601 = vmul.f32 %v561, 0.044715
      %v602 = vmul.f32 %v562, 0.044715
      %v603 = vmul.f32 %v563, 0.044715
      %v604 = vmul.f32 %v564, 0.044715
      %v605 = vmul.f32 %v565, 0.044715
      %v606 = vmul.f32 %v566, 0.044715
      %v607 = vmul.f32 %v567, 0.044715
      %v608 = vmul.f32 %v568, 0.044715
      %v609 = vmul.f32 %v569, 0.044715
      %v610 = vmul.f32 %v570, 0.044715
      %v611 = vmul.f32 %v591, %v551
      %v612 = vmul.f32 %v592, %v552
      %v613 = vmul.f32 %v593, %v553
      %v614 = vmul.f32 %v594, %v554
      %v615 = vmul.f32 %v595, %v555
      %v616 = vmul.f32 %v596, %v556
      %v617 = vmul.f32 %v597, %v557
      %v618 = vmul.f32 %v598, %v558
      %v619 = vmul.f32 %v599, %v559
      %v620 = vmul.f32 %v600, %v560
      %v621 = vmul.f32 %v601, %v561
      %v622 = vmul.f32 %v602, %v562
      %v623 = vmul.f32 %v603, %v563
      %v624 = vmul.f32 %v604, %v564
      %v625 = vmul.f32 %v605, %v565
      %v626 = vmul.f32 %v606, %v566
      %v627 = vmul.f32 %v607, %v567
      %v628 = vmul.f32 %v608, %v568
      %v629 = vmul.f32 %v609, %v569
      %v630 = vmul.f32 %v610, %v570
      %v631 = vmul.f32 %v611, %v551
      %v632 = vmul.f32 %v612, %v552
      %v633 = vmul.f32 %v613, %v553
      %v634 = vmul.f32 %v614, %v554
      %v635 = vmul.f32 %v615, %v555
      %v636 = vmul.f32 %v616, %v556
      %v637 = vmul.f32 %v617, %v557
      %v638 = vmul.f32 %v618, %v558
      %v639 = vmul.f32 %v619, %v559
      %v640 = vmul.f32 %v620, %v560
      %v641 = vmul.f32 %v621, %v561
      %v642 = vmul.f32 %v622, %v562
      %v643 = vmul.f32 %v623, %v563
      %v644 = vmul.f32 %v624, %v564
      %v645 = vmul.f32 %v625, %v565
      %v646 = vmul.f32 %v626, %v566
      %v647 = vmul.f32 %v627, %v567
      %v648 = vmul.f32 %v628, %v568
      %v649 = vmul.f32 %v629, %v569
      %v650 = vmul.f32 %v630, %v570
      %v651 = vadd.f32 %v551, %v631
      %v652 = vadd.f32 %v552, %v632
      %v653 = vadd.f32 %v553, %v633
      %v654 = vadd.f32 %v554, %v634
      %v655 = vadd.f32 %v555, %v635
      %v656 = vadd.f32 %v556, %v636
      %v657 = vadd.f32 %v557, %v637
      %v658 = vadd.f32 %v558, %v638
      %v659 = vadd.f32 %v559, %v639
      %v660 = vadd.f32 %v560, %v640
      %v661 = vadd.f32 %v561, %v641
      %v662 = vadd.f32 %v562, %v642
      %v663 = vadd.f32 %v563, %v643
      %v664 = vadd.f32 %v564, %v644
      %v665 = vadd.f32 %v565, %v645
      %v666 = vadd.f32 %v566, %v646
      %v667 = vadd.f32 %v567, %v647
      %v668 = vadd.f32 %v568, %v648
      %v669 = vadd.f32 %v569, %v649
      %v670 = vadd.f32 %v570, %v650
      %v671 = vmul.f32 %v651, 0.7978846
      %v672 = vmul.f32 %v652, 0.7978846
      %v673 = vmul.f32 %v653, 0.7978846
      %v674 = vmul.f32 %v654, 0.7978846
      %v675 = vmul.f32 %v655, 0.7978846
      %v676 = vmul.f32 %v656, 0.7978846
      %v677 = vmul.f32 %v657, 0.7978846
      %v678 = vmul.f32 %v658, 0.7978846
      %v679 = vmul.f32 %v659, 0.7978846
      %v680 = vmul.f32 %v660, 0.7978846
      %v681 = vmul.f32 %v661, 0.7978846
      %v682 = vmul.f32 %v662, 0.7978846
      %v683 = vmul.f32 %v663, 0.7978846
      %v684 = vmul.f32 %v664, 0.7978846
      %v685 = vmul.f32 %v665, 0.7978846
      %v686 = vmul.f32 %v666, 0.7978846
      %v687 = vmul.f32 %v667, 0.7978846
      %v688 = vmul.f32 %v668, 0.7978846
      %v689 = vmul.f32 %v669, 0.7978846
      %v690 = vmul.f32 %v670, 0.7978846
      %v691 = vtanh.pop %v671
      %v692 = vtanh.pop %v672
      %v693 = vtanh.pop %v673
      %v694 = vtanh.pop %v674
      %v695 = vtanh.pop %v675
      %v696 = vtanh.pop %v676
      %v697 = vtanh.pop %v677
      %v698 = vtanh.pop %v678
      %v699 = vtanh.pop %v679
      %v700 = vtanh.pop %v680
      %v701 = vtanh.pop %v681
      %v702 = vtanh.pop %v682
      %v703 = vtanh.pop %v683
      %v704 = vtanh.pop %v684
      %v705 = vtanh.pop %v685
      %v706 = vtanh.pop %v686
      %v707 = vtanh.pop %v687
      %v708 = vtanh.pop %v688
      %v709 = vtanh.pop %v689
      %v710 = vtanh.pop %v690
      %v711 = vadd.f32 %v691, 1.0
      %v712 = vadd.f32 %v692, 1.0
      %v713 = vadd.f32 %v693, 1.0
      %v714 = vadd.f32 %v694, 1.0
      %v715 = vadd.f32 %v695, 1.0
      %v716 = vadd.f32 %v696, 1.0
      %v717 = vadd.f32 %v697, 1.0
      %v718 = vadd.f32 %v698, 1.0
      %v719 = vadd.f32 %v699, 1.0
      %v720 = vadd.f32 %v700, 1.0
      %v721 = vadd.f32 %v701, 1.0
      %v722 = vadd.f32 %v702, 1.0
      %v723 = vadd.f32 %v703, 1.0
      %v724 = vadd.f32 %v704, 1.0
      %v725 = vadd.f32 %v705, 1.0
      %v726 = vadd.f32 %v706, 1.0
      %v727 = vadd.f32 %v707, 1.0
      %v728 = vadd.f32 %v708, 1.0
      %v729 = vadd.f32 %v709, 1.0
      %v730 = vadd.f32 %v710, 1.0
      %v731 = vmul.f32 %v571, %v711
      %v732 = vmul.f32 %v572, %v712
      %v733 = vmul.f32 %v573, %v713
      %v734 = vmul.f32 %v574, %v714
      %v735 = vmul.f32 %v575, %v715
      %v736 = vmul.f32 %v576, %v716
      %v737 = vmul.f32 %v577, %v717
      %v738 = vmul.f32 %v578, %v718
      %v739 = vmul.f32 %v579, %v719
      %v740 = vmul.f32 %v580, %v720
      %v741 = vmul.f32 %v581, %v721
      %v742 = vmul.f32 %v582, %v722
      %v743 = vmul.f32 %v583, %v723
      %v744 = vmul.f32 %v584, %v724
      %v745 = vmul.f32 %v585, %v725
      %v746 = vmul.f32 %v586, %v726
      %v747 = vmul.f32 %v587, %v727
      %v748 = vmul.f32 %v588, %v728
      %v749 = vmul.f32 %v589, %v729
      %v750 = vmul.f32 %v590, %v730
      %vm751 = vcmask 261120
      %752 = vst.msk [vmem:[%s170] sm:$0xff] %vm751, %v731
      %753 = vst.msk [vmem:[%s170 + $0x8] sm:$0xff] %vm751, %v732
      %754 = vst.msk [vmem:[%s170 + $0x10] sm:$0xff] %vm751, %v733
      %755 = vst.msk [vmem:[%s170 + $0x18] sm:$0xff] %vm751, %v734
      %756 = vst.msk [vmem:[%s170 + $0x20] sm:$0xff] %vm751, %v735
      %757 = vst.msk [vmem:[%s170 + $0x28] sm:$0xff] %vm751, %v736
      %758 = vst.msk [vmem:[%s170 + $0x30] sm:$0xff] %vm751, %v737
      %759 = vst.msk [vmem:[%s170 + $0x38] sm:$0xff] %vm751, %v738
      %760 = vst.msk [vmem:[%s170 + $0x40] sm:$0xff] %vm751, %v739
      %761 = vst.msk [vmem:[%s170 + $0x48] sm:$0xff] %vm751, %v740
      %762 = vst.msk [vmem:[%s170 + $0x50] sm:$0xff] %vm751, %v741
      %763 = vst.msk [vmem:[%s170 + $0x58] sm:$0xff] %vm751, %v742
      %764 = vst.msk [vmem:[%s170 + $0x60] sm:$0xff] %vm751, %v743
      %765 = vst.msk [vmem:[%s170 + $0x68] sm:$0xff] %vm751, %v744
      %766 = vst.msk [vmem:[%s170 + $0x70] sm:$0xff] %vm751, %v745
      %767 = vst.msk [vmem:[%s170 + $0x78] sm:$0xff] %vm751, %v746
      %768 = vst.msk [vmem:[%s170 + $0x80] sm:$0xff] %vm751, %v747
      %769 = vst.msk [vmem:[%s170 + $0x88] sm:$0xff] %vm751, %v748
      %770 = vst.msk [vmem:[%s170 + $0x90] sm:$0xff] %vm751, %v749
      %vm771 = vcmask 260096
      %772 = vst.msk [vmem:[%s170 + $0x98] sm:$0x7f] %vm771, %v750
      %p773 = scmp.lt.s32.totalorder %s14, 1
      %s774 = scalar_select %p773, %s14, 1
      %s775 = smul.addr %s774, 20
      %s776 = smul.addr %s775, 8
      %s777 = scalar_lea.vmem %s3, %s776
      // Predicated region
      $region33: #{_lambda_.18} parent=31 // pred_check
        %p778 = pneg %p100
      $region34: #{_lambda_.18} parent=31 // pred_check_branch
        %780 = sbr.rel (%p778) target = $region36
      $region35: #{_lambda_.18} parent=31 // pred_region
        _
      $region36: #{_lambda_.18} parent=31 // pred_fallthru
        _
    $region32: #{_lambda_.18} parent=5 // pred_fallthru
      _
    %p781 = scmp.le.s32.totalorder 2, %s9
    // Predicated region
    $region37: #{_lambda_.18} parent=5 // pred_check
      %p782 = pneg %p781
    $region38: #{_lambda_.18} parent=5 // pred_check_branch
      %784 = sbr.rel (%p782) target = $region40
    $region39: #{_lambda_.18} parent=5 // pred_region
      %s785 = ssub.s32 %s9, 2
      // Predicated region
      $region41: #{_lambda_.18} parent=39 // pred_check
        %p786 = pneg %p106
      $region42: #{_lambda_.18} parent=39 // pred_check_branch
        %788 = sbr.rel (%p786) target = $region44
      $region43: #{_lambda_.18} parent=39 // pred_region
        %p789 = scmp.lt.s32.totalorder %s15, 1
        %s790 = scalar_select %p789, %s15, 1
        %s791 = smul.addr %s790, 20
        %s792 = smul.addr %s791, 8
        %s793 = scalar_lea.vmem %s3, %s792
      $region44: #{_lambda_.18} parent=39 // pred_fallthru
        _
    $region40: #{_lambda_.18} parent=5 // pred_fallthru
      _
  $region6: #{_lambda_.18} parent=0 // loop_footer
    %s13 = sadd.s32 1, %s9
  $region7: #{_lambda_.18} parent=0 // loop_footer_branch
    %8 = sbr.rel target = $region3
  $region8: #{_lambda_.18} parent=0 // loop_exit
    _

// kernel: _lambda_.19
$region0: #{_lambda_.19}
  #allocation0 [shape = 'u32[]', space=smem, size = 0x4, offset = 0x4, fixed_abs, tag = 'smem constant byte address 0x4 - core index']
  #allocation1 [shape = 'u32[144,128]{1,0:T(1,128)}', space=vmem, size = 0x12000, scoped, tag = 'internal scratch']
  %s0 = inlined_call_operand.vmem [shape: f32[2,80,64], index: 0, kind: input, shape index: {}]
  %s1 = inlined_call_operand.vmem [shape: f32[2,64,32], index: 1, kind: input, shape index: {}]
  %s2 = inlined_call_operand.vmem [shape: f32[1,32], index: 2, kind: input, shape index: {}]
  %s3 = inlined_call_operand.vmem [shape: f32[2,79,32], index: 3, kind: output, shape index: {}]
  %s4 = sld [smem:[#allocation0]]
  $region45: #{_lambda_.19} parent=0
    _
  %s6 = ssub.s32 1, %s4
  %s7 = scalar_select 0, %s6, %s4
  loop: start=0, step=1, limit=4
  $region2: #{_lambda_.19} parent=0 // loop_pre_header
    _
  $region3: #{_lambda_.19} parent=0 // loop_header
    %s9 = sphi 0, %s13
    %p10 = scmp.ge.s32.totalorder %s9, 4
    %s19 = sphi 0, %s21
    %s22 = sphi 0, %s19
    %s23 = sphi 0, %s22
    %s39 = sphi 0, %s23
    %s43 = sphi 0, %s43
    %s45 = sphi 0, %s43
    %s46 = sphi 0, %s45
    %s60 = sphi 0, %s46
    %s64 = sphi 0, %s64
    %s66 = sphi 0, %s64
    %s67 = sphi 0, %s66
    %s81 = sphi 0, %s67
    %s87 = sphi 0, %s89
    %s90 = sphi 0, %s87
    %s91 = sphi 0, %s90
    %s107 = sphi 0, %s91
  $region4: #{_lambda_.19} parent=0 // loop_header_branch
    %12 = sbr.rel (%p10) target = $region8
  $region5: #{_lambda_.19} parent=0 // loop_body
    %s14 = ssub.s32 %s9, 1
    %s15 = ssub.s32 %s9, 2
    %s16 = sadd.s32 %s9, 1
    %s17 = ssub.s32 %s9, %s16
    %p18 = scmp.eq.s32.totalorder %s17, 0
    %s20 = sadd.s32 %s19, 1
    %s21 = scalar_select %p18, %s19, %s20
    %p24 = pneg %p18
    %p25 = scmp.eq.s32.totalorder %s9, 1
    %p26 = por %p24, %p25
    %p27 = scmp.ne.s32.totalorder %s19, %s22
    %p28 = scmp.eq.s32.totalorder %s9, 0
    %p29 = por %p27, %p28
    %p30 = scmp.ne.s32.totalorder %s19, %s22
    %p31 = scmp.eq.s32.totalorder %s14, 1
    %p32 = por %p30, %p31
    %p33 = scmp.ne.s32.totalorder %s22, %s23
    %p34 = scmp.eq.s32.totalorder %s14, 0
    %p35 = por %p33, %p34
    %p36 = scmp.ne.s32.totalorder %s22, %s23
    %p37 = scmp.eq.s32.totalorder %s15, 1
    %p38 = por %p36, %p37
    %p40 = scmp.ne.s32.totalorder %s23, %s39
    %p41 = scmp.eq.s32.totalorder %s15, 0
    %p42 = por %p40, %p41
    %s44 = sadd.s32 %s43, 1
    %p47 = scmp.eq.s32.totalorder %s9, 1
    %p48 = scmp.ne.s32.totalorder %s43, %s45
    %p49 = scmp.eq.s32.totalorder %s9, 0
    %p50 = por %p48, %p49
    %p51 = scmp.ne.s32.totalorder %s43, %s45
    %p52 = scmp.eq.s32.totalorder %s14, 1
    %p53 = por %p51, %p52
    %p54 = scmp.ne.s32.totalorder %s45, %s46
    %p55 = scmp.eq.s32.totalorder %s14, 0
    %p56 = por %p54, %p55
    %p57 = scmp.ne.s32.totalorder %s45, %s46
    %p58 = scmp.eq.s32.totalorder %s15, 1
    %p59 = por %p57, %p58
    %p61 = scmp.ne.s32.totalorder %s46, %s60
    %p62 = scmp.eq.s32.totalorder %s15, 0
    %p63 = por %p61, %p62
    %s65 = sadd.s32 %s64, 1
    %p68 = scmp.eq.s32.totalorder %s9, 1
    %p69 = scmp.ne.s32.totalorder %s64, %s66
    %p70 = scmp.eq.s32.totalorder %s9, 0
    %p71 = por %p69, %p70
    %p72 = scmp.ne.s32.totalorder %s64, %s66
    %p73 = scmp.eq.s32.totalorder %s14, 1
    %p74 = por %p72, %p73
    %p75 = scmp.ne.s32.totalorder %s66, %s67
    %p76 = scmp.eq.s32.totalorder %s14, 0
    %p77 = por %p75, %p76
    %p78 = scmp.ne.s32.totalorder %s66, %s67
    %p79 = scmp.eq.s32.totalorder %s15, 1
    %p80 = por %p78, %p79
    %p82 = scmp.ne.s32.totalorder %s67, %s81
    %p83 = scmp.eq.s32.totalorder %s15, 0
    %p84 = por %p82, %p83
    %s85 = ssub.s32 %s9, %s16
    %p86 = scmp.eq.s32.totalorder %s85, 0
    %s88 = sadd.s32 %s87, 1
    %s89 = scalar_select %p86, %s87, %s88
    %p92 = pneg %p86
    %p93 = scmp.eq.s32.totalorder %s9, 1
    %p94 = por %p92, %p93
    %p95 = scmp.ne.s32.totalorder %s87, %s90
    %p96 = scmp.eq.s32.totalorder %s9, 0
    %p97 = por %p95, %p96
    %p98 = scmp.ne.s32.totalorder %s87, %s90
    %p99 = scmp.eq.s32.totalorder %s14, 1
    %p100 = por %p98, %p99
    %p101 = scmp.ne.s32.totalorder %s90, %s91
    %p102 = scmp.eq.s32.totalorder %s14, 0
    %p103 = por %p101, %p102
    %p104 = scmp.ne.s32.totalorder %s90, %s91
    %p105 = scmp.eq.s32.totalorder %s15, 1
    %p106 = por %p104, %p105
    %p108 = scmp.ne.s32.totalorder %s91, %s107
    %p109 = scmp.eq.s32.totalorder %s15, 0
    %p110 = por %p108, %p109
    %p111 = scmp.le.s32.totalorder 1, %s9
    %p112 = scmp.lt.s32.totalorder %s9, 3
    %p113 = pnand %p111, %p112
    %p114 = pneg %p113
    // Predicated region
    $region9: #{_lambda_.19} parent=5 // pred_check
      _
    $region10: #{_lambda_.19} parent=5 // pred_check_branch
      %116 = sbr.rel (%p113) target = $region12
    $region11: #{_lambda_.19} parent=5 // pred_region
      %s117 = ssub.s32 %s9, 1
      // Predicated region
      $region13: #{_lambda_.19} parent=11 // pred_check
        %p118 = pneg %p56
      $region14: #{_lambda_.19} parent=11 // pred_check_branch
        %120 = sbr.rel (%p118) target = $region16
      $region15: #{_lambda_.19} parent=11 // pred_region
        _
      $region16: #{_lambda_.19} parent=11 // pred_fallthru
        _
      // Predicated region
      $region17: #{_lambda_.19} parent=11 // pred_check
        %p121 = pneg %p77
      $region18: #{_lambda_.19} parent=11 // pred_check_branch
        %123 = sbr.rel (%p121) target = $region20
      $region19: #{_lambda_.19} parent=11 // pred_region
        _
      $region20: #{_lambda_.19} parent=11 // pred_fallthru
        _
    $region12: #{_lambda_.19} parent=5 // pred_fallthru
      _
    %p124 = scmp.lt.s32.totalorder %s9, 2
    // Predicated region
    $region21: #{_lambda_.19} parent=5 // pred_check
      %p125 = pneg %p124
    $region22: #{_lambda_.19} parent=5 // pred_check_branch
      %127 = sbr.rel (%p125) target = $region24
    $region23: #{_lambda_.19} parent=5 // pred_region
      // Predicated region
      $region25: #{_lambda_.19} parent=23 // pred_check
        %p128 = pneg %p29
      $region26: #{_lambda_.19} parent=23 // pred_check_branch
        %130 = sbr.rel (%p128) target = $region28
      $region27: #{_lambda_.19} parent=23 // pred_region
        %p131 = scmp.lt.s32.totalorder %s9, 1
        %s132 = scalar_select %p131, %s9, 1
        %s133 = smul.addr %s132, 10
        %s134 = smul.addr %s133, 8
        %s135 = scalar_lea.vmem %s0, %s134
      $region28: #{_lambda_.19} parent=23 // pred_fallthru
        _
    $region24: #{_lambda_.19} parent=5 // pred_fallthru
      _
    %p136 = scmp.le.s32.totalorder 1, %s9
    %p137 = scmp.lt.s32.totalorder %s9, 3
    %p138 = pnand %p136, %p137
    %p139 = pneg %p138
    // Predicated region
    $region29: #{_lambda_.19} parent=5 // pred_check
      _
    $region30: #{_lambda_.19} parent=5 // pred_check_branch
      %141 = sbr.rel (%p138) target = $region32
    $region31: #{_lambda_.19} parent=5 // pred_region
      %s142 = ssub.s32 %s9, 1
      %p143 = scmp.lt.s32.totalorder %s14, 1
      %s144 = scalar_select %p143, %s14, 1
      %s145 = smul.addr %s144, 10
      %s146 = smul.addr %s145, 8
      %s147 = scalar_lea.vmem %s0, %s146
      %p148 = pneg %p35
      %p149 = pneg %p32
      %p150 = pneg %p56
      %p151 = pneg %p53
      %p152 = pneg %p77
      %p153 = pneg %p74
      %p154 = pneg %p103
      %p155 = pneg %p100
      %p156 = scmp.lt.s32.totalorder %s14, 1
      %s157 = scalar_select %p156, %s14, 1
      %s158 = smul.addr %s157, 10
      %s159 = smul.addr %s158, 8
      %s160 = scalar_lea.vmem %s3, %s159
      %p161 = scmp.lt.s32.totalorder %s14, 1
      %s162 = scalar_select %p161, %s14, 1
      %s163 = smul.addr %s162, 10
      %s164 = smul.addr %s163, 8
      %s165 = scalar_lea.vmem %s0, %s164
      %p166 = scmp.lt.s32.totalorder %s14, 1
      %s167 = scalar_select %p166, %s14, 1
      %s168 = smul.addr %s167, 10
      %s169 = smul.addr %s168, 8
      %s170 = scalar_lea.vmem %s3, %s169
      %v172 = vld [vmem:[%s165] sm:$0xff]
      %v173 = vld [vmem:[%s165 + $0x8] sm:$0xff]
      %v174 = vld [vmem:[%s165 + $0x10] sm:$0xff]
      %v175 = vld [vmem:[%s165 + $0x18] sm:$0xff]
      %v176 = vld [vmem:[%s165 + $0x20] sm:$0xff]
      %v177 = vld [vmem:[%s165 + $0x28] sm:$0xff]
      %v178 = vld [vmem:[%s165 + $0x30] sm:$0xff]
      %v179 = vld [vmem:[%s165 + $0x38] sm:$0xff]
      %v180 = vld [vmem:[%s165 + $0x40] sm:$0xff]
      %v181 = vld [vmem:[%s165 + $0x48] sm:$0x7f]
      %v182 = vpack.c.bf16 %v173, %v172
      %v183 = vpack.c.bf16 %v175, %v174
      %v184 = vpack.c.bf16 %v177, %v176
      %v185 = vpack.c.bf16 %v179, %v178
      %v186 = vpack.c.bf16 %v181, %v180
      %v187 = vld [vmem:[%s1] sm:$0xff]
      %v188 = vld [vmem:[%s1 + $0x8] sm:$0xff]
      %v189 = vld [vmem:[%s1 + $0x10] sm:$0xff]
      %v190 = vld [vmem:[%s1 + $0x18] sm:$0xff]
      %v191 = vld [vmem:[%s1 + $0x20] sm:$0xff]
      %v192 = vld [vmem:[%s1 + $0x28] sm:$0xff]
      %v193 = vld [vmem:[%s1 + $0x30] sm:$0xff]
      %v194 = vld [vmem:[%s1 + $0x38] sm:$0xff]
      %v195 = vpack.c.bf16 %v188, %v187
      %v196 = vpack.c.bf16 %v190, %v189
      %v197 = vpack.c.bf16 %v192, %v191
      %v198 = vpack.c.bf16 %v194, %v193
      %v199 = vld [vmem:[%s165 + $0x1] sm:$0xff]
      %v200 = vld [vmem:[%s165 + $0x9] sm:$0xff]
      %v201 = vld [vmem:[%s165 + $0x11] sm:$0xff]
      %v202 = vld [vmem:[%s165 + $0x19] sm:$0xff]
      %v203 = vld [vmem:[%s165 + $0x21] sm:$0xff]
      %v204 = vld [vmem:[%s165 + $0x29] sm:$0xff]
      %v205 = vld [vmem:[%s165 + $0x31] sm:$0xff]
      %v206 = vld [vmem:[%s165 + $0x39] sm:$0xff]
      %v207 = vld [vmem:[%s165 + $0x41] sm:$0xff]
      %v208 = vld [vmem:[%s165 + $0x49] sm:$0x7f]
      %v209 = vpack.c.bf16 %v200, %v199
      %v210 = vpack.c.bf16 %v202, %v201
      %v211 = vpack.c.bf16 %v204, %v203
      %v212 = vpack.c.bf16 %v206, %v205
      %v213 = vpack.c.bf16 %v208, %v207
      %s214 = scalar_lea.vmem %s1, 64
      %v215 = vld [vmem:[%s214] sm:$0xff]
      %v216 = vld [vmem:[%s214 + $0x8] sm:$0xff]
      %v217 = vld [vmem:[%s214 + $0x10] sm:$0xff]
      %v218 = vld [vmem:[%s214 + $0x18] sm:$0xff]
      %v219 = vld [vmem:[%s214 + $0x20] sm:$0xff]
      %v220 = vld [vmem:[%s214 + $0x28] sm:$0xff]
      %v221 = vld [vmem:[%s214 + $0x30] sm:$0xff]
      %v222 = vld [vmem:[%s214 + $0x38] sm:$0xff]
      %v223 = vpack.c.bf16 %v216, %v215
      %v224 = vpack.c.bf16 %v218, %v217
      %v225 = vpack.c.bf16 %v220, %v219
      %v226 = vpack.c.bf16 %v222, %v221
      %vm227 = vcmask 523264
      %v229 = vsel %vm227, %v209, 0
      %v232 = vsel %vm227, %v210, 0
      %v235 = vsel %vm227, %v211, 0
      %v238 = vsel %vm227, %v212, 0
      %v241 = vsel %vm227, %v213, 0
      %243 = vmatprep.subr.bf16.mxu0 0
      %244 = vmatpush1.bf16.msra.mxu0 0
      %245 = vmatprep.subr.bf16.mxu0 0
      %246 = vmatpush1.bf16.msra.mxu0 0
      %247 = vmatprep.subr.bf16.mxu0 0
      %248 = vmatpush1.bf16.msra.mxu0 0
      %249 = vmatprep.subr.bf16.mxu0 0
      %250 = vmatpush1.bf16.msra.mxu0 0
      %251 = vmatprep.subr.bf16.mxu0 0
      %252 = vmatpush1.bf16.msra.mxu0 %v226
      %253 = vmatprep.subr.bf16.mxu0 0
      %254 = vmatpush1.bf16.msra.mxu0 %v225
      %255 = vmatprep.subr.bf16.mxu0 0
      %256 = vmatpush1.bf16.msra.mxu0 %v224
      %257 = vmatprep.subr.bf16.mxu0 0
      %258 = vmatpush1.bf16.msra.mxu0 %v223
      %259 = vmatprep.subr.bf16.mxu0 0
      %260 = vmatpush2.bf16.msra.mxu0 0
      %261 = vmatprep.subr.bf16.mxu0 0
      %262 = vmatpush2.bf16.msra.mxu0 0
      %263 = vmatprep.subr.bf16.mxu0 0
      %264 = vmatpush2.bf16.msra.mxu0 0
      %265 = vmatprep.subr.bf16.mxu0 0
      %266 = vmatpush2.bf16.msra.mxu0 0
      %267 = vmatprep.subr.bf16.mxu0 0
      %268 = vmatpush2.bf16.msra.mxu0 0
      %269 = vmatprep.subr.bf16.mxu0 0
      %270 = vmatpush2.bf16.msra.mxu0 0
      %271 = vmatprep.subr.bf16.mxu0 0
      %272 = vmatpush2.bf16.msra.mxu0 0
      %273 = vmatprep.subr.bf16.mxu0 0
      %274 = vmatpush2.bf16.msra.mxu0 0
      %275 = vmatprep.mubr.bf16.mxu0 0
      %276 = vmatmul.mubr.bf16.gmra.mxu0 %v229
      %v277 = vpop.f32.mrf.mxu0
      %v278 = vadd.f32 0.0, %v277
      %v279 = vpop.f32.mrf.mxu0
      %v280 = vpop.f32.mrf.mxu0
      %v281 = vadd.f32 0.0, %v280
      %v282 = vpop.f32.mrf.mxu0
      %283 = vmatprep.mubr.bf16.mxu0 0
      %284 = vmatmul.mubr.bf16.gmra.mxu0 %v232
      %v285 = vpop.f32.mrf.mxu0
      %v286 = vadd.f32 0.0, %v285
      %v287 = vpop.f32.mrf.mxu0
      %v288 = vpop.f32.mrf.mxu0
      %v289 = vadd.f32 0.0, %v288
      %v290 = vpop.f32.mrf.mxu0
      %291 = vmatprep.mubr.bf16.mxu0 0
      %292 = vmatmul.mubr.bf16.gmra.mxu0 %v235
      %v293 = vpop.f32.mrf.mxu0
      %v294 = vadd.f32 0.0, %v293
      %v295 = vpop.f32.mrf.mxu0
      %v296 = vpop.f32.mrf.mxu0
      %v297 = vadd.f32 0.0, %v296
      %v298 = vpop.f32.mrf.mxu0
      %299 = vmatprep.mubr.bf16.mxu0 0
      %300 = vmatmul.mubr.bf16.gmra.mxu0 %v238
      %v301 = vpop.f32.mrf.mxu0
      %v302 = vadd.f32 0.0, %v301
      %v303 = vpop.f32.mrf.mxu0
      %v304 = vpop.f32.mrf.mxu0
      %v305 = vadd.f32 0.0, %v304
      %v306 = vpop.f32.mrf.mxu0
      %307 = vmatprep.mubr.bf16.mxu0 0
      %308 = vmatmul.mubr.bf16.gmra.mxu0 %v241
      %v309 = vpop.f32.mrf.mxu0
      %v310 = vadd.f32 0.0, %v309
      %v311 = vpop.f32.mrf.mxu0
      %v312 = vpop.f32.mrf.mxu0
      %v313 = vadd.f32 0.0, %v312
      %v314 = vpop.f32.mrf.mxu0
      %315 = vdwg.mxu0
      %v317 = vsel %vm227, %v182, 0
      %v320 = vsel %vm227, %v183, 0
      %v323 = vsel %vm227, %v184, 0
      %v326 = vsel %vm227, %v185, 0
      %v329 = vsel %vm227, %v186, 0
      %331 = vmatprep.subr.bf16.mxu0 0
      %332 = vmatpush1.bf16.msra.mxu0 0
      %333 = vmatprep.subr.bf16.mxu0 0
      %334 = vmatpush1.bf16.msra.mxu0 0
      %335 = vmatprep.subr.bf16.mxu0 0
      %336 = vmatpush1.bf16.msra.mxu0 0
      %337 = vmatprep.subr.bf16.mxu0 0
      %338 = vmatpush1.bf16.msra.mxu0 0
      %339 = vmatprep.subr.bf16.mxu0 0
      %340 = vmatpush1.bf16.msra.mxu0 %v198
      %341 = vmatprep.subr.bf16.mxu0 0
      %342 = vmatpush1.bf16.msra.mxu0 %v197
      %343 = vmatprep.subr.bf16.mxu0 0
      %344 = vmatpush1.bf16.msra.mxu0 %v196
      %345 = vmatprep.subr.bf16.mxu0 0
      %346 = vmatpush1.bf16.msra.mxu0 %v195
      %347 = vmatprep.subr.bf16.mxu0 0
      %348 = vmatpush2.bf16.msra.mxu0 0
      %349 = vmatprep.subr.bf16.mxu0 0
      %350 = vmatpush2.bf16.msra.mxu0 0
      %351 = vmatprep.subr.bf16.mxu0 0
      %352 = vmatpush2.bf16.msra.mxu0 0
      %353 = vmatprep.subr.bf16.mxu0 0
      %354 = vmatpush2.bf16.msra.mxu0 0
      %355 = vmatprep.subr.bf16.mxu0 0
      %356 = vmatpush2.bf16.msra.mxu0 0
      %357 = vmatprep.subr.bf16.mxu0 0
      %358 = vmatpush2.bf16.msra.mxu0 0
      %359 = vmatprep.subr.bf16.mxu0 0
      %360 = vmatpush2.bf16.msra.mxu0 0
      %361 = vmatprep.subr.bf16.mxu0 0
      %362 = vmatpush2.bf16.msra.mxu0 0
      %363 = vmatprep.mubr.bf16.mxu0 0
      %364 = vmatmul.mubr.bf16.gmra.mxu0 %v317
      %v365 = vpop.f32.mrf.mxu0
      %v366 = vadd.f32 %v278, %v365
      %v367 = vpop.f32.mrf.mxu0
      %v368 = vpop.f32.mrf.mxu0
      %v369 = vadd.f32 %v281, %v368
      %v370 = vpop.f32.mrf.mxu0
      %371 = vmatprep.mubr.bf16.mxu0 0
      %372 = vmatmul.mubr.bf16.gmra.mxu0 %v320
      %v373 = vpop.f32.mrf.mxu0
      %v374 = vadd.f32 %v286, %v373
      %v375 = vpop.f32.mrf.mxu0
      %v376 = vpop.f32.mrf.mxu0
      %v377 = vadd.f32 %v289, %v376
      %v378 = vpop.f32.mrf.mxu0
      %379 = vmatprep.mubr.bf16.mxu0 0
      %380 = vmatmul.mubr.bf16.gmra.mxu0 %v323
      %v381 = vpop.f32.mrf.mxu0
      %v382 = vadd.f32 %v294, %v381
      %v383 = vpop.f32.mrf.mxu0
      %v384 = vpop.f32.mrf.mxu0
      %v385 = vadd.f32 %v297, %v384
      %v386 = vpop.f32.mrf.mxu0
      %387 = vmatprep.mubr.bf16.mxu0 0
      %388 = vmatmul.mubr.bf16.gmra.mxu0 %v326
      %v389 = vpop.f32.mrf.mxu0
      %v390 = vadd.f32 %v302, %v389
      %v391 = vpop.f32.mrf.mxu0
      %v392 = vpop.f32.mrf.mxu0
      %v393 = vadd.f32 %v305, %v392
      %v394 = vpop.f32.mrf.mxu0
      %395 = vmatprep.mubr.bf16.mxu0 0
      %396 = vmatmul.mubr.bf16.gmra.mxu0 %v329
      %v397 = vpop.f32.mrf.mxu0
      %v398 = vadd.f32 %v310, %v397
      %v399 = vpop.f32.mrf.mxu0
      %v400 = vpop.f32.mrf.mxu0
      %v401 = vadd.f32 %v313, %v400
      %v402 = vpop.f32.mrf.mxu0
      %403 = vdwg.mxu0
      %v404 = vld [vmem:[%s2] sm:$0x1]
      %v406 = vlaneseq
      %v407 = vshrl.u32 %v406, 7
      %v408 = vsub.s32 0, %v407
      %v409 = vrot.slane %v404, %v408
      %v411 = vadd.f32 %v366, %v409
      %v412 = vadd.f32 %v369, %v409
      %v413 = vadd.f32 %v374, %v409
      %v414 = vadd.f32 %v377, %v409
      %v415 = vadd.f32 %v382, %v409
      %v416 = vadd.f32 %v385, %v409
      %v417 = vadd.f32 %v390, %v409
      %v418 = vadd.f32 %v393, %v409
      %v419 = vadd.f32 %v398, %v409
      %v420 = vadd.f32 %v401, %v409
      %v421 = vmul.f32 %v411, 0.5
      %v422 = vmul.f32 %v412, 0.5
      %v423 = vmul.f32 %v413, 0.5
      %v424 = vmul.f32 %v414, 0.5
      %v425 = vmul.f32 %v415, 0.5
      %v426 = vmul.f32 %v416, 0.5
      %v427 = vmul.f32 %v417, 0.5
      %v428 = vmul.f32 %v418, 0.5
      %v429 = vmul.f32 %v419, 0.5
      %v430 = vmul.f32 %v420, 0.5
      %v431 = vmul.f32 %v411, 0.044715
      %v432 = vmul.f32 %v412, 0.044715
      %v433 = vmul.f32 %v413, 0.044715
      %v434 = vmul.f32 %v414, 0.044715
      %v435 = vmul.f32 %v415, 0.044715
      %v436 = vmul.f32 %v416, 0.044715
      %v437 = vmul.f32 %v417, 0.044715
      %v438 = vmul.f32 %v418, 0.044715
      %v439 = vmul.f32 %v419, 0.044715
      %v440 = vmul.f32 %v420, 0.044715
      %v441 = vmul.f32 %v431, %v411
      %v442 = vmul.f32 %v432, %v412
      %v443 = vmul.f32 %v433, %v413
      %v444 = vmul.f32 %v434, %v414
      %v445 = vmul.f32 %v435, %v415
      %v446 = vmul.f32 %v436, %v416
      %v447 = vmul.f32 %v437, %v417
      %v448 = vmul.f32 %v438, %v418
      %v449 = vmul.f32 %v439, %v419
      %v450 = vmul.f32 %v440, %v420
      %v451 = vmul.f32 %v441, %v411
      %v452 = vmul.f32 %v442, %v412
      %v453 = vmul.f32 %v443, %v413
      %v454 = vmul.f32 %v444, %v414
      %v455 = vmul.f32 %v445, %v415
      %v456 = vmul.f32 %v446, %v416
      %v457 = vmul.f32 %v447, %v417
      %v458 = vmul.f32 %v448, %v418
      %v459 = vmul.f32 %v449, %v419
      %v460 = vmul.f32 %v450, %v420
      %v461 = vadd.f32 %v411, %v451
      %v462 = vadd.f32 %v412, %v452
      %v463 = vadd.f32 %v413, %v453
      %v464 = vadd.f32 %v414, %v454
      %v465 = vadd.f32 %v415, %v455
      %v466 = vadd.f32 %v416, %v456
      %v467 = vadd.f32 %v417, %v457
      %v468 = vadd.f32 %v418, %v458
      %v469 = vadd.f32 %v419, %v459
      %v470 = vadd.f32 %v420, %v460
      %v471 = vmul.f32 %v461, 0.7978846
      %v472 = vmul.f32 %v462, 0.7978846
      %v473 = vmul.f32 %v463, 0.7978846
      %v474 = vmul.f32 %v464, 0.7978846
      %v475 = vmul.f32 %v465, 0.7978846
      %v476 = vmul.f32 %v466, 0.7978846
      %v477 = vmul.f32 %v467, 0.7978846
      %v478 = vmul.f32 %v468, 0.7978846
      %v479 = vmul.f32 %v469, 0.7978846
      %v480 = vmul.f32 %v470, 0.7978846
      %v481 = vtanh.pop %v471
      %v482 = vtanh.pop %v472
      %v483 = vtanh.pop %v473
      %v484 = vtanh.pop %v474
      %v485 = vtanh.pop %v475
      %v486 = vtanh.pop %v476
      %v487 = vtanh.pop %v477
      %v488 = vtanh.pop %v478
      %v489 = vtanh.pop %v479
      %v490 = vtanh.pop %v480
      %v491 = vadd.f32 %v481, 1.0
      %v492 = vadd.f32 %v482, 1.0
      %v493 = vadd.f32 %v483, 1.0
      %v494 = vadd.f32 %v484, 1.0
      %v495 = vadd.f32 %v485, 1.0
      %v496 = vadd.f32 %v486, 1.0
      %v497 = vadd.f32 %v487, 1.0
      %v498 = vadd.f32 %v488, 1.0
      %v499 = vadd.f32 %v489, 1.0
      %v500 = vadd.f32 %v490, 1.0
      %v501 = vmul.f32 %v421, %v491
      %v502 = vmul.f32 %v422, %v492
      %v503 = vmul.f32 %v423, %v493
      %v504 = vmul.f32 %v424, %v494
      %v505 = vmul.f32 %v425, %v495
      %v506 = vmul.f32 %v426, %v496
      %v507 = vmul.f32 %v427, %v497
      %v508 = vmul.f32 %v428, %v498
      %v509 = vmul.f32 %v429, %v499
      %v510 = vmul.f32 %v430, %v500
      %vm511 = vcmask 261120
      %512 = vst.msk [vmem:[%s170] sm:$0xff] %vm511, %v501
      %513 = vst.msk [vmem:[%s170 + $0x8] sm:$0xff] %vm511, %v502
      %514 = vst.msk [vmem:[%s170 + $0x10] sm:$0xff] %vm511, %v503
      %515 = vst.msk [vmem:[%s170 + $0x18] sm:$0xff] %vm511, %v504
      %516 = vst.msk [vmem:[%s170 + $0x20] sm:$0xff] %vm511, %v505
      %517 = vst.msk [vmem:[%s170 + $0x28] sm:$0xff] %vm511, %v506
      %518 = vst.msk [vmem:[%s170 + $0x30] sm:$0xff] %vm511, %v507
      %519 = vst.msk [vmem:[%s170 + $0x38] sm:$0xff] %vm511, %v508
      %520 = vst.msk [vmem:[%s170 + $0x40] sm:$0xff] %vm511, %v509
      %vm521 = vcmask 260096
      %522 = vst.msk [vmem:[%s170 + $0x48] sm:$0x7f] %vm521, %v510
      %p523 = scmp.lt.s32.totalorder %s14, 1
      %s524 = scalar_select %p523, %s14, 1
      %s525 = smul.addr %s524, 10
      %s526 = smul.addr %s525, 8
      %s527 = scalar_lea.vmem %s3, %s526
      // Predicated region
      $region33: #{_lambda_.19} parent=31 // pred_check
        %p528 = pneg %p100
      $region34: #{_lambda_.19} parent=31 // pred_check_branch
        %530 = sbr.rel (%p528) target = $region36
      $region35: #{_lambda_.19} parent=31 // pred_region
        _
      $region36: #{_lambda_.19} parent=31 // pred_fallthru
        _
    $region32: #{_lambda_.19} parent=5 // pred_fallthru
      _
    %p531 = scmp.le.s32.totalorder 2, %s9
    // Predicated region
    $region37: #{_lambda_.19} parent=5 // pred_check
      %p532 = pneg %p531
    $region38: #{_lambda_.19} parent=5 // pred_check_branch
      %534 = sbr.rel (%p532) target = $region40
    $region39: #{_lambda_.19} parent=5 // pred_region
      %s535 = ssub.s32 %s9, 2
      // Predicated region
      $region41: #{_lambda_.19} parent=39 // pred_check
        %p536 = pneg %p106
      $region42: #{_lambda_.19} parent=39 // pred_check_branch
        %538 = sbr.rel (%p536) target = $region44
      $region43: #{_lambda_.19} parent=39 // pred_region
        %p539 = scmp.lt.s32.totalorder %s15, 1
        %s540 = scalar_select %p539, %s15, 1
        %s541 = smul.addr %s540, 10
        %s542 = smul.addr %s541, 8
        %s543 = scalar_lea.vmem %s3, %s542
      $region44: #{_lambda_.19} parent=39 // pred_fallthru
        _
    $region40: #{_lambda_.19} parent=5 // pred_fallthru
      _
  $region6: #{_lambda_.19} parent=0 // loop_footer
    %s13 = sadd.s32 1, %s9
  $region7: #{_lambda_.19} parent=0 // loop_footer_branch
    %8 = sbr.rel target = $region3
  $region8: #{_lambda_.19} parent=0 // loop_exit
    _

// kernel: _lambda_.20
$region0: #{_lambda_.20}
  #allocation0 [shape = 'u32[]', space=smem, size = 0x4, offset = 0x4, fixed_abs, tag = 'smem constant byte address 0x4 - core index']
  #allocation1 [shape = 'u32[144,128]{1,0:T(1,128)}', space=vmem, size = 0x12000, scoped, tag = 'internal scratch']
  %s0 = inlined_call_operand.vmem [shape: f32[158,32], index: 0, kind: input, shape index: {}]
  %s1 = inlined_call_operand.vmem [shape: f32[1,32], index: 1, kind: input, shape index: {}]
  %s2 = inlined_call_operand.vmem [shape: f32[1,32], index: 2, kind: input, shape index: {}]
  %s3 = inlined_call_operand.vmem [shape: f32[32,32], index: 3, kind: input, shape index: {}]
  %s4 = inlined_call_operand.vmem [shape: f32[1,32], index: 4, kind: input, shape index: {}]
  %s5 = inlined_call_operand.vmem [shape: f32[158,32], index: 5, kind: output, shape index: {}]
  %s6 = sld [smem:[#allocation0]]
  $region30: #{_lambda_.20} parent=0
    _
  %s8 = ssub.s32 1, %s6
  %s9 = scalar_select 0, %s8, %s6
  // Predicated region
  $region2: #{_lambda_.20} parent=0 // pred_check
    _
  $region3: #{_lambda_.20} parent=0 // pred_check_branch
    %11 = sbr.rel (0) target = $region5
  $region4: #{_lambda_.20} parent=0 // pred_region
    _
  $region5: #{_lambda_.20} parent=0 // pred_fallthru
    _
  // Predicated region
  $region6: #{_lambda_.20} parent=0 // pred_check
    _
  $region7: #{_lambda_.20} parent=0 // pred_check_branch
    %13 = sbr.rel (0) target = $region9
  $region8: #{_lambda_.20} parent=0 // pred_region
    _
  $region9: #{_lambda_.20} parent=0 // pred_fallthru
    _
  // Predicated region
  $region10: #{_lambda_.20} parent=0 // pred_check
    _
  $region11: #{_lambda_.20} parent=0 // pred_check_branch
    %15 = sbr.rel (0) target = $region13
  $region12: #{_lambda_.20} parent=0 // pred_region
    _
  $region13: #{_lambda_.20} parent=0 // pred_fallthru
    _
  // Predicated region
  $region14: #{_lambda_.20} parent=0 // pred_check
    _
  $region15: #{_lambda_.20} parent=0 // pred_check_branch
    %17 = sbr.rel (0) target = $region17
  $region16: #{_lambda_.20} parent=0 // pred_region
    _
  $region17: #{_lambda_.20} parent=0 // pred_fallthru
    _
  // Predicated region
  $region18: #{_lambda_.20} parent=0 // pred_check
    _
  $region19: #{_lambda_.20} parent=0 // pred_check_branch
    %19 = sbr.rel (0) target = $region21
  $region20: #{_lambda_.20} parent=0 // pred_region
    _
  $region21: #{_lambda_.20} parent=0 // pred_fallthru
    _
  %v21 = vld [vmem:[%s0] sm:$0xff]
  %v22 = vld [vmem:[%s0 + $0x8] sm:$0xff]
  %v23 = vld [vmem:[%s0 + $0x10] sm:$0xff]
  %v24 = vld [vmem:[%s0 + $0x18] sm:$0xff]
  %v25 = vld [vmem:[%s0 + $0x20] sm:$0xff]
  %v26 = vld [vmem:[%s0 + $0x28] sm:$0xff]
  %v27 = vld [vmem:[%s0 + $0x30] sm:$0xff]
  %v28 = vld [vmem:[%s0 + $0x38] sm:$0xff]
  %v29 = vld [vmem:[%s0 + $0x40] sm:$0xff]
  %v30 = vld [vmem:[%s0 + $0x48] sm:$0xff]
  %v31 = vld [vmem:[%s0 + $0x50] sm:$0xff]
  %v32 = vld [vmem:[%s0 + $0x58] sm:$0xff]
  %v33 = vld [vmem:[%s0 + $0x60] sm:$0xff]
  %v34 = vld [vmem:[%s0 + $0x68] sm:$0xff]
  %v35 = vld [vmem:[%s0 + $0x70] sm:$0xff]
  %v36 = vld [vmem:[%s0 + $0x78] sm:$0xff]
  %v37 = vld [vmem:[%s0 + $0x80] sm:$0xff]
  %v38 = vld [vmem:[%s0 + $0x88] sm:$0xff]
  %v39 = vld [vmem:[%s0 + $0x90] sm:$0xff]
  %v40 = vld [vmem:[%s0 + $0x98] sm:$0x3f]
  %vm41 = vcmask 261120
  %v42 = vsel %vm41, %v21, 0.0
  %43 = vadd.xlane.f32.xlu0 %v42
  %v44 = vpop.xlane.xlu0 %43
  %v45 = vsel %vm41, %v22, 0.0
  %46 = vadd.xlane.f32.xlu0 %v45
  %v47 = vpop.xlane.xlu0 %46
  %v48 = vsel %vm41, %v23, 0.0
  %49 = vadd.xlane.f32.xlu0 %v48
  %v50 = vpop.xlane.xlu0 %49
  %v51 = vsel %vm41, %v24, 0.0
  %52 = vadd.xlane.f32.xlu0 %v51
  %v53 = vpop.xlane.xlu0 %52
  %v54 = vsel %vm41, %v25, 0.0
  %55 = vadd.xlane.f32.xlu0 %v54
  %v56 = vpop.xlane.xlu0 %55
  %v57 = vsel %vm41, %v26, 0.0
  %58 = vadd.xlane.f32.xlu0 %v57
  %v59 = vpop.xlane.xlu0 %58
  %v60 = vsel %vm41, %v27, 0.0
  %61 = vadd.xlane.f32.xlu0 %v60
  %v62 = vpop.xlane.xlu0 %61
  %v63 = vsel %vm41, %v28, 0.0
  %64 = vadd.xlane.f32.xlu0 %v63
  %v65 = vpop.xlane.xlu0 %64
  %v66 = vsel %vm41, %v29, 0.0
  %67 = vadd.xlane.f32.xlu0 %v66
  %v68 = vpop.xlane.xlu0 %67
  %v69 = vsel %vm41, %v30, 0.0
  %70 = vadd.xlane.f32.xlu0 %v69
  %v71 = vpop.xlane.xlu0 %70
  %v72 = vsel %vm41, %v31, 0.0
  %73 = vadd.xlane.f32.xlu0 %v72
  %v74 = vpop.xlane.xlu0 %73
  %v75 = vsel %vm41, %v32, 0.0
  %76 = vadd.xlane.f32.xlu0 %v75
  %v77 = vpop.xlane.xlu0 %76
  %v78 = vsel %vm41, %v33, 0.0
  %79 = vadd.xlane.f32.xlu0 %v78
  %v80 = vpop.xlane.xlu0 %79
  %v81 = vsel %vm41, %v34, 0.0
  %82 = vadd.xlane.f32.xlu0 %v81
  %v83 = vpop.xlane.xlu0 %82
  %v84 = vsel %vm41, %v35, 0.0
  %85 = vadd.xlane.f32.xlu0 %v84
  %v86 = vpop.xlane.xlu0 %85
  %v87 = vsel %vm41, %v36, 0.0
  %88 = vadd.xlane.f32.xlu0 %v87
  %v89 = vpop.xlane.xlu0 %88
  %v90 = vsel %vm41, %v37, 0.0
  %91 = vadd.xlane.f32.xlu0 %v90
  %v92 = vpop.xlane.xlu0 %91
  %v93 = vsel %vm41, %v38, 0.0
  %94 = vadd.xlane.f32.xlu0 %v93
  %v95 = vpop.xlane.xlu0 %94
  %v96 = vsel %vm41, %v39, 0.0
  %97 = vadd.xlane.f32.xlu0 %v96
  %v98 = vpop.xlane.xlu0 %97
  %vm99 = vcmask 259072
  %v100 = vsel %vm99, %v40, 0.0
  %101 = vadd.xlane.f32.xlu0 %v100
  %v102 = vpop.xlane.xlu0 %101
  %v103 = vrcp.pop 32.0
  %v104 = vmul.f32 %v44, %v103
  %v105 = vmul.f32 %v47, %v103
  %v106 = vmul.f32 %v50, %v103
  %v107 = vmul.f32 %v53, %v103
  %v108 = vmul.f32 %v56, %v103
  %v109 = vmul.f32 %v59, %v103
  %v110 = vmul.f32 %v62, %v103
  %v111 = vmul.f32 %v65, %v103
  %v112 = vmul.f32 %v68, %v103
  %v113 = vmul.f32 %v71, %v103
  %v114 = vmul.f32 %v74, %v103
  %v115 = vmul.f32 %v77, %v103
  %v116 = vmul.f32 %v80, %v103
  %v117 = vmul.f32 %v83, %v103
  %v118 = vmul.f32 %v86, %v103
  %v119 = vmul.f32 %v89, %v103
  %v120 = vmul.f32 %v92, %v103
  %v121 = vmul.f32 %v95, %v103
  %v122 = vmul.f32 %v98, %v103
  %v123 = vmul.f32 %v102, %v103
  %v124 = vsub.f32 %v21, %v104
  %v125 = vsub.f32 %v22, %v105
  %v126 = vsub.f32 %v23, %v106
  %v127 = vsub.f32 %v24, %v107
  %v128 = vsub.f32 %v25, %v108
  %v129 = vsub.f32 %v26, %v109
  %v130 = vsub.f32 %v27, %v110
  %v131 = vsub.f32 %v28, %v111
  %v132 = vsub.f32 %v29, %v112
  %v133 = vsub.f32 %v30, %v113
  %v134 = vsub.f32 %v31, %v114
  %v135 = vsub.f32 %v32, %v115
  %v136 = vsub.f32 %v33, %v116
  %v137 = vsub.f32 %v34, %v117
  %v138 = vsub.f32 %v35, %v118
  %v139 = vsub.f32 %v36, %v119
  %v140 = vsub.f32 %v37, %v120
  %v141 = vsub.f32 %v38, %v121
  %v142 = vsub.f32 %v39, %v122
  %v143 = vsub.f32 %v40, %v123
  %v144 = vmul.f32 %v124, %v124
  %v145 = vmul.f32 %v125, %v125
  %v146 = vmul.f32 %v126, %v126
  %v147 = vmul.f32 %v127, %v127
  %v148 = vmul.f32 %v128, %v128
  %v149 = vmul.f32 %v129, %v129
  %v150 = vmul.f32 %v130, %v130
  %v151 = vmul.f32 %v131, %v131
  %v152 = vmul.f32 %v132, %v132
  %v153 = vmul.f32 %v133, %v133
  %v154 = vmul.f32 %v134, %v134
  %v155 = vmul.f32 %v135, %v135
  %v156 = vmul.f32 %v136, %v136
  %v157 = vmul.f32 %v137, %v137
  %v158 = vmul.f32 %v138, %v138
  %v159 = vmul.f32 %v139, %v139
  %v160 = vmul.f32 %v140, %v140
  %v161 = vmul.f32 %v141, %v141
  %v162 = vmul.f32 %v142, %v142
  %v163 = vmul.f32 %v143, %v143
  %v164 = vsel %vm41, %v144, 0.0
  %165 = vadd.xlane.f32.xlu0 %v164
  %v166 = vpop.xlane.xlu0 %165
  %v167 = vsel %vm41, %v145, 0.0
  %168 = vadd.xlane.f32.xlu0 %v167
  %v169 = vpop.xlane.xlu0 %168
  %v170 = vsel %vm41, %v146, 0.0
  %171 = vadd.xlane.f32.xlu0 %v170
  %v172 = vpop.xlane.xlu0 %171
  %v173 = vsel %vm41, %v147, 0.0
  %174 = vadd.xlane.f32.xlu0 %v173
  %v175 = vpop.xlane.xlu0 %174
  %v176 = vsel %vm41, %v148, 0.0
  %177 = vadd.xlane.f32.xlu0 %v176
  %v178 = vpop.xlane.xlu0 %177
  %v179 = vsel %vm41, %v149, 0.0
  %180 = vadd.xlane.f32.xlu0 %v179
  %v181 = vpop.xlane.xlu0 %180
  %v182 = vsel %vm41, %v150, 0.0
  %183 = vadd.xlane.f32.xlu0 %v182
  %v184 = vpop.xlane.xlu0 %183
  %v185 = vsel %vm41, %v151, 0.0
  %186 = vadd.xlane.f32.xlu0 %v185
  %v187 = vpop.xlane.xlu0 %186
  %v188 = vsel %vm41, %v152, 0.0
  %189 = vadd.xlane.f32.xlu0 %v188
  %v190 = vpop.xlane.xlu0 %189
  %v191 = vsel %vm41, %v153, 0.0
  %192 = vadd.xlane.f32.xlu0 %v191
  %v193 = vpop.xlane.xlu0 %192
  %v194 = vsel %vm41, %v154, 0.0
  %195 = vadd.xlane.f32.xlu0 %v194
  %v196 = vpop.xlane.xlu0 %195
  %v197 = vsel %vm41, %v155, 0.0
  %198 = vadd.xlane.f32.xlu0 %v197
  %v199 = vpop.xlane.xlu0 %198
  %v200 = vsel %vm41, %v156, 0.0
  %201 = vadd.xlane.f32.xlu0 %v200
  %v202 = vpop.xlane.xlu0 %201
  %v203 = vsel %vm41, %v157, 0.0
  %204 = vadd.xlane.f32.xlu0 %v203
  %v205 = vpop.xlane.xlu0 %204
  %v206 = vsel %vm41, %v158, 0.0
  %207 = vadd.xlane.f32.xlu0 %v206
  %v208 = vpop.xlane.xlu0 %207
  %v209 = vsel %vm41, %v159, 0.0
  %210 = vadd.xlane.f32.xlu0 %v209
  %v211 = vpop.xlane.xlu0 %210
  %v212 = vsel %vm41, %v160, 0.0
  %213 = vadd.xlane.f32.xlu0 %v212
  %v214 = vpop.xlane.xlu0 %213
  %v215 = vsel %vm41, %v161, 0.0
  %216 = vadd.xlane.f32.xlu0 %v215
  %v217 = vpop.xlane.xlu0 %216
  %v218 = vsel %vm41, %v162, 0.0
  %219 = vadd.xlane.f32.xlu0 %v218
  %v220 = vpop.xlane.xlu0 %219
  %v221 = vsel %vm99, %v163, 0.0
  %222 = vadd.xlane.f32.xlu0 %v221
  %v223 = vpop.xlane.xlu0 %222
  %v224 = vmul.f32 %v166, %v103
  %v225 = vmul.f32 %v169, %v103
  %v226 = vmul.f32 %v172, %v103
  %v227 = vmul.f32 %v175, %v103
  %v228 = vmul.f32 %v178, %v103
  %v229 = vmul.f32 %v181, %v103
  %v230 = vmul.f32 %v184, %v103
  %v231 = vmul.f32 %v187, %v103
  %v232 = vmul.f32 %v190, %v103
  %v233 = vmul.f32 %v193, %v103
  %v234 = vmul.f32 %v196, %v103
  %v235 = vmul.f32 %v199, %v103
  %v236 = vmul.f32 %v202, %v103
  %v237 = vmul.f32 %v205, %v103
  %v238 = vmul.f32 %v208, %v103
  %v239 = vmul.f32 %v211, %v103
  %v240 = vmul.f32 %v214, %v103
  %v241 = vmul.f32 %v217, %v103
  %v242 = vmul.f32 %v220, %v103
  %v243 = vmul.f32 %v223, %v103
  %v244 = vadd.f32 %v224, 1e-05
  %v245 = vadd.f32 %v225, 1e-05
  %v246 = vadd.f32 %v226, 1e-05
  %v247 = vadd.f32 %v227, 1e-05
  %v248 = vadd.f32 %v228, 1e-05
  %v249 = vadd.f32 %v229, 1e-05
  %v250 = vadd.f32 %v230, 1e-05
  %v251 = vadd.f32 %v231, 1e-05
  %v252 = vadd.f32 %v232, 1e-05
  %v253 = vadd.f32 %v233, 1e-05
  %v254 = vadd.f32 %v234, 1e-05
  %v255 = vadd.f32 %v235, 1e-05
  %v256 = vadd.f32 %v236, 1e-05
  %v257 = vadd.f32 %v237, 1e-05
  %v258 = vadd.f32 %v238, 1e-05
  %v259 = vadd.f32 %v239, 1e-05
  %v260 = vadd.f32 %v240, 1e-05
  %v261 = vadd.f32 %v241, 1e-05
  %v262 = vadd.f32 %v242, 1e-05
  %v263 = vadd.f32 %v243, 1e-05
  %v264 = vrsqrt.pop %v244
  %v265 = vrsqrt.pop %v245
  %v266 = vrsqrt.pop %v246
  %v267 = vrsqrt.pop %v247
  %v268 = vrsqrt.pop %v248
  %v269 = vrsqrt.pop %v249
  %v270 = vrsqrt.pop %v250
  %v271 = vrsqrt.pop %v251
  %v272 = vrsqrt.pop %v252
  %v273 = vrsqrt.pop %v253
  %v274 = vrsqrt.pop %v254
  %v275 = vrsqrt.pop %v255
  %v276 = vrsqrt.pop %v256
  %v277 = vrsqrt.pop %v257
  %v278 = vrsqrt.pop %v258
  %v279 = vrsqrt.pop %v259
  %v280 = vrsqrt.pop %v260
  %v281 = vrsqrt.pop %v261
  %v282 = vrsqrt.pop %v262
  %v283 = vrsqrt.pop %v263
  %v284 = vmul.f32 %v124, %v264
  %v285 = vmul.f32 %v125, %v265
  %v286 = vmul.f32 %v126, %v266
  %v287 = vmul.f32 %v127, %v267
  %v288 = vmul.f32 %v128, %v268
  %v289 = vmul.f32 %v129, %v269
  %v290 = vmul.f32 %v130, %v270
  %v291 = vmul.f32 %v131, %v271
  %v292 = vmul.f32 %v132, %v272
  %v293 = vmul.f32 %v133, %v273
  %v294 = vmul.f32 %v134, %v274
  %v295 = vmul.f32 %v135, %v275
  %v296 = vmul.f32 %v136, %v276
  %v297 = vmul.f32 %v137, %v277
  %v298 = vmul.f32 %v138, %v278
  %v299 = vmul.f32 %v139, %v279
  %v300 = vmul.f32 %v140, %v280
  %v301 = vmul.f32 %v141, %v281
  %v302 = vmul.f32 %v142, %v282
  %v303 = vmul.f32 %v143, %v283
  %v304 = vld [vmem:[%s1] sm:$0x1]
  %v306 = vlaneseq
  %v307 = vshrl.u32 %v306, 7
  %v308 = vsub.s32 0, %v307
  %v309 = vrot.slane %v304, %v308
  %v311 = vmul.f32 %v284, %v309
  %v312 = vmul.f32 %v285, %v309
  %v313 = vmul.f32 %v286, %v309
  %v314 = vmul.f32 %v287, %v309
  %v315 = vmul.f32 %v288, %v309
  %v316 = vmul.f32 %v289, %v309
  %v317 = vmul.f32 %v290, %v309
  %v318 = vmul.f32 %v291, %v309
  %v319 = vmul.f32 %v292, %v309
  %v320 = vmul.f32 %v293, %v309
  %v321 = vmul.f32 %v294, %v309
  %v322 = vmul.f32 %v295, %v309
  %v323 = vmul.f32 %v296, %v309
  %v324 = vmul.f32 %v297, %v309
  %v325 = vmul.f32 %v298, %v309
  %v326 = vmul.f32 %v299, %v309
  %v327 = vmul.f32 %v300, %v309
  %v328 = vmul.f32 %v301, %v309
  %v329 = vmul.f32 %v302, %v309
  %v330 = vmul.f32 %v303, %v309
  %v331 = vld [vmem:[%s2] sm:$0x1]
  %v333 = vlaneseq
  %v334 = vshrl.u32 %v333, 7
  %v335 = vsub.s32 0, %v334
  %v336 = vrot.slane %v331, %v335
  %v338 = vadd.f32 %v311, %v336
  %v339 = vadd.f32 %v312, %v336
  %v340 = vadd.f32 %v313, %v336
  %v341 = vadd.f32 %v314, %v336
  %v342 = vadd.f32 %v315, %v336
  %v343 = vadd.f32 %v316, %v336
  %v344 = vadd.f32 %v317, %v336
  %v345 = vadd.f32 %v318, %v336
  %v346 = vadd.f32 %v319, %v336
  %v347 = vadd.f32 %v320, %v336
  %v348 = vadd.f32 %v321, %v336
  %v349 = vadd.f32 %v322, %v336
  %v350 = vadd.f32 %v323, %v336
  %v351 = vadd.f32 %v324, %v336
  %v352 = vadd.f32 %v325, %v336
  %v353 = vadd.f32 %v326, %v336
  %v354 = vadd.f32 %v327, %v336
  %v355 = vadd.f32 %v328, %v336
  %v356 = vadd.f32 %v329, %v336
  %v357 = vadd.f32 %v330, %v336
  %v358 = vpack.c.bf16 %v339, %v338
  %v359 = vpack.c.bf16 %v341, %v340
  %v360 = vpack.c.bf16 %v343, %v342
  %v361 = vpack.c.bf16 %v345, %v344
  %v362 = vpack.c.bf16 %v347, %v346
  %v363 = vpack.c.bf16 %v349, %v348
  %v364 = vpack.c.bf16 %v351, %v350
  %v365 = vpack.c.bf16 %v353, %v352
  %v366 = vpack.c.bf16 %v355, %v354
  %v367 = vpack.c.bf16 %v357, %v356
  %v368 = vld [vmem:[%s3] sm:$0xff]
  %v369 = vld [vmem:[%s3 + $0x8] sm:$0xff]
  %v370 = vld [vmem:[%s3 + $0x10] sm:$0xff]
  %v371 = vld [vmem:[%s3 + $0x18] sm:$0xff]
  %v372 = vpack.c.bf16 %v369, %v368
  %v373 = vpack.c.bf16 %v371, %v370
  %v374 = vld [vmem:[%s4] sm:$0x1]
  %v376 = vlaneseq
  %v377 = vshrl.u32 %v376, 7
  %v378 = vsub.s32 0, %v377
  %v379 = vrot.slane %v374, %v378
  %v382 = vsel %vm41, %v358, 0
  %v385 = vsel %vm41, %v359, 0
  %v388 = vsel %vm41, %v360, 0
  %v391 = vsel %vm41, %v361, 0
  %v394 = vsel %vm41, %v362, 0
  %v397 = vsel %vm41, %v363, 0
  %v400 = vsel %vm41, %v364, 0
  %v403 = vsel %vm41, %v365, 0
  %v406 = vsel %vm41, %v366, 0
  %v409 = vsel %vm41, %v367, 0
  %411 = vmatprep.subr.bf16.mxu0 0
  %412 = vmatpush1.bf16.msra.mxu0 0
  %413 = vmatprep.subr.bf16.mxu0 0
  %414 = vmatpush1.bf16.msra.mxu0 0
  %415 = vmatprep.subr.bf16.mxu0 0
  %416 = vmatpush1.bf16.msra.mxu0 0
  %417 = vmatprep.subr.bf16.mxu0 0
  %418 = vmatpush1.bf16.msra.mxu0 0
  %419 = vmatprep.subr.bf16.mxu0 0
  %420 = vmatpush1.bf16.msra.mxu0 0
  %421 = vmatprep.subr.bf16.mxu0 0
  %422 = vmatpush1.bf16.msra.mxu0 0
  %423 = vmatprep.subr.bf16.mxu0 0
  %424 = vmatpush1.bf16.msra.mxu0 %v373
  %425 = vmatprep.subr.bf16.mxu0 0
  %426 = vmatpush1.bf16.msra.mxu0 %v372
  %427 = vmatprep.subr.bf16.mxu0 0
  %428 = vmatpush2.bf16.msra.mxu0 0
  %429 = vmatprep.subr.bf16.mxu0 0
  %430 = vmatpush2.bf16.msra.mxu0 0
  %431 = vmatprep.subr.bf16.mxu0 0
  %432 = vmatpush2.bf16.msra.mxu0 0
  %433 = vmatprep.subr.bf16.mxu0 0
  %434 = vmatpush2.bf16.msra.mxu0 0
  %435 = vmatprep.subr.bf16.mxu0 0
  %436 = vmatpush2.bf16.msra.mxu0 0
  %437 = vmatprep.subr.bf16.mxu0 0
  %438 = vmatpush2.bf16.msra.mxu0 0
  %439 = vmatprep.subr.bf16.mxu0 0
  %440 = vmatpush2.bf16.msra.mxu0 0
  %441 = vmatprep.subr.bf16.mxu0 0
  %442 = vmatpush2.bf16.msra.mxu0 0
  %443 = vmatprep.mubr.bf16.mxu0 0
  %444 = vmatmul.mubr.bf16.gmra.mxu0 %v382
  %v445 = vpop.f32.mrf.mxu0
  %v446 = vadd.f32 %v379, %v445
  %v447 = vpop.f32.mrf.mxu0
  %v448 = vpop.f32.mrf.mxu0
  %v449 = vadd.f32 %v379, %v448
  %v450 = vpop.f32.mrf.mxu0
  %451 = vmatprep.mubr.bf16.mxu0 0
  %452 = vmatmul.mubr.bf16.gmra.mxu0 %v385
  %v453 = vpop.f32.mrf.mxu0
  %v454 = vadd.f32 %v379, %v453
  %v455 = vpop.f32.mrf.mxu0
  %v456 = vpop.f32.mrf.mxu0
  %v457 = vadd.f32 %v379, %v456
  %v458 = vpop.f32.mrf.mxu0
  %459 = vmatprep.mubr.bf16.mxu0 0
  %460 = vmatmul.mubr.bf16.gmra.mxu0 %v388
  %v461 = vpop.f32.mrf.mxu0
  %v462 = vadd.f32 %v379, %v461
  %v463 = vpop.f32.mrf.mxu0
  %v464 = vpop.f32.mrf.mxu0
  %v465 = vadd.f32 %v379, %v464
  %v466 = vpop.f32.mrf.mxu0
  %467 = vmatprep.mubr.bf16.mxu0 0
  %468 = vmatmul.mubr.bf16.gmra.mxu0 %v391
  %v469 = vpop.f32.mrf.mxu0
  %v470 = vadd.f32 %v379, %v469
  %v471 = vpop.f32.mrf.mxu0
  %v472 = vpop.f32.mrf.mxu0
  %v473 = vadd.f32 %v379, %v472
  %v474 = vpop.f32.mrf.mxu0
  %475 = vmatprep.mubr.bf16.mxu0 0
  %476 = vmatmul.mubr.bf16.gmra.mxu0 %v394
  %v477 = vpop.f32.mrf.mxu0
  %v478 = vadd.f32 %v379, %v477
  %v479 = vpop.f32.mrf.mxu0
  %v480 = vpop.f32.mrf.mxu0
  %v481 = vadd.f32 %v379, %v480
  %v482 = vpop.f32.mrf.mxu0
  %483 = vmatprep.mubr.bf16.mxu0 0
  %484 = vmatmul.mubr.bf16.gmra.mxu0 %v397
  %v485 = vpop.f32.mrf.mxu0
  %v486 = vadd.f32 %v379, %v485
  %v487 = vpop.f32.mrf.mxu0
  %v488 = vpop.f32.mrf.mxu0
  %v489 = vadd.f32 %v379, %v488
  %v490 = vpop.f32.mrf.mxu0
  %491 = vmatprep.mubr.bf16.mxu0 0
  %492 = vmatmul.mubr.bf16.gmra.mxu0 %v400
  %v493 = vpop.f32.mrf.mxu0
  %v494 = vadd.f32 %v379, %v493
  %v495 = vpop.f32.mrf.mxu0
  %v496 = vpop.f32.mrf.mxu0
  %v497 = vadd.f32 %v379, %v496
  %v498 = vpop.f32.mrf.mxu0
  %499 = vmatprep.mubr.bf16.mxu0 0
  %500 = vmatmul.mubr.bf16.gmra.mxu0 %v403
  %v501 = vpop.f32.mrf.mxu0
  %v502 = vadd.f32 %v379, %v501
  %v503 = vpop.f32.mrf.mxu0
  %v504 = vpop.f32.mrf.mxu0
  %v505 = vadd.f32 %v379, %v504
  %v506 = vpop.f32.mrf.mxu0
  %507 = vmatprep.mubr.bf16.mxu0 0
  %508 = vmatmul.mubr.bf16.gmra.mxu0 %v406
  %v509 = vpop.f32.mrf.mxu0
  %v510 = vadd.f32 %v379, %v509
  %v511 = vpop.f32.mrf.mxu0
  %v512 = vpop.f32.mrf.mxu0
  %v513 = vadd.f32 %v379, %v512
  %v514 = vpop.f32.mrf.mxu0
  %515 = vmatprep.mubr.bf16.mxu0 0
  %516 = vmatmul.mubr.bf16.gmra.mxu0 %v409
  %v517 = vpop.f32.mrf.mxu0
  %v518 = vadd.f32 %v379, %v517
  %v519 = vpop.f32.mrf.mxu0
  %v520 = vpop.f32.mrf.mxu0
  %v521 = vadd.f32 %v379, %v520
  %v522 = vpop.f32.mrf.mxu0
  %523 = vdwg.mxu0
  %524 = vst.msk [vmem:[%s5] sm:$0xff] %vm41, %v446
  %525 = vst.msk [vmem:[%s5 + $0x8] sm:$0xff] %vm41, %v449
  %526 = vst.msk [vmem:[%s5 + $0x10] sm:$0xff] %vm41, %v454
  %527 = vst.msk [vmem:[%s5 + $0x18] sm:$0xff] %vm41, %v457
  %528 = vst.msk [vmem:[%s5 + $0x20] sm:$0xff] %vm41, %v462
  %529 = vst.msk [vmem:[%s5 + $0x28] sm:$0xff] %vm41, %v465
  %530 = vst.msk [vmem:[%s5 + $0x30] sm:$0xff] %vm41, %v470
  %531 = vst.msk [vmem:[%s5 + $0x38] sm:$0xff] %vm41, %v473
  %532 = vst.msk [vmem:[%s5 + $0x40] sm:$0xff] %vm41, %v478
  %533 = vst.msk [vmem:[%s5 + $0x48] sm:$0xff] %vm41, %v481
  %534 = vst.msk [vmem:[%s5 + $0x50] sm:$0xff] %vm41, %v486
  %535 = vst.msk [vmem:[%s5 + $0x58] sm:$0xff] %vm41, %v489
  %536 = vst.msk [vmem:[%s5 + $0x60] sm:$0xff] %vm41, %v494
  %537 = vst.msk [vmem:[%s5 + $0x68] sm:$0xff] %vm41, %v497
  %538 = vst.msk [vmem:[%s5 + $0x70] sm:$0xff] %vm41, %v502
  %539 = vst.msk [vmem:[%s5 + $0x78] sm:$0xff] %vm41, %v505
  %540 = vst.msk [vmem:[%s5 + $0x80] sm:$0xff] %vm41, %v510
  %541 = vst.msk [vmem:[%s5 + $0x88] sm:$0xff] %vm41, %v513
  %542 = vst.msk [vmem:[%s5 + $0x90] sm:$0xff] %vm41, %v518
  %543 = vst.msk [vmem:[%s5 + $0x98] sm:$0x3f] %vm99, %v521
  // Predicated region
  $region22: #{_lambda_.20} parent=0 // pred_check
    _
  $region23: #{_lambda_.20} parent=0 // pred_check_branch
    %545 = sbr.rel (0) target = $region25
  $region24: #{_lambda_.20} parent=0 // pred_region
    _
  $region25: #{_lambda_.20} parent=0 // pred_fallthru
    _
  // Predicated region
  $region26: #{_lambda_.20} parent=0 // pred_check
    _
  $region27: #{_lambda_.20} parent=0 // pred_check_branch
    %547 = sbr.rel (0) target = $region29
  $region28: #{_lambda_.20} parent=0 // pred_region
    _
  $region29: #{_lambda_.20} parent=0 // pred_fallthru
    _

// kernel: _lambda_.22
$region0: #{_lambda_.22}
  #allocation0 [shape = 'u32[]', space=smem, size = 0x4, offset = 0x4, fixed_abs, tag = 'smem constant byte address 0x4 - core index']
  #allocation1 [shape = 'u32[144,128]{1,0:T(1,128)}', space=vmem, size = 0x12000, scoped, tag = 'internal scratch']
  #allocation2 [shape = 'f32[158,96]{1,0:T(8,128)}', space=vmem, size = 0x14000, scoped, tag = 'scratch operand']
  %s0 = inlined_call_operand.vmem [shape: f32[158,32], index: 0, kind: input, shape index: {}]
  %s1 = inlined_call_operand.vmem [shape: f32[32,96], index: 1, kind: input, shape index: {}]
  %s2 = inlined_call_operand.vmem [shape: f32[1,96], index: 2, kind: input, shape index: {}]
  %s3 = inlined_call_operand.vmem [shape: f32[158,96], index: 3, kind: output, shape index: {}]
  %s4 = sld [smem:[#allocation0]]
  $region30: #{_lambda_.22} parent=0
    _
  %s6 = ssub.s32 1, %s4
  %s7 = scalar_select 0, %s6, %s4
  // Predicated region
  $region2: #{_lambda_.22} parent=0 // pred_check
    _
  $region3: #{_lambda_.22} parent=0 // pred_check_branch
    %9 = sbr.rel (0) target = $region5
  $region4: #{_lambda_.22} parent=0 // pred_region
    _
  $region5: #{_lambda_.22} parent=0 // pred_fallthru
    _
  // Predicated region
  $region6: #{_lambda_.22} parent=0 // pred_check
    _
  $region7: #{_lambda_.22} parent=0 // pred_check_branch
    %11 = sbr.rel (0) target = $region9
  $region8: #{_lambda_.22} parent=0 // pred_region
    _
  $region9: #{_lambda_.22} parent=0 // pred_fallthru
    _
  // Predicated region
  $region10: #{_lambda_.22} parent=0 // pred_check
    _
  $region11: #{_lambda_.22} parent=0 // pred_check_branch
    %13 = sbr.rel (0) target = $region13
  $region12: #{_lambda_.22} parent=0 // pred_region
    _
  $region13: #{_lambda_.22} parent=0 // pred_fallthru
    _
  %p15 = scmp.eq.s32.totalorder 0, 0
  // Predicated region
  $region14: #{_lambda_.22} parent=0 // pred_check
    %p16 = pneg %p15
  $region15: #{_lambda_.22} parent=0 // pred_check_branch
    %18 = sbr.rel (%p16) target = $region17
  $region16: #{_lambda_.22} parent=0 // pred_region
    %vm19 = vcmask 785408
    %20 = vst.msk [vmem:[#allocation2] sm:$0xff] %vm19, 0.0
    %21 = vst.msk [vmem:[#allocation2 + $0x8] sm:$0xff] %vm19, 0.0
    %22 = vst.msk [vmem:[#allocation2 + $0x10] sm:$0xff] %vm19, 0.0
    %23 = vst.msk [vmem:[#allocation2 + $0x18] sm:$0xff] %vm19, 0.0
    %24 = vst.msk [vmem:[#allocation2 + $0x20] sm:$0xff] %vm19, 0.0
    %25 = vst.msk [vmem:[#allocation2 + $0x28] sm:$0xff] %vm19, 0.0
    %26 = vst.msk [vmem:[#allocation2 + $0x30] sm:$0xff] %vm19, 0.0
    %27 = vst.msk [vmem:[#allocation2 + $0x38] sm:$0xff] %vm19, 0.0
    %28 = vst.msk [vmem:[#allocation2 + $0x40] sm:$0xff] %vm19, 0.0
    %29 = vst.msk [vmem:[#allocation2 + $0x48] sm:$0xff] %vm19, 0.0
    %30 = vst.msk [vmem:[#allocation2 + $0x50] sm:$0xff] %vm19, 0.0
    %31 = vst.msk [vmem:[#allocation2 + $0x58] sm:$0xff] %vm19, 0.0
    %32 = vst.msk [vmem:[#allocation2 + $0x60] sm:$0xff] %vm19, 0.0
    %33 = vst.msk [vmem:[#allocation2 + $0x68] sm:$0xff] %vm19, 0.0
    %34 = vst.msk [vmem:[#allocation2 + $0x70] sm:$0xff] %vm19, 0.0
    %35 = vst.msk [vmem:[#allocation2 + $0x78] sm:$0xff] %vm19, 0.0
    %36 = vst.msk [vmem:[#allocation2 + $0x80] sm:$0xff] %vm19, 0.0
    %37 = vst.msk [vmem:[#allocation2 + $0x88] sm:$0xff] %vm19, 0.0
    %38 = vst.msk [vmem:[#allocation2 + $0x90] sm:$0xff] %vm19, 0.0
    %vm39 = vcmask 783360
    %40 = vst.msk [vmem:[#allocation2 + $0x98] sm:$0x3f] %vm39, 0.0
  $region17: #{_lambda_.22} parent=0 // pred_fallthru
    _
  %v41 = vld [vmem:[#allocation2] sm:$0xff]
  %v42 = vld [vmem:[#allocation2 + $0x8] sm:$0xff]
  %v43 = vld [vmem:[#allocation2 + $0x10] sm:$0xff]
  %v44 = vld [vmem:[#allocation2 + $0x18] sm:$0xff]
  %v45 = vld [vmem:[#allocation2 + $0x20] sm:$0xff]
  %v46 = vld [vmem:[#allocation2 + $0x28] sm:$0xff]
  %v47 = vld [vmem:[#allocation2 + $0x30] sm:$0xff]
  %v48 = vld [vmem:[#allocation2 + $0x38] sm:$0xff]
  %v49 = vld [vmem:[#allocation2 + $0x40] sm:$0xff]
  %v50 = vld [vmem:[#allocation2 + $0x48] sm:$0xff]
  %v51 = vld [vmem:[#allocation2 + $0x50] sm:$0xff]
  %v52 = vld [vmem:[#allocation2 + $0x58] sm:$0xff]
  %v53 = vld [vmem:[#allocation2 + $0x60] sm:$0xff]
  %v54 = vld [vmem:[#allocation2 + $0x68] sm:$0xff]
  %v55 = vld [vmem:[#allocation2 + $0x70] sm:$0xff]
  %v56 = vld [vmem:[#allocation2 + $0x78] sm:$0xff]
  %v57 = vld [vmem:[#allocation2 + $0x80] sm:$0xff]
  %v58 = vld [vmem:[#allocation2 + $0x88] sm:$0xff]
  %v59 = vld [vmem:[#allocation2 + $0x90] sm:$0xff]
  %v60 = vld [vmem:[#allocation2 + $0x98] sm:$0x3f]
  %v61 = vld [vmem:[%s0] sm:$0xff]
  %v62 = vld [vmem:[%s0 + $0x8] sm:$0xff]
  %v63 = vld [vmem:[%s0 + $0x10] sm:$0xff]
  %v64 = vld [vmem:[%s0 + $0x18] sm:$0xff]
  %v65 = vld [vmem:[%s0 + $0x20] sm:$0xff]
  %v66 = vld [vmem:[%s0 + $0x28] sm:$0xff]
  %v67 = vld [vmem:[%s0 + $0x30] sm:$0xff]
  %v68 = vld [vmem:[%s0 + $0x38] sm:$0xff]
  %v69 = vld [vmem:[%s0 + $0x40] sm:$0xff]
  %v70 = vld [vmem:[%s0 + $0x48] sm:$0xff]
  %v71 = vld [vmem:[%s0 + $0x50] sm:$0xff]
  %v72 = vld [vmem:[%s0 + $0x58] sm:$0xff]
  %v73 = vld [vmem:[%s0 + $0x60] sm:$0xff]
  %v74 = vld [vmem:[%s0 + $0x68] sm:$0xff]
  %v75 = vld [vmem:[%s0 + $0x70] sm:$0xff]
  %v76 = vld [vmem:[%s0 + $0x78] sm:$0xff]
  %v77 = vld [vmem:[%s0 + $0x80] sm:$0xff]
  %v78 = vld [vmem:[%s0 + $0x88] sm:$0xff]
  %v79 = vld [vmem:[%s0 + $0x90] sm:$0xff]
  %v80 = vld [vmem:[%s0 + $0x98] sm:$0x3f]
  %v81 = vpack.c.bf16 %v62, %v61
  %v82 = vpack.c.bf16 %v64, %v63
  %v83 = vpack.c.bf16 %v66, %v65
  %v84 = vpack.c.bf16 %v68, %v67
  %v85 = vpack.c.bf16 %v70, %v69
  %v86 = vpack.c.bf16 %v72, %v71
  %v87 = vpack.c.bf16 %v74, %v73
  %v88 = vpack.c.bf16 %v76, %v75
  %v89 = vpack.c.bf16 %v78, %v77
  %v90 = vpack.c.bf16 %v80, %v79
  %v91 = vld [vmem:[%s1] sm:$0xff]
  %v92 = vld [vmem:[%s1 + $0x8] sm:$0xff]
  %v93 = vld [vmem:[%s1 + $0x10] sm:$0xff]
  %v94 = vld [vmem:[%s1 + $0x18] sm:$0xff]
  %v95 = vpack.c.bf16 %v92, %v91
  %v96 = vpack.c.bf16 %v94, %v93
  %vm97 = vcmask 261120
  %v99 = vsel %vm97, %v81, 0
  %v102 = vsel %vm97, %v82, 0
  %v105 = vsel %vm97, %v83, 0
  %v108 = vsel %vm97, %v84, 0
  %v111 = vsel %vm97, %v85, 0
  %v114 = vsel %vm97, %v86, 0
  %v117 = vsel %vm97, %v87, 0
  %v120 = vsel %vm97, %v88, 0
  %v123 = vsel %vm97, %v89, 0
  %v126 = vsel %vm97, %v90, 0
  %128 = vmatprep.subr.bf16.mxu0 0
  %129 = vmatpush1.bf16.msra.mxu0 0
  %130 = vmatprep.subr.bf16.mxu0 0
  %131 = vmatpush1.bf16.msra.mxu0 0
  %132 = vmatprep.subr.bf16.mxu0 0
  %133 = vmatpush1.bf16.msra.mxu0 0
  %134 = vmatprep.subr.bf16.mxu0 0
  %135 = vmatpush1.bf16.msra.mxu0 0
  %136 = vmatprep.subr.bf16.mxu0 0
  %137 = vmatpush1.bf16.msra.mxu0 0
  %138 = vmatprep.subr.bf16.mxu0 0
  %139 = vmatpush1.bf16.msra.mxu0 0
  %140 = vmatprep.subr.bf16.mxu0 0
  %141 = vmatpush1.bf16.msra.mxu0 %v96
  %142 = vmatprep.subr.bf16.mxu0 0
  %143 = vmatpush1.bf16.msra.mxu0 %v95
  %144 = vmatprep.subr.bf16.mxu0 0
  %145 = vmatpush2.bf16.msra.mxu0 0
  %146 = vmatprep.subr.bf16.mxu0 0
  %147 = vmatpush2.bf16.msra.mxu0 0
  %148 = vmatprep.subr.bf16.mxu0 0
  %149 = vmatpush2.bf16.msra.mxu0 0
  %150 = vmatprep.subr.bf16.mxu0 0
  %151 = vmatpush2.bf16.msra.mxu0 0
  %152 = vmatprep.subr.bf16.mxu0 0
  %153 = vmatpush2.bf16.msra.mxu0 0
  %154 = vmatprep.subr.bf16.mxu0 0
  %155 = vmatpush2.bf16.msra.mxu0 0
  %156 = vmatprep.subr.bf16.mxu0 0
  %157 = vmatpush2.bf16.msra.mxu0 0
  %158 = vmatprep.subr.bf16.mxu0 0
  %159 = vmatpush2.bf16.msra.mxu0 0
  %160 = vmatprep.mubr.bf16.mxu0 0
  %161 = vmatmul.mubr.bf16.gmra.mxu0 %v99
  %v162 = vpop.f32.mrf.mxu0
  %v163 = vadd.f32 0.0, %v162
  %v164 = vpop.f32.mrf.mxu0
  %v165 = vpop.f32.mrf.mxu0
  %v166 = vadd.f32 0.0, %v165
  %v167 = vpop.f32.mrf.mxu0
  %168 = vmatprep.mubr.bf16.mxu0 0
  %169 = vmatmul.mubr.bf16.gmra.mxu0 %v102
  %v170 = vpop.f32.mrf.mxu0
  %v171 = vadd.f32 0.0, %v170
  %v172 = vpop.f32.mrf.mxu0
  %v173 = vpop.f32.mrf.mxu0
  %v174 = vadd.f32 0.0, %v173
  %v175 = vpop.f32.mrf.mxu0
  %176 = vmatprep.mubr.bf16.mxu0 0
  %177 = vmatmul.mubr.bf16.gmra.mxu0 %v105
  %v178 = vpop.f32.mrf.mxu0
  %v179 = vadd.f32 0.0, %v178
  %v180 = vpop.f32.mrf.mxu0
  %v181 = vpop.f32.mrf.mxu0
  %v182 = vadd.f32 0.0, %v181
  %v183 = vpop.f32.mrf.mxu0
  %184 = vmatprep.mubr.bf16.mxu0 0
  %185 = vmatmul.mubr.bf16.gmra.mxu0 %v108
  %v186 = vpop.f32.mrf.mxu0
  %v187 = vadd.f32 0.0, %v186
  %v188 = vpop.f32.mrf.mxu0
  %v189 = vpop.f32.mrf.mxu0
  %v190 = vadd.f32 0.0, %v189
  %v191 = vpop.f32.mrf.mxu0
  %192 = vmatprep.mubr.bf16.mxu0 0
  %193 = vmatmul.mubr.bf16.gmra.mxu0 %v111
  %v194 = vpop.f32.mrf.mxu0
  %v195 = vadd.f32 0.0, %v194
  %v196 = vpop.f32.mrf.mxu0
  %v197 = vpop.f32.mrf.mxu0
  %v198 = vadd.f32 0.0, %v197
  %v199 = vpop.f32.mrf.mxu0
  %200 = vmatprep.mubr.bf16.mxu0 0
  %201 = vmatmul.mubr.bf16.gmra.mxu0 %v114
  %v202 = vpop.f32.mrf.mxu0
  %v203 = vadd.f32 0.0, %v202
  %v204 = vpop.f32.mrf.mxu0
  %v205 = vpop.f32.mrf.mxu0
  %v206 = vadd.f32 0.0, %v205
  %v207 = vpop.f32.mrf.mxu0
  %208 = vmatprep.mubr.bf16.mxu0 0
  %209 = vmatmul.mubr.bf16.gmra.mxu0 %v117
  %v210 = vpop.f32.mrf.mxu0
  %v211 = vadd.f32 0.0, %v210
  %v212 = vpop.f32.mrf.mxu0
  %v213 = vpop.f32.mrf.mxu0
  %v214 = vadd.f32 0.0, %v213
  %v215 = vpop.f32.mrf.mxu0
  %216 = vmatprep.mubr.bf16.mxu0 0
  %217 = vmatmul.mubr.bf16.gmra.mxu0 %v120
  %v218 = vpop.f32.mrf.mxu0
  %v219 = vadd.f32 0.0, %v218
  %v220 = vpop.f32.mrf.mxu0
  %v221 = vpop.f32.mrf.mxu0
  %v222 = vadd.f32 0.0, %v221
  %v223 = vpop.f32.mrf.mxu0
  %224 = vmatprep.mubr.bf16.mxu0 0
  %225 = vmatmul.mubr.bf16.gmra.mxu0 %v123
  %v226 = vpop.f32.mrf.mxu0
  %v227 = vadd.f32 0.0, %v226
  %v228 = vpop.f32.mrf.mxu0
  %v229 = vpop.f32.mrf.mxu0
  %v230 = vadd.f32 0.0, %v229
  %v231 = vpop.f32.mrf.mxu0
  %232 = vmatprep.mubr.bf16.mxu0 0
  %233 = vmatmul.mubr.bf16.gmra.mxu0 %v126
  %v234 = vpop.f32.mrf.mxu0
  %v235 = vadd.f32 0.0, %v234
  %v236 = vpop.f32.mrf.mxu0
  %v237 = vpop.f32.mrf.mxu0
  %v238 = vadd.f32 0.0, %v237
  %v239 = vpop.f32.mrf.mxu0
  %240 = vdwg.mxu0
  %v241 = vadd.f32 %v41, %v163
  %v242 = vadd.f32 %v42, %v166
  %v243 = vadd.f32 %v43, %v171
  %v244 = vadd.f32 %v44, %v174
  %v245 = vadd.f32 %v45, %v179
  %v246 = vadd.f32 %v46, %v182
  %v247 = vadd.f32 %v47, %v187
  %v248 = vadd.f32 %v48, %v190
  %v249 = vadd.f32 %v49, %v195
  %v250 = vadd.f32 %v50, %v198
  %v251 = vadd.f32 %v51, %v203
  %v252 = vadd.f32 %v52, %v206
  %v253 = vadd.f32 %v53, %v211
  %v254 = vadd.f32 %v54, %v214
  %v255 = vadd.f32 %v55, %v219
  %v256 = vadd.f32 %v56, %v222
  %v257 = vadd.f32 %v57, %v227
  %v258 = vadd.f32 %v58, %v230
  %v259 = vadd.f32 %v59, %v235
  %v260 = vadd.f32 %v60, %v238
  %vm261 = vcmask 785408
  %262 = vst.msk [vmem:[#allocation2] sm:$0xff] %vm261, %v241
  %263 = vst.msk [vmem:[#allocation2 + $0x8] sm:$0xff] %vm261, %v242
  %264 = vst.msk [vmem:[#allocation2 + $0x10] sm:$0xff] %vm261, %v243
  %265 = vst.msk [vmem:[#allocation2 + $0x18] sm:$0xff] %vm261, %v244
  %266 = vst.msk [vmem:[#allocation2 + $0x20] sm:$0xff] %vm261, %v245
  %267 = vst.msk [vmem:[#allocation2 + $0x28] sm:$0xff] %vm261, %v246
  %268 = vst.msk [vmem:[#allocation2 + $0x30] sm:$0xff] %vm261, %v247
  %269 = vst.msk [vmem:[#allocation2 + $0x38] sm:$0xff] %vm261, %v248
  %270 = vst.msk [vmem:[#allocation2 + $0x40] sm:$0xff] %vm261, %v249
  %271 = vst.msk [vmem:[#allocation2 + $0x48] sm:$0xff] %vm261, %v250
  %272 = vst.msk [vmem:[#allocation2 + $0x50] sm:$0xff] %vm261, %v251
  %273 = vst.msk [vmem:[#allocation2 + $0x58] sm:$0xff] %vm261, %v252
  %274 = vst.msk [vmem:[#allocation2 + $0x60] sm:$0xff] %vm261, %v253
  %275 = vst.msk [vmem:[#allocation2 + $0x68] sm:$0xff] %vm261, %v254
  %276 = vst.msk [vmem:[#allocation2 + $0x70] sm:$0xff] %vm261, %v255
  %277 = vst.msk [vmem:[#allocation2 + $0x78] sm:$0xff] %vm261, %v256
  %278 = vst.msk [vmem:[#allocation2 + $0x80] sm:$0xff] %vm261, %v257
  %279 = vst.msk [vmem:[#allocation2 + $0x88] sm:$0xff] %vm261, %v258
  %280 = vst.msk [vmem:[#allocation2 + $0x90] sm:$0xff] %vm261, %v259
  %vm281 = vcmask 783360
  %282 = vst.msk [vmem:[#allocation2 + $0x98] sm:$0x3f] %vm281, %v260
  // Predicated region
  $region18: #{_lambda_.22} parent=0 // pred_check
    %p283 = pneg %p15
  $region19: #{_lambda_.22} parent=0 // pred_check_branch
    %285 = sbr.rel (%p283) target = $region21
  $region20: #{_lambda_.22} parent=0 // pred_region
    %v286 = vld [vmem:[#allocation2] sm:$0xff]
    %v287 = vld [vmem:[#allocation2 + $0x8] sm:$0xff]
    %v288 = vld [vmem:[#allocation2 + $0x10] sm:$0xff]
    %v289 = vld [vmem:[#allocation2 + $0x18] sm:$0xff]
    %v290 = vld [vmem:[#allocation2 + $0x20] sm:$0xff]
    %v291 = vld [vmem:[#allocation2 + $0x28] sm:$0xff]
    %v292 = vld [vmem:[#allocation2 + $0x30] sm:$0xff]
    %v293 = vld [vmem:[#allocation2 + $0x38] sm:$0xff]
    %v294 = vld [vmem:[#allocation2 + $0x40] sm:$0xff]
    %v295 = vld [vmem:[#allocation2 + $0x48] sm:$0xff]
    %v296 = vld [vmem:[#allocation2 + $0x50] sm:$0xff]
    %v297 = vld [vmem:[#allocation2 + $0x58] sm:$0xff]
    %v298 = vld [vmem:[#allocation2 + $0x60] sm:$0xff]
    %v299 = vld [vmem:[#allocation2 + $0x68] sm:$0xff]
    %v300 = vld [vmem:[#allocation2 + $0x70] sm:$0xff]
    %v301 = vld [vmem:[#allocation2 + $0x78] sm:$0xff]
    %v302 = vld [vmem:[#allocation2 + $0x80] sm:$0xff]
    %v303 = vld [vmem:[#allocation2 + $0x88] sm:$0xff]
    %v304 = vld [vmem:[#allocation2 + $0x90] sm:$0xff]
    %v305 = vld [vmem:[#allocation2 + $0x98] sm:$0x3f]
    %v306 = vld [vmem:[%s2] sm:$0x1]
    %v308 = vlaneseq
    %v309 = vshrl.u32 %v308, 7
    %v310 = vsub.s32 0, %v309
    %v311 = vrot.slane %v306, %v310
    %v313 = vadd.f32 %v286, %v311
    %v314 = vadd.f32 %v287, %v311
    %v315 = vadd.f32 %v288, %v311
    %v316 = vadd.f32 %v289, %v311
    %v317 = vadd.f32 %v290, %v311
    %v318 = vadd.f32 %v291, %v311
    %v319 = vadd.f32 %v292, %v311
    %v320 = vadd.f32 %v293, %v311
    %v321 = vadd.f32 %v294, %v311
    %v322 = vadd.f32 %v295, %v311
    %v323 = vadd.f32 %v296, %v311
    %v324 = vadd.f32 %v297, %v311
    %v325 = vadd.f32 %v298, %v311
    %v326 = vadd.f32 %v299, %v311
    %v327 = vadd.f32 %v300, %v311
    %v328 = vadd.f32 %v301, %v311
    %v329 = vadd.f32 %v302, %v311
    %v330 = vadd.f32 %v303, %v311
    %v331 = vadd.f32 %v304, %v311
    %v332 = vadd.f32 %v305, %v311
    %333 = vst.msk [vmem:[%s3] sm:$0xff] %vm261, %v313
    %334 = vst.msk [vmem:[%s3 + $0x8] sm:$0xff] %vm261, %v314
    %335 = vst.msk [vmem:[%s3 + $0x10] sm:$0xff] %vm261, %v315
    %336 = vst.msk [vmem:[%s3 + $0x18] sm:$0xff] %vm261, %v316
    %337 = vst.msk [vmem:[%s3 + $0x20] sm:$0xff] %vm261, %v317
    %338 = vst.msk [vmem:[%s3 + $0x28] sm:$0xff] %vm261, %v318
    %339 = vst.msk [vmem:[%s3 + $0x30] sm:$0xff] %vm261, %v319
    %340 = vst.msk [vmem:[%s3 + $0x38] sm:$0xff] %vm261, %v320
    %341 = vst.msk [vmem:[%s3 + $0x40] sm:$0xff] %vm261, %v321
    %342 = vst.msk [vmem:[%s3 + $0x48] sm:$0xff] %vm261, %v322
    %343 = vst.msk [vmem:[%s3 + $0x50] sm:$0xff] %vm261, %v323
    %344 = vst.msk [vmem:[%s3 + $0x58] sm:$0xff] %vm261, %v324
    %345 = vst.msk [vmem:[%s3 + $0x60] sm:$0xff] %vm261, %v325
    %346 = vst.msk [vmem:[%s3 + $0x68] sm:$0xff] %vm261, %v326
    %347 = vst.msk [vmem:[%s3 + $0x70] sm:$0xff] %vm261, %v327
    %348 = vst.msk [vmem:[%s3 + $0x78] sm:$0xff] %vm261, %v328
    %349 = vst.msk [vmem:[%s3 + $0x80] sm:$0xff] %vm261, %v329
    %350 = vst.msk [vmem:[%s3 + $0x88] sm:$0xff] %vm261, %v330
    %351 = vst.msk [vmem:[%s3 + $0x90] sm:$0xff] %vm261, %v331
    %352 = vst.msk [vmem:[%s3 + $0x98] sm:$0x3f] %vm281, %v332
  $region21: #{_lambda_.22} parent=0 // pred_fallthru
    _
  // Predicated region
  $region22: #{_lambda_.22} parent=0 // pred_check
    _
  $region23: #{_lambda_.22} parent=0 // pred_check_branch
    %354 = sbr.rel (0) target = $region25
  $region24: #{_lambda_.22} parent=0 // pred_region
    _
  $region25: #{_lambda_.22} parent=0 // pred_fallthru
    _
  // Predicated region
  $region26: #{_lambda_.22} parent=0 // pred_check
    _
  $region27: #{_lambda_.22} parent=0 // pred_check_branch
    %356 = sbr.rel (0) target = $region29
  $region28: #{_lambda_.22} parent=0 // pred_region
    _
  $region29: #{_lambda_.22} parent=0 // pred_fallthru
    _

// kernel: _lambda_.21
$region0: #{_lambda_.21}
  #allocation0 [shape = 'u32[]', space=smem, size = 0x4, offset = 0x4, fixed_abs, tag = 'smem constant byte address 0x4 - core index']
  #allocation1 [shape = 'u32[144,128]{1,0:T(1,128)}', space=vmem, size = 0x12000, scoped, tag = 'internal scratch']
  %s0 = inlined_call_operand.vmem [shape: f32[2,83,32], index: 0, kind: input, shape index: {}]
  %s1 = inlined_call_operand.vmem [shape: f32[4,32,32], index: 1, kind: input, shape index: {}]
  %s2 = inlined_call_operand.vmem [shape: f32[1,32], index: 2, kind: input, shape index: {}]
  %s3 = inlined_call_operand.vmem [shape: f32[1,32], index: 3, kind: input, shape index: {}]
  %s4 = inlined_call_operand.vmem [shape: f32[1,32], index: 4, kind: input, shape index: {}]
  %s5 = inlined_call_operand.vmem [shape: f32[2,79,32], index: 5, kind: output, shape index: {}]
  %s6 = sld [smem:[#allocation0]]
  $region53: #{_lambda_.21} parent=0
    _
  %s8 = ssub.s32 1, %s6
  %s9 = scalar_select 0, %s8, %s6
  loop: start=0, step=1, limit=4
  $region2: #{_lambda_.21} parent=0 // loop_pre_header
    _
  $region3: #{_lambda_.21} parent=0 // loop_header
    %s11 = sphi 0, %s15
    %p12 = scmp.ge.s32.totalorder %s11, 4
    %s21 = sphi 0, %s23
    %s24 = sphi 0, %s21
    %s25 = sphi 0, %s24
    %s41 = sphi 0, %s25
    %s45 = sphi 0, %s45
    %s47 = sphi 0, %s45
    %s48 = sphi 0, %s47
    %s62 = sphi 0, %s48
    %s66 = sphi 0, %s66
    %s68 = sphi 0, %s66
    %s69 = sphi 0, %s68
    %s83 = sphi 0, %s69
    %s87 = sphi 0, %s87
    %s89 = sphi 0, %s87
    %s90 = sphi 0, %s89
    %s104 = sphi 0, %s90
    %s108 = sphi 0, %s108
    %s110 = sphi 0, %s108
    %s111 = sphi 0, %s110
    %s125 = sphi 0, %s111
    %s131 = sphi 0, %s133
    %s134 = sphi 0, %s131
    %s135 = sphi 0, %s134
    %s151 = sphi 0, %s135
  $region4: #{_lambda_.21} parent=0 // loop_header_branch
    %14 = sbr.rel (%p12) target = $region8
  $region5: #{_lambda_.21} parent=0 // loop_body
    %s16 = ssub.s32 %s11, 1
    %s17 = ssub.s32 %s11, 2
    %s18 = sadd.s32 %s11, 1
    %s19 = ssub.s32 %s11, %s18
    %p20 = scmp.eq.s32.totalorder %s19, 0
    %s22 = sadd.s32 %s21, 1
    %s23 = scalar_select %p20, %s21, %s22
    %p26 = pneg %p20
    %p27 = scmp.eq.s32.totalorder %s11, 1
    %p28 = por %p26, %p27
    %p29 = scmp.ne.s32.totalorder %s21, %s24
    %p30 = scmp.eq.s32.totalorder %s11, 0
    %p31 = por %p29, %p30
    %p32 = scmp.ne.s32.totalorder %s21, %s24
    %p33 = scmp.eq.s32.totalorder %s16, 1
    %p34 = por %p32, %p33
    %p35 = scmp.ne.s32.totalorder %s24, %s25
    %p36 = scmp.eq.s32.totalorder %s16, 0
    %p37 = por %p35, %p36
    %p38 = scmp.ne.s32.totalorder %s24, %s25
    %p39 = scmp.eq.s32.totalorder %s17, 1
    %p40 = por %p38, %p39
    %p42 = scmp.ne.s32.totalorder %s25, %s41
    %p43 = scmp.eq.s32.totalorder %s17, 0
    %p44 = por %p42, %p43
    %s46 = sadd.s32 %s45, 1
    %p49 = scmp.eq.s32.totalorder %s11, 1
    %p50 = scmp.ne.s32.totalorder %s45, %s47
    %p51 = scmp.eq.s32.totalorder %s11, 0
    %p52 = por %p50, %p51
    %p53 = scmp.ne.s32.totalorder %s45, %s47
    %p54 = scmp.eq.s32.totalorder %s16, 1
    %p55 = por %p53, %p54
    %p56 = scmp.ne.s32.totalorder %s47, %s48
    %p57 = scmp.eq.s32.totalorder %s16, 0
    %p58 = por %p56, %p57
    %p59 = scmp.ne.s32.totalorder %s47, %s48
    %p60 = scmp.eq.s32.totalorder %s17, 1
    %p61 = por %p59, %p60
    %p63 = scmp.ne.s32.totalorder %s48, %s62
    %p64 = scmp.eq.s32.totalorder %s17, 0
    %p65 = por %p63, %p64
    %s67 = sadd.s32 %s66, 1
    %p70 = scmp.eq.s32.totalorder %s11, 1
    %p71 = scmp.ne.s32.totalorder %s66, %s68
    %p72 = scmp.eq.s32.totalorder %s11, 0
    %p73 = por %p71, %p72
    %p74 = scmp.ne.s32.totalorder %s66, %s68
    %p75 = scmp.eq.s32.totalorder %s16, 1
    %p76 = por %p74, %p75
    %p77 = scmp.ne.s32.totalorder %s68, %s69
    %p78 = scmp.eq.s32.totalorder %s16, 0
    %p79 = por %p77, %p78
    %p80 = scmp.ne.s32.totalorder %s68, %s69
    %p81 = scmp.eq.s32.totalorder %s17, 1
    %p82 = por %p80, %p81
    %p84 = scmp.ne.s32.totalorder %s69, %s83
    %p85 = scmp.eq.s32.totalorder %s17, 0
    %p86 = por %p84, %p85
    %s88 = sadd.s32 %s87, 1
    %p91 = scmp.eq.s32.totalorder %s11, 1
    %p92 = scmp.ne.s32.totalorder %s87, %s89
    %p93 = scmp.eq.s32.totalorder %s11, 0
    %p94 = por %p92, %p93
    %p95 = scmp.ne.s32.totalorder %s87, %s89
    %p96 = scmp.eq.s32.totalorder %s16, 1
    %p97 = por %p95, %p96
    %p98 = scmp.ne.s32.totalorder %s89, %s90
    %p99 = scmp.eq.s32.totalorder %s16, 0
    %p100 = por %p98, %p99
    %p101 = scmp.ne.s32.totalorder %s89, %s90
    %p102 = scmp.eq.s32.totalorder %s17, 1
    %p103 = por %p101, %p102
    %p105 = scmp.ne.s32.totalorder %s90, %s104
    %p106 = scmp.eq.s32.totalorder %s17, 0
    %p107 = por %p105, %p106
    %s109 = sadd.s32 %s108, 1
    %p112 = scmp.eq.s32.totalorder %s11, 1
    %p113 = scmp.ne.s32.totalorder %s108, %s110
    %p114 = scmp.eq.s32.totalorder %s11, 0
    %p115 = por %p113, %p114
    %p116 = scmp.ne.s32.totalorder %s108, %s110
    %p117 = scmp.eq.s32.totalorder %s16, 1
    %p118 = por %p116, %p117
    %p119 = scmp.ne.s32.totalorder %s110, %s111
    %p120 = scmp.eq.s32.totalorder %s16, 0
    %p121 = por %p119, %p120
    %p122 = scmp.ne.s32.totalorder %s110, %s111
    %p123 = scmp.eq.s32.totalorder %s17, 1
    %p124 = por %p122, %p123
    %p126 = scmp.ne.s32.totalorder %s111, %s125
    %p127 = scmp.eq.s32.totalorder %s17, 0
    %p128 = por %p126, %p127
    %s129 = ssub.s32 %s11, %s18
    %p130 = scmp.eq.s32.totalorder %s129, 0
    %s132 = sadd.s32 %s131, 1
    %s133 = scalar_select %p130, %s131, %s132
    %p136 = pneg %p130
    %p137 = scmp.eq.s32.totalorder %s11, 1
    %p138 = por %p136, %p137
    %p139 = scmp.ne.s32.totalorder %s131, %s134
    %p140 = scmp.eq.s32.totalorder %s11, 0
    %p141 = por %p139, %p140
    %p142 = scmp.ne.s32.totalorder %s131, %s134
    %p143 = scmp.eq.s32.totalorder %s16, 1
    %p144 = por %p142, %p143
    %p145 = scmp.ne.s32.totalorder %s134, %s135
    %p146 = scmp.eq.s32.totalorder %s16, 0
    %p147 = por %p145, %p146
    %p148 = scmp.ne.s32.totalorder %s134, %s135
    %p149 = scmp.eq.s32.totalorder %s17, 1
    %p150 = por %p148, %p149
    %p152 = scmp.ne.s32.totalorder %s135, %s151
    %p153 = scmp.eq.s32.totalorder %s17, 0
    %p154 = por %p152, %p153
    %p155 = scmp.le.s32.totalorder 1, %s11
    %p156 = scmp.lt.s32.totalorder %s11, 3
    %p157 = pnand %p155, %p156
    %p158 = pneg %p157
    // Predicated region
    $region9: #{_lambda_.21} parent=5 // pred_check
      _
    $region10: #{_lambda_.21} parent=5 // pred_check_branch
      %160 = sbr.rel (%p157) target = $region12
    $region11: #{_lambda_.21} parent=5 // pred_region
      %s161 = ssub.s32 %s11, 1
      // Predicated region
      $region13: #{_lambda_.21} parent=11 // pred_check
        %p162 = pneg %p58
      $region14: #{_lambda_.21} parent=11 // pred_check_branch
        %164 = sbr.rel (%p162) target = $region16
      $region15: #{_lambda_.21} parent=11 // pred_region
        _
      $region16: #{_lambda_.21} parent=11 // pred_fallthru
        _
      // Predicated region
      $region17: #{_lambda_.21} parent=11 // pred_check
        %p165 = pneg %p79
      $region18: #{_lambda_.21} parent=11 // pred_check_branch
        %167 = sbr.rel (%p165) target = $region20
      $region19: #{_lambda_.21} parent=11 // pred_region
        _
      $region20: #{_lambda_.21} parent=11 // pred_fallthru
        _
      // Predicated region
      $region21: #{_lambda_.21} parent=11 // pred_check
        %p168 = pneg %p100
      $region22: #{_lambda_.21} parent=11 // pred_check_branch
        %170 = sbr.rel (%p168) target = $region24
      $region23: #{_lambda_.21} parent=11 // pred_region
        _
      $region24: #{_lambda_.21} parent=11 // pred_fallthru
        _
      // Predicated region
      $region25: #{_lambda_.21} parent=11 // pred_check
        %p171 = pneg %p121
      $region26: #{_lambda_.21} parent=11 // pred_check_branch
        %173 = sbr.rel (%p171) target = $region28
      $region27: #{_lambda_.21} parent=11 // pred_region
        _
      $region28: #{_lambda_.21} parent=11 // pred_fallthru
        _
    $region12: #{_lambda_.21} parent=5 // pred_fallthru
      _
    %p174 = scmp.lt.s32.totalorder %s11, 2
    // Predicated region
    $region29: #{_lambda_.21} parent=5 // pred_check
      %p175 = pneg %p174
    $region30: #{_lambda_.21} parent=5 // pred_check_branch
      %177 = sbr.rel (%p175) target = $region32
    $region31: #{_lambda_.21} parent=5 // pred_region
      // Predicated region
      $region33: #{_lambda_.21} parent=31 // pred_check
        %p178 = pneg %p31
      $region34: #{_lambda_.21} parent=31 // pred_check_branch
        %180 = sbr.rel (%p178) target = $region36
      $region35: #{_lambda_.21} parent=31 // pred_region
        %p181 = scmp.lt.s32.totalorder %s11, 1
        %s182 = scalar_select %p181, %s11, 1
        %s183 = smul.addr %s182, 11
        %s184 = smul.addr %s183, 8
        %s185 = scalar_lea.vmem %s0, %s184
      $region36: #{_lambda_.21} parent=31 // pred_fallthru
        _
    $region32: #{_lambda_.21} parent=5 // pred_fallthru
      _
    %p186 = scmp.le.s32.totalorder 1, %s11
    %p187 = scmp.lt.s32.totalorder %s11, 3
    %p188 = pnand %p186, %p187
    %p189 = pneg %p188
    // Predicated region
    $region37: #{_lambda_.21} parent=5 // pred_check
      _
    $region38: #{_lambda_.21} parent=5 // pred_check_branch
      %191 = sbr.rel (%p188) target = $region40
    $region39: #{_lambda_.21} parent=5 // pred_region
      %s192 = ssub.s32 %s11, 1
      %p193 = scmp.lt.s32.totalorder %s16, 1
      %s194 = scalar_select %p193, %s16, 1
      %s195 = smul.addr %s194, 11
      %s196 = smul.addr %s195, 8
      %s197 = scalar_lea.vmem %s0, %s196
      %p198 = pneg %p37
      %p199 = pneg %p34
      %p200 = pneg %p58
      %p201 = pneg %p55
      %p202 = pneg %p79
      %p203 = pneg %p76
      %p204 = pneg %p100
      %p205 = pneg %p97
      %p206 = pneg %p121
      %p207 = pneg %p118
      %p208 = pneg %p147
      %p209 = pneg %p144
      %p210 = scmp.lt.s32.totalorder %s16, 1
      %s211 = scalar_select %p210, %s16, 1
      %s212 = smul.addr %s211, 10
      %s213 = smul.addr %s212, 8
      %s214 = scalar_lea.vmem %s5, %s213
      %p215 = scmp.lt.s32.totalorder %s16, 1
      %s216 = scalar_select %p215, %s16, 1
      %s217 = smul.addr %s216, 11
      %s218 = smul.addr %s217, 8
      %s219 = scalar_lea.vmem %s0, %s218
      %p220 = scmp.lt.s32.totalorder %s16, 1
      %s221 = scalar_select %p220, %s16, 1
      %s222 = smul.addr %s221, 10
      %s223 = smul.addr %s222, 8
      %s224 = scalar_lea.vmem %s5, %s223
      %v226 = vld [vmem:[%s219] sm:$0xff]
      %v227 = vld [vmem:[%s219 + $0x8] sm:$0xff]
      %v228 = vld [vmem:[%s219 + $0x10] sm:$0xff]
      %v229 = vld [vmem:[%s219 + $0x18] sm:$0xff]
      %v230 = vld [vmem:[%s219 + $0x20] sm:$0xff]
      %v231 = vld [vmem:[%s219 + $0x28] sm:$0xff]
      %v232 = vld [vmem:[%s219 + $0x30] sm:$0xff]
      %v233 = vld [vmem:[%s219 + $0x38] sm:$0xff]
      %v234 = vld [vmem:[%s219 + $0x40] sm:$0xff]
      %v235 = vld [vmem:[%s219 + $0x48] sm:$0x7f]
      %v236 = vpack.c.bf16 %v227, %v226
      %v237 = vpack.c.bf16 %v229, %v228
      %v238 = vpack.c.bf16 %v231, %v230
      %v239 = vpack.c.bf16 %v233, %v232
      %v240 = vpack.c.bf16 %v235, %v234
      %v241 = vld [vmem:[%s1] sm:$0xff]
      %v242 = vld [vmem:[%s1 + $0x8] sm:$0xff]
      %v243 = vld [vmem:[%s1 + $0x10] sm:$0xff]
      %v244 = vld [vmem:[%s1 + $0x18] sm:$0xff]
      %v245 = vpack.c.bf16 %v242, %v241
      %v246 = vpack.c.bf16 %v244, %v243
      %v247 = vld [vmem:[%s219 + $0x1] sm:$0xff]
      %v248 = vld [vmem:[%s219 + $0x9] sm:$0xff]
      %v249 = vld [vmem:[%s219 + $0x11] sm:$0xff]
      %v250 = vld [vmem:[%s219 + $0x19] sm:$0xff]
      %v251 = vld [vmem:[%s219 + $0x21] sm:$0xff]
      %v252 = vld [vmem:[%s219 + $0x29] sm:$0xff]
      %v253 = vld [vmem:[%s219 + $0x31] sm:$0xff]
      %v254 = vld [vmem:[%s219 + $0x39] sm:$0xff]
      %v255 = vld [vmem:[%s219 + $0x41] sm:$0xff]
      %v256 = vld [vmem:[%s219 + $0x49] sm:$0x7f]
      %v257 = vpack.c.bf16 %v248, %v247
      %v258 = vpack.c.bf16 %v250, %v249
      %v259 = vpack.c.bf16 %v252, %v251
      %v260 = vpack.c.bf16 %v254, %v253
      %v261 = vpack.c.bf16 %v256, %v255
      %s262 = scalar_lea.vmem %s1, 32
      %v263 = vld [vmem:[%s262] sm:$0xff]
      %v264 = vld [vmem:[%s262 + $0x8] sm:$0xff]
      %v265 = vld [vmem:[%s262 + $0x10] sm:$0xff]
      %v266 = vld [vmem:[%s262 + $0x18] sm:$0xff]
      %v267 = vpack.c.bf16 %v264, %v263
      %v268 = vpack.c.bf16 %v266, %v265
      %vm269 = vcmask 261120
      %v271 = vsel %vm269, %v257, 0
      %v274 = vsel %vm269, %v258, 0
      %v277 = vsel %vm269, %v259, 0
      %v280 = vsel %vm269, %v260, 0
      %v283 = vsel %vm269, %v261, 0
      %285 = vmatprep.subr.bf16.mxu0 0
      %286 = vmatpush1.bf16.msra.mxu0 0
      %287 = vmatprep.subr.bf16.mxu0 0
      %288 = vmatpush1.bf16.msra.mxu0 0
      %289 = vmatprep.subr.bf16.mxu0 0
      %290 = vmatpush1.bf16.msra.mxu0 0
      %291 = vmatprep.subr.bf16.mxu0 0
      %292 = vmatpush1.bf16.msra.mxu0 0
      %293 = vmatprep.subr.bf16.mxu0 0
      %294 = vmatpush1.bf16.msra.mxu0 0
      %295 = vmatprep.subr.bf16.mxu0 0
      %296 = vmatpush1.bf16.msra.mxu0 0
      %297 = vmatprep.subr.bf16.mxu0 0
      %298 = vmatpush1.bf16.msra.mxu0 %v268
      %299 = vmatprep.subr.bf16.mxu0 0
      %300 = vmatpush1.bf16.msra.mxu0 %v267
      %301 = vmatprep.subr.bf16.mxu0 0
      %302 = vmatpush2.bf16.msra.mxu0 0
      %303 = vmatprep.subr.bf16.mxu0 0
      %304 = vmatpush2.bf16.msra.mxu0 0
      %305 = vmatprep.subr.bf16.mxu0 0
      %306 = vmatpush2.bf16.msra.mxu0 0
      %307 = vmatprep.subr.bf16.mxu0 0
      %308 = vmatpush2.bf16.msra.mxu0 0
      %309 = vmatprep.subr.bf16.mxu0 0
      %310 = vmatpush2.bf16.msra.mxu0 0
      %311 = vmatprep.subr.bf16.mxu0 0
      %312 = vmatpush2.bf16.msra.mxu0 0
      %313 = vmatprep.subr.bf16.mxu0 0
      %314 = vmatpush2.bf16.msra.mxu0 0
      %315 = vmatprep.subr.bf16.mxu0 0
      %316 = vmatpush2.bf16.msra.mxu0 0
      %317 = vmatprep.mubr.bf16.mxu0 0
      %318 = vmatmul.mubr.bf16.gmra.mxu0 %v271
      %v319 = vpop.f32.mrf.mxu0
      %v320 = vadd.f32 0.0, %v319
      %v321 = vpop.f32.mrf.mxu0
      %v322 = vpop.f32.mrf.mxu0
      %v323 = vadd.f32 0.0, %v322
      %v324 = vpop.f32.mrf.mxu0
      %325 = vmatprep.mubr.bf16.mxu0 0
      %326 = vmatmul.mubr.bf16.gmra.mxu0 %v274
      %v327 = vpop.f32.mrf.mxu0
      %v328 = vadd.f32 0.0, %v327
      %v329 = vpop.f32.mrf.mxu0
      %v330 = vpop.f32.mrf.mxu0
      %v331 = vadd.f32 0.0, %v330
      %v332 = vpop.f32.mrf.mxu0
      %333 = vmatprep.mubr.bf16.mxu0 0
      %334 = vmatmul.mubr.bf16.gmra.mxu0 %v277
      %v335 = vpop.f32.mrf.mxu0
      %v336 = vadd.f32 0.0, %v335
      %v337 = vpop.f32.mrf.mxu0
      %v338 = vpop.f32.mrf.mxu0
      %v339 = vadd.f32 0.0, %v338
      %v340 = vpop.f32.mrf.mxu0
      %341 = vmatprep.mubr.bf16.mxu0 0
      %342 = vmatmul.mubr.bf16.gmra.mxu0 %v280
      %v343 = vpop.f32.mrf.mxu0
      %v344 = vadd.f32 0.0, %v343
      %v345 = vpop.f32.mrf.mxu0
      %v346 = vpop.f32.mrf.mxu0
      %v347 = vadd.f32 0.0, %v346
      %v348 = vpop.f32.mrf.mxu0
      %349 = vmatprep.mubr.bf16.mxu0 0
      %350 = vmatmul.mubr.bf16.gmra.mxu0 %v283
      %v351 = vpop.f32.mrf.mxu0
      %v352 = vadd.f32 0.0, %v351
      %v353 = vpop.f32.mrf.mxu0
      %v354 = vpop.f32.mrf.mxu0
      %v355 = vadd.f32 0.0, %v354
      %v356 = vpop.f32.mrf.mxu0
      %357 = vdwg.mxu0
      %v359 = vsel %vm269, %v236, 0
      %v362 = vsel %vm269, %v237, 0
      %v365 = vsel %vm269, %v238, 0
      %v368 = vsel %vm269, %v239, 0
      %v371 = vsel %vm269, %v240, 0
      %373 = vmatprep.subr.bf16.mxu0 0
      %374 = vmatpush1.bf16.msra.mxu0 0
      %375 = vmatprep.subr.bf16.mxu0 0
      %376 = vmatpush1.bf16.msra.mxu0 0
      %377 = vmatprep.subr.bf16.mxu0 0
      %378 = vmatpush1.bf16.msra.mxu0 0
      %379 = vmatprep.subr.bf16.mxu0 0
      %380 = vmatpush1.bf16.msra.mxu0 0
      %381 = vmatprep.subr.bf16.mxu0 0
      %382 = vmatpush1.bf16.msra.mxu0 0
      %383 = vmatprep.subr.bf16.mxu0 0
      %384 = vmatpush1.bf16.msra.mxu0 0
      %385 = vmatprep.subr.bf16.mxu0 0
      %386 = vmatpush1.bf16.msra.mxu0 %v246
      %387 = vmatprep.subr.bf16.mxu0 0
      %388 = vmatpush1.bf16.msra.mxu0 %v245
      %389 = vmatprep.subr.bf16.mxu0 0
      %390 = vmatpush2.bf16.msra.mxu0 0
      %391 = vmatprep.subr.bf16.mxu0 0
      %392 = vmatpush2.bf16.msra.mxu0 0
      %393 = vmatprep.subr.bf16.mxu0 0
      %394 = vmatpush2.bf16.msra.mxu0 0
      %395 = vmatprep.subr.bf16.mxu0 0
      %396 = vmatpush2.bf16.msra.mxu0 0
      %397 = vmatprep.subr.bf16.mxu0 0
      %398 = vmatpush2.bf16.msra.mxu0 0
      %399 = vmatprep.subr.bf16.mxu0 0
      %400 = vmatpush2.bf16.msra.mxu0 0
      %401 = vmatprep.subr.bf16.mxu0 0
      %402 = vmatpush2.bf16.msra.mxu0 0
      %403 = vmatprep.subr.bf16.mxu0 0
      %404 = vmatpush2.bf16.msra.mxu0 0
      %405 = vmatprep.mubr.bf16.mxu0 0
      %406 = vmatmul.mubr.bf16.gmra.mxu0 %v359
      %v407 = vpop.f32.mrf.mxu0
      %v408 = vadd.f32 %v320, %v407
      %v409 = vpop.f32.mrf.mxu0
      %v410 = vpop.f32.mrf.mxu0
      %v411 = vadd.f32 %v323, %v410
      %v412 = vpop.f32.mrf.mxu0
      %413 = vmatprep.mubr.bf16.mxu0 0
      %414 = vmatmul.mubr.bf16.gmra.mxu0 %v362
      %v415 = vpop.f32.mrf.mxu0
      %v416 = vadd.f32 %v328, %v415
      %v417 = vpop.f32.mrf.mxu0
      %v418 = vpop.f32.mrf.mxu0
      %v419 = vadd.f32 %v331, %v418
      %v420 = vpop.f32.mrf.mxu0
      %421 = vmatprep.mubr.bf16.mxu0 0
      %422 = vmatmul.mubr.bf16.gmra.mxu0 %v365
      %v423 = vpop.f32.mrf.mxu0
      %v424 = vadd.f32 %v336, %v423
      %v425 = vpop.f32.mrf.mxu0
      %v426 = vpop.f32.mrf.mxu0
      %v427 = vadd.f32 %v339, %v426
      %v428 = vpop.f32.mrf.mxu0
      %429 = vmatprep.mubr.bf16.mxu0 0
      %430 = vmatmul.mubr.bf16.gmra.mxu0 %v368
      %v431 = vpop.f32.mrf.mxu0
      %v432 = vadd.f32 %v344, %v431
      %v433 = vpop.f32.mrf.mxu0
      %v434 = vpop.f32.mrf.mxu0
      %v435 = vadd.f32 %v347, %v434
      %v436 = vpop.f32.mrf.mxu0
      %437 = vmatprep.mubr.bf16.mxu0 0
      %438 = vmatmul.mubr.bf16.gmra.mxu0 %v371
      %v439 = vpop.f32.mrf.mxu0
      %v440 = vadd.f32 %v352, %v439
      %v441 = vpop.f32.mrf.mxu0
      %v442 = vpop.f32.mrf.mxu0
      %v443 = vadd.f32 %v355, %v442
      %v444 = vpop.f32.mrf.mxu0
      %445 = vdwg.mxu0
      %v446 = vld [vmem:[%s219 + $0x2] sm:$0xff]
      %v447 = vld [vmem:[%s219 + $0xa] sm:$0xff]
      %v448 = vld [vmem:[%s219 + $0x12] sm:$0xff]
      %v449 = vld [vmem:[%s219 + $0x1a] sm:$0xff]
      %v450 = vld [vmem:[%s219 + $0x22] sm:$0xff]
      %v451 = vld [vmem:[%s219 + $0x2a] sm:$0xff]
      %v452 = vld [vmem:[%s219 + $0x32] sm:$0xff]
      %v453 = vld [vmem:[%s219 + $0x3a] sm:$0xff]
      %v454 = vld [vmem:[%s219 + $0x42] sm:$0xff]
      %v455 = vld [vmem:[%s219 + $0x4a] sm:$0x7f]
      %v456 = vpack.c.bf16 %v447, %v446
      %v457 = vpack.c.bf16 %v449, %v448
      %v458 = vpack.c.bf16 %v451, %v450
      %v459 = vpack.c.bf16 %v453, %v452
      %v460 = vpack.c.bf16 %v455, %v454
      %s461 = scalar_lea.vmem %s1, 64
      %v462 = vld [vmem:[%s461] sm:$0xff]
      %v463 = vld [vmem:[%s461 + $0x8] sm:$0xff]
      %v464 = vld [vmem:[%s461 + $0x10] sm:$0xff]
      %v465 = vld [vmem:[%s461 + $0x18] sm:$0xff]
      %v466 = vpack.c.bf16 %v463, %v462
      %v467 = vpack.c.bf16 %v465, %v464
      %v469 = vsel %vm269, %v456, 0
      %v472 = vsel %vm269, %v457, 0
      %v475 = vsel %vm269, %v458, 0
      %v478 = vsel %vm269, %v459, 0
      %v481 = vsel %vm269, %v460, 0
      %483 = vmatprep.subr.bf16.mxu0 0
      %484 = vmatpush1.bf16.msra.mxu0 0
      %485 = vmatprep.subr.bf16.mxu0 0
      %486 = vmatpush1.bf16.msra.mxu0 0
      %487 = vmatprep.subr.bf16.mxu0 0
      %488 = vmatpush1.bf16.msra.mxu0 0
      %489 = vmatprep.subr.bf16.mxu0 0
      %490 = vmatpush1.bf16.msra.mxu0 0
      %491 = vmatprep.subr.bf16.mxu0 0
      %492 = vmatpush1.bf16.msra.mxu0 0
      %493 = vmatprep.subr.bf16.mxu0 0
      %494 = vmatpush1.bf16.msra.mxu0 0
      %495 = vmatprep.subr.bf16.mxu0 0
      %496 = vmatpush1.bf16.msra.mxu0 %v467
      %497 = vmatprep.subr.bf16.mxu0 0
      %498 = vmatpush1.bf16.msra.mxu0 %v466
      %499 = vmatprep.subr.bf16.mxu0 0
      %500 = vmatpush2.bf16.msra.mxu0 0
      %501 = vmatprep.subr.bf16.mxu0 0
      %502 = vmatpush2.bf16.msra.mxu0 0
      %503 = vmatprep.subr.bf16.mxu0 0
      %504 = vmatpush2.bf16.msra.mxu0 0
      %505 = vmatprep.subr.bf16.mxu0 0
      %506 = vmatpush2.bf16.msra.mxu0 0
      %507 = vmatprep.subr.bf16.mxu0 0
      %508 = vmatpush2.bf16.msra.mxu0 0
      %509 = vmatprep.subr.bf16.mxu0 0
      %510 = vmatpush2.bf16.msra.mxu0 0
      %511 = vmatprep.subr.bf16.mxu0 0
      %512 = vmatpush2.bf16.msra.mxu0 0
      %513 = vmatprep.subr.bf16.mxu0 0
      %514 = vmatpush2.bf16.msra.mxu0 0
      %515 = vmatprep.mubr.bf16.mxu0 0
      %516 = vmatmul.mubr.bf16.gmra.mxu0 %v469
      %v517 = vpop.f32.mrf.mxu0
      %v518 = vadd.f32 0.0, %v517
      %v519 = vpop.f32.mrf.mxu0
      %v520 = vpop.f32.mrf.mxu0
      %v521 = vadd.f32 0.0, %v520
      %v522 = vpop.f32.mrf.mxu0
      %523 = vmatprep.mubr.bf16.mxu0 0
      %524 = vmatmul.mubr.bf16.gmra.mxu0 %v472
      %v525 = vpop.f32.mrf.mxu0
      %v526 = vadd.f32 0.0, %v525
      %v527 = vpop.f32.mrf.mxu0
      %v528 = vpop.f32.mrf.mxu0
      %v529 = vadd.f32 0.0, %v528
      %v530 = vpop.f32.mrf.mxu0
      %531 = vmatprep.mubr.bf16.mxu0 0
      %532 = vmatmul.mubr.bf16.gmra.mxu0 %v475
      %v533 = vpop.f32.mrf.mxu0
      %v534 = vadd.f32 0.0, %v533
      %v535 = vpop.f32.mrf.mxu0
      %v536 = vpop.f32.mrf.mxu0
      %v537 = vadd.f32 0.0, %v536
      %v538 = vpop.f32.mrf.mxu0
      %539 = vmatprep.mubr.bf16.mxu0 0
      %540 = vmatmul.mubr.bf16.gmra.mxu0 %v478
      %v541 = vpop.f32.mrf.mxu0
      %v542 = vadd.f32 0.0, %v541
      %v543 = vpop.f32.mrf.mxu0
      %v544 = vpop.f32.mrf.mxu0
      %v545 = vadd.f32 0.0, %v544
      %v546 = vpop.f32.mrf.mxu0
      %547 = vmatprep.mubr.bf16.mxu0 0
      %548 = vmatmul.mubr.bf16.gmra.mxu0 %v481
      %v549 = vpop.f32.mrf.mxu0
      %v550 = vadd.f32 0.0, %v549
      %v551 = vpop.f32.mrf.mxu0
      %v552 = vpop.f32.mrf.mxu0
      %v553 = vadd.f32 0.0, %v552
      %v554 = vpop.f32.mrf.mxu0
      %555 = vdwg.mxu0
      %v556 = vadd.f32 %v408, %v518
      %v557 = vadd.f32 %v411, %v521
      %v558 = vadd.f32 %v416, %v526
      %v559 = vadd.f32 %v419, %v529
      %v560 = vadd.f32 %v424, %v534
      %v561 = vadd.f32 %v427, %v537
      %v562 = vadd.f32 %v432, %v542
      %v563 = vadd.f32 %v435, %v545
      %v564 = vadd.f32 %v440, %v550
      %v565 = vadd.f32 %v443, %v553
      %v566 = vld [vmem:[%s219 + $0x3] sm:$0xff]
      %v567 = vld [vmem:[%s219 + $0xb] sm:$0xff]
      %v568 = vld [vmem:[%s219 + $0x13] sm:$0xff]
      %v569 = vld [vmem:[%s219 + $0x1b] sm:$0xff]
      %v570 = vld [vmem:[%s219 + $0x23] sm:$0xff]
      %v571 = vld [vmem:[%s219 + $0x2b] sm:$0xff]
      %v572 = vld [vmem:[%s219 + $0x33] sm:$0xff]
      %v573 = vld [vmem:[%s219 + $0x3b] sm:$0xff]
      %v574 = vld [vmem:[%s219 + $0x43] sm:$0xff]
      %v575 = vld [vmem:[%s219 + $0x4b] sm:$0x7f]
      %v576 = vpack.c.bf16 %v567, %v566
      %v577 = vpack.c.bf16 %v569, %v568
      %v578 = vpack.c.bf16 %v571, %v570
      %v579 = vpack.c.bf16 %v573, %v572
      %v580 = vpack.c.bf16 %v575, %v574
      %s581 = scalar_lea.vmem %s1, 96
      %v582 = vld [vmem:[%s581] sm:$0xff]
      %v583 = vld [vmem:[%s581 + $0x8] sm:$0xff]
      %v584 = vld [vmem:[%s581 + $0x10] sm:$0xff]
      %v585 = vld [vmem:[%s581 + $0x18] sm:$0xff]
      %v586 = vpack.c.bf16 %v583, %v582
      %v587 = vpack.c.bf16 %v585, %v584
      %v589 = vsel %vm269, %v576, 0
      %v592 = vsel %vm269, %v577, 0
      %v595 = vsel %vm269, %v578, 0
      %v598 = vsel %vm269, %v579, 0
      %v601 = vsel %vm269, %v580, 0
      %603 = vmatprep.subr.bf16.mxu0 0
      %604 = vmatpush1.bf16.msra.mxu0 0
      %605 = vmatprep.subr.bf16.mxu0 0
      %606 = vmatpush1.bf16.msra.mxu0 0
      %607 = vmatprep.subr.bf16.mxu0 0
      %608 = vmatpush1.bf16.msra.mxu0 0
      %609 = vmatprep.subr.bf16.mxu0 0
      %610 = vmatpush1.bf16.msra.mxu0 0
      %611 = vmatprep.subr.bf16.mxu0 0
      %612 = vmatpush1.bf16.msra.mxu0 0
      %613 = vmatprep.subr.bf16.mxu0 0
      %614 = vmatpush1.bf16.msra.mxu0 0
      %615 = vmatprep.subr.bf16.mxu0 0
      %616 = vmatpush1.bf16.msra.mxu0 %v587
      %617 = vmatprep.subr.bf16.mxu0 0
      %618 = vmatpush1.bf16.msra.mxu0 %v586
      %619 = vmatprep.subr.bf16.mxu0 0
      %620 = vmatpush2.bf16.msra.mxu0 0
      %621 = vmatprep.subr.bf16.mxu0 0
      %622 = vmatpush2.bf16.msra.mxu0 0
      %623 = vmatprep.subr.bf16.mxu0 0
      %624 = vmatpush2.bf16.msra.mxu0 0
      %625 = vmatprep.subr.bf16.mxu0 0
      %626 = vmatpush2.bf16.msra.mxu0 0
      %627 = vmatprep.subr.bf16.mxu0 0
      %628 = vmatpush2.bf16.msra.mxu0 0
      %629 = vmatprep.subr.bf16.mxu0 0
      %630 = vmatpush2.bf16.msra.mxu0 0
      %631 = vmatprep.subr.bf16.mxu0 0
      %632 = vmatpush2.bf16.msra.mxu0 0
      %633 = vmatprep.subr.bf16.mxu0 0
      %634 = vmatpush2.bf16.msra.mxu0 0
      %635 = vmatprep.mubr.bf16.mxu0 0
      %636 = vmatmul.mubr.bf16.gmra.mxu0 %v589
      %v637 = vpop.f32.mrf.mxu0
      %v638 = vadd.f32 0.0, %v637
      %v639 = vpop.f32.mrf.mxu0
      %v640 = vpop.f32.mrf.mxu0
      %v641 = vadd.f32 0.0, %v640
      %v642 = vpop.f32.mrf.mxu0
      %643 = vmatprep.mubr.bf16.mxu0 0
      %644 = vmatmul.mubr.bf16.gmra.mxu0 %v592
      %v645 = vpop.f32.mrf.mxu0
      %v646 = vadd.f32 0.0, %v645
      %v647 = vpop.f32.mrf.mxu0
      %v648 = vpop.f32.mrf.mxu0
      %v649 = vadd.f32 0.0, %v648
      %v650 = vpop.f32.mrf.mxu0
      %651 = vmatprep.mubr.bf16.mxu0 0
      %652 = vmatmul.mubr.bf16.gmra.mxu0 %v595
      %v653 = vpop.f32.mrf.mxu0
      %v654 = vadd.f32 0.0, %v653
      %v655 = vpop.f32.mrf.mxu0
      %v656 = vpop.f32.mrf.mxu0
      %v657 = vadd.f32 0.0, %v656
      %v658 = vpop.f32.mrf.mxu0
      %659 = vmatprep.mubr.bf16.mxu0 0
      %660 = vmatmul.mubr.bf16.gmra.mxu0 %v598
      %v661 = vpop.f32.mrf.mxu0
      %v662 = vadd.f32 0.0, %v661
      %v663 = vpop.f32.mrf.mxu0
      %v664 = vpop.f32.mrf.mxu0
      %v665 = vadd.f32 0.0, %v664
      %v666 = vpop.f32.mrf.mxu0
      %667 = vmatprep.mubr.bf16.mxu0 0
      %668 = vmatmul.mubr.bf16.gmra.mxu0 %v601
      %v669 = vpop.f32.mrf.mxu0
      %v670 = vadd.f32 0.0, %v669
      %v671 = vpop.f32.mrf.mxu0
      %v672 = vpop.f32.mrf.mxu0
      %v673 = vadd.f32 0.0, %v672
      %v674 = vpop.f32.mrf.mxu0
      %675 = vdwg.mxu0
      %v676 = vadd.f32 %v556, %v638
      %v677 = vadd.f32 %v557, %v641
      %v678 = vadd.f32 %v558, %v646
      %v679 = vadd.f32 %v559, %v649
      %v680 = vadd.f32 %v560, %v654
      %v681 = vadd.f32 %v561, %v657
      %v682 = vadd.f32 %v562, %v662
      %v683 = vadd.f32 %v563, %v665
      %v684 = vadd.f32 %v564, %v670
      %v685 = vadd.f32 %v565, %v673
      %v686 = vld [vmem:[%s2] sm:$0x1]
      %v688 = vlaneseq
      %v689 = vshrl.u32 %v688, 7
      %v690 = vsub.s32 0, %v689
      %v691 = vrot.slane %v686, %v690
      %v693 = vadd.f32 %v676, %v691
      %v694 = vadd.f32 %v677, %v691
      %v695 = vadd.f32 %v678, %v691
      %v696 = vadd.f32 %v679, %v691
      %v697 = vadd.f32 %v680, %v691
      %v698 = vadd.f32 %v681, %v691
      %v699 = vadd.f32 %v682, %v691
      %v700 = vadd.f32 %v683, %v691
      %v701 = vadd.f32 %v684, %v691
      %v702 = vadd.f32 %v685, %v691
      %v703 = vmul.f32 %v693, 0.5
      %v704 = vmul.f32 %v694, 0.5
      %v705 = vmul.f32 %v695, 0.5
      %v706 = vmul.f32 %v696, 0.5
      %v707 = vmul.f32 %v697, 0.5
      %v708 = vmul.f32 %v698, 0.5
      %v709 = vmul.f32 %v699, 0.5
      %v710 = vmul.f32 %v700, 0.5
      %v711 = vmul.f32 %v701, 0.5
      %v712 = vmul.f32 %v702, 0.5
      %v713 = vmul.f32 %v693, 0.044715
      %v714 = vmul.f32 %v694, 0.044715
      %v715 = vmul.f32 %v695, 0.044715
      %v716 = vmul.f32 %v696, 0.044715
      %v717 = vmul.f32 %v697, 0.044715
      %v718 = vmul.f32 %v698, 0.044715
      %v719 = vmul.f32 %v699, 0.044715
      %v720 = vmul.f32 %v700, 0.044715
      %v721 = vmul.f32 %v701, 0.044715
      %v722 = vmul.f32 %v702, 0.044715
      %v723 = vmul.f32 %v713, %v693
      %v724 = vmul.f32 %v714, %v694
      %v725 = vmul.f32 %v715, %v695
      %v726 = vmul.f32 %v716, %v696
      %v727 = vmul.f32 %v717, %v697
      %v728 = vmul.f32 %v718, %v698
      %v729 = vmul.f32 %v719, %v699
      %v730 = vmul.f32 %v720, %v700
      %v731 = vmul.f32 %v721, %v701
      %v732 = vmul.f32 %v722, %v702
      %v733 = vmul.f32 %v723, %v693
      %v734 = vmul.f32 %v724, %v694
      %v735 = vmul.f32 %v725, %v695
      %v736 = vmul.f32 %v726, %v696
      %v737 = vmul.f32 %v727, %v697
      %v738 = vmul.f32 %v728, %v698
      %v739 = vmul.f32 %v729, %v699
      %v740 = vmul.f32 %v730, %v700
      %v741 = vmul.f32 %v731, %v701
      %v742 = vmul.f32 %v732, %v702
      %v743 = vadd.f32 %v693, %v733
      %v744 = vadd.f32 %v694, %v734
      %v745 = vadd.f32 %v695, %v735
      %v746 = vadd.f32 %v696, %v736
      %v747 = vadd.f32 %v697, %v737
      %v748 = vadd.f32 %v698, %v738
      %v749 = vadd.f32 %v699, %v739
      %v750 = vadd.f32 %v700, %v740
      %v751 = vadd.f32 %v701, %v741
      %v752 = vadd.f32 %v702, %v742
      %v753 = vmul.f32 %v743, 0.7978846
      %v754 = vmul.f32 %v744, 0.7978846
      %v755 = vmul.f32 %v745, 0.7978846
      %v756 = vmul.f32 %v746, 0.7978846
      %v757 = vmul.f32 %v747, 0.7978846
      %v758 = vmul.f32 %v748, 0.7978846
      %v759 = vmul.f32 %v749, 0.7978846
      %v760 = vmul.f32 %v750, 0.7978846
      %v761 = vmul.f32 %v751, 0.7978846
      %v762 = vmul.f32 %v752, 0.7978846
      %v763 = vtanh.pop %v753
      %v764 = vtanh.pop %v754
      %v765 = vtanh.pop %v755
      %v766 = vtanh.pop %v756
      %v767 = vtanh.pop %v757
      %v768 = vtanh.pop %v758
      %v769 = vtanh.pop %v759
      %v770 = vtanh.pop %v760
      %v771 = vtanh.pop %v761
      %v772 = vtanh.pop %v762
      %v773 = vadd.f32 %v763, 1.0
      %v774 = vadd.f32 %v764, 1.0
      %v775 = vadd.f32 %v765, 1.0
      %v776 = vadd.f32 %v766, 1.0
      %v777 = vadd.f32 %v767, 1.0
      %v778 = vadd.f32 %v768, 1.0
      %v779 = vadd.f32 %v769, 1.0
      %v780 = vadd.f32 %v770, 1.0
      %v781 = vadd.f32 %v771, 1.0
      %v782 = vadd.f32 %v772, 1.0
      %v783 = vmul.f32 %v703, %v773
      %v784 = vmul.f32 %v704, %v774
      %v785 = vmul.f32 %v705, %v775
      %v786 = vmul.f32 %v706, %v776
      %v787 = vmul.f32 %v707, %v777
      %v788 = vmul.f32 %v708, %v778
      %v789 = vmul.f32 %v709, %v779
      %v790 = vmul.f32 %v710, %v780
      %v791 = vmul.f32 %v711, %v781
      %v792 = vmul.f32 %v712, %v782
      %v793 = vadd.f32 %v446, %v783
      %v794 = vadd.f32 %v447, %v784
      %v795 = vadd.f32 %v448, %v785
      %v796 = vadd.f32 %v449, %v786
      %v797 = vadd.f32 %v450, %v787
      %v798 = vadd.f32 %v451, %v788
      %v799 = vadd.f32 %v452, %v789
      %v800 = vadd.f32 %v453, %v790
      %v801 = vadd.f32 %v454, %v791
      %v802 = vadd.f32 %v455, %v792
      %v803 = vsel %vm269, %v793, 0.0
      %804 = vadd.xlane.f32.xlu0 %v803
      %v805 = vpop.xlane.xlu0 %804
      %v806 = vsel %vm269, %v794, 0.0
      %807 = vadd.xlane.f32.xlu0 %v806
      %v808 = vpop.xlane.xlu0 %807
      %v809 = vsel %vm269, %v795, 0.0
      %810 = vadd.xlane.f32.xlu0 %v809
      %v811 = vpop.xlane.xlu0 %810
      %v812 = vsel %vm269, %v796, 0.0
      %813 = vadd.xlane.f32.xlu0 %v812
      %v814 = vpop.xlane.xlu0 %813
      %v815 = vsel %vm269, %v797, 0.0
      %816 = vadd.xlane.f32.xlu0 %v815
      %v817 = vpop.xlane.xlu0 %816
      %v818 = vsel %vm269, %v798, 0.0
      %819 = vadd.xlane.f32.xlu0 %v818
      %v820 = vpop.xlane.xlu0 %819
      %v821 = vsel %vm269, %v799, 0.0
      %822 = vadd.xlane.f32.xlu0 %v821
      %v823 = vpop.xlane.xlu0 %822
      %v824 = vsel %vm269, %v800, 0.0
      %825 = vadd.xlane.f32.xlu0 %v824
      %v826 = vpop.xlane.xlu0 %825
      %v827 = vsel %vm269, %v801, 0.0
      %828 = vadd.xlane.f32.xlu0 %v827
      %v829 = vpop.xlane.xlu0 %828
      %vm830 = vcmask 260096
      %v831 = vsel %vm830, %v802, 0.0
      %832 = vadd.xlane.f32.xlu0 %v831
      %v833 = vpop.xlane.xlu0 %832
      %v834 = vrcp.pop 32.0
      %v835 = vmul.f32 %v805, %v834
      %v836 = vmul.f32 %v808, %v834
      %v837 = vmul.f32 %v811, %v834
      %v838 = vmul.f32 %v814, %v834
      %v839 = vmul.f32 %v817, %v834
      %v840 = vmul.f32 %v820, %v834
      %v841 = vmul.f32 %v823, %v834
      %v842 = vmul.f32 %v826, %v834
      %v843 = vmul.f32 %v829, %v834
      %v844 = vmul.f32 %v833, %v834
      %v845 = vsub.f32 %v793, %v835
      %v846 = vsub.f32 %v794, %v836
      %v847 = vsub.f32 %v795, %v837
      %v848 = vsub.f32 %v796, %v838
      %v849 = vsub.f32 %v797, %v839
      %v850 = vsub.f32 %v798, %v840
      %v851 = vsub.f32 %v799, %v841
      %v852 = vsub.f32 %v800, %v842
      %v853 = vsub.f32 %v801, %v843
      %v854 = vsub.f32 %v802, %v844
      %v855 = vmul.f32 %v845, %v845
      %v856 = vmul.f32 %v846, %v846
      %v857 = vmul.f32 %v847, %v847
      %v858 = vmul.f32 %v848, %v848
      %v859 = vmul.f32 %v849, %v849
      %v860 = vmul.f32 %v850, %v850
      %v861 = vmul.f32 %v851, %v851
      %v862 = vmul.f32 %v852, %v852
      %v863 = vmul.f32 %v853, %v853
      %v864 = vmul.f32 %v854, %v854
      %v865 = vsel %vm269, %v855, 0.0
      %866 = vadd.xlane.f32.xlu0 %v865
      %v867 = vpop.xlane.xlu0 %866
      %v868 = vsel %vm269, %v856, 0.0
      %869 = vadd.xlane.f32.xlu0 %v868
      %v870 = vpop.xlane.xlu0 %869
      %v871 = vsel %vm269, %v857, 0.0
      %872 = vadd.xlane.f32.xlu0 %v871
      %v873 = vpop.xlane.xlu0 %872
      %v874 = vsel %vm269, %v858, 0.0
      %875 = vadd.xlane.f32.xlu0 %v874
      %v876 = vpop.xlane.xlu0 %875
      %v877 = vsel %vm269, %v859, 0.0
      %878 = vadd.xlane.f32.xlu0 %v877
      %v879 = vpop.xlane.xlu0 %878
      %v880 = vsel %vm269, %v860, 0.0
      %881 = vadd.xlane.f32.xlu0 %v880
      %v882 = vpop.xlane.xlu0 %881
      %v883 = vsel %vm269, %v861, 0.0
      %884 = vadd.xlane.f32.xlu0 %v883
      %v885 = vpop.xlane.xlu0 %884
      %v886 = vsel %vm269, %v862, 0.0
      %887 = vadd.xlane.f32.xlu0 %v886
      %v888 = vpop.xlane.xlu0 %887
      %v889 = vsel %vm269, %v863, 0.0
      %890 = vadd.xlane.f32.xlu0 %v889
      %v891 = vpop.xlane.xlu0 %890
      %v892 = vsel %vm830, %v864, 0.0
      %893 = vadd.xlane.f32.xlu0 %v892
      %v894 = vpop.xlane.xlu0 %893
      %v895 = vmul.f32 %v867, %v834
      %v896 = vmul.f32 %v870, %v834
      %v897 = vmul.f32 %v873, %v834
      %v898 = vmul.f32 %v876, %v834
      %v899 = vmul.f32 %v879, %v834
      %v900 = vmul.f32 %v882, %v834
      %v901 = vmul.f32 %v885, %v834
      %v902 = vmul.f32 %v888, %v834
      %v903 = vmul.f32 %v891, %v834
      %v904 = vmul.f32 %v894, %v834
      %v905 = vadd.f32 %v895, 1e-05
      %v906 = vadd.f32 %v896, 1e-05
      %v907 = vadd.f32 %v897, 1e-05
      %v908 = vadd.f32 %v898, 1e-05
      %v909 = vadd.f32 %v899, 1e-05
      %v910 = vadd.f32 %v900, 1e-05
      %v911 = vadd.f32 %v901, 1e-05
      %v912 = vadd.f32 %v902, 1e-05
      %v913 = vadd.f32 %v903, 1e-05
      %v914 = vadd.f32 %v904, 1e-05
      %v915 = vrsqrt.pop %v905
      %v916 = vrsqrt.pop %v906
      %v917 = vrsqrt.pop %v907
      %v918 = vrsqrt.pop %v908
      %v919 = vrsqrt.pop %v909
      %v920 = vrsqrt.pop %v910
      %v921 = vrsqrt.pop %v911
      %v922 = vrsqrt.pop %v912
      %v923 = vrsqrt.pop %v913
      %v924 = vrsqrt.pop %v914
      %v925 = vmul.f32 %v845, %v915
      %v926 = vmul.f32 %v846, %v916
      %v927 = vmul.f32 %v847, %v917
      %v928 = vmul.f32 %v848, %v918
      %v929 = vmul.f32 %v849, %v919
      %v930 = vmul.f32 %v850, %v920
      %v931 = vmul.f32 %v851, %v921
      %v932 = vmul.f32 %v852, %v922
      %v933 = vmul.f32 %v853, %v923
      %v934 = vmul.f32 %v854, %v924
      %v935 = vld [vmem:[%s3] sm:$0x1]
      %v937 = vlaneseq
      %v938 = vshrl.u32 %v937, 7
      %v939 = vsub.s32 0, %v938
      %v940 = vrot.slane %v935, %v939
      %v942 = vmul.f32 %v925, %v940
      %v943 = vmul.f32 %v926, %v940
      %v944 = vmul.f32 %v927, %v940
      %v945 = vmul.f32 %v928, %v940
      %v946 = vmul.f32 %v929, %v940
      %v947 = vmul.f32 %v930, %v940
      %v948 = vmul.f32 %v931, %v940
      %v949 = vmul.f32 %v932, %v940
      %v950 = vmul.f32 %v933, %v940
      %v951 = vmul.f32 %v934, %v940
      %v952 = vld [vmem:[%s4] sm:$0x1]
      %v954 = vlaneseq
      %v955 = vshrl.u32 %v954, 7
      %v956 = vsub.s32 0, %v955
      %v957 = vrot.slane %v952, %v956
      %v959 = vadd.f32 %v942, %v957
      %v960 = vadd.f32 %v943, %v957
      %v961 = vadd.f32 %v944, %v957
      %v962 = vadd.f32 %v945, %v957
      %v963 = vadd.f32 %v946, %v957
      %v964 = vadd.f32 %v947, %v957
      %v965 = vadd.f32 %v948, %v957
      %v966 = vadd.f32 %v949, %v957
      %v967 = vadd.f32 %v950, %v957
      %v968 = vadd.f32 %v951, %v957
      %969 = vst.msk [vmem:[%s224] sm:$0xff] %vm269, %v959
      %970 = vst.msk [vmem:[%s224 + $0x8] sm:$0xff] %vm269, %v960
      %971 = vst.msk [vmem:[%s224 + $0x10] sm:$0xff] %vm269, %v961
      %972 = vst.msk [vmem:[%s224 + $0x18] sm:$0xff] %vm269, %v962
      %973 = vst.msk [vmem:[%s224 + $0x20] sm:$0xff] %vm269, %v963
      %974 = vst.msk [vmem:[%s224 + $0x28] sm:$0xff] %vm269, %v964
      %975 = vst.msk [vmem:[%s224 + $0x30] sm:$0xff] %vm269, %v965
      %976 = vst.msk [vmem:[%s224 + $0x38] sm:$0xff] %vm269, %v966
      %977 = vst.msk [vmem:[%s224 + $0x40] sm:$0xff] %vm269, %v967
      %978 = vst.msk [vmem:[%s224 + $0x48] sm:$0x7f] %vm830, %v968
      %p979 = scmp.lt.s32.totalorder %s16, 1
      %s980 = scalar_select %p979, %s16, 1
      %s981 = smul.addr %s980, 10
      %s982 = smul.addr %s981, 8
      %s983 = scalar_lea.vmem %s5, %s982
      // Predicated region
      $region41: #{_lambda_.21} parent=39 // pred_check
        %p984 = pneg %p144
      $region42: #{_lambda_.21} parent=39 // pred_check_branch
        %986 = sbr.rel (%p984) target = $region44
      $region43: #{_lambda_.21} parent=39 // pred_region
        _
      $region44: #{_lambda_.21} parent=39 // pred_fallthru
        _
    $region40: #{_lambda_.21} parent=5 // pred_fallthru
      _
    %p987 = scmp.le.s32.totalorder 2, %s11
    // Predicated region
    $region45: #{_lambda_.21} parent=5 // pred_check
      %p988 = pneg %p987
    $region46: #{_lambda_.21} parent=5 // pred_check_branch
      %990 = sbr.rel (%p988) target = $region48
    $region47: #{_lambda_.21} parent=5 // pred_region
      %s991 = ssub.s32 %s11, 2
      // Predicated region
      $region49: #{_lambda_.21} parent=47 // pred_check
        %p992 = pneg %p150
      $region50: #{_lambda_.21} parent=47 // pred_check_branch
        %994 = sbr.rel (%p992) target = $region52
      $region51: #{_lambda_.21} parent=47 // pred_region
        %p995 = scmp.lt.s32.totalorder %s17, 1
        %s996 = scalar_select %p995, %s17, 1
        %s997 = smul.addr %s996, 10
        %s998 = smul.addr %s997, 8
        %s999 = scalar_lea.vmem %s5, %s998
      $region52: #{_lambda_.21} parent=47 // pred_fallthru
        _
    $region48: #{_lambda_.21} parent=5 // pred_fallthru
      _
  $region6: #{_lambda_.21} parent=0 // loop_footer
    %s15 = sadd.s32 1, %s11
  $region7: #{_lambda_.21} parent=0 // loop_footer_branch
    %10 = sbr.rel target = $region3
  $region8: #{_lambda_.21} parent=0 // loop_exit
    _

// kernel: _lambda_.23
$region0: #{_lambda_.23}
  #allocation0 [shape = 'u32[]', space=smem, size = 0x4, offset = 0x4, fixed_abs, tag = 'smem constant byte address 0x4 - core index']
  #allocation1 [shape = 'u32[144,128]{1,0:T(1,128)}', space=vmem, size = 0x12000, scoped, tag = 'internal scratch']
  %s0 = inlined_call_operand.vmem [shape: f32[2,79,96], index: 0, kind: input, shape index: {}]
  %s1 = inlined_call_operand.vmem [shape: f32[2,79,32], index: 1, kind: output, shape index: {}]
  %s2 = sld [smem:[#allocation0]]
  $region37: #{_lambda_.23} parent=0
    _
  %s4 = ssub.s32 1, %s2
  %s5 = scalar_select 0, %s4, %s2
  loop: start=0, step=1, limit=4
  $region2: #{_lambda_.23} parent=0 // loop_pre_header
    _
  $region3: #{_lambda_.23} parent=0 // loop_header
    %s7 = sphi 0, %s11
    %p8 = scmp.ge.s32.totalorder %s7, 4
    %s17 = sphi 0, %s19
    %s20 = sphi 0, %s17
    %s21 = sphi 0, %s20
    %s37 = sphi 0, %s21
    %s43 = sphi 0, %s45
    %s46 = sphi 0, %s43
    %s47 = sphi 0, %s46
    %s63 = sphi 0, %s47
  $region4: #{_lambda_.23} parent=0 // loop_header_branch
    %10 = sbr.rel (%p8) target = $region8
  $region5: #{_lambda_.23} parent=0 // loop_body
    %s12 = ssub.s32 %s7, 1
    %s13 = ssub.s32 %s7, 2
    %s14 = sadd.s32 %s7, 1
    %s15 = ssub.s32 %s7, %s14
    %p16 = scmp.eq.s32.totalorder %s15, 0
    %s18 = sadd.s32 %s17, 1
    %s19 = scalar_select %p16, %s17, %s18
    %p22 = pneg %p16
    %p23 = scmp.eq.s32.totalorder %s7, 1
    %p24 = por %p22, %p23
    %p25 = scmp.ne.s32.totalorder %s17, %s20
    %p26 = scmp.eq.s32.totalorder %s7, 0
    %p27 = por %p25, %p26
    %p28 = scmp.ne.s32.totalorder %s17, %s20
    %p29 = scmp.eq.s32.totalorder %s12, 1
    %p30 = por %p28, %p29
    %p31 = scmp.ne.s32.totalorder %s20, %s21
    %p32 = scmp.eq.s32.totalorder %s12, 0
    %p33 = por %p31, %p32
    %p34 = scmp.ne.s32.totalorder %s20, %s21
    %p35 = scmp.eq.s32.totalorder %s13, 1
    %p36 = por %p34, %p35
    %p38 = scmp.ne.s32.totalorder %s21, %s37
    %p39 = scmp.eq.s32.totalorder %s13, 0
    %p40 = por %p38, %p39
    %s41 = ssub.s32 %s7, %s14
    %p42 = scmp.eq.s32.totalorder %s41, 0
    %s44 = sadd.s32 %s43, 1
    %s45 = scalar_select %p42, %s43, %s44
    %p48 = pneg %p42
    %p49 = scmp.eq.s32.totalorder %s7, 1
    %p50 = por %p48, %p49
    %p51 = scmp.ne.s32.totalorder %s43, %s46
    %p52 = scmp.eq.s32.totalorder %s7, 0
    %p53 = por %p51, %p52
    %p54 = scmp.ne.s32.totalorder %s43, %s46
    %p55 = scmp.eq.s32.totalorder %s12, 1
    %p56 = por %p54, %p55
    %p57 = scmp.ne.s32.totalorder %s46, %s47
    %p58 = scmp.eq.s32.totalorder %s12, 0
    %p59 = por %p57, %p58
    %p60 = scmp.ne.s32.totalorder %s46, %s47
    %p61 = scmp.eq.s32.totalorder %s13, 1
    %p62 = por %p60, %p61
    %p64 = scmp.ne.s32.totalorder %s47, %s63
    %p65 = scmp.eq.s32.totalorder %s13, 0
    %p66 = por %p64, %p65
    %p67 = scmp.le.s32.totalorder 1, %s7
    %p68 = scmp.lt.s32.totalorder %s7, 3
    %p69 = pnand %p67, %p68
    %p70 = pneg %p69
    // Predicated region
    $region9: #{_lambda_.23} parent=5 // pred_check
      _
    $region10: #{_lambda_.23} parent=5 // pred_check_branch
      %72 = sbr.rel (%p69) target = $region12
    $region11: #{_lambda_.23} parent=5 // pred_region
      %s73 = ssub.s32 %s7, 1
    $region12: #{_lambda_.23} parent=5 // pred_fallthru
      _
    %p74 = scmp.lt.s32.totalorder %s7, 2
    // Predicated region
    $region13: #{_lambda_.23} parent=5 // pred_check
      %p75 = pneg %p74
    $region14: #{_lambda_.23} parent=5 // pred_check_branch
      %77 = sbr.rel (%p75) target = $region16
    $region15: #{_lambda_.23} parent=5 // pred_region
      // Predicated region
      $region17: #{_lambda_.23} parent=15 // pred_check
        %p78 = pneg %p27
      $region18: #{_lambda_.23} parent=15 // pred_check_branch
        %80 = sbr.rel (%p78) target = $region20
      $region19: #{_lambda_.23} parent=15 // pred_region
        %p81 = scmp.lt.s32.totalorder %s7, 1
        %s82 = scalar_select %p81, %s7, 1
        %s83 = smul.addr %s82, 10
        %s84 = smul.addr %s83, 8
        %s85 = scalar_lea.vmem %s0, %s84
      $region20: #{_lambda_.23} parent=15 // pred_fallthru
        _
    $region16: #{_lambda_.23} parent=5 // pred_fallthru
      _
    %p86 = scmp.le.s32.totalorder 1, %s7
    %p87 = scmp.lt.s32.totalorder %s7, 3
    %p88 = pnand %p86, %p87
    %p89 = pneg %p88
    // Predicated region
    $region21: #{_lambda_.23} parent=5 // pred_check
      _
    $region22: #{_lambda_.23} parent=5 // pred_check_branch
      %91 = sbr.rel (%p88) target = $region24
    $region23: #{_lambda_.23} parent=5 // pred_region
      %s92 = ssub.s32 %s7, 1
      %p93 = scmp.lt.s32.totalorder %s12, 1
      %s94 = scalar_select %p93, %s12, 1
      %s95 = smul.addr %s94, 10
      %s96 = smul.addr %s95, 8
      %s97 = scalar_lea.vmem %s0, %s96
      %p98 = pneg %p33
      %p99 = pneg %p30
      %p100 = pneg %p59
      %p101 = pneg %p56
      %p102 = scmp.lt.s32.totalorder %s12, 1
      %s103 = scalar_select %p102, %s12, 1
      %s104 = smul.addr %s103, 10
      %s105 = smul.addr %s104, 8
      %s106 = scalar_lea.vmem %s1, %s105
      %p107 = scmp.lt.s32.totalorder %s12, 1
      %s108 = scalar_select %p107, %s12, 1
      %s109 = smul.addr %s108, 10
      %s110 = smul.addr %s109, 8
      %s111 = scalar_lea.vmem %s0, %s110
      %p112 = scmp.lt.s32.totalorder %s12, 1
      %s113 = scalar_select %p112, %s12, 1
      %s114 = smul.addr %s113, 10
      %s115 = smul.addr %s114, 8
      %s116 = scalar_lea.vmem %s1, %s115
      %v118 = vld [vmem:[%s111] sm:$0xff]
      %v119 = vld [vmem:[%s111 + $0x8] sm:$0xff]
      %v120 = vld [vmem:[%s111 + $0x10] sm:$0xff]
      %v121 = vld [vmem:[%s111 + $0x18] sm:$0xff]
      %v122 = vld [vmem:[%s111 + $0x20] sm:$0xff]
      %v123 = vld [vmem:[%s111 + $0x28] sm:$0xff]
      %v124 = vld [vmem:[%s111 + $0x30] sm:$0xff]
      %v125 = vld [vmem:[%s111 + $0x38] sm:$0xff]
      %v126 = vld [vmem:[%s111 + $0x40] sm:$0xff]
      %v127 = vld [vmem:[%s111 + $0x48] sm:$0x7f]
      %v128 = vmul.f32 %v118, 0.35355338
      %v129 = vmul.f32 %v119, 0.35355338
      %v130 = vmul.f32 %v120, 0.35355338
      %v131 = vmul.f32 %v121, 0.35355338
      %v132 = vmul.f32 %v122, 0.35355338
      %v133 = vmul.f32 %v123, 0.35355338
      %v134 = vmul.f32 %v124, 0.35355338
      %v135 = vmul.f32 %v125, 0.35355338
      %v136 = vmul.f32 %v126, 0.35355338
      %v137 = vmul.f32 %v127, 0.35355338
      %v138 = vpack.c.bf16 %v129, %v128
      %v139 = vpack.c.bf16 %v131, %v130
      %v140 = vpack.c.bf16 %v133, %v132
      %v141 = vpack.c.bf16 %v135, %v134
      %v142 = vpack.c.bf16 %v137, %v136
      %v143 = vpack.c.bf16 %v119, %v118
      %v144 = vpack.c.bf16 %v121, %v120
      %v145 = vpack.c.bf16 %v123, %v122
      %v146 = vpack.c.bf16 %v125, %v124
      %v147 = vpack.c.bf16 %v127, %v126
      %153 = vrot.lane.b32.xlu0 %v143, 96
      %v154 = vpop.permute.xlu0 %153
      %155 = vrot.lane.b32.xlu0 %v144, 96
      %v156 = vpop.permute.xlu0 %155
      %157 = vrot.lane.b32.xlu0 %v145, 96
      %v158 = vpop.permute.xlu0 %157
      %159 = vrot.lane.b32.xlu0 %v146, 96
      %v160 = vpop.permute.xlu0 %159
      %161 = vrot.lane.b32.xlu0 %v147, 96
      %v162 = vpop.permute.xlu0 %161
      %vm163 = vcmask 64512
      %v165 = vsel %vm163, %v138, 0
      %v168 = vsel %vm163, %v139, 0
      %v171 = vsel %vm163, %v140, 0
      %v174 = vsel %vm163, %v141, 0
      %v177 = vsel %vm163, %v142, 0
      %v180 = vsel %vm163, %v154, 0
      %v183 = vsel %vm163, %v156, 0
      %v186 = vsel %vm163, %v158, 0
      %v189 = vsel %vm163, %v160, 0
      %v192 = vsel %vm163, %v162, 0
      %194 = vmatprep.subr.bf16.mxu0 0
      %195 = vmatpush1.bf16.xpose.msra.mxu0 0
      %196 = vmatprep.subr.bf16.mxu0 0
      %197 = vmatpush1.bf16.xpose.msra.mxu0 0
      %198 = vmatprep.subr.bf16.mxu0 0
      %199 = vmatpush1.bf16.xpose.msra.mxu0 0
      %200 = vmatprep.subr.bf16.mxu0 0
      %201 = vmatpush1.bf16.xpose.msra.mxu0 %v192
      %202 = vmatprep.subr.bf16.mxu0 0
      %203 = vmatpush1.bf16.xpose.msra.mxu0 %v189
      %204 = vmatprep.subr.bf16.mxu0 0
      %205 = vmatpush1.bf16.xpose.msra.mxu0 %v186
      %206 = vmatprep.subr.bf16.mxu0 0
      %207 = vmatpush1.bf16.xpose.msra.mxu0 %v183
      %208 = vmatprep.subr.bf16.mxu0 0
      %209 = vmatpush1.bf16.xpose.msra.mxu0 %v180
      %210 = vmatprep.subr.bf16.mxu0 0
      %211 = vmatpush2.bf16.xpose.msra.mxu0 0
      %212 = vmatprep.subr.bf16.mxu0 0
      %213 = vmatpush2.bf16.xpose.msra.mxu0 0
      %214 = vmatprep.subr.bf16.mxu0 0
      %215 = vmatpush2.bf16.xpose.msra.mxu0 0
      %216 = vmatprep.subr.bf16.mxu0 0
      %217 = vmatpush2.bf16.xpose.msra.mxu0 0
      %218 = vmatprep.subr.bf16.mxu0 0
      %219 = vmatpush2.bf16.xpose.msra.mxu0 0
      %220 = vmatprep.subr.bf16.mxu0 0
      %221 = vmatpush2.bf16.xpose.msra.mxu0 0
      %222 = vmatprep.subr.bf16.mxu0 0
      %223 = vmatpush2.bf16.xpose.msra.mxu0 0
      %224 = vmatprep.subr.bf16.mxu0 0
      %225 = vmatpush2.bf16.xpose.msra.mxu0 0
      %226 = vmatprep.mubr.bf16.mxu0 0
      %227 = vmatmul.mubr.bf16.gmra.mxu0 %v165
      %v228 = vpop.f32.mrf.mxu0
      %v229 = vadd.f32 0.0, %v228
      %v230 = vpop.f32.mrf.mxu0
      %v231 = vpop.f32.mrf.mxu0
      %v232 = vadd.f32 0.0, %v231
      %v233 = vpop.f32.mrf.mxu0
      %234 = vmatprep.mubr.bf16.mxu0 0
      %235 = vmatmul.mubr.bf16.gmra.mxu0 %v168
      %v236 = vpop.f32.mrf.mxu0
      %v237 = vadd.f32 0.0, %v236
      %v238 = vpop.f32.mrf.mxu0
      %v239 = vpop.f32.mrf.mxu0
      %v240 = vadd.f32 0.0, %v239
      %v241 = vpop.f32.mrf.mxu0
      %242 = vmatprep.mubr.bf16.mxu0 0
      %243 = vmatmul.mubr.bf16.gmra.mxu0 %v171
      %v244 = vpop.f32.mrf.mxu0
      %v245 = vadd.f32 0.0, %v244
      %v246 = vpop.f32.mrf.mxu0
      %v247 = vpop.f32.mrf.mxu0
      %v248 = vadd.f32 0.0, %v247
      %v249 = vpop.f32.mrf.mxu0
      %250 = vmatprep.mubr.bf16.mxu0 0
      %251 = vmatmul.mubr.bf16.gmra.mxu0 %v174
      %v252 = vpop.f32.mrf.mxu0
      %v253 = vadd.f32 0.0, %v252
      %v254 = vpop.f32.mrf.mxu0
      %v255 = vpop.f32.mrf.mxu0
      %v256 = vadd.f32 0.0, %v255
      %v257 = vpop.f32.mrf.mxu0
      %258 = vmatprep.mubr.bf16.mxu0 0
      %259 = vmatmul.mubr.bf16.gmra.mxu0 %v177
      %v260 = vpop.f32.mrf.mxu0
      %v261 = vadd.f32 0.0, %v260
      %v262 = vpop.f32.mrf.mxu0
      %v263 = vpop.f32.mrf.mxu0
      %v264 = vadd.f32 0.0, %v263
      %v265 = vpop.f32.mrf.mxu0
      %266 = vdwg.mxu0
      %vm267 = vcmask 646144
      %v268 = vsel %vm267, %v229, -inf
      %269 = vmax.xlane.f32.xlu0 %v268
      %v270 = vpop.xlane.xlu0 %269
      %v271 = vsel %vm267, %v232, -inf
      %272 = vmax.xlane.f32.xlu0 %v271
      %v273 = vpop.xlane.xlu0 %272
      %v274 = vsel %vm267, %v237, -inf
      %275 = vmax.xlane.f32.xlu0 %v274
      %v276 = vpop.xlane.xlu0 %275
      %v277 = vsel %vm267, %v240, -inf
      %278 = vmax.xlane.f32.xlu0 %v277
      %v279 = vpop.xlane.xlu0 %278
      %v280 = vsel %vm267, %v245, -inf
      %281 = vmax.xlane.f32.xlu0 %v280
      %v282 = vpop.xlane.xlu0 %281
      %v283 = vsel %vm267, %v248, -inf
      %284 = vmax.xlane.f32.xlu0 %v283
      %v285 = vpop.xlane.xlu0 %284
      %v286 = vsel %vm267, %v253, -inf
      %287 = vmax.xlane.f32.xlu0 %v286
      %v288 = vpop.xlane.xlu0 %287
      %v289 = vsel %vm267, %v256, -inf
      %290 = vmax.xlane.f32.xlu0 %v289
      %v291 = vpop.xlane.xlu0 %290
      %v292 = vsel %vm267, %v261, -inf
      %293 = vmax.xlane.f32.xlu0 %v292
      %v294 = vpop.xlane.xlu0 %293
      %vm295 = vcmask 645120
      %v296 = vsel %vm295, %v264, -inf
      %297 = vmax.xlane.f32.xlu0 %v296
      %v298 = vpop.xlane.xlu0 %297
      %v299 = vsub.f32 %v229, %v270
      %v300 = vsub.f32 %v232, %v273
      %v301 = vsub.f32 %v237, %v276
      %v302 = vsub.f32 %v240, %v279
      %v303 = vsub.f32 %v245, %v282
      %v304 = vsub.f32 %v248, %v285
      %v305 = vsub.f32 %v253, %v288
      %v306 = vsub.f32 %v256, %v291
      %v307 = vsub.f32 %v261, %v294
      %v308 = vsub.f32 %v264, %v298
      %v309 = vmul.f32 %v299, 1.442695
      %v310 = vpow.pop %v309
      %v311 = vmul.f32 %v300, 1.442695
      %v312 = vpow.pop %v311
      %v313 = vmul.f32 %v301, 1.442695
      %v314 = vpow.pop %v313
      %v315 = vmul.f32 %v302, 1.442695
      %v316 = vpow.pop %v315
      %v317 = vmul.f32 %v303, 1.442695
      %v318 = vpow.pop %v317
      %v319 = vmul.f32 %v304, 1.442695
      %v320 = vpow.pop %v319
      %v321 = vmul.f32 %v305, 1.442695
      %v322 = vpow.pop %v321
      %v323 = vmul.f32 %v306, 1.442695
      %v324 = vpow.pop %v323
      %v325 = vmul.f32 %v307, 1.442695
      %v326 = vpow.pop %v325
      %v327 = vmul.f32 %v308, 1.442695
      %v328 = vpow.pop %v327
      %v329 = vsel %vm267, %v310, 0.0
      %330 = vadd.xlane.f32.xlu0 %v329
      %v331 = vpop.xlane.xlu0 %330
      %v332 = vsel %vm267, %v312, 0.0
      %333 = vadd.xlane.f32.xlu0 %v332
      %v334 = vpop.xlane.xlu0 %333
      %v335 = vsel %vm267, %v314, 0.0
      %336 = vadd.xlane.f32.xlu0 %v335
      %v337 = vpop.xlane.xlu0 %336
      %v338 = vsel %vm267, %v316, 0.0
      %339 = vadd.xlane.f32.xlu0 %v338
      %v340 = vpop.xlane.xlu0 %339
      %v341 = vsel %vm267, %v318, 0.0
      %342 = vadd.xlane.f32.xlu0 %v341
      %v343 = vpop.xlane.xlu0 %342
      %v344 = vsel %vm267, %v320, 0.0
      %345 = vadd.xlane.f32.xlu0 %v344
      %v346 = vpop.xlane.xlu0 %345
      %v347 = vsel %vm267, %v322, 0.0
      %348 = vadd.xlane.f32.xlu0 %v347
      %v349 = vpop.xlane.xlu0 %348
      %v350 = vsel %vm267, %v324, 0.0
      %351 = vadd.xlane.f32.xlu0 %v350
      %v352 = vpop.xlane.xlu0 %351
      %v353 = vsel %vm267, %v326, 0.0
      %354 = vadd.xlane.f32.xlu0 %v353
      %v355 = vpop.xlane.xlu0 %354
      %v356 = vsel %vm295, %v328, 0.0
      %357 = vadd.xlane.f32.xlu0 %v356
      %v358 = vpop.xlane.xlu0 %357
      %v359 = vrcp.pop %v331
      %v360 = vrcp.pop %v334
      %v361 = vrcp.pop %v337
      %v362 = vrcp.pop %v340
      %v363 = vrcp.pop %v343
      %v364 = vrcp.pop %v346
      %v365 = vrcp.pop %v349
      %v366 = vrcp.pop %v352
      %v367 = vrcp.pop %v355
      %v368 = vrcp.pop %v358
      %v369 = vmul.f32 %v310, %v359
      %v370 = vmul.f32 %v312, %v360
      %v371 = vmul.f32 %v314, %v361
      %v372 = vmul.f32 %v316, %v362
      %v373 = vmul.f32 %v318, %v363
      %v374 = vmul.f32 %v320, %v364
      %v375 = vmul.f32 %v322, %v365
      %v376 = vmul.f32 %v324, %v366
      %v377 = vmul.f32 %v326, %v367
      %v378 = vmul.f32 %v328, %v368
      %v379 = vpack.c.bf16 %v370, %v369
      %v380 = vpack.c.bf16 %v372, %v371
      %v381 = vpack.c.bf16 %v374, %v373
      %v382 = vpack.c.bf16 %v376, %v375
      %v383 = vpack.c.bf16 %v378, %v377
      %384 = vrot.lane.b32.xlu0 %v143, 64
      %v385 = vpop.permute.xlu0 %384
      %386 = vrot.lane.b32.xlu0 %v144, 64
      %v387 = vpop.permute.xlu0 %386
      %388 = vrot.lane.b32.xlu0 %v145, 64
      %v389 = vpop.permute.xlu0 %388
      %390 = vrot.lane.b32.xlu0 %v146, 64
      %v391 = vpop.permute.xlu0 %390
      %392 = vrot.lane.b32.xlu0 %v147, 64
      %v393 = vpop.permute.xlu0 %392
      %v399 = vsel %vm267, %v379, 0
      %v402 = vsel %vm267, %v380, 0
      %v405 = vsel %vm267, %v381, 0
      %v408 = vsel %vm267, %v382, 0
      %v411 = vsel %vm267, %v383, 0
      %vm413 = vcmask 1046528
      %vm414 = vcmask 1047552
      %v415 = vsel %vm413, 4294967295, 65535
      %v416 = vsel %vm414, %v415, 0
      %v418 = vand.u32 %v393, %v416
      %420 = vmatprep.subr.bf16.mxu0 0
      %421 = vmatpush1.bf16.msra.mxu0 0
      %422 = vmatprep.subr.bf16.mxu0 0
      %423 = vmatpush1.bf16.msra.mxu0 0
      %424 = vmatprep.subr.bf16.mxu0 0
      %425 = vmatpush1.bf16.msra.mxu0 0
      %426 = vmatprep.subr.bf16.mxu0 0
      %427 = vmatpush1.bf16.msra.mxu0 %v418
      %428 = vmatprep.subr.bf16.mxu0 0
      %429 = vmatpush1.bf16.msra.mxu0 %v391
      %430 = vmatprep.subr.bf16.mxu0 0
      %431 = vmatpush1.bf16.msra.mxu0 %v389
      %432 = vmatprep.subr.bf16.mxu0 0
      %433 = vmatpush1.bf16.msra.mxu0 %v387
      %434 = vmatprep.subr.bf16.mxu0 0
      %435 = vmatpush1.bf16.msra.mxu0 %v385
      %436 = vmatprep.subr.bf16.mxu0 0
      %437 = vmatpush2.bf16.msra.mxu0 0
      %438 = vmatprep.subr.bf16.mxu0 0
      %439 = vmatpush2.bf16.msra.mxu0 0
      %440 = vmatprep.subr.bf16.mxu0 0
      %441 = vmatpush2.bf16.msra.mxu0 0
      %442 = vmatprep.subr.bf16.mxu0 0
      %443 = vmatpush2.bf16.msra.mxu0 0
      %444 = vmatprep.subr.bf16.mxu0 0
      %445 = vmatpush2.bf16.msra.mxu0 0
      %446 = vmatprep.subr.bf16.mxu0 0
      %447 = vmatpush2.bf16.msra.mxu0 0
      %448 = vmatprep.subr.bf16.mxu0 0
      %449 = vmatpush2.bf16.msra.mxu0 0
      %450 = vmatprep.subr.bf16.mxu0 0
      %451 = vmatpush2.bf16.msra.mxu0 0
      %452 = vmatprep.mubr.bf16.mxu0 0
      %453 = vmatmul.mubr.bf16.gmra.mxu0 %v399
      %v454 = vpop.f32.mrf.mxu0
      %v455 = vadd.f32 0.0, %v454
      %v456 = vpop.f32.mrf.mxu0
      %v457 = vpop.f32.mrf.mxu0
      %v458 = vadd.f32 0.0, %v457
      %v459 = vpop.f32.mrf.mxu0
      %460 = vmatprep.mubr.bf16.mxu0 0
      %461 = vmatmul.mubr.bf16.gmra.mxu0 %v402
      %v462 = vpop.f32.mrf.mxu0
      %v463 = vadd.f32 0.0, %v462
      %v464 = vpop.f32.mrf.mxu0
      %v465 = vpop.f32.mrf.mxu0
      %v466 = vadd.f32 0.0, %v465
      %v467 = vpop.f32.mrf.mxu0
      %468 = vmatprep.mubr.bf16.mxu0 0
      %469 = vmatmul.mubr.bf16.gmra.mxu0 %v405
      %v470 = vpop.f32.mrf.mxu0
      %v471 = vadd.f32 0.0, %v470
      %v472 = vpop.f32.mrf.mxu0
      %v473 = vpop.f32.mrf.mxu0
      %v474 = vadd.f32 0.0, %v473
      %v475 = vpop.f32.mrf.mxu0
      %476 = vmatprep.mubr.bf16.mxu0 0
      %477 = vmatmul.mubr.bf16.gmra.mxu0 %v408
      %v478 = vpop.f32.mrf.mxu0
      %v479 = vadd.f32 0.0, %v478
      %v480 = vpop.f32.mrf.mxu0
      %v481 = vpop.f32.mrf.mxu0
      %v482 = vadd.f32 0.0, %v481
      %v483 = vpop.f32.mrf.mxu0
      %484 = vmatprep.mubr.bf16.mxu0 0
      %485 = vmatmul.mubr.bf16.gmra.mxu0 %v411
      %v486 = vpop.f32.mrf.mxu0
      %v487 = vadd.f32 0.0, %v486
      %v488 = vpop.f32.mrf.mxu0
      %v489 = vpop.f32.mrf.mxu0
      %v490 = vadd.f32 0.0, %v489
      %v491 = vpop.f32.mrf.mxu0
      %492 = vdwg.mxu0
      %498 = vrot.lane.b32.xlu0 %v138, 120
      %v499 = vpop.permute.xlu0 %498
      %500 = vrot.lane.b32.xlu0 %v139, 120
      %v501 = vpop.permute.xlu0 %500
      %502 = vrot.lane.b32.xlu0 %v140, 120
      %v503 = vpop.permute.xlu0 %502
      %504 = vrot.lane.b32.xlu0 %v141, 120
      %v505 = vpop.permute.xlu0 %504
      %506 = vrot.lane.b32.xlu0 %v142, 120
      %v507 = vpop.permute.xlu0 %506
      %508 = vrot.lane.b32.xlu0 %v143, 88
      %v509 = vpop.permute.xlu0 %508
      %510 = vrot.lane.b32.xlu0 %v144, 88
      %v511 = vpop.permute.xlu0 %510
      %512 = vrot.lane.b32.xlu0 %v145, 88
      %v513 = vpop.permute.xlu0 %512
      %514 = vrot.lane.b32.xlu0 %v146, 88
      %v515 = vpop.permute.xlu0 %514
      %516 = vrot.lane.b32.xlu0 %v147, 88
      %v517 = vpop.permute.xlu0 %516
      %v519 = vsel %vm163, %v499, 0
      %v522 = vsel %vm163, %v501, 0
      %v525 = vsel %vm163, %v503, 0
      %v528 = vsel %vm163, %v505, 0
      %v531 = vsel %vm163, %v507, 0
      %v534 = vsel %vm163, %v509, 0
      %v537 = vsel %vm163, %v511, 0
      %v540 = vsel %vm163, %v513, 0
      %v543 = vsel %vm163, %v515, 0
      %v546 = vsel %vm163, %v517, 0
      %548 = vmatprep.subr.bf16.mxu0 0
      %549 = vmatpush1.bf16.xpose.msra.mxu0 0
      %550 = vmatprep.subr.bf16.mxu0 0
      %551 = vmatpush1.bf16.xpose.msra.mxu0 0
      %552 = vmatprep.subr.bf16.mxu0 0
      %553 = vmatpush1.bf16.xpose.msra.mxu0 0
      %554 = vmatprep.subr.bf16.mxu0 0
      %555 = vmatpush1.bf16.xpose.msra.mxu0 %v546
      %556 = vmatprep.subr.bf16.mxu0 0
      %557 = vmatpush1.bf16.xpose.msra.mxu0 %v543
      %558 = vmatprep.subr.bf16.mxu0 0
      %559 = vmatpush1.bf16.xpose.msra.mxu0 %v540
      %560 = vmatprep.subr.bf16.mxu0 0
      %561 = vmatpush1.bf16.xpose.msra.mxu0 %v537
      %562 = vmatprep.subr.bf16.mxu0 0
      %563 = vmatpush1.bf16.xpose.msra.mxu0 %v534
      %564 = vmatprep.subr.bf16.mxu0 0
      %565 = vmatpush2.bf16.xpose.msra.mxu0 0
      %566 = vmatprep.subr.bf16.mxu0 0
      %567 = vmatpush2.bf16.xpose.msra.mxu0 0
      %568 = vmatprep.subr.bf16.mxu0 0
      %569 = vmatpush2.bf16.xpose.msra.mxu0 0
      %570 = vmatprep.subr.bf16.mxu0 0
      %571 = vmatpush2.bf16.xpose.msra.mxu0 0
      %572 = vmatprep.subr.bf16.mxu0 0
      %573 = vmatpush2.bf16.xpose.msra.mxu0 0
      %574 = vmatprep.subr.bf16.mxu0 0
      %575 = vmatpush2.bf16.xpose.msra.mxu0 0
      %576 = vmatprep.subr.bf16.mxu0 0
      %577 = vmatpush2.bf16.xpose.msra.mxu0 0
      %578 = vmatprep.subr.bf16.mxu0 0
      %579 = vmatpush2.bf16.xpose.msra.mxu0 0
      %580 = vmatprep.mubr.bf16.mxu0 0
      %581 = vmatmul.mubr.bf16.gmra.mxu0 %v519
      %v582 = vpop.f32.mrf.mxu0
      %v583 = vadd.f32 0.0, %v582
      %v584 = vpop.f32.mrf.mxu0
      %v585 = vpop.f32.mrf.mxu0
      %v586 = vadd.f32 0.0, %v585
      %v587 = vpop.f32.mrf.mxu0
      %588 = vmatprep.mubr.bf16.mxu0 0
      %589 = vmatmul.mubr.bf16.gmra.mxu0 %v522
      %v590 = vpop.f32.mrf.mxu0
      %v591 = vadd.f32 0.0, %v590
      %v592 = vpop.f32.mrf.mxu0
      %v593 = vpop.f32.mrf.mxu0
      %v594 = vadd.f32 0.0, %v593
      %v595 = vpop.f32.mrf.mxu0
      %596 = vmatprep.mubr.bf16.mxu0 0
      %597 = vmatmul.mubr.bf16.gmra.mxu0 %v525
      %v598 = vpop.f32.mrf.mxu0
      %v599 = vadd.f32 0.0, %v598
      %v600 = vpop.f32.mrf.mxu0
      %v601 = vpop.f32.mrf.mxu0
      %v602 = vadd.f32 0.0, %v601
      %v603 = vpop.f32.mrf.mxu0
      %604 = vmatprep.mubr.bf16.mxu0 0
      %605 = vmatmul.mubr.bf16.gmra.mxu0 %v528
      %v606 = vpop.f32.mrf.mxu0
      %v607 = vadd.f32 0.0, %v606
      %v608 = vpop.f32.mrf.mxu0
      %v609 = vpop.f32.mrf.mxu0
      %v610 = vadd.f32 0.0, %v609
      %v611 = vpop.f32.mrf.mxu0
      %612 = vmatprep.mubr.bf16.mxu0 0
      %613 = vmatmul.mubr.bf16.gmra.mxu0 %v531
      %v614 = vpop.f32.mrf.mxu0
      %v615 = vadd.f32 0.0, %v614
      %v616 = vpop.f32.mrf.mxu0
      %v617 = vpop.f32.mrf.mxu0
      %v618 = vadd.f32 0.0, %v617
      %v619 = vpop.f32.mrf.mxu0
      %620 = vdwg.mxu0
      %v621 = vsel %vm267, %v583, -inf
      %622 = vmax.xlane.f32.xlu0 %v621
      %v623 = vpop.xlane.xlu0 %622
      %v624 = vsel %vm267, %v586, -inf
      %625 = vmax.xlane.f32.xlu0 %v624
      %v626 = vpop.xlane.xlu0 %625
      %v627 = vsel %vm267, %v591, -inf
      %628 = vmax.xlane.f32.xlu0 %v627
      %v629 = vpop.xlane.xlu0 %628
      %v630 = vsel %vm267, %v594, -inf
      %631 = vmax.xlane.f32.xlu0 %v630
      %v632 = vpop.xlane.xlu0 %631
      %v633 = vsel %vm267, %v599, -inf
      %634 = vmax.xlane.f32.xlu0 %v633
      %v635 = vpop.xlane.xlu0 %634
      %v636 = vsel %vm267, %v602, -inf
      %637 = vmax.xlane.f32.xlu0 %v636
      %v638 = vpop.xlane.xlu0 %637
      %v639 = vsel %vm267, %v607, -inf
      %640 = vmax.xlane.f32.xlu0 %v639
      %v641 = vpop.xlane.xlu0 %640
      %v642 = vsel %vm267, %v610, -inf
      %643 = vmax.xlane.f32.xlu0 %v642
      %v644 = vpop.xlane.xlu0 %643
      %v645 = vsel %vm267, %v615, -inf
      %646 = vmax.xlane.f32.xlu0 %v645
      %v647 = vpop.xlane.xlu0 %646
      %v648 = vsel %vm295, %v618, -inf
      %649 = vmax.xlane.f32.xlu0 %v648
      %v650 = vpop.xlane.xlu0 %649
      %v651 = vsub.f32 %v583, %v623
      %v652 = vsub.f32 %v586, %v626
      %v653 = vsub.f32 %v591, %v629
      %v654 = vsub.f32 %v594, %v632
      %v655 = vsub.f32 %v599, %v635
      %v656 = vsub.f32 %v602, %v638
      %v657 = vsub.f32 %v607, %v641
      %v658 = vsub.f32 %v610, %v644
      %v659 = vsub.f32 %v615, %v647
      %v660 = vsub.f32 %v618, %v650
      %v661 = vmul.f32 %v651, 1.442695
      %v662 = vpow.pop %v661
      %v663 = vmul.f32 %v652, 1.442695
      %v664 = vpow.pop %v663
      %v665 = vmul.f32 %v653, 1.442695
      %v666 = vpow.pop %v665
      %v667 = vmul.f32 %v654, 1.442695
      %v668 = vpow.pop %v667
      %v669 = vmul.f32 %v655, 1.442695
      %v670 = vpow.pop %v669
      %v671 = vmul.f32 %v656, 1.442695
      %v672 = vpow.pop %v671
      %v673 = vmul.f32 %v657, 1.442695
      %v674 = vpow.pop %v673
      %v675 = vmul.f32 %v658, 1.442695
      %v676 = vpow.pop %v675
      %v677 = vmul.f32 %v659, 1.442695
      %v678 = vpow.pop %v677
      %v679 = vmul.f32 %v660, 1.442695
      %v680 = vpow.pop %v679
      %v681 = vsel %vm267, %v662, 0.0
      %682 = vadd.xlane.f32.xlu0 %v681
      %v683 = vpop.xlane.xlu0 %682
      %v684 = vsel %vm267, %v664, 0.0
      %685 = vadd.xlane.f32.xlu0 %v684
      %v686 = vpop.xlane.xlu0 %685
      %v687 = vsel %vm267, %v666, 0.0
      %688 = vadd.xlane.f32.xlu0 %v687
      %v689 = vpop.xlane.xlu0 %688
      %v690 = vsel %vm267, %v668, 0.0
      %691 = vadd.xlane.f32.xlu0 %v690
      %v692 = vpop.xlane.xlu0 %691
      %v693 = vsel %vm267, %v670, 0.0
      %694 = vadd.xlane.f32.xlu0 %v693
      %v695 = vpop.xlane.xlu0 %694
      %v696 = vsel %vm267, %v672, 0.0
      %697 = vadd.xlane.f32.xlu0 %v696
      %v698 = vpop.xlane.xlu0 %697
      %v699 = vsel %vm267, %v674, 0.0
      %700 = vadd.xlane.f32.xlu0 %v699
      %v701 = vpop.xlane.xlu0 %700
      %v702 = vsel %vm267, %v676, 0.0
      %703 = vadd.xlane.f32.xlu0 %v702
      %v704 = vpop.xlane.xlu0 %703
      %v705 = vsel %vm267, %v678, 0.0
      %706 = vadd.xlane.f32.xlu0 %v705
      %v707 = vpop.xlane.xlu0 %706
      %v708 = vsel %vm295, %v680, 0.0
      %709 = vadd.xlane.f32.xlu0 %v708
      %v710 = vpop.xlane.xlu0 %709
      %v711 = vrcp.pop %v683
      %v712 = vrcp.pop %v686
      %v713 = vrcp.pop %v689
      %v714 = vrcp.pop %v692
      %v715 = vrcp.pop %v695
      %v716 = vrcp.pop %v698
      %v717 = vrcp.pop %v701
      %v718 = vrcp.pop %v704
      %v719 = vrcp.pop %v707
      %v720 = vrcp.pop %v710
      %v721 = vmul.f32 %v662, %v711
      %v722 = vmul.f32 %v664, %v712
      %v723 = vmul.f32 %v666, %v713
      %v724 = vmul.f32 %v668, %v714
      %v725 = vmul.f32 %v670, %v715
      %v726 = vmul.f32 %v672, %v716
      %v727 = vmul.f32 %v674, %v717
      %v728 = vmul.f32 %v676, %v718
      %v729 = vmul.f32 %v678, %v719
      %v730 = vmul.f32 %v680, %v720
      %v731 = vpack.c.bf16 %v722, %v721
      %v732 = vpack.c.bf16 %v724, %v723
      %v733 = vpack.c.bf16 %v726, %v725
      %v734 = vpack.c.bf16 %v728, %v727
      %v735 = vpack.c.bf16 %v730, %v729
      %736 = vrot.lane.b32.xlu0 %v143, 56
      %v737 = vpop.permute.xlu0 %736
      %738 = vrot.lane.b32.xlu0 %v144, 56
      %v739 = vpop.permute.xlu0 %738
      %740 = vrot.lane.b32.xlu0 %v145, 56
      %v741 = vpop.permute.xlu0 %740
      %742 = vrot.lane.b32.xlu0 %v146, 56
      %v743 = vpop.permute.xlu0 %742
      %744 = vrot.lane.b32.xlu0 %v147, 56
      %v745 = vpop.permute.xlu0 %744
      %v751 = vsel %vm267, %v731, 0
      %v754 = vsel %vm267, %v732, 0
      %v757 = vsel %vm267, %v733, 0
      %v760 = vsel %vm267, %v734, 0
      %v763 = vsel %vm267, %v735, 0
      %v766 = vand.u32 %v745, %v416
      %768 = vmatprep.subr.bf16.mxu0 0
      %769 = vmatpush1.bf16.msra.mxu0 0
      %770 = vmatprep.subr.bf16.mxu0 0
      %771 = vmatpush1.bf16.msra.mxu0 0
      %772 = vmatprep.subr.bf16.mxu0 0
      %773 = vmatpush1.bf16.msra.mxu0 0
      %774 = vmatprep.subr.bf16.mxu0 0
      %775 = vmatpush1.bf16.msra.mxu0 %v766
      %776 = vmatprep.subr.bf16.mxu0 0
      %777 = vmatpush1.bf16.msra.mxu0 %v743
      %778 = vmatprep.subr.bf16.mxu0 0
      %779 = vmatpush1.bf16.msra.mxu0 %v741
      %780 = vmatprep.subr.bf16.mxu0 0
      %781 = vmatpush1.bf16.msra.mxu0 %v739
      %782 = vmatprep.subr.bf16.mxu0 0
      %783 = vmatpush1.bf16.msra.mxu0 %v737
      %784 = vmatprep.subr.bf16.mxu0 0
      %785 = vmatpush2.bf16.msra.mxu0 0
      %786 = vmatprep.subr.bf16.mxu0 0
      %787 = vmatpush2.bf16.msra.mxu0 0
      %788 = vmatprep.subr.bf16.mxu0 0
      %789 = vmatpush2.bf16.msra.mxu0 0
      %790 = vmatprep.subr.bf16.mxu0 0
      %791 = vmatpush2.bf16.msra.mxu0 0
      %792 = vmatprep.subr.bf16.mxu0 0
      %793 = vmatpush2.bf16.msra.mxu0 0
      %794 = vmatprep.subr.bf16.mxu0 0
      %795 = vmatpush2.bf16.msra.mxu0 0
      %796 = vmatprep.subr.bf16.mxu0 0
      %797 = vmatpush2.bf16.msra.mxu0 0
      %798 = vmatprep.subr.bf16.mxu0 0
      %799 = vmatpush2.bf16.msra.mxu0 0
      %800 = vmatprep.mubr.bf16.mxu0 0
      %801 = vmatmul.mubr.bf16.gmra.mxu0 %v751
      %v802 = vpop.f32.mrf.mxu0
      %v803 = vadd.f32 0.0, %v802
      %v804 = vpop.f32.mrf.mxu0
      %v805 = vpop.f32.mrf.mxu0
      %v806 = vadd.f32 0.0, %v805
      %v807 = vpop.f32.mrf.mxu0
      %808 = vmatprep.mubr.bf16.mxu0 0
      %809 = vmatmul.mubr.bf16.gmra.mxu0 %v754
      %v810 = vpop.f32.mrf.mxu0
      %v811 = vadd.f32 0.0, %v810
      %v812 = vpop.f32.mrf.mxu0
      %v813 = vpop.f32.mrf.mxu0
      %v814 = vadd.f32 0.0, %v813
      %v815 = vpop.f32.mrf.mxu0
      %816 = vmatprep.mubr.bf16.mxu0 0
      %817 = vmatmul.mubr.bf16.gmra.mxu0 %v757
      %v818 = vpop.f32.mrf.mxu0
      %v819 = vadd.f32 0.0, %v818
      %v820 = vpop.f32.mrf.mxu0
      %v821 = vpop.f32.mrf.mxu0
      %v822 = vadd.f32 0.0, %v821
      %v823 = vpop.f32.mrf.mxu0
      %824 = vmatprep.mubr.bf16.mxu0 0
      %825 = vmatmul.mubr.bf16.gmra.mxu0 %v760
      %v826 = vpop.f32.mrf.mxu0
      %v827 = vadd.f32 0.0, %v826
      %v828 = vpop.f32.mrf.mxu0
      %v829 = vpop.f32.mrf.mxu0
      %v830 = vadd.f32 0.0, %v829
      %v831 = vpop.f32.mrf.mxu0
      %832 = vmatprep.mubr.bf16.mxu0 0
      %833 = vmatmul.mubr.bf16.gmra.mxu0 %v763
      %v834 = vpop.f32.mrf.mxu0
      %v835 = vadd.f32 0.0, %v834
      %v836 = vpop.f32.mrf.mxu0
      %v837 = vpop.f32.mrf.mxu0
      %v838 = vadd.f32 0.0, %v837
      %v839 = vpop.f32.mrf.mxu0
      %840 = vdwg.mxu0
      %841 = vrot.lane.b32.xlu0 %v138, 112
      %v842 = vpop.permute.xlu0 %841
      %843 = vrot.lane.b32.xlu0 %v139, 112
      %v844 = vpop.permute.xlu0 %843
      %845 = vrot.lane.b32.xlu0 %v140, 112
      %v846 = vpop.permute.xlu0 %845
      %847 = vrot.lane.b32.xlu0 %v141, 112
      %v848 = vpop.permute.xlu0 %847
      %849 = vrot.lane.b32.xlu0 %v142, 112
      %v850 = vpop.permute.xlu0 %849
      %851 = vrot.lane.b32.xlu0 %v143, 80
      %v852 = vpop.permute.xlu0 %851
      %853 = vrot.lane.b32.xlu0 %v144, 80
      %v854 = vpop.permute.xlu0 %853
      %855 = vrot.lane.b32.xlu0 %v145, 80
      %v856 = vpop.permute.xlu0 %855
      %857 = vrot.lane.b32.xlu0 %v146, 80
      %v858 = vpop.permute.xlu0 %857
      %859 = vrot.lane.b32.xlu0 %v147, 80
      %v860 = vpop.permute.xlu0 %859
      %v862 = vsel %vm163, %v842, 0
      %v865 = vsel %vm163, %v844, 0
      %v868 = vsel %vm163, %v846, 0
      %v871 = vsel %vm163, %v848, 0
      %v874 = vsel %vm163, %v850, 0
      %v877 = vsel %vm163, %v852, 0
      %v880 = vsel %vm163, %v854, 0
      %v883 = vsel %vm163, %v856, 0
      %v886 = vsel %vm163, %v858, 0
      %v889 = vsel %vm163, %v860, 0
      %891 = vmatprep.subr.bf16.mxu0 0
      %892 = vmatpush1.bf16.xpose.msra.mxu0 0
      %893 = vmatprep.subr.bf16.mxu0 0
      %894 = vmatpush1.bf16.xpose.msra.mxu0 0
      %895 = vmatprep.subr.bf16.mxu0 0
      %896 = vmatpush1.bf16.xpose.msra.mxu0 0
      %897 = vmatprep.subr.bf16.mxu0 0
      %898 = vmatpush1.bf16.xpose.msra.mxu0 %v889
      %899 = vmatprep.subr.bf16.mxu0 0
      %900 = vmatpush1.bf16.xpose.msra.mxu0 %v886
      %901 = vmatprep.subr.bf16.mxu0 0
      %902 = vmatpush1.bf16.xpose.msra.mxu0 %v883
      %903 = vmatprep.subr.bf16.mxu0 0
      %904 = vmatpush1.bf16.xpose.msra.mxu0 %v880
      %905 = vmatprep.subr.bf16.mxu0 0
      %906 = vmatpush1.bf16.xpose.msra.mxu0 %v877
      %907 = vmatprep.subr.bf16.mxu0 0
      %908 = vmatpush2.bf16.xpose.msra.mxu0 0
      %909 = vmatprep.subr.bf16.mxu0 0
      %910 = vmatpush2.bf16.xpose.msra.mxu0 0
      %911 = vmatprep.subr.bf16.mxu0 0
      %912 = vmatpush2.bf16.xpose.msra.mxu0 0
      %913 = vmatprep.subr.bf16.mxu0 0
      %914 = vmatpush2.bf16.xpose.msra.mxu0 0
      %915 = vmatprep.subr.bf16.mxu0 0
      %916 = vmatpush2.bf16.xpose.msra.mxu0 0
      %917 = vmatprep.subr.bf16.mxu0 0
      %918 = vmatpush2.bf16.xpose.msra.mxu0 0
      %919 = vmatprep.subr.bf16.mxu0 0
      %920 = vmatpush2.bf16.xpose.msra.mxu0 0
      %921 = vmatprep.subr.bf16.mxu0 0
      %922 = vmatpush2.bf16.xpose.msra.mxu0 0
      %923 = vmatprep.mubr.bf16.mxu0 0
      %924 = vmatmul.mubr.bf16.gmra.mxu0 %v862
      %v925 = vpop.f32.mrf.mxu0
      %v926 = vadd.f32 0.0, %v925
      %v927 = vpop.f32.mrf.mxu0
      %v928 = vpop.f32.mrf.mxu0
      %v929 = vadd.f32 0.0, %v928
      %v930 = vpop.f32.mrf.mxu0
      %931 = vmatprep.mubr.bf16.mxu0 0
      %932 = vmatmul.mubr.bf16.gmra.mxu0 %v865
      %v933 = vpop.f32.mrf.mxu0
      %v934 = vadd.f32 0.0, %v933
      %v935 = vpop.f32.mrf.mxu0
      %v936 = vpop.f32.mrf.mxu0
      %v937 = vadd.f32 0.0, %v936
      %v938 = vpop.f32.mrf.mxu0
      %939 = vmatprep.mubr.bf16.mxu0 0
      %940 = vmatmul.mubr.bf16.gmra.mxu0 %v868
      %v941 = vpop.f32.mrf.mxu0
      %v942 = vadd.f32 0.0, %v941
      %v943 = vpop.f32.mrf.mxu0
      %v944 = vpop.f32.mrf.mxu0
      %v945 = vadd.f32 0.0, %v944
      %v946 = vpop.f32.mrf.mxu0
      %947 = vmatprep.mubr.bf16.mxu0 0
      %948 = vmatmul.mubr.bf16.gmra.mxu0 %v871
      %v949 = vpop.f32.mrf.mxu0
      %v950 = vadd.f32 0.0, %v949
      %v951 = vpop.f32.mrf.mxu0
      %v952 = vpop.f32.mrf.mxu0
      %v953 = vadd.f32 0.0, %v952
      %v954 = vpop.f32.mrf.mxu0
      %955 = vmatprep.mubr.bf16.mxu0 0
      %956 = vmatmul.mubr.bf16.gmra.mxu0 %v874
      %v957 = vpop.f32.mrf.mxu0
      %v958 = vadd.f32 0.0, %v957
      %v959 = vpop.f32.mrf.mxu0
      %v960 = vpop.f32.mrf.mxu0
      %v961 = vadd.f32 0.0, %v960
      %v962 = vpop.f32.mrf.mxu0
      %963 = vdwg.mxu0
      %v964 = vsel %vm267, %v926, -inf
      %965 = vmax.xlane.f32.xlu0 %v964
      %v966 = vpop.xlane.xlu0 %965
      %v967 = vsel %vm267, %v929, -inf
      %968 = vmax.xlane.f32.xlu0 %v967
      %v969 = vpop.xlane.xlu0 %968
      %v970 = vsel %vm267, %v934, -inf
      %971 = vmax.xlane.f32.xlu0 %v970
      %v972 = vpop.xlane.xlu0 %971
      %v973 = vsel %vm267, %v937, -inf
      %974 = vmax.xlane.f32.xlu0 %v973
      %v975 = vpop.xlane.xlu0 %974
      %v976 = vsel %vm267, %v942, -inf
      %977 = vmax.xlane.f32.xlu0 %v976
      %v978 = vpop.xlane.xlu0 %977
      %v979 = vsel %vm267, %v945, -inf
      %980 = vmax.xlane.f32.xlu0 %v979
      %v981 = vpop.xlane.xlu0 %980
      %v982 = vsel %vm267, %v950, -inf
      %983 = vmax.xlane.f32.xlu0 %v982
      %v984 = vpop.xlane.xlu0 %983
      %v985 = vsel %vm267, %v953, -inf
      %986 = vmax.xlane.f32.xlu0 %v985
      %v987 = vpop.xlane.xlu0 %986
      %v988 = vsel %vm267, %v958, -inf
      %989 = vmax.xlane.f32.xlu0 %v988
      %v990 = vpop.xlane.xlu0 %989
      %v991 = vsel %vm295, %v961, -inf
      %992 = vmax.xlane.f32.xlu0 %v991
      %v993 = vpop.xlane.xlu0 %992
      %v994 = vsub.f32 %v926, %v966
      %v995 = vsub.f32 %v929, %v969
      %v996 = vsub.f32 %v934, %v972
      %v997 = vsub.f32 %v937, %v975
      %v998 = vsub.f32 %v942, %v978
      %v999 = vsub.f32 %v945, %v981
      %v1000 = vsub.f32 %v950, %v984
      %v1001 = vsub.f32 %v953, %v987
      %v1002 = vsub.f32 %v958, %v990
      %v1003 = vsub.f32 %v961, %v993
      %v1004 = vmul.f32 %v994, 1.442695
      %v1005 = vpow.pop %v1004
      %v1006 = vmul.f32 %v995, 1.442695
      %v1007 = vpow.pop %v1006
      %v1008 = vmul.f32 %v996, 1.442695
      %v1009 = vpow.pop %v1008
      %v1010 = vmul.f32 %v997, 1.442695
      %v1011 = vpow.pop %v1010
      %v1012 = vmul.f32 %v998, 1.442695
      %v1013 = vpow.pop %v1012
      %v1014 = vmul.f32 %v999, 1.442695
      %v1015 = vpow.pop %v1014
      %v1016 = vmul.f32 %v1000, 1.442695
      %v1017 = vpow.pop %v1016
      %v1018 = vmul.f32 %v1001, 1.442695
      %v1019 = vpow.pop %v1018
      %v1020 = vmul.f32 %v1002, 1.442695
      %v1021 = vpow.pop %v1020
      %v1022 = vmul.f32 %v1003, 1.442695
      %v1023 = vpow.pop %v1022
      %v1024 = vsel %vm267, %v1005, 0.0
      %1025 = vadd.xlane.f32.xlu0 %v1024
      %v1026 = vpop.xlane.xlu0 %1025
      %v1027 = vsel %vm267, %v1007, 0.0
      %1028 = vadd.xlane.f32.xlu0 %v1027
      %v1029 = vpop.xlane.xlu0 %1028
      %v1030 = vsel %vm267, %v1009, 0.0
      %1031 = vadd.xlane.f32.xlu0 %v1030
      %v1032 = vpop.xlane.xlu0 %1031
      %v1033 = vsel %vm267, %v1011, 0.0
      %1034 = vadd.xlane.f32.xlu0 %v1033
      %v1035 = vpop.xlane.xlu0 %1034
      %v1036 = vsel %vm267, %v1013, 0.0
      %1037 = vadd.xlane.f32.xlu0 %v1036
      %v1038 = vpop.xlane.xlu0 %1037
      %v1039 = vsel %vm267, %v1015, 0.0
      %1040 = vadd.xlane.f32.xlu0 %v1039
      %v1041 = vpop.xlane.xlu0 %1040
      %v1042 = vsel %vm267, %v1017, 0.0
      %1043 = vadd.xlane.f32.xlu0 %v1042
      %v1044 = vpop.xlane.xlu0 %1043
      %v1045 = vsel %vm267, %v1019, 0.0
      %1046 = vadd.xlane.f32.xlu0 %v1045
      %v1047 = vpop.xlane.xlu0 %1046
      %v1048 = vsel %vm267, %v1021, 0.0
      %1049 = vadd.xlane.f32.xlu0 %v1048
      %v1050 = vpop.xlane.xlu0 %1049
      %v1051 = vsel %vm295, %v1023, 0.0
      %1052 = vadd.xlane.f32.xlu0 %v1051
      %v1053 = vpop.xlane.xlu0 %1052
      %v1054 = vrcp.pop %v1026
      %v1055 = vrcp.pop %v1029
      %v1056 = vrcp.pop %v1032
      %v1057 = vrcp.pop %v1035
      %v1058 = vrcp.pop %v1038
      %v1059 = vrcp.pop %v1041
      %v1060 = vrcp.pop %v1044
      %v1061 = vrcp.pop %v1047
      %v1062 = vrcp.pop %v1050
      %v1063 = vrcp.pop %v1053
      %v1064 = vmul.f32 %v1005, %v1054
      %v1065 = vmul.f32 %v1007, %v1055
      %v1066 = vmul.f32 %v1009, %v1056
      %v1067 = vmul.f32 %v1011, %v1057
      %v1068 = vmul.f32 %v1013, %v1058
      %v1069 = vmul.f32 %v1015, %v1059
      %v1070 = vmul.f32 %v1017, %v1060
      %v1071 = vmul.f32 %v1019, %v1061
      %v1072 = vmul.f32 %v1021, %v1062
      %v1073 = vmul.f32 %v1023, %v1063
      %v1074 = vpack.c.bf16 %v1065, %v1064
      %v1075 = vpack.c.bf16 %v1067, %v1066
      %v1076 = vpack.c.bf16 %v1069, %v1068
      %v1077 = vpack.c.bf16 %v1071, %v1070
      %v1078 = vpack.c.bf16 %v1073, %v1072
      %1079 = vrot.lane.b32.xlu0 %v143, 48
      %v1080 = vpop.permute.xlu0 %1079
      %1081 = vrot.lane.b32.xlu0 %v144, 48
      %v1082 = vpop.permute.xlu0 %1081
      %1083 = vrot.lane.b32.xlu0 %v145, 48
      %v1084 = vpop.permute.xlu0 %1083
      %1085 = vrot.lane.b32.xlu0 %v146, 48
      %v1086 = vpop.permute.xlu0 %1085
      %1087 = vrot.lane.b32.xlu0 %v147, 48
      %v1088 = vpop.permute.xlu0 %1087
      %v1094 = vsel %vm267, %v1074, 0
      %v1097 = vsel %vm267, %v1075, 0
      %v1100 = vsel %vm267, %v1076, 0
      %v1103 = vsel %vm267, %v1077, 0
      %v1106 = vsel %vm267, %v1078, 0
      %v1109 = vand.u32 %v1088, %v416
      %1111 = vmatprep.subr.bf16.mxu0 0
      %1112 = vmatpush1.bf16.msra.mxu0 0
      %1113 = vmatprep.subr.bf16.mxu0 0
      %1114 = vmatpush1.bf16.msra.mxu0 0
      %1115 = vmatprep.subr.bf16.mxu0 0
      %1116 = vmatpush1.bf16.msra.mxu0 0
      %1117 = vmatprep.subr.bf16.mxu0 0
      %1118 = vmatpush1.bf16.msra.mxu0 %v1109
      %1119 = vmatprep.subr.bf16.mxu0 0
      %1120 = vmatpush1.bf16.msra.mxu0 %v1086
      %1121 = vmatprep.subr.bf16.mxu0 0
      %1122 = vmatpush1.bf16.msra.mxu0 %v1084
      %1123 = vmatprep.subr.bf16.mxu0 0
      %1124 = vmatpush1.bf16.msra.mxu0 %v1082
      %1125 = vmatprep.subr.bf16.mxu0 0
      %1126 = vmatpush1.bf16.msra.mxu0 %v1080
      %1127 = vmatprep.subr.bf16.mxu0 0
      %1128 = vmatpush2.bf16.msra.mxu0 0
      %1129 = vmatprep.subr.bf16.mxu0 0
      %1130 = vmatpush2.bf16.msra.mxu0 0
      %1131 = vmatprep.subr.bf16.mxu0 0
      %1132 = vmatpush2.bf16.msra.mxu0 0
      %1133 = vmatprep.subr.bf16.mxu0 0
      %1134 = vmatpush2.bf16.msra.mxu0 0
      %1135 = vmatprep.subr.bf16.mxu0 0
      %1136 = vmatpush2.bf16.msra.mxu0 0
      %1137 = vmatprep.subr.bf16.mxu0 0
      %1138 = vmatpush2.bf16.msra.mxu0 0
      %1139 = vmatprep.subr.bf16.mxu0 0
      %1140 = vmatpush2.bf16.msra.mxu0 0
      %1141 = vmatprep.subr.bf16.mxu0 0
      %1142 = vmatpush2.bf16.msra.mxu0 0
      %1143 = vmatprep.mubr.bf16.mxu0 0
      %1144 = vmatmul.mubr.bf16.gmra.mxu0 %v1094
      %v1145 = vpop.f32.mrf.mxu0
      %v1146 = vadd.f32 0.0, %v1145
      %v1147 = vpop.f32.mrf.mxu0
      %v1148 = vpop.f32.mrf.mxu0
      %v1149 = vadd.f32 0.0, %v1148
      %v1150 = vpop.f32.mrf.mxu0
      %1151 = vmatprep.mubr.bf16.mxu0 0
      %1152 = vmatmul.mubr.bf16.gmra.mxu0 %v1097
      %v1153 = vpop.f32.mrf.mxu0
      %v1154 = vadd.f32 0.0, %v1153
      %v1155 = vpop.f32.mrf.mxu0
      %v1156 = vpop.f32.mrf.mxu0
      %v1157 = vadd.f32 0.0, %v1156
      %v1158 = vpop.f32.mrf.mxu0
      %1159 = vmatprep.mubr.bf16.mxu0 0
      %1160 = vmatmul.mubr.bf16.gmra.mxu0 %v1100
      %v1161 = vpop.f32.mrf.mxu0
      %v1162 = vadd.f32 0.0, %v1161
      %v1163 = vpop.f32.mrf.mxu0
      %v1164 = vpop.f32.mrf.mxu0
      %v1165 = vadd.f32 0.0, %v1164
      %v1166 = vpop.f32.mrf.mxu0
      %1167 = vmatprep.mubr.bf16.mxu0 0
      %1168 = vmatmul.mubr.bf16.gmra.mxu0 %v1103
      %v1169 = vpop.f32.mrf.mxu0
      %v1170 = vadd.f32 0.0, %v1169
      %v1171 = vpop.f32.mrf.mxu0
      %v1172 = vpop.f32.mrf.mxu0
      %v1173 = vadd.f32 0.0, %v1172
      %v1174 = vpop.f32.mrf.mxu0
      %1175 = vmatprep.mubr.bf16.mxu0 0
      %1176 = vmatmul.mubr.bf16.gmra.mxu0 %v1106
      %v1177 = vpop.f32.mrf.mxu0
      %v1178 = vadd.f32 0.0, %v1177
      %v1179 = vpop.f32.mrf.mxu0
      %v1180 = vpop.f32.mrf.mxu0
      %v1181 = vadd.f32 0.0, %v1180
      %v1182 = vpop.f32.mrf.mxu0
      %1183 = vdwg.mxu0
      %1184 = vrot.lane.b32.xlu0 %v138, 104
      %v1185 = vpop.permute.xlu0 %1184
      %1186 = vrot.lane.b32.xlu0 %v139, 104
      %v1187 = vpop.permute.xlu0 %1186
      %1188 = vrot.lane.b32.xlu0 %v140, 104
      %v1189 = vpop.permute.xlu0 %1188
      %1190 = vrot.lane.b32.xlu0 %v141, 104
      %v1191 = vpop.permute.xlu0 %1190
      %1192 = vrot.lane.b32.xlu0 %v142, 104
      %v1193 = vpop.permute.xlu0 %1192
      %1194 = vrot.lane.b32.xlu0 %v143, 72
      %v1195 = vpop.permute.xlu0 %1194
      %1196 = vrot.lane.b32.xlu0 %v144, 72
      %v1197 = vpop.permute.xlu0 %1196
      %1198 = vrot.lane.b32.xlu0 %v145, 72
      %v1199 = vpop.permute.xlu0 %1198
      %1200 = vrot.lane.b32.xlu0 %v146, 72
      %v1201 = vpop.permute.xlu0 %1200
      %1202 = vrot.lane.b32.xlu0 %v147, 72
      %v1203 = vpop.permute.xlu0 %1202
      %v1205 = vsel %vm163, %v1185, 0
      %v1208 = vsel %vm163, %v1187, 0
      %v1211 = vsel %vm163, %v1189, 0
      %v1214 = vsel %vm163, %v1191, 0
      %v1217 = vsel %vm163, %v1193, 0
      %v1220 = vsel %vm163, %v1195, 0
      %v1223 = vsel %vm163, %v1197, 0
      %v1226 = vsel %vm163, %v1199, 0
      %v1229 = vsel %vm163, %v1201, 0
      %v1232 = vsel %vm163, %v1203, 0
      %1234 = vmatprep.subr.bf16.mxu0 0
      %1235 = vmatpush1.bf16.xpose.msra.mxu0 0
      %1236 = vmatprep.subr.bf16.mxu0 0
      %1237 = vmatpush1.bf16.xpose.msra.mxu0 0
      %1238 = vmatprep.subr.bf16.mxu0 0
      %1239 = vmatpush1.bf16.xpose.msra.mxu0 0
      %1240 = vmatprep.subr.bf16.mxu0 0
      %1241 = vmatpush1.bf16.xpose.msra.mxu0 %v1232
      %1242 = vmatprep.subr.bf16.mxu0 0
      %1243 = vmatpush1.bf16.xpose.msra.mxu0 %v1229
      %1244 = vmatprep.subr.bf16.mxu0 0
      %1245 = vmatpush1.bf16.xpose.msra.mxu0 %v1226
      %1246 = vmatprep.subr.bf16.mxu0 0
      %1247 = vmatpush1.bf16.xpose.msra.mxu0 %v1223
      %1248 = vmatprep.subr.bf16.mxu0 0
      %1249 = vmatpush1.bf16.xpose.msra.mxu0 %v1220
      %1250 = vmatprep.subr.bf16.mxu0 0
      %1251 = vmatpush2.bf16.xpose.msra.mxu0 0
      %1252 = vmatprep.subr.bf16.mxu0 0
      %1253 = vmatpush2.bf16.xpose.msra.mxu0 0
      %1254 = vmatprep.subr.bf16.mxu0 0
      %1255 = vmatpush2.bf16.xpose.msra.mxu0 0
      %1256 = vmatprep.subr.bf16.mxu0 0
      %1257 = vmatpush2.bf16.xpose.msra.mxu0 0
      %1258 = vmatprep.subr.bf16.mxu0 0
      %1259 = vmatpush2.bf16.xpose.msra.mxu0 0
      %1260 = vmatprep.subr.bf16.mxu0 0
      %1261 = vmatpush2.bf16.xpose.msra.mxu0 0
      %1262 = vmatprep.subr.bf16.mxu0 0
      %1263 = vmatpush2.bf16.xpose.msra.mxu0 0
      %1264 = vmatprep.subr.bf16.mxu0 0
      %1265 = vmatpush2.bf16.xpose.msra.mxu0 0
      %1266 = vmatprep.mubr.bf16.mxu0 0
      %1267 = vmatmul.mubr.bf16.gmra.mxu0 %v1205
      %v1268 = vpop.f32.mrf.mxu0
      %v1269 = vadd.f32 0.0, %v1268
      %v1270 = vpop.f32.mrf.mxu0
      %v1271 = vpop.f32.mrf.mxu0
      %v1272 = vadd.f32 0.0, %v1271
      %v1273 = vpop.f32.mrf.mxu0
      %1274 = vmatprep.mubr.bf16.mxu0 0
      %1275 = vmatmul.mubr.bf16.gmra.mxu0 %v1208
      %v1276 = vpop.f32.mrf.mxu0
      %v1277 = vadd.f32 0.0, %v1276
      %v1278 = vpop.f32.mrf.mxu0
      %v1279 = vpop.f32.mrf.mxu0
      %v1280 = vadd.f32 0.0, %v1279
      %v1281 = vpop.f32.mrf.mxu0
      %1282 = vmatprep.mubr.bf16.mxu0 0
      %1283 = vmatmul.mubr.bf16.gmra.mxu0 %v1211
      %v1284 = vpop.f32.mrf.mxu0
      %v1285 = vadd.f32 0.0, %v1284
      %v1286 = vpop.f32.mrf.mxu0
      %v1287 = vpop.f32.mrf.mxu0
      %v1288 = vadd.f32 0.0, %v1287
      %v1289 = vpop.f32.mrf.mxu0
      %1290 = vmatprep.mubr.bf16.mxu0 0
      %1291 = vmatmul.mubr.bf16.gmra.mxu0 %v1214
      %v1292 = vpop.f32.mrf.mxu0
      %v1293 = vadd.f32 0.0, %v1292
      %v1294 = vpop.f32.mrf.mxu0
      %v1295 = vpop.f32.mrf.mxu0
      %v1296 = vadd.f32 0.0, %v1295
      %v1297 = vpop.f32.mrf.mxu0
      %1298 = vmatprep.mubr.bf16.mxu0 0
      %1299 = vmatmul.mubr.bf16.gmra.mxu0 %v1217
      %v1300 = vpop.f32.mrf.mxu0
      %v1301 = vadd.f32 0.0, %v1300
      %v1302 = vpop.f32.mrf.mxu0
      %v1303 = vpop.f32.mrf.mxu0
      %v1304 = vadd.f32 0.0, %v1303
      %v1305 = vpop.f32.mrf.mxu0
      %1306 = vdwg.mxu0
      %v1307 = vsel %vm267, %v1269, -inf
      %1308 = vmax.xlane.f32.xlu0 %v1307
      %v1309 = vpop.xlane.xlu0 %1308
      %v1310 = vsel %vm267, %v1272, -inf
      %1311 = vmax.xlane.f32.xlu0 %v1310
      %v1312 = vpop.xlane.xlu0 %1311
      %v1313 = vsel %vm267, %v1277, -inf
      %1314 = vmax.xlane.f32.xlu0 %v1313
      %v1315 = vpop.xlane.xlu0 %1314
      %v1316 = vsel %vm267, %v1280, -inf
      %1317 = vmax.xlane.f32.xlu0 %v1316
      %v1318 = vpop.xlane.xlu0 %1317
      %v1319 = vsel %vm267, %v1285, -inf
      %1320 = vmax.xlane.f32.xlu0 %v1319
      %v1321 = vpop.xlane.xlu0 %1320
      %v1322 = vsel %vm267, %v1288, -inf
      %1323 = vmax.xlane.f32.xlu0 %v1322
      %v1324 = vpop.xlane.xlu0 %1323
      %v1325 = vsel %vm267, %v1293, -inf
      %1326 = vmax.xlane.f32.xlu0 %v1325
      %v1327 = vpop.xlane.xlu0 %1326
      %v1328 = vsel %vm267, %v1296, -inf
      %1329 = vmax.xlane.f32.xlu0 %v1328
      %v1330 = vpop.xlane.xlu0 %1329
      %v1331 = vsel %vm267, %v1301, -inf
      %1332 = vmax.xlane.f32.xlu0 %v1331
      %v1333 = vpop.xlane.xlu0 %1332
      %v1334 = vsel %vm295, %v1304, -inf
      %1335 = vmax.xlane.f32.xlu0 %v1334
      %v1336 = vpop.xlane.xlu0 %1335
      %v1337 = vsub.f32 %v1269, %v1309
      %v1338 = vsub.f32 %v1272, %v1312
      %v1339 = vsub.f32 %v1277, %v1315
      %v1340 = vsub.f32 %v1280, %v1318
      %v1341 = vsub.f32 %v1285, %v1321
      %v1342 = vsub.f32 %v1288, %v1324
      %v1343 = vsub.f32 %v1293, %v1327
      %v1344 = vsub.f32 %v1296, %v1330
      %v1345 = vsub.f32 %v1301, %v1333
      %v1346 = vsub.f32 %v1304, %v1336
      %v1347 = vmul.f32 %v1337, 1.442695
      %v1348 = vpow.pop %v1347
      %v1349 = vmul.f32 %v1338, 1.442695
      %v1350 = vpow.pop %v1349
      %v1351 = vmul.f32 %v1339, 1.442695
      %v1352 = vpow.pop %v1351
      %v1353 = vmul.f32 %v1340, 1.442695
      %v1354 = vpow.pop %v1353
      %v1355 = vmul.f32 %v1341, 1.442695
      %v1356 = vpow.pop %v1355
      %v1357 = vmul.f32 %v1342, 1.442695
      %v1358 = vpow.pop %v1357
      %v1359 = vmul.f32 %v1343, 1.442695
      %v1360 = vpow.pop %v1359
      %v1361 = vmul.f32 %v1344, 1.442695
      %v1362 = vpow.pop %v1361
      %v1363 = vmul.f32 %v1345, 1.442695
      %v1364 = vpow.pop %v1363
      %v1365 = vmul.f32 %v1346, 1.442695
      %v1366 = vpow.pop %v1365
      %v1367 = vsel %vm267, %v1348, 0.0
      %1368 = vadd.xlane.f32.xlu0 %v1367
      %v1369 = vpop.xlane.xlu0 %1368
      %v1370 = vsel %vm267, %v1350, 0.0
      %1371 = vadd.xlane.f32.xlu0 %v1370
      %v1372 = vpop.xlane.xlu0 %1371
      %v1373 = vsel %vm267, %v1352, 0.0
      %1374 = vadd.xlane.f32.xlu0 %v1373
      %v1375 = vpop.xlane.xlu0 %1374
      %v1376 = vsel %vm267, %v1354, 0.0
      %1377 = vadd.xlane.f32.xlu0 %v1376
      %v1378 = vpop.xlane.xlu0 %1377
      %v1379 = vsel %vm267, %v1356, 0.0
      %1380 = vadd.xlane.f32.xlu0 %v1379
      %v1381 = vpop.xlane.xlu0 %1380
      %v1382 = vsel %vm267, %v1358, 0.0
      %1383 = vadd.xlane.f32.xlu0 %v1382
      %v1384 = vpop.xlane.xlu0 %1383
      %v1385 = vsel %vm267, %v1360, 0.0
      %1386 = vadd.xlane.f32.xlu0 %v1385
      %v1387 = vpop.xlane.xlu0 %1386
      %v1388 = vsel %vm267, %v1362, 0.0
      %1389 = vadd.xlane.f32.xlu0 %v1388
      %v1390 = vpop.xlane.xlu0 %1389
      %v1391 = vsel %vm267, %v1364, 0.0
      %1392 = vadd.xlane.f32.xlu0 %v1391
      %v1393 = vpop.xlane.xlu0 %1392
      %v1394 = vsel %vm295, %v1366, 0.0
      %1395 = vadd.xlane.f32.xlu0 %v1394
      %v1396 = vpop.xlane.xlu0 %1395
      %v1397 = vrcp.pop %v1369
      %v1398 = vrcp.pop %v1372
      %v1399 = vrcp.pop %v1375
      %v1400 = vrcp.pop %v1378
      %v1401 = vrcp.pop %v1381
      %v1402 = vrcp.pop %v1384
      %v1403 = vrcp.pop %v1387
      %v1404 = vrcp.pop %v1390
      %v1405 = vrcp.pop %v1393
      %v1406 = vrcp.pop %v1396
      %v1407 = vmul.f32 %v1348, %v1397
      %v1408 = vmul.f32 %v1350, %v1398
      %v1409 = vmul.f32 %v1352, %v1399
      %v1410 = vmul.f32 %v1354, %v1400
      %v1411 = vmul.f32 %v1356, %v1401
      %v1412 = vmul.f32 %v1358, %v1402
      %v1413 = vmul.f32 %v1360, %v1403
      %v1414 = vmul.f32 %v1362, %v1404
      %v1415 = vmul.f32 %v1364, %v1405
      %v1416 = vmul.f32 %v1366, %v1406
      %v1417 = vpack.c.bf16 %v1408, %v1407
      %v1418 = vpack.c.bf16 %v1410, %v1409
      %v1419 = vpack.c.bf16 %v1412, %v1411
      %v1420 = vpack.c.bf16 %v1414, %v1413
      %v1421 = vpack.c.bf16 %v1416, %v1415
      %1422 = vrot.lane.b32.xlu0 %v143, 40
      %v1423 = vpop.permute.xlu0 %1422
      %1424 = vrot.lane.b32.xlu0 %v144, 40
      %v1425 = vpop.permute.xlu0 %1424
      %1426 = vrot.lane.b32.xlu0 %v145, 40
      %v1427 = vpop.permute.xlu0 %1426
      %1428 = vrot.lane.b32.xlu0 %v146, 40
      %v1429 = vpop.permute.xlu0 %1428
      %1430 = vrot.lane.b32.xlu0 %v147, 40
      %v1431 = vpop.permute.xlu0 %1430
      %v1437 = vsel %vm267, %v1417, 0
      %v1440 = vsel %vm267, %v1418, 0
      %v1443 = vsel %vm267, %v1419, 0
      %v1446 = vsel %vm267, %v1420, 0
      %v1449 = vsel %vm267, %v1421, 0
      %v1452 = vand.u32 %v1431, %v416
      %1454 = vmatprep.subr.bf16.mxu0 0
      %1455 = vmatpush1.bf16.msra.mxu0 0
      %1456 = vmatprep.subr.bf16.mxu0 0
      %1457 = vmatpush1.bf16.msra.mxu0 0
      %1458 = vmatprep.subr.bf16.mxu0 0
      %1459 = vmatpush1.bf16.msra.mxu0 0
      %1460 = vmatprep.subr.bf16.mxu0 0
      %1461 = vmatpush1.bf16.msra.mxu0 %v1452
      %1462 = vmatprep.subr.bf16.mxu0 0
      %1463 = vmatpush1.bf16.msra.mxu0 %v1429
      %1464 = vmatprep.subr.bf16.mxu0 0
      %1465 = vmatpush1.bf16.msra.mxu0 %v1427
      %1466 = vmatprep.subr.bf16.mxu0 0
      %1467 = vmatpush1.bf16.msra.mxu0 %v1425
      %1468 = vmatprep.subr.bf16.mxu0 0
      %1469 = vmatpush1.bf16.msra.mxu0 %v1423
      %1470 = vmatprep.subr.bf16.mxu0 0
      %1471 = vmatpush2.bf16.msra.mxu0 0
      %1472 = vmatprep.subr.bf16.mxu0 0
      %1473 = vmatpush2.bf16.msra.mxu0 0
      %1474 = vmatprep.subr.bf16.mxu0 0
      %1475 = vmatpush2.bf16.msra.mxu0 0
      %1476 = vmatprep.subr.bf16.mxu0 0
      %1477 = vmatpush2.bf16.msra.mxu0 0
      %1478 = vmatprep.subr.bf16.mxu0 0
      %1479 = vmatpush2.bf16.msra.mxu0 0
      %1480 = vmatprep.subr.bf16.mxu0 0
      %1481 = vmatpush2.bf16.msra.mxu0 0
      %1482 = vmatprep.subr.bf16.mxu0 0
      %1483 = vmatpush2.bf16.msra.mxu0 0
      %1484 = vmatprep.subr.bf16.mxu0 0
      %1485 = vmatpush2.bf16.msra.mxu0 0
      %1486 = vmatprep.mubr.bf16.mxu0 0
      %1487 = vmatmul.mubr.bf16.gmra.mxu0 %v1437
      %v1488 = vpop.f32.mrf.mxu0
      %v1489 = vadd.f32 0.0, %v1488
      %v1490 = vpop.f32.mrf.mxu0
      %v1491 = vpop.f32.mrf.mxu0
      %v1492 = vadd.f32 0.0, %v1491
      %v1493 = vpop.f32.mrf.mxu0
      %1494 = vmatprep.mubr.bf16.mxu0 0
      %1495 = vmatmul.mubr.bf16.gmra.mxu0 %v1440
      %v1496 = vpop.f32.mrf.mxu0
      %v1497 = vadd.f32 0.0, %v1496
      %v1498 = vpop.f32.mrf.mxu0
      %v1499 = vpop.f32.mrf.mxu0
      %v1500 = vadd.f32 0.0, %v1499
      %v1501 = vpop.f32.mrf.mxu0
      %1502 = vmatprep.mubr.bf16.mxu0 0
      %1503 = vmatmul.mubr.bf16.gmra.mxu0 %v1443
      %v1504 = vpop.f32.mrf.mxu0
      %v1505 = vadd.f32 0.0, %v1504
      %v1506 = vpop.f32.mrf.mxu0
      %v1507 = vpop.f32.mrf.mxu0
      %v1508 = vadd.f32 0.0, %v1507
      %v1509 = vpop.f32.mrf.mxu0
      %1510 = vmatprep.mubr.bf16.mxu0 0
      %1511 = vmatmul.mubr.bf16.gmra.mxu0 %v1446
      %v1512 = vpop.f32.mrf.mxu0
      %v1513 = vadd.f32 0.0, %v1512
      %v1514 = vpop.f32.mrf.mxu0
      %v1515 = vpop.f32.mrf.mxu0
      %v1516 = vadd.f32 0.0, %v1515
      %v1517 = vpop.f32.mrf.mxu0
      %1518 = vmatprep.mubr.bf16.mxu0 0
      %1519 = vmatmul.mubr.bf16.gmra.mxu0 %v1449
      %v1520 = vpop.f32.mrf.mxu0
      %v1521 = vadd.f32 0.0, %v1520
      %v1522 = vpop.f32.mrf.mxu0
      %v1523 = vpop.f32.mrf.mxu0
      %v1524 = vadd.f32 0.0, %v1523
      %v1525 = vpop.f32.mrf.mxu0
      %1526 = vdwg.mxu0
      %1537 = vrot.lane.b32.xlu0 %v803, 8
      %v1538 = vpop.permute.xlu0 %1537
      %1539 = vrot.lane.b32.xlu0 %v806, 8
      %v1540 = vpop.permute.xlu0 %1539
      %1541 = vrot.lane.b32.xlu0 %v811, 8
      %v1542 = vpop.permute.xlu0 %1541
      %1543 = vrot.lane.b32.xlu0 %v814, 8
      %v1544 = vpop.permute.xlu0 %1543
      %1545 = vrot.lane.b32.xlu0 %v819, 8
      %v1546 = vpop.permute.xlu0 %1545
      %1547 = vrot.lane.b32.xlu0 %v822, 8
      %v1548 = vpop.permute.xlu0 %1547
      %1549 = vrot.lane.b32.xlu0 %v827, 8
      %v1550 = vpop.permute.xlu0 %1549
      %1551 = vrot.lane.b32.xlu0 %v830, 8
      %v1552 = vpop.permute.xlu0 %1551
      %1553 = vrot.lane.b32.xlu0 %v835, 8
      %v1554 = vpop.permute.xlu0 %1553
      %1555 = vrot.lane.b32.xlu0 %v838, 8
      %v1556 = vpop.permute.xlu0 %1555
      %1577 = vrot.lane.b32.xlu0 %v1146, 16
      %v1578 = vpop.permute.xlu0 %1577
      %1579 = vrot.lane.b32.xlu0 %v1149, 16
      %v1580 = vpop.permute.xlu0 %1579
      %1581 = vrot.lane.b32.xlu0 %v1154, 16
      %v1582 = vpop.permute.xlu0 %1581
      %1583 = vrot.lane.b32.xlu0 %v1157, 16
      %v1584 = vpop.permute.xlu0 %1583
      %1585 = vrot.lane.b32.xlu0 %v1162, 16
      %v1586 = vpop.permute.xlu0 %1585
      %1587 = vrot.lane.b32.xlu0 %v1165, 16
      %v1588 = vpop.permute.xlu0 %1587
      %1589 = vrot.lane.b32.xlu0 %v1170, 16
      %v1590 = vpop.permute.xlu0 %1589
      %1591 = vrot.lane.b32.xlu0 %v1173, 16
      %v1592 = vpop.permute.xlu0 %1591
      %1593 = vrot.lane.b32.xlu0 %v1178, 16
      %v1594 = vpop.permute.xlu0 %1593
      %1595 = vrot.lane.b32.xlu0 %v1181, 16
      %v1596 = vpop.permute.xlu0 %1595
      %1617 = vrot.lane.b32.xlu0 %v1489, 24
      %v1618 = vpop.permute.xlu0 %1617
      %1619 = vrot.lane.b32.xlu0 %v1492, 24
      %v1620 = vpop.permute.xlu0 %1619
      %1621 = vrot.lane.b32.xlu0 %v1497, 24
      %v1622 = vpop.permute.xlu0 %1621
      %1623 = vrot.lane.b32.xlu0 %v1500, 24
      %v1624 = vpop.permute.xlu0 %1623
      %1625 = vrot.lane.b32.xlu0 %v1505, 24
      %v1626 = vpop.permute.xlu0 %1625
      %1627 = vrot.lane.b32.xlu0 %v1508, 24
      %v1628 = vpop.permute.xlu0 %1627
      %1629 = vrot.lane.b32.xlu0 %v1513, 24
      %v1630 = vpop.permute.xlu0 %1629
      %1631 = vrot.lane.b32.xlu0 %v1516, 24
      %v1632 = vpop.permute.xlu0 %1631
      %1633 = vrot.lane.b32.xlu0 %v1521, 24
      %v1634 = vpop.permute.xlu0 %1633
      %1635 = vrot.lane.b32.xlu0 %v1524, 24
      %v1636 = vpop.permute.xlu0 %1635
      %v1647 = vsel %vm163, %v455, %v1538
      %v1648 = vsel %vm163, %v458, %v1540
      %v1649 = vsel %vm163, %v463, %v1542
      %v1650 = vsel %vm163, %v466, %v1544
      %v1651 = vsel %vm163, %v471, %v1546
      %v1652 = vsel %vm163, %v474, %v1548
      %v1653 = vsel %vm163, %v479, %v1550
      %v1654 = vsel %vm163, %v482, %v1552
      %v1655 = vsel %vm163, %v487, %v1554
      %v1656 = vsel %vm163, %v490, %v1556
      %vm1657 = vcmask 130048
      %v1658 = vsel %vm1657, %v1647, %v1578
      %v1659 = vsel %vm1657, %v1648, %v1580
      %v1660 = vsel %vm1657, %v1649, %v1582
      %v1661 = vsel %vm1657, %v1650, %v1584
      %v1662 = vsel %vm1657, %v1651, %v1586
      %v1663 = vsel %vm1657, %v1652, %v1588
      %v1664 = vsel %vm1657, %v1653, %v1590
      %v1665 = vsel %vm1657, %v1654, %v1592
      %v1666 = vsel %vm1657, %v1655, %v1594
      %v1667 = vsel %vm1657, %v1656, %v1596
      %vm1668 = vcmask 195584
      %v1669 = vsel %vm1668, %v1658, %v1618
      %v1670 = vsel %vm1668, %v1659, %v1620
      %v1671 = vsel %vm1668, %v1660, %v1622
      %v1672 = vsel %vm1668, %v1661, %v1624
      %v1673 = vsel %vm1668, %v1662, %v1626
      %v1674 = vsel %vm1668, %v1663, %v1628
      %v1675 = vsel %vm1668, %v1664, %v1630
      %v1676 = vsel %vm1668, %v1665, %v1632
      %v1677 = vsel %vm1668, %v1666, %v1634
      %v1678 = vsel %vm1668, %v1667, %v1636
      %vm1679 = vcmask 261120
      %1680 = vst.msk [vmem:[%s116] sm:$0xff] %vm1679, %v1669
      %1681 = vst.msk [vmem:[%s116 + $0x8] sm:$0xff] %vm1679, %v1670
      %1682 = vst.msk [vmem:[%s116 + $0x10] sm:$0xff] %vm1679, %v1671
      %1683 = vst.msk [vmem:[%s116 + $0x18] sm:$0xff] %vm1679, %v1672
      %1684 = vst.msk [vmem:[%s116 + $0x20] sm:$0xff] %vm1679, %v1673
      %1685 = vst.msk [vmem:[%s116 + $0x28] sm:$0xff] %vm1679, %v1674
      %1686 = vst.msk [vmem:[%s116 + $0x30] sm:$0xff] %vm1679, %v1675
      %1687 = vst.msk [vmem:[%s116 + $0x38] sm:$0xff] %vm1679, %v1676
      %1688 = vst.msk [vmem:[%s116 + $0x40] sm:$0xff] %vm1679, %v1677
      %vm1689 = vcmask 260096
      %1690 = vst.msk [vmem:[%s116 + $0x48] sm:$0x7f] %vm1689, %v1678
      %p1691 = scmp.lt.s32.totalorder %s12, 1
      %s1692 = scalar_select %p1691, %s12, 1
      %s1693 = smul.addr %s1692, 10
      %s1694 = smul.addr %s1693, 8
      %s1695 = scalar_lea.vmem %s1, %s1694
      // Predicated region
      $region25: #{_lambda_.23} parent=23 // pred_check
        %p1696 = pneg %p56
      $region26: #{_lambda_.23} parent=23 // pred_check_branch
        %1698 = sbr.rel (%p1696) target = $region28
      $region27: #{_lambda_.23} parent=23 // pred_region
        _
      $region28: #{_lambda_.23} parent=23 // pred_fallthru
        _
    $region24: #{_lambda_.23} parent=5 // pred_fallthru
      _
    %p1699 = scmp.le.s32.totalorder 2, %s7
    // Predicated region
    $region29: #{_lambda_.23} parent=5 // pred_check
      %p1700 = pneg %p1699
    $region30: #{_lambda_.23} parent=5 // pred_check_branch
      %1702 = sbr.rel (%p1700) target = $region32
    $region31: #{_lambda_.23} parent=5 // pred_region
      %s1703 = ssub.s32 %s7, 2
      // Predicated region
      $region33: #{_lambda_.23} parent=31 // pred_check
        %p1704 = pneg %p62
      $region34: #{_lambda_.23} parent=31 // pred_check_branch
        %1706 = sbr.rel (%p1704) target = $region36
      $region35: #{_lambda_.23} parent=31 // pred_region
        %p1707 = scmp.lt.s32.totalorder %s13, 1
        %s1708 = scalar_select %p1707, %s13, 1
        %s1709 = smul.addr %s1708, 10
        %s1710 = smul.addr %s1709, 8
        %s1711 = scalar_lea.vmem %s1, %s1710
      $region36: #{_lambda_.23} parent=31 // pred_fallthru
        _
    $region32: #{_lambda_.23} parent=5 // pred_fallthru
      _
  $region6: #{_lambda_.23} parent=0 // loop_footer
    %s11 = sadd.s32 1, %s7
  $region7: #{_lambda_.23} parent=0 // loop_footer_branch
    %6 = sbr.rel target = $region3
  $region8: #{_lambda_.23} parent=0 // loop_exit
    _

// kernel: _lambda_.24
$region0: #{_lambda_.24}
  #allocation0 [shape = 'u32[]', space=smem, size = 0x4, offset = 0x4, fixed_abs, tag = 'smem constant byte address 0x4 - core index']
  #allocation1 [shape = 'u32[144,128]{1,0:T(1,128)}', space=vmem, size = 0x12000, scoped, tag = 'internal scratch']
  #allocation2 [shape = 'f32[158,32]{1,0:T(8,128)}', space=vmem, size = 0x14000, scoped, tag = 'scratch operand']
  %s0 = inlined_call_operand.vmem [shape: f32[158,32], index: 0, kind: input, shape index: {}]
  %s1 = inlined_call_operand.vmem [shape: f32[32,32], index: 1, kind: input, shape index: {}]
  %s2 = inlined_call_operand.vmem [shape: f32[1,32], index: 2, kind: input, shape index: {}]
  %s3 = inlined_call_operand.vmem [shape: f32[158,32], index: 3, kind: input, shape index: {}]
  %s4 = inlined_call_operand.vmem [shape: f32[1,32], index: 4, kind: input, shape index: {}]
  %s5 = inlined_call_operand.vmem [shape: f32[1,32], index: 5, kind: input, shape index: {}]
  %s6 = inlined_call_operand.vmem [shape: f32[158,32], index: 6, kind: output, shape index: {}]
  %s7 = sld [smem:[#allocation0]]
  $region42: #{_lambda_.24} parent=0
    _
  %s9 = ssub.s32 1, %s7
  %s10 = scalar_select 0, %s9, %s7
  // Predicated region
  $region2: #{_lambda_.24} parent=0 // pred_check
    _
  $region3: #{_lambda_.24} parent=0 // pred_check_branch
    %12 = sbr.rel (0) target = $region5
  $region4: #{_lambda_.24} parent=0 // pred_region
    _
  $region5: #{_lambda_.24} parent=0 // pred_fallthru
    _
  // Predicated region
  $region6: #{_lambda_.24} parent=0 // pred_check
    _
  $region7: #{_lambda_.24} parent=0 // pred_check_branch
    %14 = sbr.rel (0) target = $region9
  $region8: #{_lambda_.24} parent=0 // pred_region
    _
  $region9: #{_lambda_.24} parent=0 // pred_fallthru
    _
  // Predicated region
  $region10: #{_lambda_.24} parent=0 // pred_check
    _
  $region11: #{_lambda_.24} parent=0 // pred_check_branch
    %16 = sbr.rel (0) target = $region13
  $region12: #{_lambda_.24} parent=0 // pred_region
    _
  $region13: #{_lambda_.24} parent=0 // pred_fallthru
    _
  // Predicated region
  $region14: #{_lambda_.24} parent=0 // pred_check
    _
  $region15: #{_lambda_.24} parent=0 // pred_check_branch
    %18 = sbr.rel (0) target = $region17
  $region16: #{_lambda_.24} parent=0 // pred_region
    _
  $region17: #{_lambda_.24} parent=0 // pred_fallthru
    _
  // Predicated region
  $region18: #{_lambda_.24} parent=0 // pred_check
    _
  $region19: #{_lambda_.24} parent=0 // pred_check_branch
    %20 = sbr.rel (0) target = $region21
  $region20: #{_lambda_.24} parent=0 // pred_region
    _
  $region21: #{_lambda_.24} parent=0 // pred_fallthru
    _
  // Predicated region
  $region22: #{_lambda_.24} parent=0 // pred_check
    _
  $region23: #{_lambda_.24} parent=0 // pred_check_branch
    %22 = sbr.rel (0) target = $region25
  $region24: #{_lambda_.24} parent=0 // pred_region
    _
  $region25: #{_lambda_.24} parent=0 // pred_fallthru
    _
  %p24 = scmp.eq.s32.totalorder 0, 0
  // Predicated region
  $region26: #{_lambda_.24} parent=0 // pred_check
    %p25 = pneg %p24
  $region27: #{_lambda_.24} parent=0 // pred_check_branch
    %27 = sbr.rel (%p25) target = $region29
  $region28: #{_lambda_.24} parent=0 // pred_region
    %vm28 = vcmask 261120
    %29 = vst.msk [vmem:[#allocation2] sm:$0xff] %vm28, 0.0
    %30 = vst.msk [vmem:[#allocation2 + $0x8] sm:$0xff] %vm28, 0.0
    %31 = vst.msk [vmem:[#allocation2 + $0x10] sm:$0xff] %vm28, 0.0
    %32 = vst.msk [vmem:[#allocation2 + $0x18] sm:$0xff] %vm28, 0.0
    %33 = vst.msk [vmem:[#allocation2 + $0x20] sm:$0xff] %vm28, 0.0
    %34 = vst.msk [vmem:[#allocation2 + $0x28] sm:$0xff] %vm28, 0.0
    %35 = vst.msk [vmem:[#allocation2 + $0x30] sm:$0xff] %vm28, 0.0
    %36 = vst.msk [vmem:[#allocation2 + $0x38] sm:$0xff] %vm28, 0.0
    %37 = vst.msk [vmem:[#allocation2 + $0x40] sm:$0xff] %vm28, 0.0
    %38 = vst.msk [vmem:[#allocation2 + $0x48] sm:$0xff] %vm28, 0.0
    %39 = vst.msk [vmem:[#allocation2 + $0x50] sm:$0xff] %vm28, 0.0
    %40 = vst.msk [vmem:[#allocation2 + $0x58] sm:$0xff] %vm28, 0.0
    %41 = vst.msk [vmem:[#allocation2 + $0x60] sm:$0xff] %vm28, 0.0
    %42 = vst.msk [vmem:[#allocation2 + $0x68] sm:$0xff] %vm28, 0.0
    %43 = vst.msk [vmem:[#allocation2 + $0x70] sm:$0xff] %vm28, 0.0
    %44 = vst.msk [vmem:[#allocation2 + $0x78] sm:$0xff] %vm28, 0.0
    %45 = vst.msk [vmem:[#allocation2 + $0x80] sm:$0xff] %vm28, 0.0
    %46 = vst.msk [vmem:[#allocation2 + $0x88] sm:$0xff] %vm28, 0.0
    %47 = vst.msk [vmem:[#allocation2 + $0x90] sm:$0xff] %vm28, 0.0
    %vm48 = vcmask 259072
    %49 = vst.msk [vmem:[#allocation2 + $0x98] sm:$0x3f] %vm48, 0.0
  $region29: #{_lambda_.24} parent=0 // pred_fallthru
    _
  %v50 = vld [vmem:[#allocation2] sm:$0xff]
  %v51 = vld [vmem:[#allocation2 + $0x8] sm:$0xff]
  %v52 = vld [vmem:[#allocation2 + $0x10] sm:$0xff]
  %v53 = vld [vmem:[#allocation2 + $0x18] sm:$0xff]
  %v54 = vld [vmem:[#allocation2 + $0x20] sm:$0xff]
  %v55 = vld [vmem:[#allocation2 + $0x28] sm:$0xff]
  %v56 = vld [vmem:[#allocation2 + $0x30] sm:$0xff]
  %v57 = vld [vmem:[#allocation2 + $0x38] sm:$0xff]
  %v58 = vld [vmem:[#allocation2 + $0x40] sm:$0xff]
  %v59 = vld [vmem:[#allocation2 + $0x48] sm:$0xff]
  %v60 = vld [vmem:[#allocation2 + $0x50] sm:$0xff]
  %v61 = vld [vmem:[#allocation2 + $0x58] sm:$0xff]
  %v62 = vld [vmem:[#allocation2 + $0x60] sm:$0xff]
  %v63 = vld [vmem:[#allocation2 + $0x68] sm:$0xff]
  %v64 = vld [vmem:[#allocation2 + $0x70] sm:$0xff]
  %v65 = vld [vmem:[#allocation2 + $0x78] sm:$0xff]
  %v66 = vld [vmem:[#allocation2 + $0x80] sm:$0xff]
  %v67 = vld [vmem:[#allocation2 + $0x88] sm:$0xff]
  %v68 = vld [vmem:[#allocation2 + $0x90] sm:$0xff]
  %v69 = vld [vmem:[#allocation2 + $0x98] sm:$0x3f]
  %v70 = vld [vmem:[%s0] sm:$0xff]
  %v71 = vld [vmem:[%s0 + $0x8] sm:$0xff]
  %v72 = vld [vmem:[%s0 + $0x10] sm:$0xff]
  %v73 = vld [vmem:[%s0 + $0x18] sm:$0xff]
  %v74 = vld [vmem:[%s0 + $0x20] sm:$0xff]
  %v75 = vld [vmem:[%s0 + $0x28] sm:$0xff]
  %v76 = vld [vmem:[%s0 + $0x30] sm:$0xff]
  %v77 = vld [vmem:[%s0 + $0x38] sm:$0xff]
  %v78 = vld [vmem:[%s0 + $0x40] sm:$0xff]
  %v79 = vld [vmem:[%s0 + $0x48] sm:$0xff]
  %v80 = vld [vmem:[%s0 + $0x50] sm:$0xff]
  %v81 = vld [vmem:[%s0 + $0x58] sm:$0xff]
  %v82 = vld [vmem:[%s0 + $0x60] sm:$0xff]
  %v83 = vld [vmem:[%s0 + $0x68] sm:$0xff]
  %v84 = vld [vmem:[%s0 + $0x70] sm:$0xff]
  %v85 = vld [vmem:[%s0 + $0x78] sm:$0xff]
  %v86 = vld [vmem:[%s0 + $0x80] sm:$0xff]
  %v87 = vld [vmem:[%s0 + $0x88] sm:$0xff]
  %v88 = vld [vmem:[%s0 + $0x90] sm:$0xff]
  %v89 = vld [vmem:[%s0 + $0x98] sm:$0x3f]
  %v90 = vpack.c.bf16 %v71, %v70
  %v91 = vpack.c.bf16 %v73, %v72
  %v92 = vpack.c.bf16 %v75, %v74
  %v93 = vpack.c.bf16 %v77, %v76
  %v94 = vpack.c.bf16 %v79, %v78
  %v95 = vpack.c.bf16 %v81, %v80
  %v96 = vpack.c.bf16 %v83, %v82
  %v97 = vpack.c.bf16 %v85, %v84
  %v98 = vpack.c.bf16 %v87, %v86
  %v99 = vpack.c.bf16 %v89, %v88
  %v100 = vld [vmem:[%s1] sm:$0xff]
  %v101 = vld [vmem:[%s1 + $0x8] sm:$0xff]
  %v102 = vld [vmem:[%s1 + $0x10] sm:$0xff]
  %v103 = vld [vmem:[%s1 + $0x18] sm:$0xff]
  %v104 = vpack.c.bf16 %v101, %v100
  %v105 = vpack.c.bf16 %v103, %v102
  %vm106 = vcmask 261120
  %v108 = vsel %vm106, %v90, 0
  %v111 = vsel %vm106, %v91, 0
  %v114 = vsel %vm106, %v92, 0
  %v117 = vsel %vm106, %v93, 0
  %v120 = vsel %vm106, %v94, 0
  %v123 = vsel %vm106, %v95, 0
  %v126 = vsel %vm106, %v96, 0
  %v129 = vsel %vm106, %v97, 0
  %v132 = vsel %vm106, %v98, 0
  %v135 = vsel %vm106, %v99, 0
  %137 = vmatprep.subr.bf16.mxu0 0
  %138 = vmatpush1.bf16.msra.mxu0 0
  %139 = vmatprep.subr.bf16.mxu0 0
  %140 = vmatpush1.bf16.msra.mxu0 0
  %141 = vmatprep.subr.bf16.mxu0 0
  %142 = vmatpush1.bf16.msra.mxu0 0
  %143 = vmatprep.subr.bf16.mxu0 0
  %144 = vmatpush1.bf16.msra.mxu0 0
  %145 = vmatprep.subr.bf16.mxu0 0
  %146 = vmatpush1.bf16.msra.mxu0 0
  %147 = vmatprep.subr.bf16.mxu0 0
  %148 = vmatpush1.bf16.msra.mxu0 0
  %149 = vmatprep.subr.bf16.mxu0 0
  %150 = vmatpush1.bf16.msra.mxu0 %v105
  %151 = vmatprep.subr.bf16.mxu0 0
  %152 = vmatpush1.bf16.msra.mxu0 %v104
  %153 = vmatprep.subr.bf16.mxu0 0
  %154 = vmatpush2.bf16.msra.mxu0 0
  %155 = vmatprep.subr.bf16.mxu0 0
  %156 = vmatpush2.bf16.msra.mxu0 0
  %157 = vmatprep.subr.bf16.mxu0 0
  %158 = vmatpush2.bf16.msra.mxu0 0
  %159 = vmatprep.subr.bf16.mxu0 0
  %160 = vmatpush2.bf16.msra.mxu0 0
  %161 = vmatprep.subr.bf16.mxu0 0
  %162 = vmatpush2.bf16.msra.mxu0 0
  %163 = vmatprep.subr.bf16.mxu0 0
  %164 = vmatpush2.bf16.msra.mxu0 0
  %165 = vmatprep.subr.bf16.mxu0 0
  %166 = vmatpush2.bf16.msra.mxu0 0
  %167 = vmatprep.subr.bf16.mxu0 0
  %168 = vmatpush2.bf16.msra.mxu0 0
  %169 = vmatprep.mubr.bf16.mxu0 0
  %170 = vmatmul.mubr.bf16.gmra.mxu0 %v108
  %v171 = vpop.f32.mrf.mxu0
  %v172 = vadd.f32 0.0, %v171
  %v173 = vpop.f32.mrf.mxu0
  %v174 = vpop.f32.mrf.mxu0
  %v175 = vadd.f32 0.0, %v174
  %v176 = vpop.f32.mrf.mxu0
  %177 = vmatprep.mubr.bf16.mxu0 0
  %178 = vmatmul.mubr.bf16.gmra.mxu0 %v111
  %v179 = vpop.f32.mrf.mxu0
  %v180 = vadd.f32 0.0, %v179
  %v181 = vpop.f32.mrf.mxu0
  %v182 = vpop.f32.mrf.mxu0
  %v183 = vadd.f32 0.0, %v182
  %v184 = vpop.f32.mrf.mxu0
  %185 = vmatprep.mubr.bf16.mxu0 0
  %186 = vmatmul.mubr.bf16.gmra.mxu0 %v114
  %v187 = vpop.f32.mrf.mxu0
  %v188 = vadd.f32 0.0, %v187
  %v189 = vpop.f32.mrf.mxu0
  %v190 = vpop.f32.mrf.mxu0
  %v191 = vadd.f32 0.0, %v190
  %v192 = vpop.f32.mrf.mxu0
  %193 = vmatprep.mubr.bf16.mxu0 0
  %194 = vmatmul.mubr.bf16.gmra.mxu0 %v117
  %v195 = vpop.f32.mrf.mxu0
  %v196 = vadd.f32 0.0, %v195
  %v197 = vpop.f32.mrf.mxu0
  %v198 = vpop.f32.mrf.mxu0
  %v199 = vadd.f32 0.0, %v198
  %v200 = vpop.f32.mrf.mxu0
  %201 = vmatprep.mubr.bf16.mxu0 0
  %202 = vmatmul.mubr.bf16.gmra.mxu0 %v120
  %v203 = vpop.f32.mrf.mxu0
  %v204 = vadd.f32 0.0, %v203
  %v205 = vpop.f32.mrf.mxu0
  %v206 = vpop.f32.mrf.mxu0
  %v207 = vadd.f32 0.0, %v206
  %v208 = vpop.f32.mrf.mxu0
  %209 = vmatprep.mubr.bf16.mxu0 0
  %210 = vmatmul.mubr.bf16.gmra.mxu0 %v123
  %v211 = vpop.f32.mrf.mxu0
  %v212 = vadd.f32 0.0, %v211
  %v213 = vpop.f32.mrf.mxu0
  %v214 = vpop.f32.mrf.mxu0
  %v215 = vadd.f32 0.0, %v214
  %v216 = vpop.f32.mrf.mxu0
  %217 = vmatprep.mubr.bf16.mxu0 0
  %218 = vmatmul.mubr.bf16.gmra.mxu0 %v126
  %v219 = vpop.f32.mrf.mxu0
  %v220 = vadd.f32 0.0, %v219
  %v221 = vpop.f32.mrf.mxu0
  %v222 = vpop.f32.mrf.mxu0
  %v223 = vadd.f32 0.0, %v222
  %v224 = vpop.f32.mrf.mxu0
  %225 = vmatprep.mubr.bf16.mxu0 0
  %226 = vmatmul.mubr.bf16.gmra.mxu0 %v129
  %v227 = vpop.f32.mrf.mxu0
  %v228 = vadd.f32 0.0, %v227
  %v229 = vpop.f32.mrf.mxu0
  %v230 = vpop.f32.mrf.mxu0
  %v231 = vadd.f32 0.0, %v230
  %v232 = vpop.f32.mrf.mxu0
  %233 = vmatprep.mubr.bf16.mxu0 0
  %234 = vmatmul.mubr.bf16.gmra.mxu0 %v132
  %v235 = vpop.f32.mrf.mxu0
  %v236 = vadd.f32 0.0, %v235
  %v237 = vpop.f32.mrf.mxu0
  %v238 = vpop.f32.mrf.mxu0
  %v239 = vadd.f32 0.0, %v238
  %v240 = vpop.f32.mrf.mxu0
  %241 = vmatprep.mubr.bf16.mxu0 0
  %242 = vmatmul.mubr.bf16.gmra.mxu0 %v135
  %v243 = vpop.f32.mrf.mxu0
  %v244 = vadd.f32 0.0, %v243
  %v245 = vpop.f32.mrf.mxu0
  %v246 = vpop.f32.mrf.mxu0
  %v247 = vadd.f32 0.0, %v246
  %v248 = vpop.f32.mrf.mxu0
  %249 = vdwg.mxu0
  %v250 = vadd.f32 %v50, %v172
  %v251 = vadd.f32 %v51, %v175
  %v252 = vadd.f32 %v52, %v180
  %v253 = vadd.f32 %v53, %v183
  %v254 = vadd.f32 %v54, %v188
  %v255 = vadd.f32 %v55, %v191
  %v256 = vadd.f32 %v56, %v196
  %v257 = vadd.f32 %v57, %v199
  %v258 = vadd.f32 %v58, %v204
  %v259 = vadd.f32 %v59, %v207
  %v260 = vadd.f32 %v60, %v212
  %v261 = vadd.f32 %v61, %v215
  %v262 = vadd.f32 %v62, %v220
  %v263 = vadd.f32 %v63, %v223
  %v264 = vadd.f32 %v64, %v228
  %v265 = vadd.f32 %v65, %v231
  %v266 = vadd.f32 %v66, %v236
  %v267 = vadd.f32 %v67, %v239
  %v268 = vadd.f32 %v68, %v244
  %v269 = vadd.f32 %v69, %v247
  %270 = vst.msk [vmem:[#allocation2] sm:$0xff] %vm106, %v250
  %271 = vst.msk [vmem:[#allocation2 + $0x8] sm:$0xff] %vm106, %v251
  %272 = vst.msk [vmem:[#allocation2 + $0x10] sm:$0xff] %vm106, %v252
  %273 = vst.msk [vmem:[#allocation2 + $0x18] sm:$0xff] %vm106, %v253
  %274 = vst.msk [vmem:[#allocation2 + $0x20] sm:$0xff] %vm106, %v254
  %275 = vst.msk [vmem:[#allocation2 + $0x28] sm:$0xff] %vm106, %v255
  %276 = vst.msk [vmem:[#allocation2 + $0x30] sm:$0xff] %vm106, %v256
  %277 = vst.msk [vmem:[#allocation2 + $0x38] sm:$0xff] %vm106, %v257
  %278 = vst.msk [vmem:[#allocation2 + $0x40] sm:$0xff] %vm106, %v258
  %279 = vst.msk [vmem:[#allocation2 + $0x48] sm:$0xff] %vm106, %v259
  %280 = vst.msk [vmem:[#allocation2 + $0x50] sm:$0xff] %vm106, %v260
  %281 = vst.msk [vmem:[#allocation2 + $0x58] sm:$0xff] %vm106, %v261
  %282 = vst.msk [vmem:[#allocation2 + $0x60] sm:$0xff] %vm106, %v262
  %283 = vst.msk [vmem:[#allocation2 + $0x68] sm:$0xff] %vm106, %v263
  %284 = vst.msk [vmem:[#allocation2 + $0x70] sm:$0xff] %vm106, %v264
  %285 = vst.msk [vmem:[#allocation2 + $0x78] sm:$0xff] %vm106, %v265
  %286 = vst.msk [vmem:[#allocation2 + $0x80] sm:$0xff] %vm106, %v266
  %287 = vst.msk [vmem:[#allocation2 + $0x88] sm:$0xff] %vm106, %v267
  %288 = vst.msk [vmem:[#allocation2 + $0x90] sm:$0xff] %vm106, %v268
  %vm289 = vcmask 259072
  %290 = vst.msk [vmem:[#allocation2 + $0x98] sm:$0x3f] %vm289, %v269
  // Predicated region
  $region30: #{_lambda_.24} parent=0 // pred_check
    %p291 = pneg %p24
  $region31: #{_lambda_.24} parent=0 // pred_check_branch
    %293 = sbr.rel (%p291) target = $region33
  $region32: #{_lambda_.24} parent=0 // pred_region
    %v294 = vld [vmem:[#allocation2] sm:$0xff]
    %v295 = vld [vmem:[#allocation2 + $0x8] sm:$0xff]
    %v296 = vld [vmem:[#allocation2 + $0x10] sm:$0xff]
    %v297 = vld [vmem:[#allocation2 + $0x18] sm:$0xff]
    %v298 = vld [vmem:[#allocation2 + $0x20] sm:$0xff]
    %v299 = vld [vmem:[#allocation2 + $0x28] sm:$0xff]
    %v300 = vld [vmem:[#allocation2 + $0x30] sm:$0xff]
    %v301 = vld [vmem:[#allocation2 + $0x38] sm:$0xff]
    %v302 = vld [vmem:[#allocation2 + $0x40] sm:$0xff]
    %v303 = vld [vmem:[#allocation2 + $0x48] sm:$0xff]
    %v304 = vld [vmem:[#allocation2 + $0x50] sm:$0xff]
    %v305 = vld [vmem:[#allocation2 + $0x58] sm:$0xff]
    %v306 = vld [vmem:[#allocation2 + $0x60] sm:$0xff]
    %v307 = vld [vmem:[#allocation2 + $0x68] sm:$0xff]
    %v308 = vld [vmem:[#allocation2 + $0x70] sm:$0xff]
    %v309 = vld [vmem:[#allocation2 + $0x78] sm:$0xff]
    %v310 = vld [vmem:[#allocation2 + $0x80] sm:$0xff]
    %v311 = vld [vmem:[#allocation2 + $0x88] sm:$0xff]
    %v312 = vld [vmem:[#allocation2 + $0x90] sm:$0xff]
    %v313 = vld [vmem:[#allocation2 + $0x98] sm:$0x3f]
    %v314 = vld [vmem:[%s2] sm:$0x1]
    %v316 = vlaneseq
    %v317 = vshrl.u32 %v316, 7
    %v318 = vsub.s32 0, %v317
    %v319 = vrot.slane %v314, %v318
    %v321 = vadd.f32 %v294, %v319
    %v322 = vadd.f32 %v295, %v319
    %v323 = vadd.f32 %v296, %v319
    %v324 = vadd.f32 %v297, %v319
    %v325 = vadd.f32 %v298, %v319
    %v326 = vadd.f32 %v299, %v319
    %v327 = vadd.f32 %v300, %v319
    %v328 = vadd.f32 %v301, %v319
    %v329 = vadd.f32 %v302, %v319
    %v330 = vadd.f32 %v303, %v319
    %v331 = vadd.f32 %v304, %v319
    %v332 = vadd.f32 %v305, %v319
    %v333 = vadd.f32 %v306, %v319
    %v334 = vadd.f32 %v307, %v319
    %v335 = vadd.f32 %v308, %v319
    %v336 = vadd.f32 %v309, %v319
    %v337 = vadd.f32 %v310, %v319
    %v338 = vadd.f32 %v311, %v319
    %v339 = vadd.f32 %v312, %v319
    %v340 = vadd.f32 %v313, %v319
    %v341 = vld [vmem:[%s3] sm:$0xff]
    %v342 = vld [vmem:[%s3 + $0x8] sm:$0xff]
    %v343 = vld [vmem:[%s3 + $0x10] sm:$0xff]
    %v344 = vld [vmem:[%s3 + $0x18] sm:$0xff]
    %v345 = vld [vmem:[%s3 + $0x20] sm:$0xff]
    %v346 = vld [vmem:[%s3 + $0x28] sm:$0xff]
    %v347 = vld [vmem:[%s3 + $0x30] sm:$0xff]
    %v348 = vld [vmem:[%s3 + $0x38] sm:$0xff]
    %v349 = vld [vmem:[%s3 + $0x40] sm:$0xff]
    %v350 = vld [vmem:[%s3 + $0x48] sm:$0xff]
    %v351 = vld [vmem:[%s3 + $0x50] sm:$0xff]
    %v352 = vld [vmem:[%s3 + $0x58] sm:$0xff]
    %v353 = vld [vmem:[%s3 + $0x60] sm:$0xff]
    %v354 = vld [vmem:[%s3 + $0x68] sm:$0xff]
    %v355 = vld [vmem:[%s3 + $0x70] sm:$0xff]
    %v356 = vld [vmem:[%s3 + $0x78] sm:$0xff]
    %v357 = vld [vmem:[%s3 + $0x80] sm:$0xff]
    %v358 = vld [vmem:[%s3 + $0x88] sm:$0xff]
    %v359 = vld [vmem:[%s3 + $0x90] sm:$0xff]
    %v360 = vld [vmem:[%s3 + $0x98] sm:$0x3f]
    %v361 = vadd.f32 %v321, %v341
    %v362 = vadd.f32 %v322, %v342
    %v363 = vadd.f32 %v323, %v343
    %v364 = vadd.f32 %v324, %v344
    %v365 = vadd.f32 %v325, %v345
    %v366 = vadd.f32 %v326, %v346
    %v367 = vadd.f32 %v327, %v347
    %v368 = vadd.f32 %v328, %v348
    %v369 = vadd.f32 %v329, %v349
    %v370 = vadd.f32 %v330, %v350
    %v371 = vadd.f32 %v331, %v351
    %v372 = vadd.f32 %v332, %v352
    %v373 = vadd.f32 %v333, %v353
    %v374 = vadd.f32 %v334, %v354
    %v375 = vadd.f32 %v335, %v355
    %v376 = vadd.f32 %v336, %v356
    %v377 = vadd.f32 %v337, %v357
    %v378 = vadd.f32 %v338, %v358
    %v379 = vadd.f32 %v339, %v359
    %v380 = vadd.f32 %v340, %v360
    %v381 = vsel %vm106, %v361, 0.0
    %382 = vadd.xlane.f32.xlu0 %v381
    %v383 = vpop.xlane.xlu0 %382
    %v384 = vsel %vm106, %v362, 0.0
    %385 = vadd.xlane.f32.xlu0 %v384
    %v386 = vpop.xlane.xlu0 %385
    %v387 = vsel %vm106, %v363, 0.0
    %388 = vadd.xlane.f32.xlu0 %v387
    %v389 = vpop.xlane.xlu0 %388
    %v390 = vsel %vm106, %v364, 0.0
    %391 = vadd.xlane.f32.xlu0 %v390
    %v392 = vpop.xlane.xlu0 %391
    %v393 = vsel %vm106, %v365, 0.0
    %394 = vadd.xlane.f32.xlu0 %v393
    %v395 = vpop.xlane.xlu0 %394
    %v396 = vsel %vm106, %v366, 0.0
    %397 = vadd.xlane.f32.xlu0 %v396
    %v398 = vpop.xlane.xlu0 %397
    %v399 = vsel %vm106, %v367, 0.0
    %400 = vadd.xlane.f32.xlu0 %v399
    %v401 = vpop.xlane.xlu0 %400
    %v402 = vsel %vm106, %v368, 0.0
    %403 = vadd.xlane.f32.xlu0 %v402
    %v404 = vpop.xlane.xlu0 %403
    %v405 = vsel %vm106, %v369, 0.0
    %406 = vadd.xlane.f32.xlu0 %v405
    %v407 = vpop.xlane.xlu0 %406
    %v408 = vsel %vm106, %v370, 0.0
    %409 = vadd.xlane.f32.xlu0 %v408
    %v410 = vpop.xlane.xlu0 %409
    %v411 = vsel %vm106, %v371, 0.0
    %412 = vadd.xlane.f32.xlu0 %v411
    %v413 = vpop.xlane.xlu0 %412
    %v414 = vsel %vm106, %v372, 0.0
    %415 = vadd.xlane.f32.xlu0 %v414
    %v416 = vpop.xlane.xlu0 %415
    %v417 = vsel %vm106, %v373, 0.0
    %418 = vadd.xlane.f32.xlu0 %v417
    %v419 = vpop.xlane.xlu0 %418
    %v420 = vsel %vm106, %v374, 0.0
    %421 = vadd.xlane.f32.xlu0 %v420
    %v422 = vpop.xlane.xlu0 %421
    %v423 = vsel %vm106, %v375, 0.0
    %424 = vadd.xlane.f32.xlu0 %v423
    %v425 = vpop.xlane.xlu0 %424
    %v426 = vsel %vm106, %v376, 0.0
    %427 = vadd.xlane.f32.xlu0 %v426
    %v428 = vpop.xlane.xlu0 %427
    %v429 = vsel %vm106, %v377, 0.0
    %430 = vadd.xlane.f32.xlu0 %v429
    %v431 = vpop.xlane.xlu0 %430
    %v432 = vsel %vm106, %v378, 0.0
    %433 = vadd.xlane.f32.xlu0 %v432
    %v434 = vpop.xlane.xlu0 %433
    %v435 = vsel %vm106, %v379, 0.0
    %436 = vadd.xlane.f32.xlu0 %v435
    %v437 = vpop.xlane.xlu0 %436
    %v438 = vsel %vm289, %v380, 0.0
    %439 = vadd.xlane.f32.xlu0 %v438
    %v440 = vpop.xlane.xlu0 %439
    %v441 = vrcp.pop 32.0
    %v442 = vmul.f32 %v383, %v441
    %v443 = vmul.f32 %v386, %v441
    %v444 = vmul.f32 %v389, %v441
    %v445 = vmul.f32 %v392, %v441
    %v446 = vmul.f32 %v395, %v441
    %v447 = vmul.f32 %v398, %v441
    %v448 = vmul.f32 %v401, %v441
    %v449 = vmul.f32 %v404, %v441
    %v450 = vmul.f32 %v407, %v441
    %v451 = vmul.f32 %v410, %v441
    %v452 = vmul.f32 %v413, %v441
    %v453 = vmul.f32 %v416, %v441
    %v454 = vmul.f32 %v419, %v441
    %v455 = vmul.f32 %v422, %v441
    %v456 = vmul.f32 %v425, %v441
    %v457 = vmul.f32 %v428, %v441
    %v458 = vmul.f32 %v431, %v441
    %v459 = vmul.f32 %v434, %v441
    %v460 = vmul.f32 %v437, %v441
    %v461 = vmul.f32 %v440, %v441
    %v462 = vsub.f32 %v361, %v442
    %v463 = vsub.f32 %v362, %v443
    %v464 = vsub.f32 %v363, %v444
    %v465 = vsub.f32 %v364, %v445
    %v466 = vsub.f32 %v365, %v446
    %v467 = vsub.f32 %v366, %v447
    %v468 = vsub.f32 %v367, %v448
    %v469 = vsub.f32 %v368, %v449
    %v470 = vsub.f32 %v369, %v450
    %v471 = vsub.f32 %v370, %v451
    %v472 = vsub.f32 %v371, %v452
    %v473 = vsub.f32 %v372, %v453
    %v474 = vsub.f32 %v373, %v454
    %v475 = vsub.f32 %v374, %v455
    %v476 = vsub.f32 %v375, %v456
    %v477 = vsub.f32 %v376, %v457
    %v478 = vsub.f32 %v377, %v458
    %v479 = vsub.f32 %v378, %v459
    %v480 = vsub.f32 %v379, %v460
    %v481 = vsub.f32 %v380, %v461
    %v482 = vmul.f32 %v462, %v462
    %v483 = vmul.f32 %v463, %v463
    %v484 = vmul.f32 %v464, %v464
    %v485 = vmul.f32 %v465, %v465
    %v486 = vmul.f32 %v466, %v466
    %v487 = vmul.f32 %v467, %v467
    %v488 = vmul.f32 %v468, %v468
    %v489 = vmul.f32 %v469, %v469
    %v490 = vmul.f32 %v470, %v470
    %v491 = vmul.f32 %v471, %v471
    %v492 = vmul.f32 %v472, %v472
    %v493 = vmul.f32 %v473, %v473
    %v494 = vmul.f32 %v474, %v474
    %v495 = vmul.f32 %v475, %v475
    %v496 = vmul.f32 %v476, %v476
    %v497 = vmul.f32 %v477, %v477
    %v498 = vmul.f32 %v478, %v478
    %v499 = vmul.f32 %v479, %v479
    %v500 = vmul.f32 %v480, %v480
    %v501 = vmul.f32 %v481, %v481
    %v502 = vsel %vm106, %v482, 0.0
    %503 = vadd.xlane.f32.xlu0 %v502
    %v504 = vpop.xlane.xlu0 %503
    %v505 = vsel %vm106, %v483, 0.0
    %506 = vadd.xlane.f32.xlu0 %v505
    %v507 = vpop.xlane.xlu0 %506
    %v508 = vsel %vm106, %v484, 0.0
    %509 = vadd.xlane.f32.xlu0 %v508
    %v510 = vpop.xlane.xlu0 %509
    %v511 = vsel %vm106, %v485, 0.0
    %512 = vadd.xlane.f32.xlu0 %v511
    %v513 = vpop.xlane.xlu0 %512
    %v514 = vsel %vm106, %v486, 0.0
    %515 = vadd.xlane.f32.xlu0 %v514
    %v516 = vpop.xlane.xlu0 %515
    %v517 = vsel %vm106, %v487, 0.0
    %518 = vadd.xlane.f32.xlu0 %v517
    %v519 = vpop.xlane.xlu0 %518
    %v520 = vsel %vm106, %v488, 0.0
    %521 = vadd.xlane.f32.xlu0 %v520
    %v522 = vpop.xlane.xlu0 %521
    %v523 = vsel %vm106, %v489, 0.0
    %524 = vadd.xlane.f32.xlu0 %v523
    %v525 = vpop.xlane.xlu0 %524
    %v526 = vsel %vm106, %v490, 0.0
    %527 = vadd.xlane.f32.xlu0 %v526
    %v528 = vpop.xlane.xlu0 %527
    %v529 = vsel %vm106, %v491, 0.0
    %530 = vadd.xlane.f32.xlu0 %v529
    %v531 = vpop.xlane.xlu0 %530
    %v532 = vsel %vm106, %v492, 0.0
    %533 = vadd.xlane.f32.xlu0 %v532
    %v534 = vpop.xlane.xlu0 %533
    %v535 = vsel %vm106, %v493, 0.0
    %536 = vadd.xlane.f32.xlu0 %v535
    %v537 = vpop.xlane.xlu0 %536
    %v538 = vsel %vm106, %v494, 0.0
    %539 = vadd.xlane.f32.xlu0 %v538
    %v540 = vpop.xlane.xlu0 %539
    %v541 = vsel %vm106, %v495, 0.0
    %542 = vadd.xlane.f32.xlu0 %v541
    %v543 = vpop.xlane.xlu0 %542
    %v544 = vsel %vm106, %v496, 0.0
    %545 = vadd.xlane.f32.xlu0 %v544
    %v546 = vpop.xlane.xlu0 %545
    %v547 = vsel %vm106, %v497, 0.0
    %548 = vadd.xlane.f32.xlu0 %v547
    %v549 = vpop.xlane.xlu0 %548
    %v550 = vsel %vm106, %v498, 0.0
    %551 = vadd.xlane.f32.xlu0 %v550
    %v552 = vpop.xlane.xlu0 %551
    %v553 = vsel %vm106, %v499, 0.0
    %554 = vadd.xlane.f32.xlu0 %v553
    %v555 = vpop.xlane.xlu0 %554
    %v556 = vsel %vm106, %v500, 0.0
    %557 = vadd.xlane.f32.xlu0 %v556
    %v558 = vpop.xlane.xlu0 %557
    %v559 = vsel %vm289, %v501, 0.0
    %560 = vadd.xlane.f32.xlu0 %v559
    %v561 = vpop.xlane.xlu0 %560
    %v562 = vmul.f32 %v504, %v441
    %v563 = vmul.f32 %v507, %v441
    %v564 = vmul.f32 %v510, %v441
    %v565 = vmul.f32 %v513, %v441
    %v566 = vmul.f32 %v516, %v441
    %v567 = vmul.f32 %v519, %v441
    %v568 = vmul.f32 %v522, %v441
    %v569 = vmul.f32 %v525, %v441
    %v570 = vmul.f32 %v528, %v441
    %v571 = vmul.f32 %v531, %v441
    %v572 = vmul.f32 %v534, %v441
    %v573 = vmul.f32 %v537, %v441
    %v574 = vmul.f32 %v540, %v441
    %v575 = vmul.f32 %v543, %v441
    %v576 = vmul.f32 %v546, %v441
    %v577 = vmul.f32 %v549, %v441
    %v578 = vmul.f32 %v552, %v441
    %v579 = vmul.f32 %v555, %v441
    %v580 = vmul.f32 %v558, %v441
    %v581 = vmul.f32 %v561, %v441
    %v582 = vadd.f32 %v562, 1e-05
    %v583 = vadd.f32 %v563, 1e-05
    %v584 = vadd.f32 %v564, 1e-05
    %v585 = vadd.f32 %v565, 1e-05
    %v586 = vadd.f32 %v566, 1e-05
    %v587 = vadd.f32 %v567, 1e-05
    %v588 = vadd.f32 %v568, 1e-05
    %v589 = vadd.f32 %v569, 1e-05
    %v590 = vadd.f32 %v570, 1e-05
    %v591 = vadd.f32 %v571, 1e-05
    %v592 = vadd.f32 %v572, 1e-05
    %v593 = vadd.f32 %v573, 1e-05
    %v594 = vadd.f32 %v574, 1e-05
    %v595 = vadd.f32 %v575, 1e-05
    %v596 = vadd.f32 %v576, 1e-05
    %v597 = vadd.f32 %v577, 1e-05
    %v598 = vadd.f32 %v578, 1e-05
    %v599 = vadd.f32 %v579, 1e-05
    %v600 = vadd.f32 %v580, 1e-05
    %v601 = vadd.f32 %v581, 1e-05
    %v602 = vrsqrt.pop %v582
    %v603 = vrsqrt.pop %v583
    %v604 = vrsqrt.pop %v584
    %v605 = vrsqrt.pop %v585
    %v606 = vrsqrt.pop %v586
    %v607 = vrsqrt.pop %v587
    %v608 = vrsqrt.pop %v588
    %v609 = vrsqrt.pop %v589
    %v610 = vrsqrt.pop %v590
    %v611 = vrsqrt.pop %v591
    %v612 = vrsqrt.pop %v592
    %v613 = vrsqrt.pop %v593
    %v614 = vrsqrt.pop %v594
    %v615 = vrsqrt.pop %v595
    %v616 = vrsqrt.pop %v596
    %v617 = vrsqrt.pop %v597
    %v618 = vrsqrt.pop %v598
    %v619 = vrsqrt.pop %v599
    %v620 = vrsqrt.pop %v600
    %v621 = vrsqrt.pop %v601
    %v622 = vmul.f32 %v462, %v602
    %v623 = vmul.f32 %v463, %v603
    %v624 = vmul.f32 %v464, %v604
    %v625 = vmul.f32 %v465, %v605
    %v626 = vmul.f32 %v466, %v606
    %v627 = vmul.f32 %v467, %v607
    %v628 = vmul.f32 %v468, %v608
    %v629 = vmul.f32 %v469, %v609
    %v630 = vmul.f32 %v470, %v610
    %v631 = vmul.f32 %v471, %v611
    %v632 = vmul.f32 %v472, %v612
    %v633 = vmul.f32 %v473, %v613
    %v634 = vmul.f32 %v474, %v614
    %v635 = vmul.f32 %v475, %v615
    %v636 = vmul.f32 %v476, %v616
    %v637 = vmul.f32 %v477, %v617
    %v638 = vmul.f32 %v478, %v618
    %v639 = vmul.f32 %v479, %v619
    %v640 = vmul.f32 %v480, %v620
    %v641 = vmul.f32 %v481, %v621
    %v642 = vld [vmem:[%s4] sm:$0x1]
    %v644 = vlaneseq
    %v645 = vshrl.u32 %v644, 7
    %v646 = vsub.s32 0, %v645
    %v647 = vrot.slane %v642, %v646
    %v649 = vmul.f32 %v622, %v647
    %v650 = vmul.f32 %v623, %v647
    %v651 = vmul.f32 %v624, %v647
    %v652 = vmul.f32 %v625, %v647
    %v653 = vmul.f32 %v626, %v647
    %v654 = vmul.f32 %v627, %v647
    %v655 = vmul.f32 %v628, %v647
    %v656 = vmul.f32 %v629, %v647
    %v657 = vmul.f32 %v630, %v647
    %v658 = vmul.f32 %v631, %v647
    %v659 = vmul.f32 %v632, %v647
    %v660 = vmul.f32 %v633, %v647
    %v661 = vmul.f32 %v634, %v647
    %v662 = vmul.f32 %v635, %v647
    %v663 = vmul.f32 %v636, %v647
    %v664 = vmul.f32 %v637, %v647
    %v665 = vmul.f32 %v638, %v647
    %v666 = vmul.f32 %v639, %v647
    %v667 = vmul.f32 %v640, %v647
    %v668 = vmul.f32 %v641, %v647
    %v669 = vld [vmem:[%s5] sm:$0x1]
    %v671 = vlaneseq
    %v672 = vshrl.u32 %v671, 7
    %v673 = vsub.s32 0, %v672
    %v674 = vrot.slane %v669, %v673
    %v676 = vadd.f32 %v649, %v674
    %v677 = vadd.f32 %v650, %v674
    %v678 = vadd.f32 %v651, %v674
    %v679 = vadd.f32 %v652, %v674
    %v680 = vadd.f32 %v653, %v674
    %v681 = vadd.f32 %v654, %v674
    %v682 = vadd.f32 %v655, %v674
    %v683 = vadd.f32 %v656, %v674
    %v684 = vadd.f32 %v657, %v674
    %v685 = vadd.f32 %v658, %v674
    %v686 = vadd.f32 %v659, %v674
    %v687 = vadd.f32 %v660, %v674
    %v688 = vadd.f32 %v661, %v674
    %v689 = vadd.f32 %v662, %v674
    %v690 = vadd.f32 %v663, %v674
    %v691 = vadd.f32 %v664, %v674
    %v692 = vadd.f32 %v665, %v674
    %v693 = vadd.f32 %v666, %v674
    %v694 = vadd.f32 %v667, %v674
    %v695 = vadd.f32 %v668, %v674
    %696 = vst.msk [vmem:[%s6] sm:$0xff] %vm106, %v676
    %697 = vst.msk [vmem:[%s6 + $0x8] sm:$0xff] %vm106, %v677
    %698 = vst.msk [vmem:[%s6 + $0x10] sm:$0xff] %vm106, %v678
    %699 = vst.msk [vmem:[%s6 + $0x18] sm:$0xff] %vm106, %v679
    %700 = vst.msk [vmem:[%s6 + $0x20] sm:$0xff] %vm106, %v680
    %701 = vst.msk [vmem:[%s6 + $0x28] sm:$0xff] %vm106, %v681
    %702 = vst.msk [vmem:[%s6 + $0x30] sm:$0xff] %vm106, %v682
    %703 = vst.msk [vmem:[%s6 + $0x38] sm:$0xff] %vm106, %v683
    %704 = vst.msk [vmem:[%s6 + $0x40] sm:$0xff] %vm106, %v684
    %705 = vst.msk [vmem:[%s6 + $0x48] sm:$0xff] %vm106, %v685
    %706 = vst.msk [vmem:[%s6 + $0x50] sm:$0xff] %vm106, %v686
    %707 = vst.msk [vmem:[%s6 + $0x58] sm:$0xff] %vm106, %v687
    %708 = vst.msk [vmem:[%s6 + $0x60] sm:$0xff] %vm106, %v688
    %709 = vst.msk [vmem:[%s6 + $0x68] sm:$0xff] %vm106, %v689
    %710 = vst.msk [vmem:[%s6 + $0x70] sm:$0xff] %vm106, %v690
    %711 = vst.msk [vmem:[%s6 + $0x78] sm:$0xff] %vm106, %v691
    %712 = vst.msk [vmem:[%s6 + $0x80] sm:$0xff] %vm106, %v692
    %713 = vst.msk [vmem:[%s6 + $0x88] sm:$0xff] %vm106, %v693
    %714 = vst.msk [vmem:[%s6 + $0x90] sm:$0xff] %vm106, %v694
    %715 = vst.msk [vmem:[%s6 + $0x98] sm:$0x3f] %vm289, %v695
  $region33: #{_lambda_.24} parent=0 // pred_fallthru
    _
  // Predicated region
  $region34: #{_lambda_.24} parent=0 // pred_check
    _
  $region35: #{_lambda_.24} parent=0 // pred_check_branch
    %717 = sbr.rel (0) target = $region37
  $region36: #{_lambda_.24} parent=0 // pred_region
    _
  $region37: #{_lambda_.24} parent=0 // pred_fallthru
    _
  // Predicated region
  $region38: #{_lambda_.24} parent=0 // pred_check
    _
  $region39: #{_lambda_.24} parent=0 // pred_check_branch
    %719 = sbr.rel (0) target = $region41
  $region40: #{_lambda_.24} parent=0 // pred_region
    _
  $region41: #{_lambda_.24} parent=0 // pred_fallthru
    _

// kernel: _lambda_.25
$region0: #{_lambda_.25}
  #allocation0 [shape = 'u32[]', space=smem, size = 0x4, offset = 0x4, fixed_abs, tag = 'smem constant byte address 0x4 - core index']
  #allocation1 [shape = 'u32[144,128]{1,0:T(1,128)}', space=vmem, size = 0x12000, scoped, tag = 'internal scratch']
  #allocation2 [shape = 'f32[158,64]{1,0:T(8,128)}', space=vmem, size = 0x14000, scoped, tag = 'scratch operand']
  %s0 = inlined_call_operand.vmem [shape: f32[158,32], index: 0, kind: input, shape index: {}]
  %s1 = inlined_call_operand.vmem [shape: f32[32,64], index: 1, kind: input, shape index: {}]
  %s2 = inlined_call_operand.vmem [shape: f32[1,64], index: 2, kind: input, shape index: {}]
  %s3 = inlined_call_operand.vmem [shape: f32[158,64], index: 3, kind: output, shape index: {}]
  %s4 = sld [smem:[#allocation0]]
  $region30: #{_lambda_.25} parent=0
    _
  %s6 = ssub.s32 1, %s4
  %s7 = scalar_select 0, %s6, %s4
  // Predicated region
  $region2: #{_lambda_.25} parent=0 // pred_check
    _
  $region3: #{_lambda_.25} parent=0 // pred_check_branch
    %9 = sbr.rel (0) target = $region5
  $region4: #{_lambda_.25} parent=0 // pred_region
    _
  $region5: #{_lambda_.25} parent=0 // pred_fallthru
    _
  // Predicated region
  $region6: #{_lambda_.25} parent=0 // pred_check
    _
  $region7: #{_lambda_.25} parent=0 // pred_check_branch
    %11 = sbr.rel (0) target = $region9
  $region8: #{_lambda_.25} parent=0 // pred_region
    _
  $region9: #{_lambda_.25} parent=0 // pred_fallthru
    _
  // Predicated region
  $region10: #{_lambda_.25} parent=0 // pred_check
    _
  $region11: #{_lambda_.25} parent=0 // pred_check_branch
    %13 = sbr.rel (0) target = $region13
  $region12: #{_lambda_.25} parent=0 // pred_region
    _
  $region13: #{_lambda_.25} parent=0 // pred_fallthru
    _
  %p15 = scmp.eq.s32.totalorder 0, 0
  // Predicated region
  $region14: #{_lambda_.25} parent=0 // pred_check
    %p16 = pneg %p15
  $region15: #{_lambda_.25} parent=0 // pred_check_branch
    %18 = sbr.rel (%p16) target = $region17
  $region16: #{_lambda_.25} parent=0 // pred_region
    %vm19 = vcmask 523264
    %20 = vst.msk [vmem:[#allocation2] sm:$0xff] %vm19, 0.0
    %21 = vst.msk [vmem:[#allocation2 + $0x8] sm:$0xff] %vm19, 0.0
    %22 = vst.msk [vmem:[#allocation2 + $0x10] sm:$0xff] %vm19, 0.0
    %23 = vst.msk [vmem:[#allocation2 + $0x18] sm:$0xff] %vm19, 0.0
    %24 = vst.msk [vmem:[#allocation2 + $0x20] sm:$0xff] %vm19, 0.0
    %25 = vst.msk [vmem:[#allocation2 + $0x28] sm:$0xff] %vm19, 0.0
    %26 = vst.msk [vmem:[#allocation2 + $0x30] sm:$0xff] %vm19, 0.0
    %27 = vst.msk [vmem:[#allocation2 + $0x38] sm:$0xff] %vm19, 0.0
    %28 = vst.msk [vmem:[#allocation2 + $0x40] sm:$0xff] %vm19, 0.0
    %29 = vst.msk [vmem:[#allocation2 + $0x48] sm:$0xff] %vm19, 0.0
    %30 = vst.msk [vmem:[#allocation2 + $0x50] sm:$0xff] %vm19, 0.0
    %31 = vst.msk [vmem:[#allocation2 + $0x58] sm:$0xff] %vm19, 0.0
    %32 = vst.msk [vmem:[#allocation2 + $0x60] sm:$0xff] %vm19, 0.0
    %33 = vst.msk [vmem:[#allocation2 + $0x68] sm:$0xff] %vm19, 0.0
    %34 = vst.msk [vmem:[#allocation2 + $0x70] sm:$0xff] %vm19, 0.0
    %35 = vst.msk [vmem:[#allocation2 + $0x78] sm:$0xff] %vm19, 0.0
    %36 = vst.msk [vmem:[#allocation2 + $0x80] sm:$0xff] %vm19, 0.0
    %37 = vst.msk [vmem:[#allocation2 + $0x88] sm:$0xff] %vm19, 0.0
    %38 = vst.msk [vmem:[#allocation2 + $0x90] sm:$0xff] %vm19, 0.0
    %vm39 = vcmask 521216
    %40 = vst.msk [vmem:[#allocation2 + $0x98] sm:$0x3f] %vm39, 0.0
  $region17: #{_lambda_.25} parent=0 // pred_fallthru
    _
  %v41 = vld [vmem:[#allocation2] sm:$0xff]
  %v42 = vld [vmem:[#allocation2 + $0x8] sm:$0xff]
  %v43 = vld [vmem:[#allocation2 + $0x10] sm:$0xff]
  %v44 = vld [vmem:[#allocation2 + $0x18] sm:$0xff]
  %v45 = vld [vmem:[#allocation2 + $0x20] sm:$0xff]
  %v46 = vld [vmem:[#allocation2 + $0x28] sm:$0xff]
  %v47 = vld [vmem:[#allocation2 + $0x30] sm:$0xff]
  %v48 = vld [vmem:[#allocation2 + $0x38] sm:$0xff]
  %v49 = vld [vmem:[#allocation2 + $0x40] sm:$0xff]
  %v50 = vld [vmem:[#allocation2 + $0x48] sm:$0xff]
  %v51 = vld [vmem:[#allocation2 + $0x50] sm:$0xff]
  %v52 = vld [vmem:[#allocation2 + $0x58] sm:$0xff]
  %v53 = vld [vmem:[#allocation2 + $0x60] sm:$0xff]
  %v54 = vld [vmem:[#allocation2 + $0x68] sm:$0xff]
  %v55 = vld [vmem:[#allocation2 + $0x70] sm:$0xff]
  %v56 = vld [vmem:[#allocation2 + $0x78] sm:$0xff]
  %v57 = vld [vmem:[#allocation2 + $0x80] sm:$0xff]
  %v58 = vld [vmem:[#allocation2 + $0x88] sm:$0xff]
  %v59 = vld [vmem:[#allocation2 + $0x90] sm:$0xff]
  %v60 = vld [vmem:[#allocation2 + $0x98] sm:$0x3f]
  %v61 = vld [vmem:[%s0] sm:$0xff]
  %v62 = vld [vmem:[%s0 + $0x8] sm:$0xff]
  %v63 = vld [vmem:[%s0 + $0x10] sm:$0xff]
  %v64 = vld [vmem:[%s0 + $0x18] sm:$0xff]
  %v65 = vld [vmem:[%s0 + $0x20] sm:$0xff]
  %v66 = vld [vmem:[%s0 + $0x28] sm:$0xff]
  %v67 = vld [vmem:[%s0 + $0x30] sm:$0xff]
  %v68 = vld [vmem:[%s0 + $0x38] sm:$0xff]
  %v69 = vld [vmem:[%s0 + $0x40] sm:$0xff]
  %v70 = vld [vmem:[%s0 + $0x48] sm:$0xff]
  %v71 = vld [vmem:[%s0 + $0x50] sm:$0xff]
  %v72 = vld [vmem:[%s0 + $0x58] sm:$0xff]
  %v73 = vld [vmem:[%s0 + $0x60] sm:$0xff]
  %v74 = vld [vmem:[%s0 + $0x68] sm:$0xff]
  %v75 = vld [vmem:[%s0 + $0x70] sm:$0xff]
  %v76 = vld [vmem:[%s0 + $0x78] sm:$0xff]
  %v77 = vld [vmem:[%s0 + $0x80] sm:$0xff]
  %v78 = vld [vmem:[%s0 + $0x88] sm:$0xff]
  %v79 = vld [vmem:[%s0 + $0x90] sm:$0xff]
  %v80 = vld [vmem:[%s0 + $0x98] sm:$0x3f]
  %v81 = vpack.c.bf16 %v62, %v61
  %v82 = vpack.c.bf16 %v64, %v63
  %v83 = vpack.c.bf16 %v66, %v65
  %v84 = vpack.c.bf16 %v68, %v67
  %v85 = vpack.c.bf16 %v70, %v69
  %v86 = vpack.c.bf16 %v72, %v71
  %v87 = vpack.c.bf16 %v74, %v73
  %v88 = vpack.c.bf16 %v76, %v75
  %v89 = vpack.c.bf16 %v78, %v77
  %v90 = vpack.c.bf16 %v80, %v79
  %v91 = vld [vmem:[%s1] sm:$0xff]
  %v92 = vld [vmem:[%s1 + $0x8] sm:$0xff]
  %v93 = vld [vmem:[%s1 + $0x10] sm:$0xff]
  %v94 = vld [vmem:[%s1 + $0x18] sm:$0xff]
  %v95 = vpack.c.bf16 %v92, %v91
  %v96 = vpack.c.bf16 %v94, %v93
  %vm97 = vcmask 261120
  %v99 = vsel %vm97, %v81, 0
  %v102 = vsel %vm97, %v82, 0
  %v105 = vsel %vm97, %v83, 0
  %v108 = vsel %vm97, %v84, 0
  %v111 = vsel %vm97, %v85, 0
  %v114 = vsel %vm97, %v86, 0
  %v117 = vsel %vm97, %v87, 0
  %v120 = vsel %vm97, %v88, 0
  %v123 = vsel %vm97, %v89, 0
  %v126 = vsel %vm97, %v90, 0
  %128 = vmatprep.subr.bf16.mxu0 0
  %129 = vmatpush1.bf16.msra.mxu0 0
  %130 = vmatprep.subr.bf16.mxu0 0
  %131 = vmatpush1.bf16.msra.mxu0 0
  %132 = vmatprep.subr.bf16.mxu0 0
  %133 = vmatpush1.bf16.msra.mxu0 0
  %134 = vmatprep.subr.bf16.mxu0 0
  %135 = vmatpush1.bf16.msra.mxu0 0
  %136 = vmatprep.subr.bf16.mxu0 0
  %137 = vmatpush1.bf16.msra.mxu0 0
  %138 = vmatprep.subr.bf16.mxu0 0
  %139 = vmatpush1.bf16.msra.mxu0 0
  %140 = vmatprep.subr.bf16.mxu0 0
  %141 = vmatpush1.bf16.msra.mxu0 %v96
  %142 = vmatprep.subr.bf16.mxu0 0
  %143 = vmatpush1.bf16.msra.mxu0 %v95
  %144 = vmatprep.subr.bf16.mxu0 0
  %145 = vmatpush2.bf16.msra.mxu0 0
  %146 = vmatprep.subr.bf16.mxu0 0
  %147 = vmatpush2.bf16.msra.mxu0 0
  %148 = vmatprep.subr.bf16.mxu0 0
  %149 = vmatpush2.bf16.msra.mxu0 0
  %150 = vmatprep.subr.bf16.mxu0 0
  %151 = vmatpush2.bf16.msra.mxu0 0
  %152 = vmatprep.subr.bf16.mxu0 0
  %153 = vmatpush2.bf16.msra.mxu0 0
  %154 = vmatprep.subr.bf16.mxu0 0
  %155 = vmatpush2.bf16.msra.mxu0 0
  %156 = vmatprep.subr.bf16.mxu0 0
  %157 = vmatpush2.bf16.msra.mxu0 0
  %158 = vmatprep.subr.bf16.mxu0 0
  %159 = vmatpush2.bf16.msra.mxu0 0
  %160 = vmatprep.mubr.bf16.mxu0 0
  %161 = vmatmul.mubr.bf16.gmra.mxu0 %v99
  %v162 = vpop.f32.mrf.mxu0
  %v163 = vadd.f32 0.0, %v162
  %v164 = vpop.f32.mrf.mxu0
  %v165 = vpop.f32.mrf.mxu0
  %v166 = vadd.f32 0.0, %v165
  %v167 = vpop.f32.mrf.mxu0
  %168 = vmatprep.mubr.bf16.mxu0 0
  %169 = vmatmul.mubr.bf16.gmra.mxu0 %v102
  %v170 = vpop.f32.mrf.mxu0
  %v171 = vadd.f32 0.0, %v170
  %v172 = vpop.f32.mrf.mxu0
  %v173 = vpop.f32.mrf.mxu0
  %v174 = vadd.f32 0.0, %v173
  %v175 = vpop.f32.mrf.mxu0
  %176 = vmatprep.mubr.bf16.mxu0 0
  %177 = vmatmul.mubr.bf16.gmra.mxu0 %v105
  %v178 = vpop.f32.mrf.mxu0
  %v179 = vadd.f32 0.0, %v178
  %v180 = vpop.f32.mrf.mxu0
  %v181 = vpop.f32.mrf.mxu0
  %v182 = vadd.f32 0.0, %v181
  %v183 = vpop.f32.mrf.mxu0
  %184 = vmatprep.mubr.bf16.mxu0 0
  %185 = vmatmul.mubr.bf16.gmra.mxu0 %v108
  %v186 = vpop.f32.mrf.mxu0
  %v187 = vadd.f32 0.0, %v186
  %v188 = vpop.f32.mrf.mxu0
  %v189 = vpop.f32.mrf.mxu0
  %v190 = vadd.f32 0.0, %v189
  %v191 = vpop.f32.mrf.mxu0
  %192 = vmatprep.mubr.bf16.mxu0 0
  %193 = vmatmul.mubr.bf16.gmra.mxu0 %v111
  %v194 = vpop.f32.mrf.mxu0
  %v195 = vadd.f32 0.0, %v194
  %v196 = vpop.f32.mrf.mxu0
  %v197 = vpop.f32.mrf.mxu0
  %v198 = vadd.f32 0.0, %v197
  %v199 = vpop.f32.mrf.mxu0
  %200 = vmatprep.mubr.bf16.mxu0 0
  %201 = vmatmul.mubr.bf16.gmra.mxu0 %v114
  %v202 = vpop.f32.mrf.mxu0
  %v203 = vadd.f32 0.0, %v202
  %v204 = vpop.f32.mrf.mxu0
  %v205 = vpop.f32.mrf.mxu0
  %v206 = vadd.f32 0.0, %v205
  %v207 = vpop.f32.mrf.mxu0
  %208 = vmatprep.mubr.bf16.mxu0 0
  %209 = vmatmul.mubr.bf16.gmra.mxu0 %v117
  %v210 = vpop.f32.mrf.mxu0
  %v211 = vadd.f32 0.0, %v210
  %v212 = vpop.f32.mrf.mxu0
  %v213 = vpop.f32.mrf.mxu0
  %v214 = vadd.f32 0.0, %v213
  %v215 = vpop.f32.mrf.mxu0
  %216 = vmatprep.mubr.bf16.mxu0 0
  %217 = vmatmul.mubr.bf16.gmra.mxu0 %v120
  %v218 = vpop.f32.mrf.mxu0
  %v219 = vadd.f32 0.0, %v218
  %v220 = vpop.f32.mrf.mxu0
  %v221 = vpop.f32.mrf.mxu0
  %v222 = vadd.f32 0.0, %v221
  %v223 = vpop.f32.mrf.mxu0
  %224 = vmatprep.mubr.bf16.mxu0 0
  %225 = vmatmul.mubr.bf16.gmra.mxu0 %v123
  %v226 = vpop.f32.mrf.mxu0
  %v227 = vadd.f32 0.0, %v226
  %v228 = vpop.f32.mrf.mxu0
  %v229 = vpop.f32.mrf.mxu0
  %v230 = vadd.f32 0.0, %v229
  %v231 = vpop.f32.mrf.mxu0
  %232 = vmatprep.mubr.bf16.mxu0 0
  %233 = vmatmul.mubr.bf16.gmra.mxu0 %v126
  %v234 = vpop.f32.mrf.mxu0
  %v235 = vadd.f32 0.0, %v234
  %v236 = vpop.f32.mrf.mxu0
  %v237 = vpop.f32.mrf.mxu0
  %v238 = vadd.f32 0.0, %v237
  %v239 = vpop.f32.mrf.mxu0
  %240 = vdwg.mxu0
  %v241 = vadd.f32 %v41, %v163
  %v242 = vadd.f32 %v42, %v166
  %v243 = vadd.f32 %v43, %v171
  %v244 = vadd.f32 %v44, %v174
  %v245 = vadd.f32 %v45, %v179
  %v246 = vadd.f32 %v46, %v182
  %v247 = vadd.f32 %v47, %v187
  %v248 = vadd.f32 %v48, %v190
  %v249 = vadd.f32 %v49, %v195
  %v250 = vadd.f32 %v50, %v198
  %v251 = vadd.f32 %v51, %v203
  %v252 = vadd.f32 %v52, %v206
  %v253 = vadd.f32 %v53, %v211
  %v254 = vadd.f32 %v54, %v214
  %v255 = vadd.f32 %v55, %v219
  %v256 = vadd.f32 %v56, %v222
  %v257 = vadd.f32 %v57, %v227
  %v258 = vadd.f32 %v58, %v230
  %v259 = vadd.f32 %v59, %v235
  %v260 = vadd.f32 %v60, %v238
  %vm261 = vcmask 523264
  %262 = vst.msk [vmem:[#allocation2] sm:$0xff] %vm261, %v241
  %263 = vst.msk [vmem:[#allocation2 + $0x8] sm:$0xff] %vm261, %v242
  %264 = vst.msk [vmem:[#allocation2 + $0x10] sm:$0xff] %vm261, %v243
  %265 = vst.msk [vmem:[#allocation2 + $0x18] sm:$0xff] %vm261, %v244
  %266 = vst.msk [vmem:[#allocation2 + $0x20] sm:$0xff] %vm261, %v245
  %267 = vst.msk [vmem:[#allocation2 + $0x28] sm:$0xff] %vm261, %v246
  %268 = vst.msk [vmem:[#allocation2 + $0x30] sm:$0xff] %vm261, %v247
  %269 = vst.msk [vmem:[#allocation2 + $0x38] sm:$0xff] %vm261, %v248
  %270 = vst.msk [vmem:[#allocation2 + $0x40] sm:$0xff] %vm261, %v249
  %271 = vst.msk [vmem:[#allocation2 + $0x48] sm:$0xff] %vm261, %v250
  %272 = vst.msk [vmem:[#allocation2 + $0x50] sm:$0xff] %vm261, %v251
  %273 = vst.msk [vmem:[#allocation2 + $0x58] sm:$0xff] %vm261, %v252
  %274 = vst.msk [vmem:[#allocation2 + $0x60] sm:$0xff] %vm261, %v253
  %275 = vst.msk [vmem:[#allocation2 + $0x68] sm:$0xff] %vm261, %v254
  %276 = vst.msk [vmem:[#allocation2 + $0x70] sm:$0xff] %vm261, %v255
  %277 = vst.msk [vmem:[#allocation2 + $0x78] sm:$0xff] %vm261, %v256
  %278 = vst.msk [vmem:[#allocation2 + $0x80] sm:$0xff] %vm261, %v257
  %279 = vst.msk [vmem:[#allocation2 + $0x88] sm:$0xff] %vm261, %v258
  %280 = vst.msk [vmem:[#allocation2 + $0x90] sm:$0xff] %vm261, %v259
  %vm281 = vcmask 521216
  %282 = vst.msk [vmem:[#allocation2 + $0x98] sm:$0x3f] %vm281, %v260
  // Predicated region
  $region18: #{_lambda_.25} parent=0 // pred_check
    %p283 = pneg %p15
  $region19: #{_lambda_.25} parent=0 // pred_check_branch
    %285 = sbr.rel (%p283) target = $region21
  $region20: #{_lambda_.25} parent=0 // pred_region
    %v286 = vld [vmem:[#allocation2] sm:$0xff]
    %v287 = vld [vmem:[#allocation2 + $0x8] sm:$0xff]
    %v288 = vld [vmem:[#allocation2 + $0x10] sm:$0xff]
    %v289 = vld [vmem:[#allocation2 + $0x18] sm:$0xff]
    %v290 = vld [vmem:[#allocation2 + $0x20] sm:$0xff]
    %v291 = vld [vmem:[#allocation2 + $0x28] sm:$0xff]
    %v292 = vld [vmem:[#allocation2 + $0x30] sm:$0xff]
    %v293 = vld [vmem:[#allocation2 + $0x38] sm:$0xff]
    %v294 = vld [vmem:[#allocation2 + $0x40] sm:$0xff]
    %v295 = vld [vmem:[#allocation2 + $0x48] sm:$0xff]
    %v296 = vld [vmem:[#allocation2 + $0x50] sm:$0xff]
    %v297 = vld [vmem:[#allocation2 + $0x58] sm:$0xff]
    %v298 = vld [vmem:[#allocation2 + $0x60] sm:$0xff]
    %v299 = vld [vmem:[#allocation2 + $0x68] sm:$0xff]
    %v300 = vld [vmem:[#allocation2 + $0x70] sm:$0xff]
    %v301 = vld [vmem:[#allocation2 + $0x78] sm:$0xff]
    %v302 = vld [vmem:[#allocation2 + $0x80] sm:$0xff]
    %v303 = vld [vmem:[#allocation2 + $0x88] sm:$0xff]
    %v304 = vld [vmem:[#allocation2 + $0x90] sm:$0xff]
    %v305 = vld [vmem:[#allocation2 + $0x98] sm:$0x3f]
    %v306 = vld [vmem:[%s2] sm:$0x1]
    %v308 = vlaneseq
    %v309 = vshrl.u32 %v308, 7
    %v310 = vsub.s32 0, %v309
    %v311 = vrot.slane %v306, %v310
    %v313 = vadd.f32 %v286, %v311
    %v314 = vadd.f32 %v287, %v311
    %v315 = vadd.f32 %v288, %v311
    %v316 = vadd.f32 %v289, %v311
    %v317 = vadd.f32 %v290, %v311
    %v318 = vadd.f32 %v291, %v311
    %v319 = vadd.f32 %v292, %v311
    %v320 = vadd.f32 %v293, %v311
    %v321 = vadd.f32 %v294, %v311
    %v322 = vadd.f32 %v295, %v311
    %v323 = vadd.f32 %v296, %v311
    %v324 = vadd.f32 %v297, %v311
    %v325 = vadd.f32 %v298, %v311
    %v326 = vadd.f32 %v299, %v311
    %v327 = vadd.f32 %v300, %v311
    %v328 = vadd.f32 %v301, %v311
    %v329 = vadd.f32 %v302, %v311
    %v330 = vadd.f32 %v303, %v311
    %v331 = vadd.f32 %v304, %v311
    %v332 = vadd.f32 %v305, %v311
    %v333 = vmul.f32 %v313, 0.5
    %v334 = vmul.f32 %v314, 0.5
    %v335 = vmul.f32 %v315, 0.5
    %v336 = vmul.f32 %v316, 0.5
    %v337 = vmul.f32 %v317, 0.5
    %v338 = vmul.f32 %v318, 0.5
    %v339 = vmul.f32 %v319, 0.5
    %v340 = vmul.f32 %v320, 0.5
    %v341 = vmul.f32 %v321, 0.5
    %v342 = vmul.f32 %v322, 0.5
    %v343 = vmul.f32 %v323, 0.5
    %v344 = vmul.f32 %v324, 0.5
    %v345 = vmul.f32 %v325, 0.5
    %v346 = vmul.f32 %v326, 0.5
    %v347 = vmul.f32 %v327, 0.5
    %v348 = vmul.f32 %v328, 0.5
    %v349 = vmul.f32 %v329, 0.5
    %v350 = vmul.f32 %v330, 0.5
    %v351 = vmul.f32 %v331, 0.5
    %v352 = vmul.f32 %v332, 0.5
    %v353 = vmul.f32 %v313, 0.044715
    %v354 = vmul.f32 %v314, 0.044715
    %v355 = vmul.f32 %v315, 0.044715
    %v356 = vmul.f32 %v316, 0.044715
    %v357 = vmul.f32 %v317, 0.044715
    %v358 = vmul.f32 %v318, 0.044715
    %v359 = vmul.f32 %v319, 0.044715
    %v360 = vmul.f32 %v320, 0.044715
    %v361 = vmul.f32 %v321, 0.044715
    %v362 = vmul.f32 %v322, 0.044715
    %v363 = vmul.f32 %v323, 0.044715
    %v364 = vmul.f32 %v324, 0.044715
    %v365 = vmul.f32 %v325, 0.044715
    %v366 = vmul.f32 %v326, 0.044715
    %v367 = vmul.f32 %v327, 0.044715
    %v368 = vmul.f32 %v328, 0.044715
    %v369 = vmul.f32 %v329, 0.044715
    %v370 = vmul.f32 %v330, 0.044715
    %v371 = vmul.f32 %v331, 0.044715
    %v372 = vmul.f32 %v332, 0.044715
    %v373 = vmul.f32 %v353, %v313
    %v374 = vmul.f32 %v354, %v314
    %v375 = vmul.f32 %v355, %v315
    %v376 = vmul.f32 %v356, %v316
    %v377 = vmul.f32 %v357, %v317
    %v378 = vmul.f32 %v358, %v318
    %v379 = vmul.f32 %v359, %v319
    %v380 = vmul.f32 %v360, %v320
    %v381 = vmul.f32 %v361, %v321
    %v382 = vmul.f32 %v362, %v322
    %v383 = vmul.f32 %v363, %v323
    %v384 = vmul.f32 %v364, %v324
    %v385 = vmul.f32 %v365, %v325
    %v386 = vmul.f32 %v366, %v326
    %v387 = vmul.f32 %v367, %v327
    %v388 = vmul.f32 %v368, %v328
    %v389 = vmul.f32 %v369, %v329
    %v390 = vmul.f32 %v370, %v330
    %v391 = vmul.f32 %v371, %v331
    %v392 = vmul.f32 %v372, %v332
    %v393 = vmul.f32 %v373, %v313
    %v394 = vmul.f32 %v374, %v314
    %v395 = vmul.f32 %v375, %v315
    %v396 = vmul.f32 %v376, %v316
    %v397 = vmul.f32 %v377, %v317
    %v398 = vmul.f32 %v378, %v318
    %v399 = vmul.f32 %v379, %v319
    %v400 = vmul.f32 %v380, %v320
    %v401 = vmul.f32 %v381, %v321
    %v402 = vmul.f32 %v382, %v322
    %v403 = vmul.f32 %v383, %v323
    %v404 = vmul.f32 %v384, %v324
    %v405 = vmul.f32 %v385, %v325
    %v406 = vmul.f32 %v386, %v326
    %v407 = vmul.f32 %v387, %v327
    %v408 = vmul.f32 %v388, %v328
    %v409 = vmul.f32 %v389, %v329
    %v410 = vmul.f32 %v390, %v330
    %v411 = vmul.f32 %v391, %v331
    %v412 = vmul.f32 %v392, %v332
    %v413 = vadd.f32 %v313, %v393
    %v414 = vadd.f32 %v314, %v394
    %v415 = vadd.f32 %v315, %v395
    %v416 = vadd.f32 %v316, %v396
    %v417 = vadd.f32 %v317, %v397
    %v418 = vadd.f32 %v318, %v398
    %v419 = vadd.f32 %v319, %v399
    %v420 = vadd.f32 %v320, %v400
    %v421 = vadd.f32 %v321, %v401
    %v422 = vadd.f32 %v322, %v402
    %v423 = vadd.f32 %v323, %v403
    %v424 = vadd.f32 %v324, %v404
    %v425 = vadd.f32 %v325, %v405
    %v426 = vadd.f32 %v326, %v406
    %v427 = vadd.f32 %v327, %v407
    %v428 = vadd.f32 %v328, %v408
    %v429 = vadd.f32 %v329, %v409
    %v430 = vadd.f32 %v330, %v410
    %v431 = vadd.f32 %v331, %v411
    %v432 = vadd.f32 %v332, %v412
    %v433 = vmul.f32 %v413, 0.7978846
    %v434 = vmul.f32 %v414, 0.7978846
    %v435 = vmul.f32 %v415, 0.7978846
    %v436 = vmul.f32 %v416, 0.7978846
    %v437 = vmul.f32 %v417, 0.7978846
    %v438 = vmul.f32 %v418, 0.7978846
    %v439 = vmul.f32 %v419, 0.7978846
    %v440 = vmul.f32 %v420, 0.7978846
    %v441 = vmul.f32 %v421, 0.7978846
    %v442 = vmul.f32 %v422, 0.7978846
    %v443 = vmul.f32 %v423, 0.7978846
    %v444 = vmul.f32 %v424, 0.7978846
    %v445 = vmul.f32 %v425, 0.7978846
    %v446 = vmul.f32 %v426, 0.7978846
    %v447 = vmul.f32 %v427, 0.7978846
    %v448 = vmul.f32 %v428, 0.7978846
    %v449 = vmul.f32 %v429, 0.7978846
    %v450 = vmul.f32 %v430, 0.7978846
    %v451 = vmul.f32 %v431, 0.7978846
    %v452 = vmul.f32 %v432, 0.7978846
    %v453 = vtanh.pop %v433
    %v454 = vtanh.pop %v434
    %v455 = vtanh.pop %v435
    %v456 = vtanh.pop %v436
    %v457 = vtanh.pop %v437
    %v458 = vtanh.pop %v438
    %v459 = vtanh.pop %v439
    %v460 = vtanh.pop %v440
    %v461 = vtanh.pop %v441
    %v462 = vtanh.pop %v442
    %v463 = vtanh.pop %v443
    %v464 = vtanh.pop %v444
    %v465 = vtanh.pop %v445
    %v466 = vtanh.pop %v446
    %v467 = vtanh.pop %v447
    %v468 = vtanh.pop %v448
    %v469 = vtanh.pop %v449
    %v470 = vtanh.pop %v450
    %v471 = vtanh.pop %v451
    %v472 = vtanh.pop %v452
    %v473 = vadd.f32 %v453, 1.0
    %v474 = vadd.f32 %v454, 1.0
    %v475 = vadd.f32 %v455, 1.0
    %v476 = vadd.f32 %v456, 1.0
    %v477 = vadd.f32 %v457, 1.0
    %v478 = vadd.f32 %v458, 1.0
    %v479 = vadd.f32 %v459, 1.0
    %v480 = vadd.f32 %v460, 1.0
    %v481 = vadd.f32 %v461, 1.0
    %v482 = vadd.f32 %v462, 1.0
    %v483 = vadd.f32 %v463, 1.0
    %v484 = vadd.f32 %v464, 1.0
    %v485 = vadd.f32 %v465, 1.0
    %v486 = vadd.f32 %v466, 1.0
    %v487 = vadd.f32 %v467, 1.0
    %v488 = vadd.f32 %v468, 1.0
    %v489 = vadd.f32 %v469, 1.0
    %v490 = vadd.f32 %v470, 1.0
    %v491 = vadd.f32 %v471, 1.0
    %v492 = vadd.f32 %v472, 1.0
    %v493 = vmul.f32 %v333, %v473
    %v494 = vmul.f32 %v334, %v474
    %v495 = vmul.f32 %v335, %v475
    %v496 = vmul.f32 %v336, %v476
    %v497 = vmul.f32 %v337, %v477
    %v498 = vmul.f32 %v338, %v478
    %v499 = vmul.f32 %v339, %v479
    %v500 = vmul.f32 %v340, %v480
    %v501 = vmul.f32 %v341, %v481
    %v502 = vmul.f32 %v342, %v482
    %v503 = vmul.f32 %v343, %v483
    %v504 = vmul.f32 %v344, %v484
    %v505 = vmul.f32 %v345, %v485
    %v506 = vmul.f32 %v346, %v486
    %v507 = vmul.f32 %v347, %v487
    %v508 = vmul.f32 %v348, %v488
    %v509 = vmul.f32 %v349, %v489
    %v510 = vmul.f32 %v350, %v490
    %v511 = vmul.f32 %v351, %v491
    %v512 = vmul.f32 %v352, %v492
    %513 = vst.msk [vmem:[%s3] sm:$0xff] %vm261, %v493
    %514 = vst.msk [vmem:[%s3 + $0x8] sm:$0xff] %vm261, %v494
    %515 = vst.msk [vmem:[%s3 + $0x10] sm:$0xff] %vm261, %v495
    %516 = vst.msk [vmem:[%s3 + $0x18] sm:$0xff] %vm261, %v496
    %517 = vst.msk [vmem:[%s3 + $0x20] sm:$0xff] %vm261, %v497
    %518 = vst.msk [vmem:[%s3 + $0x28] sm:$0xff] %vm261, %v498
    %519 = vst.msk [vmem:[%s3 + $0x30] sm:$0xff] %vm261, %v499
    %520 = vst.msk [vmem:[%s3 + $0x38] sm:$0xff] %vm261, %v500
    %521 = vst.msk [vmem:[%s3 + $0x40] sm:$0xff] %vm261, %v501
    %522 = vst.msk [vmem:[%s3 + $0x48] sm:$0xff] %vm261, %v502
    %523 = vst.msk [vmem:[%s3 + $0x50] sm:$0xff] %vm261, %v503
    %524 = vst.msk [vmem:[%s3 + $0x58] sm:$0xff] %vm261, %v504
    %525 = vst.msk [vmem:[%s3 + $0x60] sm:$0xff] %vm261, %v505
    %526 = vst.msk [vmem:[%s3 + $0x68] sm:$0xff] %vm261, %v506
    %527 = vst.msk [vmem:[%s3 + $0x70] sm:$0xff] %vm261, %v507
    %528 = vst.msk [vmem:[%s3 + $0x78] sm:$0xff] %vm261, %v508
    %529 = vst.msk [vmem:[%s3 + $0x80] sm:$0xff] %vm261, %v509
    %530 = vst.msk [vmem:[%s3 + $0x88] sm:$0xff] %vm261, %v510
    %531 = vst.msk [vmem:[%s3 + $0x90] sm:$0xff] %vm261, %v511
    %532 = vst.msk [vmem:[%s3 + $0x98] sm:$0x3f] %vm281, %v512
  $region21: #{_lambda_.25} parent=0 // pred_fallthru
    _
  // Predicated region
  $region22: #{_lambda_.25} parent=0 // pred_check
    _
  $region23: #{_lambda_.25} parent=0 // pred_check_branch
    %534 = sbr.rel (0) target = $region25
  $region24: #{_lambda_.25} parent=0 // pred_region
    _
  $region25: #{_lambda_.25} parent=0 // pred_fallthru
    _
  // Predicated region
  $region26: #{_lambda_.25} parent=0 // pred_check
    _
  $region27: #{_lambda_.25} parent=0 // pred_check_branch
    %536 = sbr.rel (0) target = $region29
  $region28: #{_lambda_.25} parent=0 // pred_region
    _
  $region29: #{_lambda_.25} parent=0 // pred_fallthru
    _

// kernel: _lambda_.26
$region0: #{_lambda_.26}
  #allocation0 [shape = 'u32[]', space=smem, size = 0x4, offset = 0x4, fixed_abs, tag = 'smem constant byte address 0x4 - core index']
  #allocation1 [shape = 'u32[144,128]{1,0:T(1,128)}', space=vmem, size = 0x12000, scoped, tag = 'internal scratch']
  #allocation2 [shape = 'f32[158,32]{1,0:T(8,128)}', space=vmem, size = 0x14000, scoped, tag = 'scratch operand']
  %s0 = inlined_call_operand.vmem [shape: f32[158,64], index: 0, kind: input, shape index: {}]
  %s1 = inlined_call_operand.vmem [shape: f32[64,32], index: 1, kind: input, shape index: {}]
  %s2 = inlined_call_operand.vmem [shape: f32[1,32], index: 2, kind: input, shape index: {}]
  %s3 = inlined_call_operand.vmem [shape: f32[158,32], index: 3, kind: input, shape index: {}]
  %s4 = inlined_call_operand.vmem [shape: f32[1,32], index: 4, kind: input, shape index: {}]
  %s5 = inlined_call_operand.vmem [shape: f32[1,32], index: 5, kind: input, shape index: {}]
  %s6 = inlined_call_operand.vmem [shape: f32[158,32], index: 6, kind: output, shape index: {}]
  %s7 = sld [smem:[#allocation0]]
  $region42: #{_lambda_.26} parent=0
    _
  %s9 = ssub.s32 1, %s7
  %s10 = scalar_select 0, %s9, %s7
  // Predicated region
  $region2: #{_lambda_.26} parent=0 // pred_check
    _
  $region3: #{_lambda_.26} parent=0 // pred_check_branch
    %12 = sbr.rel (0) target = $region5
  $region4: #{_lambda_.26} parent=0 // pred_region
    _
  $region5: #{_lambda_.26} parent=0 // pred_fallthru
    _
  // Predicated region
  $region6: #{_lambda_.26} parent=0 // pred_check
    _
  $region7: #{_lambda_.26} parent=0 // pred_check_branch
    %14 = sbr.rel (0) target = $region9
  $region8: #{_lambda_.26} parent=0 // pred_region
    _
  $region9: #{_lambda_.26} parent=0 // pred_fallthru
    _
  // Predicated region
  $region10: #{_lambda_.26} parent=0 // pred_check
    _
  $region11: #{_lambda_.26} parent=0 // pred_check_branch
    %16 = sbr.rel (0) target = $region13
  $region12: #{_lambda_.26} parent=0 // pred_region
    _
  $region13: #{_lambda_.26} parent=0 // pred_fallthru
    _
  // Predicated region
  $region14: #{_lambda_.26} parent=0 // pred_check
    _
  $region15: #{_lambda_.26} parent=0 // pred_check_branch
    %18 = sbr.rel (0) target = $region17
  $region16: #{_lambda_.26} parent=0 // pred_region
    _
  $region17: #{_lambda_.26} parent=0 // pred_fallthru
    _
  // Predicated region
  $region18: #{_lambda_.26} parent=0 // pred_check
    _
  $region19: #{_lambda_.26} parent=0 // pred_check_branch
    %20 = sbr.rel (0) target = $region21
  $region20: #{_lambda_.26} parent=0 // pred_region
    _
  $region21: #{_lambda_.26} parent=0 // pred_fallthru
    _
  // Predicated region
  $region22: #{_lambda_.26} parent=0 // pred_check
    _
  $region23: #{_lambda_.26} parent=0 // pred_check_branch
    %22 = sbr.rel (0) target = $region25
  $region24: #{_lambda_.26} parent=0 // pred_region
    _
  $region25: #{_lambda_.26} parent=0 // pred_fallthru
    _
  %p24 = scmp.eq.s32.totalorder 0, 0
  // Predicated region
  $region26: #{_lambda_.26} parent=0 // pred_check
    %p25 = pneg %p24
  $region27: #{_lambda_.26} parent=0 // pred_check_branch
    %27 = sbr.rel (%p25) target = $region29
  $region28: #{_lambda_.26} parent=0 // pred_region
    %vm28 = vcmask 261120
    %29 = vst.msk [vmem:[#allocation2] sm:$0xff] %vm28, 0.0
    %30 = vst.msk [vmem:[#allocation2 + $0x8] sm:$0xff] %vm28, 0.0
    %31 = vst.msk [vmem:[#allocation2 + $0x10] sm:$0xff] %vm28, 0.0
    %32 = vst.msk [vmem:[#allocation2 + $0x18] sm:$0xff] %vm28, 0.0
    %33 = vst.msk [vmem:[#allocation2 + $0x20] sm:$0xff] %vm28, 0.0
    %34 = vst.msk [vmem:[#allocation2 + $0x28] sm:$0xff] %vm28, 0.0
    %35 = vst.msk [vmem:[#allocation2 + $0x30] sm:$0xff] %vm28, 0.0
    %36 = vst.msk [vmem:[#allocation2 + $0x38] sm:$0xff] %vm28, 0.0
    %37 = vst.msk [vmem:[#allocation2 + $0x40] sm:$0xff] %vm28, 0.0
    %38 = vst.msk [vmem:[#allocation2 + $0x48] sm:$0xff] %vm28, 0.0
    %39 = vst.msk [vmem:[#allocation2 + $0x50] sm:$0xff] %vm28, 0.0
    %40 = vst.msk [vmem:[#allocation2 + $0x58] sm:$0xff] %vm28, 0.0
    %41 = vst.msk [vmem:[#allocation2 + $0x60] sm:$0xff] %vm28, 0.0
    %42 = vst.msk [vmem:[#allocation2 + $0x68] sm:$0xff] %vm28, 0.0
    %43 = vst.msk [vmem:[#allocation2 + $0x70] sm:$0xff] %vm28, 0.0
    %44 = vst.msk [vmem:[#allocation2 + $0x78] sm:$0xff] %vm28, 0.0
    %45 = vst.msk [vmem:[#allocation2 + $0x80] sm:$0xff] %vm28, 0.0
    %46 = vst.msk [vmem:[#allocation2 + $0x88] sm:$0xff] %vm28, 0.0
    %47 = vst.msk [vmem:[#allocation2 + $0x90] sm:$0xff] %vm28, 0.0
    %vm48 = vcmask 259072
    %49 = vst.msk [vmem:[#allocation2 + $0x98] sm:$0x3f] %vm48, 0.0
  $region29: #{_lambda_.26} parent=0 // pred_fallthru
    _
  %v50 = vld [vmem:[#allocation2] sm:$0xff]
  %v51 = vld [vmem:[#allocation2 + $0x8] sm:$0xff]
  %v52 = vld [vmem:[#allocation2 + $0x10] sm:$0xff]
  %v53 = vld [vmem:[#allocation2 + $0x18] sm:$0xff]
  %v54 = vld [vmem:[#allocation2 + $0x20] sm:$0xff]
  %v55 = vld [vmem:[#allocation2 + $0x28] sm:$0xff]
  %v56 = vld [vmem:[#allocation2 + $0x30] sm:$0xff]
  %v57 = vld [vmem:[#allocation2 + $0x38] sm:$0xff]
  %v58 = vld [vmem:[#allocation2 + $0x40] sm:$0xff]
  %v59 = vld [vmem:[#allocation2 + $0x48] sm:$0xff]
  %v60 = vld [vmem:[#allocation2 + $0x50] sm:$0xff]
  %v61 = vld [vmem:[#allocation2 + $0x58] sm:$0xff]
  %v62 = vld [vmem:[#allocation2 + $0x60] sm:$0xff]
  %v63 = vld [vmem:[#allocation2 + $0x68] sm:$0xff]
  %v64 = vld [vmem:[#allocation2 + $0x70] sm:$0xff]
  %v65 = vld [vmem:[#allocation2 + $0x78] sm:$0xff]
  %v66 = vld [vmem:[#allocation2 + $0x80] sm:$0xff]
  %v67 = vld [vmem:[#allocation2 + $0x88] sm:$0xff]
  %v68 = vld [vmem:[#allocation2 + $0x90] sm:$0xff]
  %v69 = vld [vmem:[#allocation2 + $0x98] sm:$0x3f]
  %v70 = vld [vmem:[%s0] sm:$0xff]
  %v71 = vld [vmem:[%s0 + $0x8] sm:$0xff]
  %v72 = vld [vmem:[%s0 + $0x10] sm:$0xff]
  %v73 = vld [vmem:[%s0 + $0x18] sm:$0xff]
  %v74 = vld [vmem:[%s0 + $0x20] sm:$0xff]
  %v75 = vld [vmem:[%s0 + $0x28] sm:$0xff]
  %v76 = vld [vmem:[%s0 + $0x30] sm:$0xff]
  %v77 = vld [vmem:[%s0 + $0x38] sm:$0xff]
  %v78 = vld [vmem:[%s0 + $0x40] sm:$0xff]
  %v79 = vld [vmem:[%s0 + $0x48] sm:$0xff]
  %v80 = vld [vmem:[%s0 + $0x50] sm:$0xff]
  %v81 = vld [vmem:[%s0 + $0x58] sm:$0xff]
  %v82 = vld [vmem:[%s0 + $0x60] sm:$0xff]
  %v83 = vld [vmem:[%s0 + $0x68] sm:$0xff]
  %v84 = vld [vmem:[%s0 + $0x70] sm:$0xff]
  %v85 = vld [vmem:[%s0 + $0x78] sm:$0xff]
  %v86 = vld [vmem:[%s0 + $0x80] sm:$0xff]
  %v87 = vld [vmem:[%s0 + $0x88] sm:$0xff]
  %v88 = vld [vmem:[%s0 + $0x90] sm:$0xff]
  %v89 = vld [vmem:[%s0 + $0x98] sm:$0x3f]
  %v90 = vpack.c.bf16 %v71, %v70
  %v91 = vpack.c.bf16 %v73, %v72
  %v92 = vpack.c.bf16 %v75, %v74
  %v93 = vpack.c.bf16 %v77, %v76
  %v94 = vpack.c.bf16 %v79, %v78
  %v95 = vpack.c.bf16 %v81, %v80
  %v96 = vpack.c.bf16 %v83, %v82
  %v97 = vpack.c.bf16 %v85, %v84
  %v98 = vpack.c.bf16 %v87, %v86
  %v99 = vpack.c.bf16 %v89, %v88
  %v100 = vld [vmem:[%s1] sm:$0xff]
  %v101 = vld [vmem:[%s1 + $0x8] sm:$0xff]
  %v102 = vld [vmem:[%s1 + $0x10] sm:$0xff]
  %v103 = vld [vmem:[%s1 + $0x18] sm:$0xff]
  %v104 = vld [vmem:[%s1 + $0x20] sm:$0xff]
  %v105 = vld [vmem:[%s1 + $0x28] sm:$0xff]
  %v106 = vld [vmem:[%s1 + $0x30] sm:$0xff]
  %v107 = vld [vmem:[%s1 + $0x38] sm:$0xff]
  %v108 = vpack.c.bf16 %v101, %v100
  %v109 = vpack.c.bf16 %v103, %v102
  %v110 = vpack.c.bf16 %v105, %v104
  %v111 = vpack.c.bf16 %v107, %v106
  %vm112 = vcmask 523264
  %v114 = vsel %vm112, %v90, 0
  %v117 = vsel %vm112, %v91, 0
  %v120 = vsel %vm112, %v92, 0
  %v123 = vsel %vm112, %v93, 0
  %v126 = vsel %vm112, %v94, 0
  %v129 = vsel %vm112, %v95, 0
  %v132 = vsel %vm112, %v96, 0
  %v135 = vsel %vm112, %v97, 0
  %v138 = vsel %vm112, %v98, 0
  %v141 = vsel %vm112, %v99, 0
  %143 = vmatprep.subr.bf16.mxu0 0
  %144 = vmatpush1.bf16.msra.mxu0 0
  %145 = vmatprep.subr.bf16.mxu0 0
  %146 = vmatpush1.bf16.msra.mxu0 0
  %147 = vmatprep.subr.bf16.mxu0 0
  %148 = vmatpush1.bf16.msra.mxu0 0
  %149 = vmatprep.subr.bf16.mxu0 0
  %150 = vmatpush1.bf16.msra.mxu0 0
  %151 = vmatprep.subr.bf16.mxu0 0
  %152 = vmatpush1.bf16.msra.mxu0 %v111
  %153 = vmatprep.subr.bf16.mxu0 0
  %154 = vmatpush1.bf16.msra.mxu0 %v110
  %155 = vmatprep.subr.bf16.mxu0 0
  %156 = vmatpush1.bf16.msra.mxu0 %v109
  %157 = vmatprep.subr.bf16.mxu0 0
  %158 = vmatpush1.bf16.msra.mxu0 %v108
  %159 = vmatprep.subr.bf16.mxu0 0
  %160 = vmatpush2.bf16.msra.mxu0 0
  %161 = vmatprep.subr.bf16.mxu0 0
  %162 = vmatpush2.bf16.msra.mxu0 0
  %163 = vmatprep.subr.bf16.mxu0 0
  %164 = vmatpush2.bf16.msra.mxu0 0
  %165 = vmatprep.subr.bf16.mxu0 0
  %166 = vmatpush2.bf16.msra.mxu0 0
  %167 = vmatprep.subr.bf16.mxu0 0
  %168 = vmatpush2.bf16.msra.mxu0 0
  %169 = vmatprep.subr.bf16.mxu0 0
  %170 = vmatpush2.bf16.msra.mxu0 0
  %171 = vmatprep.subr.bf16.mxu0 0
  %172 = vmatpush2.bf16.msra.mxu0 0
  %173 = vmatprep.subr.bf16.mxu0 0
  %174 = vmatpush2.bf16.msra.mxu0 0
  %175 = vmatprep.mubr.bf16.mxu0 0
  %176 = vmatmul.mubr.bf16.gmra.mxu0 %v114
  %v177 = vpop.f32.mrf.mxu0
  %v178 = vadd.f32 0.0, %v177
  %v179 = vpop.f32.mrf.mxu0
  %v180 = vpop.f32.mrf.mxu0
  %v181 = vadd.f32 0.0, %v180
  %v182 = vpop.f32.mrf.mxu0
  %183 = vmatprep.mubr.bf16.mxu0 0
  %184 = vmatmul.mubr.bf16.gmra.mxu0 %v117
  %v185 = vpop.f32.mrf.mxu0
  %v186 = vadd.f32 0.0, %v185
  %v187 = vpop.f32.mrf.mxu0
  %v188 = vpop.f32.mrf.mxu0
  %v189 = vadd.f32 0.0, %v188
  %v190 = vpop.f32.mrf.mxu0
  %191 = vmatprep.mubr.bf16.mxu0 0
  %192 = vmatmul.mubr.bf16.gmra.mxu0 %v120
  %v193 = vpop.f32.mrf.mxu0
  %v194 = vadd.f32 0.0, %v193
  %v195 = vpop.f32.mrf.mxu0
  %v196 = vpop.f32.mrf.mxu0
  %v197 = vadd.f32 0.0, %v196
  %v198 = vpop.f32.mrf.mxu0
  %199 = vmatprep.mubr.bf16.mxu0 0
  %200 = vmatmul.mubr.bf16.gmra.mxu0 %v123
  %v201 = vpop.f32.mrf.mxu0
  %v202 = vadd.f32 0.0, %v201
  %v203 = vpop.f32.mrf.mxu0
  %v204 = vpop.f32.mrf.mxu0
  %v205 = vadd.f32 0.0, %v204
  %v206 = vpop.f32.mrf.mxu0
  %207 = vmatprep.mubr.bf16.mxu0 0
  %208 = vmatmul.mubr.bf16.gmra.mxu0 %v126
  %v209 = vpop.f32.mrf.mxu0
  %v210 = vadd.f32 0.0, %v209
  %v211 = vpop.f32.mrf.mxu0
  %v212 = vpop.f32.mrf.mxu0
  %v213 = vadd.f32 0.0, %v212
  %v214 = vpop.f32.mrf.mxu0
  %215 = vmatprep.mubr.bf16.mxu0 0
  %216 = vmatmul.mubr.bf16.gmra.mxu0 %v129
  %v217 = vpop.f32.mrf.mxu0
  %v218 = vadd.f32 0.0, %v217
  %v219 = vpop.f32.mrf.mxu0
  %v220 = vpop.f32.mrf.mxu0
  %v221 = vadd.f32 0.0, %v220
  %v222 = vpop.f32.mrf.mxu0
  %223 = vmatprep.mubr.bf16.mxu0 0
  %224 = vmatmul.mubr.bf16.gmra.mxu0 %v132
  %v225 = vpop.f32.mrf.mxu0
  %v226 = vadd.f32 0.0, %v225
  %v227 = vpop.f32.mrf.mxu0
  %v228 = vpop.f32.mrf.mxu0
  %v229 = vadd.f32 0.0, %v228
  %v230 = vpop.f32.mrf.mxu0
  %231 = vmatprep.mubr.bf16.mxu0 0
  %232 = vmatmul.mubr.bf16.gmra.mxu0 %v135
  %v233 = vpop.f32.mrf.mxu0
  %v234 = vadd.f32 0.0, %v233
  %v235 = vpop.f32.mrf.mxu0
  %v236 = vpop.f32.mrf.mxu0
  %v237 = vadd.f32 0.0, %v236
  %v238 = vpop.f32.mrf.mxu0
  %239 = vmatprep.mubr.bf16.mxu0 0
  %240 = vmatmul.mubr.bf16.gmra.mxu0 %v138
  %v241 = vpop.f32.mrf.mxu0
  %v242 = vadd.f32 0.0, %v241
  %v243 = vpop.f32.mrf.mxu0
  %v244 = vpop.f32.mrf.mxu0
  %v245 = vadd.f32 0.0, %v244
  %v246 = vpop.f32.mrf.mxu0
  %247 = vmatprep.mubr.bf16.mxu0 0
  %248 = vmatmul.mubr.bf16.gmra.mxu0 %v141
  %v249 = vpop.f32.mrf.mxu0
  %v250 = vadd.f32 0.0, %v249
  %v251 = vpop.f32.mrf.mxu0
  %v252 = vpop.f32.mrf.mxu0
  %v253 = vadd.f32 0.0, %v252
  %v254 = vpop.f32.mrf.mxu0
  %255 = vdwg.mxu0
  %v256 = vadd.f32 %v50, %v178
  %v257 = vadd.f32 %v51, %v181
  %v258 = vadd.f32 %v52, %v186
  %v259 = vadd.f32 %v53, %v189
  %v260 = vadd.f32 %v54, %v194
  %v261 = vadd.f32 %v55, %v197
  %v262 = vadd.f32 %v56, %v202
  %v263 = vadd.f32 %v57, %v205
  %v264 = vadd.f32 %v58, %v210
  %v265 = vadd.f32 %v59, %v213
  %v266 = vadd.f32 %v60, %v218
  %v267 = vadd.f32 %v61, %v221
  %v268 = vadd.f32 %v62, %v226
  %v269 = vadd.f32 %v63, %v229
  %v270 = vadd.f32 %v64, %v234
  %v271 = vadd.f32 %v65, %v237
  %v272 = vadd.f32 %v66, %v242
  %v273 = vadd.f32 %v67, %v245
  %v274 = vadd.f32 %v68, %v250
  %v275 = vadd.f32 %v69, %v253
  %vm276 = vcmask 261120
  %277 = vst.msk [vmem:[#allocation2] sm:$0xff] %vm276, %v256
  %278 = vst.msk [vmem:[#allocation2 + $0x8] sm:$0xff] %vm276, %v257
  %279 = vst.msk [vmem:[#allocation2 + $0x10] sm:$0xff] %vm276, %v258
  %280 = vst.msk [vmem:[#allocation2 + $0x18] sm:$0xff] %vm276, %v259
  %281 = vst.msk [vmem:[#allocation2 + $0x20] sm:$0xff] %vm276, %v260
  %282 = vst.msk [vmem:[#allocation2 + $0x28] sm:$0xff] %vm276, %v261
  %283 = vst.msk [vmem:[#allocation2 + $0x30] sm:$0xff] %vm276, %v262
  %284 = vst.msk [vmem:[#allocation2 + $0x38] sm:$0xff] %vm276, %v263
  %285 = vst.msk [vmem:[#allocation2 + $0x40] sm:$0xff] %vm276, %v264
  %286 = vst.msk [vmem:[#allocation2 + $0x48] sm:$0xff] %vm276, %v265
  %287 = vst.msk [vmem:[#allocation2 + $0x50] sm:$0xff] %vm276, %v266
  %288 = vst.msk [vmem:[#allocation2 + $0x58] sm:$0xff] %vm276, %v267
  %289 = vst.msk [vmem:[#allocation2 + $0x60] sm:$0xff] %vm276, %v268
  %290 = vst.msk [vmem:[#allocation2 + $0x68] sm:$0xff] %vm276, %v269
  %291 = vst.msk [vmem:[#allocation2 + $0x70] sm:$0xff] %vm276, %v270
  %292 = vst.msk [vmem:[#allocation2 + $0x78] sm:$0xff] %vm276, %v271
  %293 = vst.msk [vmem:[#allocation2 + $0x80] sm:$0xff] %vm276, %v272
  %294 = vst.msk [vmem:[#allocation2 + $0x88] sm:$0xff] %vm276, %v273
  %295 = vst.msk [vmem:[#allocation2 + $0x90] sm:$0xff] %vm276, %v274
  %vm296 = vcmask 259072
  %297 = vst.msk [vmem:[#allocation2 + $0x98] sm:$0x3f] %vm296, %v275
  // Predicated region
  $region30: #{_lambda_.26} parent=0 // pred_check
    %p298 = pneg %p24
  $region31: #{_lambda_.26} parent=0 // pred_check_branch
    %300 = sbr.rel (%p298) target = $region33
  $region32: #{_lambda_.26} parent=0 // pred_region
    %v301 = vld [vmem:[#allocation2] sm:$0xff]
    %v302 = vld [vmem:[#allocation2 + $0x8] sm:$0xff]
    %v303 = vld [vmem:[#allocation2 + $0x10] sm:$0xff]
    %v304 = vld [vmem:[#allocation2 + $0x18] sm:$0xff]
    %v305 = vld [vmem:[#allocation2 + $0x20] sm:$0xff]
    %v306 = vld [vmem:[#allocation2 + $0x28] sm:$0xff]
    %v307 = vld [vmem:[#allocation2 + $0x30] sm:$0xff]
    %v308 = vld [vmem:[#allocation2 + $0x38] sm:$0xff]
    %v309 = vld [vmem:[#allocation2 + $0x40] sm:$0xff]
    %v310 = vld [vmem:[#allocation2 + $0x48] sm:$0xff]
    %v311 = vld [vmem:[#allocation2 + $0x50] sm:$0xff]
    %v312 = vld [vmem:[#allocation2 + $0x58] sm:$0xff]
    %v313 = vld [vmem:[#allocation2 + $0x60] sm:$0xff]
    %v314 = vld [vmem:[#allocation2 + $0x68] sm:$0xff]
    %v315 = vld [vmem:[#allocation2 + $0x70] sm:$0xff]
    %v316 = vld [vmem:[#allocation2 + $0x78] sm:$0xff]
    %v317 = vld [vmem:[#allocation2 + $0x80] sm:$0xff]
    %v318 = vld [vmem:[#allocation2 + $0x88] sm:$0xff]
    %v319 = vld [vmem:[#allocation2 + $0x90] sm:$0xff]
    %v320 = vld [vmem:[#allocation2 + $0x98] sm:$0x3f]
    %v321 = vld [vmem:[%s2] sm:$0x1]
    %v323 = vlaneseq
    %v324 = vshrl.u32 %v323, 7
    %v325 = vsub.s32 0, %v324
    %v326 = vrot.slane %v321, %v325
    %v328 = vadd.f32 %v301, %v326
    %v329 = vadd.f32 %v302, %v326
    %v330 = vadd.f32 %v303, %v326
    %v331 = vadd.f32 %v304, %v326
    %v332 = vadd.f32 %v305, %v326
    %v333 = vadd.f32 %v306, %v326
    %v334 = vadd.f32 %v307, %v326
    %v335 = vadd.f32 %v308, %v326
    %v336 = vadd.f32 %v309, %v326
    %v337 = vadd.f32 %v310, %v326
    %v338 = vadd.f32 %v311, %v326
    %v339 = vadd.f32 %v312, %v326
    %v340 = vadd.f32 %v313, %v326
    %v341 = vadd.f32 %v314, %v326
    %v342 = vadd.f32 %v315, %v326
    %v343 = vadd.f32 %v316, %v326
    %v344 = vadd.f32 %v317, %v326
    %v345 = vadd.f32 %v318, %v326
    %v346 = vadd.f32 %v319, %v326
    %v347 = vadd.f32 %v320, %v326
    %v348 = vld [vmem:[%s3] sm:$0xff]
    %v349 = vld [vmem:[%s3 + $0x8] sm:$0xff]
    %v350 = vld [vmem:[%s3 + $0x10] sm:$0xff]
    %v351 = vld [vmem:[%s3 + $0x18] sm:$0xff]
    %v352 = vld [vmem:[%s3 + $0x20] sm:$0xff]
    %v353 = vld [vmem:[%s3 + $0x28] sm:$0xff]
    %v354 = vld [vmem:[%s3 + $0x30] sm:$0xff]
    %v355 = vld [vmem:[%s3 + $0x38] sm:$0xff]
    %v356 = vld [vmem:[%s3 + $0x40] sm:$0xff]
    %v357 = vld [vmem:[%s3 + $0x48] sm:$0xff]
    %v358 = vld [vmem:[%s3 + $0x50] sm:$0xff]
    %v359 = vld [vmem:[%s3 + $0x58] sm:$0xff]
    %v360 = vld [vmem:[%s3 + $0x60] sm:$0xff]
    %v361 = vld [vmem:[%s3 + $0x68] sm:$0xff]
    %v362 = vld [vmem:[%s3 + $0x70] sm:$0xff]
    %v363 = vld [vmem:[%s3 + $0x78] sm:$0xff]
    %v364 = vld [vmem:[%s3 + $0x80] sm:$0xff]
    %v365 = vld [vmem:[%s3 + $0x88] sm:$0xff]
    %v366 = vld [vmem:[%s3 + $0x90] sm:$0xff]
    %v367 = vld [vmem:[%s3 + $0x98] sm:$0x3f]
    %v368 = vadd.f32 %v328, %v348
    %v369 = vadd.f32 %v329, %v349
    %v370 = vadd.f32 %v330, %v350
    %v371 = vadd.f32 %v331, %v351
    %v372 = vadd.f32 %v332, %v352
    %v373 = vadd.f32 %v333, %v353
    %v374 = vadd.f32 %v334, %v354
    %v375 = vadd.f32 %v335, %v355
    %v376 = vadd.f32 %v336, %v356
    %v377 = vadd.f32 %v337, %v357
    %v378 = vadd.f32 %v338, %v358
    %v379 = vadd.f32 %v339, %v359
    %v380 = vadd.f32 %v340, %v360
    %v381 = vadd.f32 %v341, %v361
    %v382 = vadd.f32 %v342, %v362
    %v383 = vadd.f32 %v343, %v363
    %v384 = vadd.f32 %v344, %v364
    %v385 = vadd.f32 %v345, %v365
    %v386 = vadd.f32 %v346, %v366
    %v387 = vadd.f32 %v347, %v367
    %v388 = vsel %vm276, %v368, 0.0
    %389 = vadd.xlane.f32.xlu0 %v388
    %v390 = vpop.xlane.xlu0 %389
    %v391 = vsel %vm276, %v369, 0.0
    %392 = vadd.xlane.f32.xlu0 %v391
    %v393 = vpop.xlane.xlu0 %392
    %v394 = vsel %vm276, %v370, 0.0
    %395 = vadd.xlane.f32.xlu0 %v394
    %v396 = vpop.xlane.xlu0 %395
    %v397 = vsel %vm276, %v371, 0.0
    %398 = vadd.xlane.f32.xlu0 %v397
    %v399 = vpop.xlane.xlu0 %398
    %v400 = vsel %vm276, %v372, 0.0
    %401 = vadd.xlane.f32.xlu0 %v400
    %v402 = vpop.xlane.xlu0 %401
    %v403 = vsel %vm276, %v373, 0.0
    %404 = vadd.xlane.f32.xlu0 %v403
    %v405 = vpop.xlane.xlu0 %404
    %v406 = vsel %vm276, %v374, 0.0
    %407 = vadd.xlane.f32.xlu0 %v406
    %v408 = vpop.xlane.xlu0 %407
    %v409 = vsel %vm276, %v375, 0.0
    %410 = vadd.xlane.f32.xlu0 %v409
    %v411 = vpop.xlane.xlu0 %410
    %v412 = vsel %vm276, %v376, 0.0
    %413 = vadd.xlane.f32.xlu0 %v412
    %v414 = vpop.xlane.xlu0 %413
    %v415 = vsel %vm276, %v377, 0.0
    %416 = vadd.xlane.f32.xlu0 %v415
    %v417 = vpop.xlane.xlu0 %416
    %v418 = vsel %vm276, %v378, 0.0
    %419 = vadd.xlane.f32.xlu0 %v418
    %v420 = vpop.xlane.xlu0 %419
    %v421 = vsel %vm276, %v379, 0.0
    %422 = vadd.xlane.f32.xlu0 %v421
    %v423 = vpop.xlane.xlu0 %422
    %v424 = vsel %vm276, %v380, 0.0
    %425 = vadd.xlane.f32.xlu0 %v424
    %v426 = vpop.xlane.xlu0 %425
    %v427 = vsel %vm276, %v381, 0.0
    %428 = vadd.xlane.f32.xlu0 %v427
    %v429 = vpop.xlane.xlu0 %428
    %v430 = vsel %vm276, %v382, 0.0
    %431 = vadd.xlane.f32.xlu0 %v430
    %v432 = vpop.xlane.xlu0 %431
    %v433 = vsel %vm276, %v383, 0.0
    %434 = vadd.xlane.f32.xlu0 %v433
    %v435 = vpop.xlane.xlu0 %434
    %v436 = vsel %vm276, %v384, 0.0
    %437 = vadd.xlane.f32.xlu0 %v436
    %v438 = vpop.xlane.xlu0 %437
    %v439 = vsel %vm276, %v385, 0.0
    %440 = vadd.xlane.f32.xlu0 %v439
    %v441 = vpop.xlane.xlu0 %440
    %v442 = vsel %vm276, %v386, 0.0
    %443 = vadd.xlane.f32.xlu0 %v442
    %v444 = vpop.xlane.xlu0 %443
    %v445 = vsel %vm296, %v387, 0.0
    %446 = vadd.xlane.f32.xlu0 %v445
    %v447 = vpop.xlane.xlu0 %446
    %v448 = vrcp.pop 32.0
    %v449 = vmul.f32 %v390, %v448
    %v450 = vmul.f32 %v393, %v448
    %v451 = vmul.f32 %v396, %v448
    %v452 = vmul.f32 %v399, %v448
    %v453 = vmul.f32 %v402, %v448
    %v454 = vmul.f32 %v405, %v448
    %v455 = vmul.f32 %v408, %v448
    %v456 = vmul.f32 %v411, %v448
    %v457 = vmul.f32 %v414, %v448
    %v458 = vmul.f32 %v417, %v448
    %v459 = vmul.f32 %v420, %v448
    %v460 = vmul.f32 %v423, %v448
    %v461 = vmul.f32 %v426, %v448
    %v462 = vmul.f32 %v429, %v448
    %v463 = vmul.f32 %v432, %v448
    %v464 = vmul.f32 %v435, %v448
    %v465 = vmul.f32 %v438, %v448
    %v466 = vmul.f32 %v441, %v448
    %v467 = vmul.f32 %v444, %v448
    %v468 = vmul.f32 %v447, %v448
    %v469 = vsub.f32 %v368, %v449
    %v470 = vsub.f32 %v369, %v450
    %v471 = vsub.f32 %v370, %v451
    %v472 = vsub.f32 %v371, %v452
    %v473 = vsub.f32 %v372, %v453
    %v474 = vsub.f32 %v373, %v454
    %v475 = vsub.f32 %v374, %v455
    %v476 = vsub.f32 %v375, %v456
    %v477 = vsub.f32 %v376, %v457
    %v478 = vsub.f32 %v377, %v458
    %v479 = vsub.f32 %v378, %v459
    %v480 = vsub.f32 %v379, %v460
    %v481 = vsub.f32 %v380, %v461
    %v482 = vsub.f32 %v381, %v462
    %v483 = vsub.f32 %v382, %v463
    %v484 = vsub.f32 %v383, %v464
    %v485 = vsub.f32 %v384, %v465
    %v486 = vsub.f32 %v385, %v466
    %v487 = vsub.f32 %v386, %v467
    %v488 = vsub.f32 %v387, %v468
    %v489 = vmul.f32 %v469, %v469
    %v490 = vmul.f32 %v470, %v470
    %v491 = vmul.f32 %v471, %v471
    %v492 = vmul.f32 %v472, %v472
    %v493 = vmul.f32 %v473, %v473
    %v494 = vmul.f32 %v474, %v474
    %v495 = vmul.f32 %v475, %v475
    %v496 = vmul.f32 %v476, %v476
    %v497 = vmul.f32 %v477, %v477
    %v498 = vmul.f32 %v478, %v478
    %v499 = vmul.f32 %v479, %v479
    %v500 = vmul.f32 %v480, %v480
    %v501 = vmul.f32 %v481, %v481
    %v502 = vmul.f32 %v482, %v482
    %v503 = vmul.f32 %v483, %v483
    %v504 = vmul.f32 %v484, %v484
    %v505 = vmul.f32 %v485, %v485
    %v506 = vmul.f32 %v486, %v486
    %v507 = vmul.f32 %v487, %v487
    %v508 = vmul.f32 %v488, %v488
    %v509 = vsel %vm276, %v489, 0.0
    %510 = vadd.xlane.f32.xlu0 %v509
    %v511 = vpop.xlane.xlu0 %510
    %v512 = vsel %vm276, %v490, 0.0
    %513 = vadd.xlane.f32.xlu0 %v512
    %v514 = vpop.xlane.xlu0 %513
    %v515 = vsel %vm276, %v491, 0.0
    %516 = vadd.xlane.f32.xlu0 %v515
    %v517 = vpop.xlane.xlu0 %516
    %v518 = vsel %vm276, %v492, 0.0
    %519 = vadd.xlane.f32.xlu0 %v518
    %v520 = vpop.xlane.xlu0 %519
    %v521 = vsel %vm276, %v493, 0.0
    %522 = vadd.xlane.f32.xlu0 %v521
    %v523 = vpop.xlane.xlu0 %522
    %v524 = vsel %vm276, %v494, 0.0
    %525 = vadd.xlane.f32.xlu0 %v524
    %v526 = vpop.xlane.xlu0 %525
    %v527 = vsel %vm276, %v495, 0.0
    %528 = vadd.xlane.f32.xlu0 %v527
    %v529 = vpop.xlane.xlu0 %528
    %v530 = vsel %vm276, %v496, 0.0
    %531 = vadd.xlane.f32.xlu0 %v530
    %v532 = vpop.xlane.xlu0 %531
    %v533 = vsel %vm276, %v497, 0.0
    %534 = vadd.xlane.f32.xlu0 %v533
    %v535 = vpop.xlane.xlu0 %534
    %v536 = vsel %vm276, %v498, 0.0
    %537 = vadd.xlane.f32.xlu0 %v536
    %v538 = vpop.xlane.xlu0 %537
    %v539 = vsel %vm276, %v499, 0.0
    %540 = vadd.xlane.f32.xlu0 %v539
    %v541 = vpop.xlane.xlu0 %540
    %v542 = vsel %vm276, %v500, 0.0
    %543 = vadd.xlane.f32.xlu0 %v542
    %v544 = vpop.xlane.xlu0 %543
    %v545 = vsel %vm276, %v501, 0.0
    %546 = vadd.xlane.f32.xlu0 %v545
    %v547 = vpop.xlane.xlu0 %546
    %v548 = vsel %vm276, %v502, 0.0
    %549 = vadd.xlane.f32.xlu0 %v548
    %v550 = vpop.xlane.xlu0 %549
    %v551 = vsel %vm276, %v503, 0.0
    %552 = vadd.xlane.f32.xlu0 %v551
    %v553 = vpop.xlane.xlu0 %552
    %v554 = vsel %vm276, %v504, 0.0
    %555 = vadd.xlane.f32.xlu0 %v554
    %v556 = vpop.xlane.xlu0 %555
    %v557 = vsel %vm276, %v505, 0.0
    %558 = vadd.xlane.f32.xlu0 %v557
    %v559 = vpop.xlane.xlu0 %558
    %v560 = vsel %vm276, %v506, 0.0
    %561 = vadd.xlane.f32.xlu0 %v560
    %v562 = vpop.xlane.xlu0 %561
    %v563 = vsel %vm276, %v507, 0.0
    %564 = vadd.xlane.f32.xlu0 %v563
    %v565 = vpop.xlane.xlu0 %564
    %v566 = vsel %vm296, %v508, 0.0
    %567 = vadd.xlane.f32.xlu0 %v566
    %v568 = vpop.xlane.xlu0 %567
    %v569 = vmul.f32 %v511, %v448
    %v570 = vmul.f32 %v514, %v448
    %v571 = vmul.f32 %v517, %v448
    %v572 = vmul.f32 %v520, %v448
    %v573 = vmul.f32 %v523, %v448
    %v574 = vmul.f32 %v526, %v448
    %v575 = vmul.f32 %v529, %v448
    %v576 = vmul.f32 %v532, %v448
    %v577 = vmul.f32 %v535, %v448
    %v578 = vmul.f32 %v538, %v448
    %v579 = vmul.f32 %v541, %v448
    %v580 = vmul.f32 %v544, %v448
    %v581 = vmul.f32 %v547, %v448
    %v582 = vmul.f32 %v550, %v448
    %v583 = vmul.f32 %v553, %v448
    %v584 = vmul.f32 %v556, %v448
    %v585 = vmul.f32 %v559, %v448
    %v586 = vmul.f32 %v562, %v448
    %v587 = vmul.f32 %v565, %v448
    %v588 = vmul.f32 %v568, %v448
    %v589 = vadd.f32 %v569, 1e-05
    %v590 = vadd.f32 %v570, 1e-05
    %v591 = vadd.f32 %v571, 1e-05
    %v592 = vadd.f32 %v572, 1e-05
    %v593 = vadd.f32 %v573, 1e-05
    %v594 = vadd.f32 %v574, 1e-05
    %v595 = vadd.f32 %v575, 1e-05
    %v596 = vadd.f32 %v576, 1e-05
    %v597 = vadd.f32 %v577, 1e-05
    %v598 = vadd.f32 %v578, 1e-05
    %v599 = vadd.f32 %v579, 1e-05
    %v600 = vadd.f32 %v580, 1e-05
    %v601 = vadd.f32 %v581, 1e-05
    %v602 = vadd.f32 %v582, 1e-05
    %v603 = vadd.f32 %v583, 1e-05
    %v604 = vadd.f32 %v584, 1e-05
    %v605 = vadd.f32 %v585, 1e-05
    %v606 = vadd.f32 %v586, 1e-05
    %v607 = vadd.f32 %v587, 1e-05
    %v608 = vadd.f32 %v588, 1e-05
    %v609 = vrsqrt.pop %v589
    %v610 = vrsqrt.pop %v590
    %v611 = vrsqrt.pop %v591
    %v612 = vrsqrt.pop %v592
    %v613 = vrsqrt.pop %v593
    %v614 = vrsqrt.pop %v594
    %v615 = vrsqrt.pop %v595
    %v616 = vrsqrt.pop %v596
    %v617 = vrsqrt.pop %v597
    %v618 = vrsqrt.pop %v598
    %v619 = vrsqrt.pop %v599
    %v620 = vrsqrt.pop %v600
    %v621 = vrsqrt.pop %v601
    %v622 = vrsqrt.pop %v602
    %v623 = vrsqrt.pop %v603
    %v624 = vrsqrt.pop %v604
    %v625 = vrsqrt.pop %v605
    %v626 = vrsqrt.pop %v606
    %v627 = vrsqrt.pop %v607
    %v628 = vrsqrt.pop %v608
    %v629 = vmul.f32 %v469, %v609
    %v630 = vmul.f32 %v470, %v610
    %v631 = vmul.f32 %v471, %v611
    %v632 = vmul.f32 %v472, %v612
    %v633 = vmul.f32 %v473, %v613
    %v634 = vmul.f32 %v474, %v614
    %v635 = vmul.f32 %v475, %v615
    %v636 = vmul.f32 %v476, %v616
    %v637 = vmul.f32 %v477, %v617
    %v638 = vmul.f32 %v478, %v618
    %v639 = vmul.f32 %v479, %v619
    %v640 = vmul.f32 %v480, %v620
    %v641 = vmul.f32 %v481, %v621
    %v642 = vmul.f32 %v482, %v622
    %v643 = vmul.f32 %v483, %v623
    %v644 = vmul.f32 %v484, %v624
    %v645 = vmul.f32 %v485, %v625
    %v646 = vmul.f32 %v486, %v626
    %v647 = vmul.f32 %v487, %v627
    %v648 = vmul.f32 %v488, %v628
    %v649 = vld [vmem:[%s4] sm:$0x1]
    %v651 = vlaneseq
    %v652 = vshrl.u32 %v651, 7
    %v653 = vsub.s32 0, %v652
    %v654 = vrot.slane %v649, %v653
    %v656 = vmul.f32 %v629, %v654
    %v657 = vmul.f32 %v630, %v654
    %v658 = vmul.f32 %v631, %v654
    %v659 = vmul.f32 %v632, %v654
    %v660 = vmul.f32 %v633, %v654
    %v661 = vmul.f32 %v634, %v654
    %v662 = vmul.f32 %v635, %v654
    %v663 = vmul.f32 %v636, %v654
    %v664 = vmul.f32 %v637, %v654
    %v665 = vmul.f32 %v638, %v654
    %v666 = vmul.f32 %v639, %v654
    %v667 = vmul.f32 %v640, %v654
    %v668 = vmul.f32 %v641, %v654
    %v669 = vmul.f32 %v642, %v654
    %v670 = vmul.f32 %v643, %v654
    %v671 = vmul.f32 %v644, %v654
    %v672 = vmul.f32 %v645, %v654
    %v673 = vmul.f32 %v646, %v654
    %v674 = vmul.f32 %v647, %v654
    %v675 = vmul.f32 %v648, %v654
    %v676 = vld [vmem:[%s5] sm:$0x1]
    %v678 = vlaneseq
    %v679 = vshrl.u32 %v678, 7
    %v680 = vsub.s32 0, %v679
    %v681 = vrot.slane %v676, %v680
    %v683 = vadd.f32 %v656, %v681
    %v684 = vadd.f32 %v657, %v681
    %v685 = vadd.f32 %v658, %v681
    %v686 = vadd.f32 %v659, %v681
    %v687 = vadd.f32 %v660, %v681
    %v688 = vadd.f32 %v661, %v681
    %v689 = vadd.f32 %v662, %v681
    %v690 = vadd.f32 %v663, %v681
    %v691 = vadd.f32 %v664, %v681
    %v692 = vadd.f32 %v665, %v681
    %v693 = vadd.f32 %v666, %v681
    %v694 = vadd.f32 %v667, %v681
    %v695 = vadd.f32 %v668, %v681
    %v696 = vadd.f32 %v669, %v681
    %v697 = vadd.f32 %v670, %v681
    %v698 = vadd.f32 %v671, %v681
    %v699 = vadd.f32 %v672, %v681
    %v700 = vadd.f32 %v673, %v681
    %v701 = vadd.f32 %v674, %v681
    %v702 = vadd.f32 %v675, %v681
    %703 = vst.msk [vmem:[%s6] sm:$0xff] %vm276, %v683
    %704 = vst.msk [vmem:[%s6 + $0x8] sm:$0xff] %vm276, %v684
    %705 = vst.msk [vmem:[%s6 + $0x10] sm:$0xff] %vm276, %v685
    %706 = vst.msk [vmem:[%s6 + $0x18] sm:$0xff] %vm276, %v686
    %707 = vst.msk [vmem:[%s6 + $0x20] sm:$0xff] %vm276, %v687
    %708 = vst.msk [vmem:[%s6 + $0x28] sm:$0xff] %vm276, %v688
    %709 = vst.msk [vmem:[%s6 + $0x30] sm:$0xff] %vm276, %v689
    %710 = vst.msk [vmem:[%s6 + $0x38] sm:$0xff] %vm276, %v690
    %711 = vst.msk [vmem:[%s6 + $0x40] sm:$0xff] %vm276, %v691
    %712 = vst.msk [vmem:[%s6 + $0x48] sm:$0xff] %vm276, %v692
    %713 = vst.msk [vmem:[%s6 + $0x50] sm:$0xff] %vm276, %v693
    %714 = vst.msk [vmem:[%s6 + $0x58] sm:$0xff] %vm276, %v694
    %715 = vst.msk [vmem:[%s6 + $0x60] sm:$0xff] %vm276, %v695
    %716 = vst.msk [vmem:[%s6 + $0x68] sm:$0xff] %vm276, %v696
    %717 = vst.msk [vmem:[%s6 + $0x70] sm:$0xff] %vm276, %v697
    %718 = vst.msk [vmem:[%s6 + $0x78] sm:$0xff] %vm276, %v698
    %719 = vst.msk [vmem:[%s6 + $0x80] sm:$0xff] %vm276, %v699
    %720 = vst.msk [vmem:[%s6 + $0x88] sm:$0xff] %vm276, %v700
    %721 = vst.msk [vmem:[%s6 + $0x90] sm:$0xff] %vm276, %v701
    %722 = vst.msk [vmem:[%s6 + $0x98] sm:$0x3f] %vm296, %v702
  $region33: #{_lambda_.26} parent=0 // pred_fallthru
    _
  // Predicated region
  $region34: #{_lambda_.26} parent=0 // pred_check
    _
  $region35: #{_lambda_.26} parent=0 // pred_check_branch
    %724 = sbr.rel (0) target = $region37
  $region36: #{_lambda_.26} parent=0 // pred_region
    _
  $region37: #{_lambda_.26} parent=0 // pred_fallthru
    _
  // Predicated region
  $region38: #{_lambda_.26} parent=0 // pred_check
    _
  $region39: #{_lambda_.26} parent=0 // pred_check_branch
    %726 = sbr.rel (0) target = $region41
  $region40: #{_lambda_.26} parent=0 // pred_region
    _
  $region41: #{_lambda_.26} parent=0 // pred_fallthru
    _

</llo_original>
